<compile_context>
chip_gen: v7x
topology: tpu7x:2x2x1
jax: 0.10.0
libtpu: 0.0.40
codegen_flags: <defaults>
</compile_context>

<pallas_src>
import functools

import jax
import jax.numpy as jnp
from jax import lax
from jax.experimental import pallas as pl
from jax.experimental.pallas import tpu as pltpu


def _round_up(n, m):
    return (n + m - 1) // m * m


def _pick_batch_block(batch, hw, target_rows=256):
    """Smallest divisor of `batch` giving >= target_rows matmul rows."""
    want = max(1, -(-target_rows // hw))
    if want >= batch:
        return batch
    for bb in range(want, batch + 1):
        if batch % bb == 0:
            return bb
    return batch


def _vmem_limit_bytes(bb, h, w, wp, cp):
    """Explicit scoped-VMEM budget sized from the actual footprint."""
    bf16, f32 = 2, 4
    act_block = bb * h * w * cp * bf16          # one x / out block (bf16)
    weights = 2 * 9 * cp * cp * bf16            # w1 + w2 (bf16)
    scratch = bb * (h + 2) * wp * cp * f32      # halo scratch (f32)
    temps = 6 * bb * h * wp * cp * f32          # acc / matmul results / y
    need = 2 * 2 * act_block + 2 * weights + scratch + temps + (2 << 20)
    cap = 128 << 20
    try:
        cap = pltpu.get_tpu_info().vmem_capacity_bytes
    except Exception:
        pass
    return int(min(max(need, 32 << 20), (cap * 3) // 4))


def _make_resnet_block_kernel(Bb, H, W, Wp, Cp):
    """Kernel for one (Bb, H, W, Cp) activation block."""

    def kernel(x_ref, w1_ref, w2_ref, s1_ref, b1_ref, s2_ref, b2_ref,
               out_ref, pad_ref):
        # x_ref:   (Bb, H, W, Cp)    bf16
        # w*_ref:  (9, Cp, Cp)       bf16  (tap-major: kh*3+kw, cin, cout)
        # s*/b*:   (1, Cp)           f32   (folded BN scale / shift)
        # out_ref: (Bb, H, W, Cp)    bf16
        # pad_ref: (Bb, H+2, Wp, Cp) f32 scratch (1-pixel halo, Wp >= W+2)
        f32 = jnp.float32

        # --- zero only the 1-pixel halo border (interior is overwritten) ----
        pad_ref[:, 0:1, :, :] = jnp.zeros((Bb, 1, Wp, Cp), f32)
        pad_ref[:, H + 1:H + 2, :, :] = jnp.zeros((Bb, 1, Wp, Cp), f32)
        pad_ref[:, :, 0:1, :] = jnp.zeros((Bb, H + 2, 1, Cp), f32)
        pad_ref[:, :, W + 1:Wp, :] = jnp.zeros((Bb, H + 2, Wp - W - 1, Cp), f32)

        def conv3x3(w_ref):
            # 9 per-tap (Cp x Cp) matmuls, f32 accumulation.  LHS per dh is a
            # contiguous full-width slice (cast to bf16 once); the dw shift is
            # taken on the f32 result, never on the operand.
            acc = None
            for dh in range(3):
                lhs = pad_ref[:, dh:dh + H, :, :].reshape(Bb * H * Wp, Cp)
                lhs = lhs.astype(jnp.bfloat16)
                for dw in range(3):
                    r = jnp.dot(lhs, w_ref[dh * 3 + dw],
                                preferred_element_type=jnp.float32)
                    r = r.reshape(Bb, H, Wp, Cp)[:, :, dw:dw + W, :]
                    acc = r if acc is None else acc + r
            return acc                               # (Bb, H, W, Cp) f32

        x32 = x_ref[...].astype(f32)                 # identity, f32

        # ---- conv1 (3x3, stride 1, pad 1, no bias) + bn1 (folded) + ReLU ----
        pad_ref[:, 1:H + 1, 1:W + 1, :] = x32
        s1 = s1_ref[...].reshape(1, 1, 1, Cp)
        b1 = b1_ref[...].reshape(1, 1, 1, Cp)
        y = jnp.maximum(conv3x3(w1_ref) * s1 + b1, 0.0)

        # ---- conv2 + bn2 (folded) + residual add + ReLU ----
        pad_ref[:, 1:H + 1, 1:W + 1, :] = y
        s2 = s2_ref[...].reshape(1, 1, 1, Cp)
        b2 = b2_ref[...].reshape(1, 1, 1, Cp)
        z = conv3x3(w2_ref) * s2 + b2

        out_ref[...] = jnp.maximum(z + x32, 0.0).astype(out_ref.dtype)

    return kernel


def _fold_bn(g, b, m, v, eps, C, Cp):
    s = g.astype(jnp.float32) / jnp.sqrt(v.astype(jnp.float32) + eps)
    sh = b.astype(jnp.float32) - m.astype(jnp.float32) * s
    if Cp != C:
        s = jnp.pad(s, (0, Cp - C))
        sh = jnp.pad(sh, (0, Cp - C))
    return s.reshape(1, Cp), sh.reshape(1, Cp)


def _prep_w(w_oihw, C, Cp):
    # OIHW -> (kh, kw, cin, cout) -> (9, C, C) -> channel-pad -> bf16.
    w = jnp.transpose(w_oihw, (2, 3, 1, 0)).reshape(9, C, C)
    if Cp != C:
        # NOTE: for C=64 this doubles the contraction K; a dense-K (trimmed
        # cin) variant is a further optimization not taken here.
        w = jnp.pad(w, ((0, 0), (0, Cp - C), (0, Cp - C)))
    return w.astype(jnp.bfloat16)


def resnet_block_forward_nhwc(x_nhwc, w1_oihw, w2_oihw, bn1, bn2, eps=1e-5):
    """Pallas forward of ResNetBlock, NHWC activations (stride=1, no downsample)."""
    B, H, W, C = x_nhwc.shape
    Cp = max(128, _round_up(C, 128))     # lane-dense channel dimension
    Wp = _round_up(W + 2, 8)             # sublane-aligned halo width
    Bb = _pick_batch_block(B, H * W)     # images per grid step (M >= 256)

    # TODO(synk): training-mode BatchNorm (batch statistics) not implemented;
    # eval-mode (running-stats) semantics are used.
    s1, sh1 = _fold_bn(*bn1, eps, C, Cp)
    s2, sh2 = _fold_bn(*bn2, eps, C, Cp)
    w1 = _prep_w(w1_oihw, C, Cp)
    w2 = _prep_w(w2_oihw, C, Cp)

    x_in = x_nhwc.astype(jnp.bfloat16)
    if Cp != C:
        x_in = jnp.pad(x_in, ((0, 0), (0, 0), (0, 0), (0, Cp - C)))

    kernel = _make_resnet_block_kernel(Bb, H, W, Wp, Cp)
    out = pl.pallas_call(
        kernel,
        out_shape=jax.ShapeDtypeStruct((B, H, W, Cp), jnp.bfloat16),
        grid_spec=pltpu.PrefetchScalarGridSpec(
            num_scalar_prefetch=0,
            grid=(B // Bb,),
            in_specs=[
                pl.BlockSpec((Bb, H, W, Cp), lambda b: (b, 0, 0, 0)),
                # Constant-index weight blocks (fetched once across the grid).
                pl.BlockSpec((9, Cp, Cp), lambda b: (0, 0, 0)),
                pl.BlockSpec((9, Cp, Cp), lambda b: (0, 0, 0)),
                pl.BlockSpec((1, Cp), lambda b: (0, 0)),
                pl.BlockSpec((1, Cp), lambda b: (0, 0)),
                pl.BlockSpec((1, Cp), lambda b: (0, 0)),
                pl.BlockSpec((1, Cp), lambda b: (0, 0)),
            ],
            out_specs=pl.BlockSpec((Bb, H, W, Cp), lambda b: (b, 0, 0, 0)),
            scratch_shapes=[pltpu.VMEM((Bb, H + 2, Wp, Cp), jnp.float32)],
        ),
        compiler_params=pltpu.CompilerParams(
            dimension_semantics=("parallel",),
            vmem_limit_bytes=_vmem_limit_bytes(Bb, H, W, Wp, Cp)),
    )(x_in, w1, w2, s1, sh1, s2, sh2)

    if Cp != C:
        out = out[..., :C]
    return out.astype(jnp.float32)


def resnet_block_forward(x_nchw, w1_oihw, w2_oihw, bn1, bn2, eps=1e-5):
    """PyTorch-layout (NCHW) wrapper around the NHWC Pallas forward."""
    x_nhwc = jnp.transpose(x_nchw, (0, 2, 3, 1))
    out = resnet_block_forward_nhwc(x_nhwc, w1_oihw, w2_oihw, bn1, bn2, eps)
    return jnp.transpose(out, (0, 3, 1, 2))


def resnet_block_reference(x, w1, w2, bn1, bn2, eps=1e-5,
                           match_kernel_bf16=False):
    """Pure-JAX reference (mirrors the PyTorch forward, eval-mode BN).

    match_kernel_bf16=True quantizes operands at exactly the points the Pallas
    kernel does (x, weights, conv2 input, final output) with f32 accumulation,
    isolating indexing/BN/residual correctness from bf16 rounding.
    """
    f32 = jnp.float32
    q = ((lambda a: a.astype(jnp.bfloat16)) if match_kernel_bf16
         else (lambda a: a.astype(f32)))

    def bn(y, g, b, m, v):
        inv = 1.0 / jnp.sqrt(v.astype(f32) + eps)
        return ((y - m.astype(f32)[None, :, None, None])
                * (g.astype(f32) * inv)[None, :, None, None]
                + b.astype(f32)[None, :, None, None])

    dn = ('NCHW', 'OIHW', 'NCHW')

    def conv(a, w):
        return lax.conv_general_dilated(a, w, (1, 1), ((1, 1), (1, 1)),
                                        dimension_numbers=dn,
                                        preferred_element_type=f32,
                                        precision=lax.Precision.HIGHEST)

    xq = q(x)
    y = jnp.maximum(bn(conv(xq, q(w1)), *bn1), 0.0)
    z = bn(conv(q(y), q(w2)), *bn2)
    out = jnp.maximum(z + xq.astype(f32), 0.0)
    if match_kernel_bf16:
        out = out.astype(jnp.bfloat16)
    return out.astype(f32)


if __name__ == "__main__":
    B, C, H, W = 2, 4, 16, 16  # in_channels == out_channels, stride=1
    key = jax.random.PRNGKey(0)
    kx, kw1, kw2, kg1, kb1, km1, kv1, kg2, kb2, km2, kv2 = jax.random.split(key, 11)

    x = jax.random.normal(kx, (B, C, H, W), dtype=jnp.float32)
    w1 = jax.random.normal(kw1, (C, C, 3, 3), dtype=jnp.float32) * 0.2
    w2 = jax.random.normal(kw2, (C, C, 3, 3), dtype=jnp.float32) * 0.2

    bn1 = (jax.random.uniform(kg1, (C,), minval=0.5, maxval=1.5),
           jax.random.normal(kb1, (C,)) * 0.1,
           jax.random.normal(km1, (C,)) * 0.1,
           jax.random.uniform(kv1, (C,), minval=0.5, maxval=1.5))
    bn2 = (jax.random.uniform(kg2, (C,), minval=0.5, maxval=1.5),
           jax.random.normal(kb2, (C,)) * 0.1,
           jax.random.normal(km2, (C,)) * 0.1,
           jax.random.uniform(kv2, (C,), minval=0.5, maxval=1.5))

    fwd = jax.jit(resnet_block_forward)
    out = jax.block_until_ready(fwd(x, w1, w2, bn1, bn2))
    assert out.shape == (B, C, H, W)

    # Tight check vs. a matched-precision reference (same bf16 quantization
    # points as the kernel): verifies tap indexing, BN folding, residual, ReLU.
    ref_m = jax.block_until_ready(
        resnet_block_reference(x, w1, w2, bn1, bn2, match_kernel_bf16=True))
    assert jnp.allclose(out, ref_m, atol=1e-2, rtol=1e-2), \
        "mismatch vs matched-precision reference"

    # Loose check vs. the full-f32 reference (kernel uses bf16 MXU operands
    # and a bf16 output, so ~1% deviation is expected).
    ref_f = jax.block_until_ready(resnet_block_reference(x, w1, w2, bn1, bn2))
    assert jnp.allclose(out, ref_f, atol=1e-1, rtol=1e-1), \
        "mismatch vs f32 reference"

    print("KERNEL_OK")
</pallas_src>

<mosaic_0001>
module attributes {stable_mosaic.version = 11 : i64} {
  func.func @kernel(%arg0: i32, %arg1: memref<1x16x16x128xbf16, #tpu.memory_space<vmem>>, %arg2: memref<9x128x128xbf16, #tpu.memory_space<vmem>>, %arg3: memref<9x128x128xbf16, #tpu.memory_space<vmem>>, %arg4: memref<1x128xf32, #tpu.memory_space<vmem>>, %arg5: memref<1x128xf32, #tpu.memory_space<vmem>>, %arg6: memref<1x128xf32, #tpu.memory_space<vmem>>, %arg7: memref<1x128xf32, #tpu.memory_space<vmem>>, %arg8: memref<1x16x16x128xbf16, #tpu.memory_space<vmem>>, %arg9: memref<1x18x24x128xf32, #tpu.memory_space<vmem>>) attributes {dimension_semantics = [#tpu.dimension_semantics<parallel>], iteration_bounds = array<i64: 2>, scalar_prefetch = 0 : i64, scratch_operands = 1 : i64, tpu.core_type = #tpu.core_type<tc>, window_params = [{transform_indices = @transform_0, window_bounds = array<i64: 1, 16, 16, 128>}, {pipeline_mode = #tpu.pipeline_mode<synchronous>, transform_indices = @transform_1, window_bounds = array<i64: 9, 128, 128>}, {pipeline_mode = #tpu.pipeline_mode<synchronous>, transform_indices = @transform_2, window_bounds = array<i64: 9, 128, 128>}, {pipeline_mode = #tpu.pipeline_mode<synchronous>, transform_indices = @transform_3, window_bounds = array<i64: 1, 128>}, {pipeline_mode = #tpu.pipeline_mode<synchronous>, transform_indices = @transform_4, window_bounds = array<i64: 1, 128>}, {pipeline_mode = #tpu.pipeline_mode<synchronous>, transform_indices = @transform_5, window_bounds = array<i64: 1, 128>}, {pipeline_mode = #tpu.pipeline_mode<synchronous>, transform_indices = @transform_6, window_bounds = array<i64: 1, 128>}, {transform_indices = @transform_7, window_bounds = array<i64: 1, 16, 16, 128>}]} {
    %cst = arith.constant 0.000000e+00 : f32
    %0 = vector.broadcast %cst : f32 to vector<1x1x24x128xf32>
    %c0 = arith.constant 0 : index
    %c0_0 = arith.constant 0 : index
    %c0_1 = arith.constant 0 : index
    %c0_2 = arith.constant 0 : index
    %1 = vector.load %arg9[%c0, %c0_0, %c0_1, %c0_2] : memref<1x18x24x128xf32, #tpu.memory_space<vmem>>, vector<1x1x24x128xf32>
    tpu.vector_store %arg9[%c0, %c0_0, %c0_1, %c0_2], %0 {strides = array<i32>} : memref<1x18x24x128xf32, #tpu.memory_space<vmem>>, vector<1x1x24x128xf32>,
    %cst_3 = arith.constant 0.000000e+00 : f32
    %2 = vector.broadcast %cst_3 : f32 to vector<1x1x24x128xf32>
    %c0_4 = arith.constant 0 : index
    %c17 = arith.constant 17 : index
    %c0_5 = arith.constant 0 : index
    %c0_6 = arith.constant 0 : index
    %3 = vector.load %arg9[%c0_4, %c17, %c0_5, %c0_6] : memref<1x18x24x128xf32, #tpu.memory_space<vmem>>, vector<1x1x24x128xf32>
    tpu.vector_store %arg9[%c0_4, %c17, %c0_5, %c0_6], %2 {strides = array<i32>} : memref<1x18x24x128xf32, #tpu.memory_space<vmem>>, vector<1x1x24x128xf32>,
    %cst_7 = arith.constant 0.000000e+00 : f32
    %4 = vector.broadcast %cst_7 : f32 to vector<1x18x1x128xf32>
    %c0_8 = arith.constant 0 : index
    %c0_9 = arith.constant 0 : index
    %c0_10 = arith.constant 0 : index
    %c0_11 = arith.constant 0 : index
    %5 = vector.load %arg9[%c0_8, %c0_9, %c0_10, %c0_11] : memref<1x18x24x128xf32, #tpu.memory_space<vmem>>, vector<1x18x1x128xf32>
    tpu.vector_store %arg9[%c0_8, %c0_9, %c0_10, %c0_11], %4 {strides = array<i32>} : memref<1x18x24x128xf32, #tpu.memory_space<vmem>>, vector<1x18x1x128xf32>,
    %cst_12 = arith.constant 0.000000e+00 : f32
    %6 = vector.broadcast %cst_12 : f32 to vector<1x18x7x128xf32>
    %c0_13 = arith.constant 0 : index
    %c0_14 = arith.constant 0 : index
    %c17_15 = arith.constant 17 : index
    %c0_16 = arith.constant 0 : index
    %7 = vector.load %arg9[%c0_13, %c0_14, %c17_15, %c0_16] : memref<1x18x24x128xf32, #tpu.memory_space<vmem>>, vector<1x18x7x128xf32>
    tpu.vector_store %arg9[%c0_13, %c0_14, %c17_15, %c0_16], %6 {strides = array<i32>} : memref<1x18x24x128xf32, #tpu.memory_space<vmem>>, vector<1x18x7x128xf32>,
    %c0_17 = arith.constant 0 : index
    %c0_18 = arith.constant 0 : index
    %c0_19 = arith.constant 0 : index
    %c0_20 = arith.constant 0 : index
    %8 = vector.load %arg1[%c0_17, %c0_18, %c0_19, %c0_20] : memref<1x16x16x128xbf16, #tpu.memory_space<vmem>>, vector<1x16x16x128xbf16>
    %9 = arith.extf %8 : vector<1x16x16x128xbf16> to vector<1x16x16x128xf32>
    %c0_21 = arith.constant 0 : index
    %c1 = arith.constant 1 : index
    %c1_22 = arith.constant 1 : index
    %c0_23 = arith.constant 0 : index
    %10 = vector.load %arg9[%c0_21, %c1, %c1_22, %c0_23] : memref<1x18x24x128xf32, #tpu.memory_space<vmem>>, vector<1x16x16x128xf32>
    tpu.vector_store %arg9[%c0_21, %c1, %c1_22, %c0_23], %9 {strides = array<i32>} : memref<1x18x24x128xf32, #tpu.memory_space<vmem>>, vector<1x16x16x128xf32>,
    %c0_24 = arith.constant 0 : index
    %c0_25 = arith.constant 0 : index
    %11 = vector.load %arg4[%c0_24, %c0_25] : memref<1x128xf32, #tpu.memory_space<vmem>>, vector<1x128xf32>
    %12 = vector.shape_cast %11 : vector<1x128xf32> to vector<1x1x1x128xf32>
    %c0_26 = arith.constant 0 : index
    %c0_27 = arith.constant 0 : index
    %13 = vector.load %arg5[%c0_26, %c0_27] : memref<1x128xf32, #tpu.memory_space<vmem>>, vector<1x128xf32>
    %14 = vector.shape_cast %13 : vector<1x128xf32> to vector<1x1x1x128xf32>
    %c0_28 = arith.constant 0 : index
    %c0_29 = arith.constant 0 : index
    %c0_30 = arith.constant 0 : index
    %c0_31 = arith.constant 0 : index
    %15 = vector.load %arg9[%c0_28, %c0_29, %c0_30, %c0_31] : memref<1x18x24x128xf32, #tpu.memory_space<vmem>>, vector<1x16x24x128xf32>
    %16 = vector.shape_cast %15 : vector<1x16x24x128xf32> to vector<384x128xf32>
    %17 = arith.truncf %16 : vector<384x128xf32> to vector<384x128xbf16>
    %c0_32 = arith.constant 0 : index
    %c0_33 = arith.constant 0 : index
    %c0_34 = arith.constant 0 : index
    %18 = vector.load %arg2[%c0_32, %c0_33, %c0_34] : memref<9x128x128xbf16, #tpu.memory_space<vmem>>, vector<1x128x128xbf16>
    %19 = vector.shape_cast %18 : vector<1x128x128xbf16> to vector<128x128xbf16>
    %cst_35 = arith.constant dense<0.000000e+00> : vector<384x128xf32>
    %20 = tpu.matmul %17, %19, %cst_35 {dimension_numbers = #tpu.dot_dimension_numbers<[1], [0], [0], [1], [0, 0, 1, 1], [], []>} : vector<384x128xbf16>, vector<128x128xbf16>, vector<384x128xf32> -> vector<384x128xf32>
    %21 = vector.shape_cast %20 : vector<384x128xf32> to vector<1x16x24x128xf32>
    %22 = vector.extract_strided_slice %21 {offsets = [0, 0, 0, 0], sizes = [1, 16, 16, 128], strides = [1, 1, 1, 1]} : vector<1x16x24x128xf32> to vector<1x16x16x128xf32>
    %c1_36 = arith.constant 1 : index
    %c0_37 = arith.constant 0 : index
    %c0_38 = arith.constant 0 : index
    %23 = vector.load %arg2[%c1_36, %c0_37, %c0_38] : memref<9x128x128xbf16, #tpu.memory_space<vmem>>, vector<1x128x128xbf16>
    %24 = vector.shape_cast %23 : vector<1x128x128xbf16> to vector<128x128xbf16>
    %cst_39 = arith.constant dense<0.000000e+00> : vector<384x128xf32>
    %25 = tpu.matmul %17, %24, %cst_39 {dimension_numbers = #tpu.dot_dimension_numbers<[1], [0], [0], [1], [0, 0, 1, 1], [], []>} : vector<384x128xbf16>, vector<128x128xbf16>, vector<384x128xf32> -> vector<384x128xf32>
    %26 = vector.shape_cast %25 : vector<384x128xf32> to vector<1x16x24x128xf32>
    %27 = vector.extract_strided_slice %26 {offsets = [0, 0, 1, 0], sizes = [1, 16, 16, 128], strides = [1, 1, 1, 1]} : vector<1x16x24x128xf32> to vector<1x16x16x128xf32>
    %28 = arith.addf %22, %27 : vector<1x16x16x128xf32>
    %c2 = arith.constant 2 : index
    %c0_40 = arith.constant 0 : index
    %c0_41 = arith.constant 0 : index
    %29 = vector.load %arg2[%c2, %c0_40, %c0_41] : memref<9x128x128xbf16, #tpu.memory_space<vmem>>, vector<1x128x128xbf16>
    %30 = vector.shape_cast %29 : vector<1x128x128xbf16> to vector<128x128xbf16>
    %cst_42 = arith.constant dense<0.000000e+00> : vector<384x128xf32>
    %31 = tpu.matmul %17, %30, %cst_42 {dimension_numbers = #tpu.dot_dimension_numbers<[1], [0], [0], [1], [0, 0, 1, 1], [], []>} : vector<384x128xbf16>, vector<128x128xbf16>, vector<384x128xf32> -> vector<384x128xf32>
    %32 = vector.shape_cast %31 : vector<384x128xf32> to vector<1x16x24x128xf32>
    %33 = vector.extract_strided_slice %32 {offsets = [0, 0, 2, 0], sizes = [1, 16, 16, 128], strides = [1, 1, 1, 1]} : vector<1x16x24x128xf32> to vector<1x16x16x128xf32>
    %34 = arith.addf %28, %33 : vector<1x16x16x128xf32>
    %c0_43 = arith.constant 0 : index
    %c1_44 = arith.constant 1 : index
    %c0_45 = arith.constant 0 : index
    %c0_46 = arith.constant 0 : index
    %35 = vector.load %arg9[%c0_43, %c1_44, %c0_45, %c0_46] : memref<1x18x24x128xf32, #tpu.memory_space<vmem>>, vector<1x16x24x128xf32>
    %36 = vector.shape_cast %35 : vector<1x16x24x128xf32> to vector<384x128xf32>
    %37 = arith.truncf %36 : vector<384x128xf32> to vector<384x128xbf16>
    %c3 = arith.constant 3 : index
    %c0_47 = arith.constant 0 : index
    %c0_48 = arith.constant 0 : index
    %38 = vector.load %arg2[%c3, %c0_47, %c0_48] : memref<9x128x128xbf16, #tpu.memory_space<vmem>>, vector<1x128x128xbf16>
    %39 = vector.shape_cast %38 : vector<1x128x128xbf16> to vector<128x128xbf16>
    %cst_49 = arith.constant dense<0.000000e+00> : vector<384x128xf32>
    %40 = tpu.matmul %37, %39, %cst_49 {dimension_numbers = #tpu.dot_dimension_numbers<[1], [0], [0], [1], [0, 0, 1, 1], [], []>} : vector<384x128xbf16>, vector<128x128xbf16>, vector<384x128xf32> -> vector<384x128xf32>
    %41 = vector.shape_cast %40 : vector<384x128xf32> to vector<1x16x24x128xf32>
    %42 = vector.extract_strided_slice %41 {offsets = [0, 0, 0, 0], sizes = [1, 16, 16, 128], strides = [1, 1, 1, 1]} : vector<1x16x24x128xf32> to vector<1x16x16x128xf32>
    %43 = arith.addf %34, %42 : vector<1x16x16x128xf32>
    %c4 = arith.constant 4 : index
    %c0_50 = arith.constant 0 : index
    %c0_51 = arith.constant 0 : index
    %44 = vector.load %arg2[%c4, %c0_50, %c0_51] : memref<9x128x128xbf16, #tpu.memory_space<vmem>>, vector<1x128x128xbf16>
    %45 = vector.shape_cast %44 : vector<1x128x128xbf16> to vector<128x128xbf16>
    %cst_52 = arith.constant dense<0.000000e+00> : vector<384x128xf32>
    %46 = tpu.matmul %37, %45, %cst_52 {dimension_numbers = #tpu.dot_dimension_numbers<[1], [0], [0], [1], [0, 0, 1, 1], [], []>} : vector<384x128xbf16>, vector<128x128xbf16>, vector<384x128xf32> -> vector<384x128xf32>
    %47 = vector.shape_cast %46 : vector<384x128xf32> to vector<1x16x24x128xf32>
    %48 = vector.extract_strided_slice %47 {offsets = [0, 0, 1, 0], sizes = [1, 16, 16, 128], strides = [1, 1, 1, 1]} : vector<1x16x24x128xf32> to vector<1x16x16x128xf32>
    %49 = arith.addf %43, %48 : vector<1x16x16x128xf32>
    %c5 = arith.constant 5 : index
    %c0_53 = arith.constant 0 : index
    %c0_54 = arith.constant 0 : index
    %50 = vector.load %arg2[%c5, %c0_53, %c0_54] : memref<9x128x128xbf16, #tpu.memory_space<vmem>>, vector<1x128x128xbf16>
    %51 = vector.shape_cast %50 : vector<1x128x128xbf16> to vector<128x128xbf16>
    %cst_55 = arith.constant dense<0.000000e+00> : vector<384x128xf32>
    %52 = tpu.matmul %37, %51, %cst_55 {dimension_numbers = #tpu.dot_dimension_numbers<[1], [0], [0], [1], [0, 0, 1, 1], [], []>} : vector<384x128xbf16>, vector<128x128xbf16>, vector<384x128xf32> -> vector<384x128xf32>
    %53 = vector.shape_cast %52 : vector<384x128xf32> to vector<1x16x24x128xf32>
    %54 = vector.extract_strided_slice %53 {offsets = [0, 0, 2, 0], sizes = [1, 16, 16, 128], strides = [1, 1, 1, 1]} : vector<1x16x24x128xf32> to vector<1x16x16x128xf32>
    %55 = arith.addf %49, %54 : vector<1x16x16x128xf32>
    %c0_56 = arith.constant 0 : index
    %c2_57 = arith.constant 2 : index
    %c0_58 = arith.constant 0 : index
    %c0_59 = arith.constant 0 : index
    %56 = vector.load %arg9[%c0_56, %c2_57, %c0_58, %c0_59] : memref<1x18x24x128xf32, #tpu.memory_space<vmem>>, vector<1x16x24x128xf32>
    %57 = vector.shape_cast %56 : vector<1x16x24x128xf32> to vector<384x128xf32>
    %58 = arith.truncf %57 : vector<384x128xf32> to vector<384x128xbf16>
    %c6 = arith.constant 6 : index
    %c0_60 = arith.constant 0 : index
    %c0_61 = arith.constant 0 : index
    %59 = vector.load %arg2[%c6, %c0_60, %c0_61] : memref<9x128x128xbf16, #tpu.memory_space<vmem>>, vector<1x128x128xbf16>
    %60 = vector.shape_cast %59 : vector<1x128x128xbf16> to vector<128x128xbf16>
    %cst_62 = arith.constant dense<0.000000e+00> : vector<384x128xf32>
    %61 = tpu.matmul %58, %60, %cst_62 {dimension_numbers = #tpu.dot_dimension_numbers<[1], [0], [0], [1], [0, 0, 1, 1], [], []>} : vector<384x128xbf16>, vector<128x128xbf16>, vector<384x128xf32> -> vector<384x128xf32>
    %62 = vector.shape_cast %61 : vector<384x128xf32> to vector<1x16x24x128xf32>
    %63 = vector.extract_strided_slice %62 {offsets = [0, 0, 0, 0], sizes = [1, 16, 16, 128], strides = [1, 1, 1, 1]} : vector<1x16x24x128xf32> to vector<1x16x16x128xf32>
    %64 = arith.addf %55, %63 : vector<1x16x16x128xf32>
    %c7 = arith.constant 7 : index
    %c0_63 = arith.constant 0 : index
    %c0_64 = arith.constant 0 : index
    %65 = vector.load %arg2[%c7, %c0_63, %c0_64] : memref<9x128x128xbf16, #tpu.memory_space<vmem>>, vector<1x128x128xbf16>
    %66 = vector.shape_cast %65 : vector<1x128x128xbf16> to vector<128x128xbf16>
    %cst_65 = arith.constant dense<0.000000e+00> : vector<384x128xf32>
    %67 = tpu.matmul %58, %66, %cst_65 {dimension_numbers = #tpu.dot_dimension_numbers<[1], [0], [0], [1], [0, 0, 1, 1], [], []>} : vector<384x128xbf16>, vector<128x128xbf16>, vector<384x128xf32> -> vector<384x128xf32>
    %68 = vector.shape_cast %67 : vector<384x128xf32> to vector<1x16x24x128xf32>
    %69 = vector.extract_strided_slice %68 {offsets = [0, 0, 1, 0], sizes = [1, 16, 16, 128], strides = [1, 1, 1, 1]} : vector<1x16x24x128xf32> to vector<1x16x16x128xf32>
    %70 = arith.addf %64, %69 : vector<1x16x16x128xf32>
    %c8 = arith.constant 8 : index
    %c0_66 = arith.constant 0 : index
    %c0_67 = arith.constant 0 : index
    %71 = vector.load %arg2[%c8, %c0_66, %c0_67] : memref<9x128x128xbf16, #tpu.memory_space<vmem>>, vector<1x128x128xbf16>
    %72 = vector.shape_cast %71 : vector<1x128x128xbf16> to vector<128x128xbf16>
    %cst_68 = arith.constant dense<0.000000e+00> : vector<384x128xf32>
    %73 = tpu.matmul %58, %72, %cst_68 {dimension_numbers = #tpu.dot_dimension_numbers<[1], [0], [0], [1], [0, 0, 1, 1], [], []>} : vector<384x128xbf16>, vector<128x128xbf16>, vector<384x128xf32> -> vector<384x128xf32>
    %74 = vector.shape_cast %73 : vector<384x128xf32> to vector<1x16x24x128xf32>
    %75 = vector.extract_strided_slice %74 {offsets = [0, 0, 2, 0], sizes = [1, 16, 16, 128], strides = [1, 1, 1, 1]} : vector<1x16x24x128xf32> to vector<1x16x16x128xf32>
    %76 = arith.addf %70, %75 : vector<1x16x16x128xf32>
    %77 = vector.broadcast %12 : vector<1x1x1x128xf32> to vector<1x16x16x128xf32>
    %78 = arith.mulf %76, %77 : vector<1x16x16x128xf32>
    %79 = vector.broadcast %14 : vector<1x1x1x128xf32> to vector<1x16x16x128xf32>
    %80 = arith.addf %78, %79 : vector<1x16x16x128xf32>
    %cst_69 = arith.constant 0.000000e+00 : f32
    %81 = vector.broadcast %cst_69 : f32 to vector<1x16x16x128xf32>
    %82 = arith.maximumf %80, %81 : vector<1x16x16x128xf32>
    %c0_70 = arith.constant 0 : index
    %c1_71 = arith.constant 1 : index
    %c1_72 = arith.constant 1 : index
    %c0_73 = arith.constant 0 : index
    %83 = vector.load %arg9[%c0_70, %c1_71, %c1_72, %c0_73] : memref<1x18x24x128xf32, #tpu.memory_space<vmem>>, vector<1x16x16x128xf32>
    tpu.vector_store %arg9[%c0_70, %c1_71, %c1_72, %c0_73], %82 {strides = array<i32>} : memref<1x18x24x128xf32, #tpu.memory_space<vmem>>, vector<1x16x16x128xf32>,
    %c0_74 = arith.constant 0 : index
    %c0_75 = arith.constant 0 : index
    %84 = vector.load %arg6[%c0_74, %c0_75] : memref<1x128xf32, #tpu.memory_space<vmem>>, vector<1x128xf32>
    %85 = vector.shape_cast %84 : vector<1x128xf32> to vector<1x1x1x128xf32>
    %c0_76 = arith.constant 0 : index
    %c0_77 = arith.constant 0 : index
    %86 = vector.load %arg7[%c0_76, %c0_77] : memref<1x128xf32, #tpu.memory_space<vmem>>, vector<1x128xf32>
    %87 = vector.shape_cast %86 : vector<1x128xf32> to vector<1x1x1x128xf32>
    %c0_78 = arith.constant 0 : index
    %c0_79 = arith.constant 0 : index
    %c0_80 = arith.constant 0 : index
    %c0_81 = arith.constant 0 : index
    %88 = vector.load %arg9[%c0_78, %c0_79, %c0_80, %c0_81] : memref<1x18x24x128xf32, #tpu.memory_space<vmem>>, vector<1x16x24x128xf32>
    %89 = vector.shape_cast %88 : vector<1x16x24x128xf32> to vector<384x128xf32>
    %90 = arith.truncf %89 : vector<384x128xf32> to vector<384x128xbf16>
    %c0_82 = arith.constant 0 : index
    %c0_83 = arith.constant 0 : index
    %c0_84 = arith.constant 0 : index
    %91 = vector.load %arg3[%c0_82, %c0_83, %c0_84] : memref<9x128x128xbf16, #tpu.memory_space<vmem>>, vector<1x128x128xbf16>
    %92 = vector.shape_cast %91 : vector<1x128x128xbf16> to vector<128x128xbf16>
    %cst_85 = arith.constant dense<0.000000e+00> : vector<384x128xf32>
    %93 = tpu.matmul %90, %92, %cst_85 {dimension_numbers = #tpu.dot_dimension_numbers<[1], [0], [0], [1], [0, 0, 1, 1], [], []>} : vector<384x128xbf16>, vector<128x128xbf16>, vector<384x128xf32> -> vector<384x128xf32>
    %94 = vector.shape_cast %93 : vector<384x128xf32> to vector<1x16x24x128xf32>
    %95 = vector.extract_strided_slice %94 {offsets = [0, 0, 0, 0], sizes = [1, 16, 16, 128], strides = [1, 1, 1, 1]} : vector<1x16x24x128xf32> to vector<1x16x16x128xf32>
    %c1_86 = arith.constant 1 : index
    %c0_87 = arith.constant 0 : index
    %c0_88 = arith.constant 0 : index
    %96 = vector.load %arg3[%c1_86, %c0_87, %c0_88] : memref<9x128x128xbf16, #tpu.memory_space<vmem>>, vector<1x128x128xbf16>
    %97 = vector.shape_cast %96 : vector<1x128x128xbf16> to vector<128x128xbf16>
    %cst_89 = arith.constant dense<0.000000e+00> : vector<384x128xf32>
    %98 = tpu.matmul %90, %97, %cst_89 {dimension_numbers = #tpu.dot_dimension_numbers<[1], [0], [0], [1], [0, 0, 1, 1], [], []>} : vector<384x128xbf16>, vector<128x128xbf16>, vector<384x128xf32> -> vector<384x128xf32>
    %99 = vector.shape_cast %98 : vector<384x128xf32> to vector<1x16x24x128xf32>
    %100 = vector.extract_strided_slice %99 {offsets = [0, 0, 1, 0], sizes = [1, 16, 16, 128], strides = [1, 1, 1, 1]} : vector<1x16x24x128xf32> to vector<1x16x16x128xf32>
    %101 = arith.addf %95, %100 : vector<1x16x16x128xf32>
    %c2_90 = arith.constant 2 : index
    %c0_91 = arith.constant 0 : index
    %c0_92 = arith.constant 0 : index
    %102 = vector.load %arg3[%c2_90, %c0_91, %c0_92] : memref<9x128x128xbf16, #tpu.memory_space<vmem>>, vector<1x128x128xbf16>
    %103 = vector.shape_cast %102 : vector<1x128x128xbf16> to vector<128x128xbf16>
    %cst_93 = arith.constant dense<0.000000e+00> : vector<384x128xf32>
    %104 = tpu.matmul %90, %103, %cst_93 {dimension_numbers = #tpu.dot_dimension_numbers<[1], [0], [0], [1], [0, 0, 1, 1], [], []>} : vector<384x128xbf16>, vector<128x128xbf16>, vector<384x128xf32> -> vector<384x128xf32>
    %105 = vector.shape_cast %104 : vector<384x128xf32> to vector<1x16x24x128xf32>
    %106 = vector.extract_strided_slice %105 {offsets = [0, 0, 2, 0], sizes = [1, 16, 16, 128], strides = [1, 1, 1, 1]} : vector<1x16x24x128xf32> to vector<1x16x16x128xf32>
    %107 = arith.addf %101, %106 : vector<1x16x16x128xf32>
    %c0_94 = arith.constant 0 : index
    %c1_95 = arith.constant 1 : index
    %c0_96 = arith.constant 0 : index
    %c0_97 = arith.constant 0 : index
    %108 = vector.load %arg9[%c0_94, %c1_95, %c0_96, %c0_97] : memref<1x18x24x128xf32, #tpu.memory_space<vmem>>, vector<1x16x24x128xf32>
    %109 = vector.shape_cast %108 : vector<1x16x24x128xf32> to vector<384x128xf32>
    %110 = arith.truncf %109 : vector<384x128xf32> to vector<384x128xbf16>
    %c3_98 = arith.constant 3 : index
    %c0_99 = arith.constant 0 : index
    %c0_100 = arith.constant 0 : index
    %111 = vector.load %arg3[%c3_98, %c0_99, %c0_100] : memref<9x128x128xbf16, #tpu.memory_space<vmem>>, vector<1x128x128xbf16>
    %112 = vector.shape_cast %111 : vector<1x128x128xbf16> to vector<128x128xbf16>
    %cst_101 = arith.constant dense<0.000000e+00> : vector<384x128xf32>
    %113 = tpu.matmul %110, %112, %cst_101 {dimension_numbers = #tpu.dot_dimension_numbers<[1], [0], [0], [1], [0, 0, 1, 1], [], []>} : vector<384x128xbf16>, vector<128x128xbf16>, vector<384x128xf32> -> vector<384x128xf32>
    %114 = vector.shape_cast %113 : vector<384x128xf32> to vector<1x16x24x128xf32>
    %115 = vector.extract_strided_slice %114 {offsets = [0, 0, 0, 0], sizes = [1, 16, 16, 128], strides = [1, 1, 1, 1]} : vector<1x16x24x128xf32> to vector<1x16x16x128xf32>
    %116 = arith.addf %107, %115 : vector<1x16x16x128xf32>
    %c4_102 = arith.constant 4 : index
    %c0_103 = arith.constant 0 : index
    %c0_104 = arith.constant 0 : index
    %117 = vector.load %arg3[%c4_102, %c0_103, %c0_104] : memref<9x128x128xbf16, #tpu.memory_space<vmem>>, vector<1x128x128xbf16>
    %118 = vector.shape_cast %117 : vector<1x128x128xbf16> to vector<128x128xbf16>
    %cst_105 = arith.constant dense<0.000000e+00> : vector<384x128xf32>
    %119 = tpu.matmul %110, %118, %cst_105 {dimension_numbers = #tpu.dot_dimension_numbers<[1], [0], [0], [1], [0, 0, 1, 1], [], []>} : vector<384x128xbf16>, vector<128x128xbf16>, vector<384x128xf32> -> vector<384x128xf32>
    %120 = vector.shape_cast %119 : vector<384x128xf32> to vector<1x16x24x128xf32>
    %121 = vector.extract_strided_slice %120 {offsets = [0, 0, 1, 0], sizes = [1, 16, 16, 128], strides = [1, 1, 1, 1]} : vector<1x16x24x128xf32> to vector<1x16x16x128xf32>
    %122 = arith.addf %116, %121 : vector<1x16x16x128xf32>
    %c5_106 = arith.constant 5 : index
    %c0_107 = arith.constant 0 : index
    %c0_108 = arith.constant 0 : index
    %123 = vector.load %arg3[%c5_106, %c0_107, %c0_108] : memref<9x128x128xbf16, #tpu.memory_space<vmem>>, vector<1x128x128xbf16>
    %124 = vector.shape_cast %123 : vector<1x128x128xbf16> to vector<128x128xbf16>
    %cst_109 = arith.constant dense<0.000000e+00> : vector<384x128xf32>
    %125 = tpu.matmul %110, %124, %cst_109 {dimension_numbers = #tpu.dot_dimension_numbers<[1], [0], [0], [1], [0, 0, 1, 1], [], []>} : vector<384x128xbf16>, vector<128x128xbf16>, vector<384x128xf32> -> vector<384x128xf32>
    %126 = vector.shape_cast %125 : vector<384x128xf32> to vector<1x16x24x128xf32>
    %127 = vector.extract_strided_slice %126 {offsets = [0, 0, 2, 0], sizes = [1, 16, 16, 128], strides = [1, 1, 1, 1]} : vector<1x16x24x128xf32> to vector<1x16x16x128xf32>
    %128 = arith.addf %122, %127 : vector<1x16x16x128xf32>
    %c0_110 = arith.constant 0 : index
    %c2_111 = arith.constant 2 : index
    %c0_112 = arith.constant 0 : index
    %c0_113 = arith.constant 0 : index
    %129 = vector.load %arg9[%c0_110, %c2_111, %c0_112, %c0_113] : memref<1x18x24x128xf32, #tpu.memory_space<vmem>>, vector<1x16x24x128xf32>
    %130 = vector.shape_cast %129 : vector<1x16x24x128xf32> to vector<384x128xf32>
    %131 = arith.truncf %130 : vector<384x128xf32> to vector<384x128xbf16>
    %c6_114 = arith.constant 6 : index
    %c0_115 = arith.constant 0 : index
    %c0_116 = arith.constant 0 : index
    %132 = vector.load %arg3[%c6_114, %c0_115, %c0_116] : memref<9x128x128xbf16, #tpu.memory_space<vmem>>, vector<1x128x128xbf16>
    %133 = vector.shape_cast %132 : vector<1x128x128xbf16> to vector<128x128xbf16>
    %cst_117 = arith.constant dense<0.000000e+00> : vector<384x128xf32>
    %134 = tpu.matmul %131, %133, %cst_117 {dimension_numbers = #tpu.dot_dimension_numbers<[1], [0], [0], [1], [0, 0, 1, 1], [], []>} : vector<384x128xbf16>, vector<128x128xbf16>, vector<384x128xf32> -> vector<384x128xf32>
    %135 = vector.shape_cast %134 : vector<384x128xf32> to vector<1x16x24x128xf32>
    %136 = vector.extract_strided_slice %135 {offsets = [0, 0, 0, 0], sizes = [1, 16, 16, 128], strides = [1, 1, 1, 1]} : vector<1x16x24x128xf32> to vector<1x16x16x128xf32>
    %137 = arith.addf %128, %136 : vector<1x16x16x128xf32>
    %c7_118 = arith.constant 7 : index
    %c0_119 = arith.constant 0 : index
    %c0_120 = arith.constant 0 : index
    %138 = vector.load %arg3[%c7_118, %c0_119, %c0_120] : memref<9x128x128xbf16, #tpu.memory_space<vmem>>, vector<1x128x128xbf16>
    %139 = vector.shape_cast %138 : vector<1x128x128xbf16> to vector<128x128xbf16>
    %cst_121 = arith.constant dense<0.000000e+00> : vector<384x128xf32>
    %140 = tpu.matmul %131, %139, %cst_121 {dimension_numbers = #tpu.dot_dimension_numbers<[1], [0], [0], [1], [0, 0, 1, 1], [], []>} : vector<384x128xbf16>, vector<128x128xbf16>, vector<384x128xf32> -> vector<384x128xf32>
    %141 = vector.shape_cast %140 : vector<384x128xf32> to vector<1x16x24x128xf32>
    %142 = vector.extract_strided_slice %141 {offsets = [0, 0, 1, 0], sizes = [1, 16, 16, 128], strides = [1, 1, 1, 1]} : vector<1x16x24x128xf32> to vector<1x16x16x128xf32>
    %143 = arith.addf %137, %142 : vector<1x16x16x128xf32>
    %c8_122 = arith.constant 8 : index
    %c0_123 = arith.constant 0 : index
    %c0_124 = arith.constant 0 : index
    %144 = vector.load %arg3[%c8_122, %c0_123, %c0_124] : memref<9x128x128xbf16, #tpu.memory_space<vmem>>, vector<1x128x128xbf16>
    %145 = vector.shape_cast %144 : vector<1x128x128xbf16> to vector<128x128xbf16>
    %cst_125 = arith.constant dense<0.000000e+00> : vector<384x128xf32>
    %146 = tpu.matmul %131, %145, %cst_125 {dimension_numbers = #tpu.dot_dimension_numbers<[1], [0], [0], [1], [0, 0, 1, 1], [], []>} : vector<384x128xbf16>, vector<128x128xbf16>, vector<384x128xf32> -> vector<384x128xf32>
    %147 = vector.shape_cast %146 : vector<384x128xf32> to vector<1x16x24x128xf32>
    %148 = vector.extract_strided_slice %147 {offsets = [0, 0, 2, 0], sizes = [1, 16, 16, 128], strides = [1, 1, 1, 1]} : vector<1x16x24x128xf32> to vector<1x16x16x128xf32>
    %149 = arith.addf %143, %148 : vector<1x16x16x128xf32>
    %150 = vector.broadcast %85 : vector<1x1x1x128xf32> to vector<1x16x16x128xf32>
    %151 = arith.mulf %149, %150 : vector<1x16x16x128xf32>
    %152 = vector.broadcast %87 : vector<1x1x1x128xf32> to vector<1x16x16x128xf32>
    %153 = arith.addf %151, %152 : vector<1x16x16x128xf32>
    %154 = arith.addf %153, %9 : vector<1x16x16x128xf32>
    %cst_126 = arith.constant 0.000000e+00 : f32
    %155 = vector.broadcast %cst_126 : f32 to vector<1x16x16x128xf32>
    %156 = arith.maximumf %154, %155 : vector<1x16x16x128xf32>
    %157 = arith.truncf %156 : vector<1x16x16x128xf32> to vector<1x16x16x128xbf16>
    %c0_127 = arith.constant 0 : index
    %c0_128 = arith.constant 0 : index
    %c0_129 = arith.constant 0 : index
    %c0_130 = arith.constant 0 : index
    %158 = vector.load %arg8[%c0_127, %c0_128, %c0_129, %c0_130] : memref<1x16x16x128xbf16, #tpu.memory_space<vmem>>, vector<1x16x16x128xbf16>
    tpu.vector_store %arg8[%c0_127, %c0_128, %c0_129, %c0_130], %157 {strides = array<i32>} : memref<1x16x16x128xbf16, #tpu.memory_space<vmem>>, vector<1x16x16x128xbf16>,
    return
  }
  func.func @transform_0(%arg0: i32) -> (i32, i32, i32, i32) {
    %c0_i32 = arith.constant 0 : i32
    %c0_i32_0 = arith.constant 0 : i32
    %c0_i32_1 = arith.constant 0 : i32
    %c0_i32_2 = arith.constant 0 : i32
    return %arg0, %c0_i32, %c0_i32_0, %c0_i32_1 : i32, i32, i32, i32
  }
  func.func @transform_1(%arg0: i32) -> (i32, i32, i32) {
    %c0_i32 = arith.constant 0 : i32
    %c0_i32_0 = arith.constant 0 : i32
    %c0_i32_1 = arith.constant 0 : i32
    %c0_i32_2 = arith.constant 0 : i32
    return %c0_i32, %c0_i32_0, %c0_i32_1 : i32, i32, i32
  }
  func.func @transform_2(%arg0: i32) -> (i32, i32, i32) {
    %c0_i32 = arith.constant 0 : i32
    %c0_i32_0 = arith.constant 0 : i32
    %c0_i32_1 = arith.constant 0 : i32
    %c0_i32_2 = arith.constant 0 : i32
    return %c0_i32, %c0_i32_0, %c0_i32_1 : i32, i32, i32
  }
  func.func @transform_3(%arg0: i32) -> (i32, i32) {
    %c0_i32 = arith.constant 0 : i32
    %c0_i32_0 = arith.constant 0 : i32
    %c0_i32_1 = arith.constant 0 : i32
    return %c0_i32, %c0_i32_0 : i32, i32
  }
  func.func @transform_4(%arg0: i32) -> (i32, i32) {
    %c0_i32 = arith.constant 0 : i32
    %c0_i32_0 = arith.constant 0 : i32
    %c0_i32_1 = arith.constant 0 : i32
    return %c0_i32, %c0_i32_0 : i32, i32
  }
  func.func @transform_5(%arg0: i32) -> (i32, i32) {
    %c0_i32 = arith.constant 0 : i32
    %c0_i32_0 = arith.constant 0 : i32
    %c0_i32_1 = arith.constant 0 : i32
    return %c0_i32, %c0_i32_0 : i32, i32
  }
  func.func @transform_6(%arg0: i32) -> (i32, i32) {
    %c0_i32 = arith.constant 0 : i32
    %c0_i32_0 = arith.constant 0 : i32
    %c0_i32_1 = arith.constant 0 : i32
    return %c0_i32, %c0_i32_0 : i32, i32
  }
  func.func @transform_7(%arg0: i32) -> (i32, i32, i32, i32) {
    %c0_i32 = arith.constant 0 : i32
    %c0_i32_0 = arith.constant 0 : i32
    %c0_i32_1 = arith.constant 0 : i32
    %c0_i32_2 = arith.constant 0 : i32
    return %arg0, %c0_i32, %c0_i32_0, %c0_i32_1 : i32, i32, i32, i32
  }
}

</mosaic_0001>

<llo_original>
// kernel: resnet_block_forward.1
$region0: #{resnet_block_forward.1}
  #allocation0 [shape = 'u32[]', space=smem, size = 0x4, offset = 0x4, fixed_abs, tag = 'smem constant byte address 0x4 - core index']
  #allocation1 [shape = 'u32[144,128]{1,0:T(1,128)}', space=vmem, size = 0x12000, scoped, tag = 'internal scratch']
  #allocation2 [shape = 'f32[1,18,24,128]{3,2,1,0:T(8,128)}', space=vmem, size = 0x36000, scoped, tag = 'scratch operand']
  %s0 = inlined_call_operand.vmem [shape: bf16[2,16,16,128], index: 0, kind: input, shape index: {}]
  %s1 = inlined_call_operand.vmem [shape: bf16[9,128,128], index: 1, kind: input, shape index: {}]
  %s2 = inlined_call_operand.vmem [shape: bf16[9,128,128], index: 2, kind: input, shape index: {}]
  %s3 = inlined_call_operand.vmem [shape: f32[1,128], index: 3, kind: input, shape index: {}]
  %s4 = inlined_call_operand.vmem [shape: f32[1,128], index: 4, kind: input, shape index: {}]
  %s5 = inlined_call_operand.vmem [shape: f32[1,128], index: 5, kind: input, shape index: {}]
  %s6 = inlined_call_operand.vmem [shape: f32[1,128], index: 6, kind: input, shape index: {}]
  %s7 = inlined_call_operand.vmem [shape: bf16[2,16,16,128], index: 7, kind: output, shape index: {}]
  %s8 = sld [smem:[#allocation0]]
  $region61: #{resnet_block_forward.1} parent=0
    _
  %s10 = ssub.s32 1, %s8
  %s11 = scalar_select 0, %s10, %s8
  loop: start=0, step=1, limit=4
  $region2: #{resnet_block_forward.1} parent=0 // loop_pre_header
    _
  $region3: #{resnet_block_forward.1} parent=0 // loop_header
    %s13 = sphi 0, %s17
    %p14 = scmp.ge.s32.totalorder %s13, 4
    %s23 = sphi 0, %s25
    %s26 = sphi 0, %s23
    %s27 = sphi 0, %s26
    %s43 = sphi 0, %s27
    %s47 = sphi 0, %s47
    %s49 = sphi 0, %s47
    %s50 = sphi 0, %s49
    %s64 = sphi 0, %s50
    %s68 = sphi 0, %s68
    %s70 = sphi 0, %s68
    %s71 = sphi 0, %s70
    %s85 = sphi 0, %s71
    %s89 = sphi 0, %s89
    %s91 = sphi 0, %s89
    %s92 = sphi 0, %s91
    %s106 = sphi 0, %s92
    %s110 = sphi 0, %s110
    %s112 = sphi 0, %s110
    %s113 = sphi 0, %s112
    %s127 = sphi 0, %s113
    %s131 = sphi 0, %s131
    %s133 = sphi 0, %s131
    %s134 = sphi 0, %s133
    %s148 = sphi 0, %s134
    %s152 = sphi 0, %s152
    %s154 = sphi 0, %s152
    %s155 = sphi 0, %s154
    %s169 = sphi 0, %s155
    %s175 = sphi 0, %s177
    %s178 = sphi 0, %s175
    %s179 = sphi 0, %s178
    %s195 = sphi 0, %s179
  $region4: #{resnet_block_forward.1} parent=0 // loop_header_branch
    %16 = sbr.rel (%p14) target = $region8
  $region5: #{resnet_block_forward.1} parent=0 // loop_body
    %s18 = ssub.s32 %s13, 1
    %s19 = ssub.s32 %s13, 2
    %s20 = sadd.s32 %s13, 1
    %s21 = ssub.s32 %s13, %s20
    %p22 = scmp.eq.s32.totalorder %s21, 0
    %s24 = sadd.s32 %s23, 1
    %s25 = scalar_select %p22, %s23, %s24
    %p28 = pneg %p22
    %p29 = scmp.eq.s32.totalorder %s13, 1
    %p30 = por %p28, %p29
    %p31 = scmp.ne.s32.totalorder %s23, %s26
    %p32 = scmp.eq.s32.totalorder %s13, 0
    %p33 = por %p31, %p32
    %p34 = scmp.ne.s32.totalorder %s23, %s26
    %p35 = scmp.eq.s32.totalorder %s18, 1
    %p36 = por %p34, %p35
    %p37 = scmp.ne.s32.totalorder %s26, %s27
    %p38 = scmp.eq.s32.totalorder %s18, 0
    %p39 = por %p37, %p38
    %p40 = scmp.ne.s32.totalorder %s26, %s27
    %p41 = scmp.eq.s32.totalorder %s19, 1
    %p42 = por %p40, %p41
    %p44 = scmp.ne.s32.totalorder %s27, %s43
    %p45 = scmp.eq.s32.totalorder %s19, 0
    %p46 = por %p44, %p45
    %s48 = sadd.s32 %s47, 1
    %p51 = scmp.eq.s32.totalorder %s13, 1
    %p52 = scmp.ne.s32.totalorder %s47, %s49
    %p53 = scmp.eq.s32.totalorder %s13, 0
    %p54 = por %p52, %p53
    %p55 = scmp.ne.s32.totalorder %s47, %s49
    %p56 = scmp.eq.s32.totalorder %s18, 1
    %p57 = por %p55, %p56
    %p58 = scmp.ne.s32.totalorder %s49, %s50
    %p59 = scmp.eq.s32.totalorder %s18, 0
    %p60 = por %p58, %p59
    %p61 = scmp.ne.s32.totalorder %s49, %s50
    %p62 = scmp.eq.s32.totalorder %s19, 1
    %p63 = por %p61, %p62
    %p65 = scmp.ne.s32.totalorder %s50, %s64
    %p66 = scmp.eq.s32.totalorder %s19, 0
    %p67 = por %p65, %p66
    %s69 = sadd.s32 %s68, 1
    %p72 = scmp.eq.s32.totalorder %s13, 1
    %p73 = scmp.ne.s32.totalorder %s68, %s70
    %p74 = scmp.eq.s32.totalorder %s13, 0
    %p75 = por %p73, %p74
    %p76 = scmp.ne.s32.totalorder %s68, %s70
    %p77 = scmp.eq.s32.totalorder %s18, 1
    %p78 = por %p76, %p77
    %p79 = scmp.ne.s32.totalorder %s70, %s71
    %p80 = scmp.eq.s32.totalorder %s18, 0
    %p81 = por %p79, %p80
    %p82 = scmp.ne.s32.totalorder %s70, %s71
    %p83 = scmp.eq.s32.totalorder %s19, 1
    %p84 = por %p82, %p83
    %p86 = scmp.ne.s32.totalorder %s71, %s85
    %p87 = scmp.eq.s32.totalorder %s19, 0
    %p88 = por %p86, %p87
    %s90 = sadd.s32 %s89, 1
    %p93 = scmp.eq.s32.totalorder %s13, 1
    %p94 = scmp.ne.s32.totalorder %s89, %s91
    %p95 = scmp.eq.s32.totalorder %s13, 0
    %p96 = por %p94, %p95
    %p97 = scmp.ne.s32.totalorder %s89, %s91
    %p98 = scmp.eq.s32.totalorder %s18, 1
    %p99 = por %p97, %p98
    %p100 = scmp.ne.s32.totalorder %s91, %s92
    %p101 = scmp.eq.s32.totalorder %s18, 0
    %p102 = por %p100, %p101
    %p103 = scmp.ne.s32.totalorder %s91, %s92
    %p104 = scmp.eq.s32.totalorder %s19, 1
    %p105 = por %p103, %p104
    %p107 = scmp.ne.s32.totalorder %s92, %s106
    %p108 = scmp.eq.s32.totalorder %s19, 0
    %p109 = por %p107, %p108
    %s111 = sadd.s32 %s110, 1
    %p114 = scmp.eq.s32.totalorder %s13, 1
    %p115 = scmp.ne.s32.totalorder %s110, %s112
    %p116 = scmp.eq.s32.totalorder %s13, 0
    %p117 = por %p115, %p116
    %p118 = scmp.ne.s32.totalorder %s110, %s112
    %p119 = scmp.eq.s32.totalorder %s18, 1
    %p120 = por %p118, %p119
    %p121 = scmp.ne.s32.totalorder %s112, %s113
    %p122 = scmp.eq.s32.totalorder %s18, 0
    %p123 = por %p121, %p122
    %p124 = scmp.ne.s32.totalorder %s112, %s113
    %p125 = scmp.eq.s32.totalorder %s19, 1
    %p126 = por %p124, %p125
    %p128 = scmp.ne.s32.totalorder %s113, %s127
    %p129 = scmp.eq.s32.totalorder %s19, 0
    %p130 = por %p128, %p129
    %s132 = sadd.s32 %s131, 1
    %p135 = scmp.eq.s32.totalorder %s13, 1
    %p136 = scmp.ne.s32.totalorder %s131, %s133
    %p137 = scmp.eq.s32.totalorder %s13, 0
    %p138 = por %p136, %p137
    %p139 = scmp.ne.s32.totalorder %s131, %s133
    %p140 = scmp.eq.s32.totalorder %s18, 1
    %p141 = por %p139, %p140
    %p142 = scmp.ne.s32.totalorder %s133, %s134
    %p143 = scmp.eq.s32.totalorder %s18, 0
    %p144 = por %p142, %p143
    %p145 = scmp.ne.s32.totalorder %s133, %s134
    %p146 = scmp.eq.s32.totalorder %s19, 1
    %p147 = por %p145, %p146
    %p149 = scmp.ne.s32.totalorder %s134, %s148
    %p150 = scmp.eq.s32.totalorder %s19, 0
    %p151 = por %p149, %p150
    %s153 = sadd.s32 %s152, 1
    %p156 = scmp.eq.s32.totalorder %s13, 1
    %p157 = scmp.ne.s32.totalorder %s152, %s154
    %p158 = scmp.eq.s32.totalorder %s13, 0
    %p159 = por %p157, %p158
    %p160 = scmp.ne.s32.totalorder %s152, %s154
    %p161 = scmp.eq.s32.totalorder %s18, 1
    %p162 = por %p160, %p161
    %p163 = scmp.ne.s32.totalorder %s154, %s155
    %p164 = scmp.eq.s32.totalorder %s18, 0
    %p165 = por %p163, %p164
    %p166 = scmp.ne.s32.totalorder %s154, %s155
    %p167 = scmp.eq.s32.totalorder %s19, 1
    %p168 = por %p166, %p167
    %p170 = scmp.ne.s32.totalorder %s155, %s169
    %p171 = scmp.eq.s32.totalorder %s19, 0
    %p172 = por %p170, %p171
    %s173 = ssub.s32 %s13, %s20
    %p174 = scmp.eq.s32.totalorder %s173, 0
    %s176 = sadd.s32 %s175, 1
    %s177 = scalar_select %p174, %s175, %s176
    %p180 = pneg %p174
    %p181 = scmp.eq.s32.totalorder %s13, 1
    %p182 = por %p180, %p181
    %p183 = scmp.ne.s32.totalorder %s175, %s178
    %p184 = scmp.eq.s32.totalorder %s13, 0
    %p185 = por %p183, %p184
    %p186 = scmp.ne.s32.totalorder %s175, %s178
    %p187 = scmp.eq.s32.totalorder %s18, 1
    %p188 = por %p186, %p187
    %p189 = scmp.ne.s32.totalorder %s178, %s179
    %p190 = scmp.eq.s32.totalorder %s18, 0
    %p191 = por %p189, %p190
    %p192 = scmp.ne.s32.totalorder %s178, %s179
    %p193 = scmp.eq.s32.totalorder %s19, 1
    %p194 = por %p192, %p193
    %p196 = scmp.ne.s32.totalorder %s179, %s195
    %p197 = scmp.eq.s32.totalorder %s19, 0
    %p198 = por %p196, %p197
    %p199 = scmp.le.s32.totalorder 1, %s13
    %p200 = scmp.lt.s32.totalorder %s13, 3
    %p201 = pnand %p199, %p200
    %p202 = pneg %p201
    // Predicated region
    $region9: #{resnet_block_forward.1} parent=5 // pred_check
      _
    $region10: #{resnet_block_forward.1} parent=5 // pred_check_branch
      %204 = sbr.rel (%p201) target = $region12
    $region11: #{resnet_block_forward.1} parent=5 // pred_region
      %s205 = ssub.s32 %s13, 1
      // Predicated region
      $region13: #{resnet_block_forward.1} parent=11 // pred_check
        %p206 = pneg %p60
      $region14: #{resnet_block_forward.1} parent=11 // pred_check_branch
        %208 = sbr.rel (%p206) target = $region16
      $region15: #{resnet_block_forward.1} parent=11 // pred_region
        _
      $region16: #{resnet_block_forward.1} parent=11 // pred_fallthru
        _
      // Predicated region
      $region17: #{resnet_block_forward.1} parent=11 // pred_check
        %p209 = pneg %p81
      $region18: #{resnet_block_forward.1} parent=11 // pred_check_branch
        %211 = sbr.rel (%p209) target = $region20
      $region19: #{resnet_block_forward.1} parent=11 // pred_region
        _
      $region20: #{resnet_block_forward.1} parent=11 // pred_fallthru
        _
      // Predicated region
      $region21: #{resnet_block_forward.1} parent=11 // pred_check
        %p212 = pneg %p102
      $region22: #{resnet_block_forward.1} parent=11 // pred_check_branch
        %214 = sbr.rel (%p212) target = $region24
      $region23: #{resnet_block_forward.1} parent=11 // pred_region
        _
      $region24: #{resnet_block_forward.1} parent=11 // pred_fallthru
        _
      // Predicated region
      $region25: #{resnet_block_forward.1} parent=11 // pred_check
        %p215 = pneg %p123
      $region26: #{resnet_block_forward.1} parent=11 // pred_check_branch
        %217 = sbr.rel (%p215) target = $region28
      $region27: #{resnet_block_forward.1} parent=11 // pred_region
        _
      $region28: #{resnet_block_forward.1} parent=11 // pred_fallthru
        _
      // Predicated region
      $region29: #{resnet_block_forward.1} parent=11 // pred_check
        %p218 = pneg %p144
      $region30: #{resnet_block_forward.1} parent=11 // pred_check_branch
        %220 = sbr.rel (%p218) target = $region32
      $region31: #{resnet_block_forward.1} parent=11 // pred_region
        _
      $region32: #{resnet_block_forward.1} parent=11 // pred_fallthru
        _
      // Predicated region
      $region33: #{resnet_block_forward.1} parent=11 // pred_check
        %p221 = pneg %p165
      $region34: #{resnet_block_forward.1} parent=11 // pred_check_branch
        %223 = sbr.rel (%p221) target = $region36
      $region35: #{resnet_block_forward.1} parent=11 // pred_region
        _
      $region36: #{resnet_block_forward.1} parent=11 // pred_fallthru
        _
    $region12: #{resnet_block_forward.1} parent=5 // pred_fallthru
      _
    %p224 = scmp.lt.s32.totalorder %s13, 2
    // Predicated region
    $region37: #{resnet_block_forward.1} parent=5 // pred_check
      %p225 = pneg %p224
    $region38: #{resnet_block_forward.1} parent=5 // pred_check_branch
      %227 = sbr.rel (%p225) target = $region40
    $region39: #{resnet_block_forward.1} parent=5 // pred_region
      // Predicated region
      $region41: #{resnet_block_forward.1} parent=39 // pred_check
        %p228 = pneg %p33
      $region42: #{resnet_block_forward.1} parent=39 // pred_check_branch
        %230 = sbr.rel (%p228) target = $region44
      $region43: #{resnet_block_forward.1} parent=39 // pred_region
        %p231 = scmp.lt.s32.totalorder %s13, 1
        %s232 = scalar_select %p231, %s13, 1
        %s233 = smul.addr %s232, 32
        %s234 = smul.addr %s233, 4
        %s235 = scalar_lea.vmem %s0, %s234
      $region44: #{resnet_block_forward.1} parent=39 // pred_fallthru
        _
    $region40: #{resnet_block_forward.1} parent=5 // pred_fallthru
      _
    %p236 = scmp.le.s32.totalorder 1, %s13
    %p237 = scmp.lt.s32.totalorder %s13, 3
    %p238 = pnand %p236, %p237
    %p239 = pneg %p238
    // Predicated region
    $region45: #{resnet_block_forward.1} parent=5 // pred_check
      _
    $region46: #{resnet_block_forward.1} parent=5 // pred_check_branch
      %241 = sbr.rel (%p238) target = $region48
    $region47: #{resnet_block_forward.1} parent=5 // pred_region
      %s242 = ssub.s32 %s13, 1
      %p243 = scmp.lt.s32.totalorder %s18, 1
      %s244 = scalar_select %p243, %s18, 1
      %s245 = smul.addr %s244, 32
      %s246 = smul.addr %s245, 4
      %s247 = scalar_lea.vmem %s0, %s246
      %p248 = pneg %p39
      %p249 = pneg %p36
      %p250 = pneg %p60
      %p251 = pneg %p57
      %p252 = pneg %p81
      %p253 = pneg %p78
      %p254 = pneg %p102
      %p255 = pneg %p99
      %p256 = pneg %p123
      %p257 = pneg %p120
      %p258 = pneg %p144
      %p259 = pneg %p141
      %p260 = pneg %p165
      %p261 = pneg %p162
      %p262 = pneg %p191
      %p263 = pneg %p188
      %p264 = scmp.lt.s32.totalorder %s18, 1
      %s265 = scalar_select %p264, %s18, 1
      %s266 = smul.addr %s265, 32
      %s267 = smul.addr %s266, 4
      %s268 = scalar_lea.vmem %s7, %s267
      %p269 = scmp.lt.s32.totalorder %s18, 1
      %s270 = scalar_select %p269, %s18, 1
      %s271 = smul.addr %s270, 32
      %s272 = smul.addr %s271, 4
      %s273 = scalar_lea.vmem %s0, %s272
      %p274 = scmp.lt.s32.totalorder %s18, 1
      %s275 = scalar_select %p274, %s18, 1
      %s276 = smul.addr %s275, 32
      %s277 = smul.addr %s276, 4
      %s278 = scalar_lea.vmem %s7, %s277
      %280 = vst [vmem:[#allocation2] sm:$0xff] 0.0
      %281 = vst [vmem:[#allocation2 + $0x8] sm:$0xff] 0.0
      %282 = vst [vmem:[#allocation2 + $0x10] sm:$0xff] 0.0
      %s283 = scalar_lea.vmem [#allocation2], 408
      %284 = vst [vmem:[%s283] sm:$0xff] 0.0
      %285 = vst [vmem:[%s283 + $0x8] sm:$0xff] 0.0
      %286 = vst [vmem:[%s283 + $0x10] sm:$0xff] 0.0
      %287 = vst [vmem:[#allocation2] sm:$0x1] 0.0
      %288 = vst [vmem:[#allocation2 + $0x18] sm:$0x1] 0.0
      %289 = vst [vmem:[#allocation2 + $0x30] sm:$0x1] 0.0
      %290 = vst [vmem:[#allocation2 + $0x48] sm:$0x1] 0.0
      %291 = vst [vmem:[#allocation2 + $0x60] sm:$0x1] 0.0
      %292 = vst [vmem:[#allocation2 + $0x78] sm:$0x1] 0.0
      %293 = vst [vmem:[#allocation2 + $0x90] sm:$0x1] 0.0
      %294 = vst [vmem:[#allocation2 + $0xa8] sm:$0x1] 0.0
      %295 = vst [vmem:[#allocation2 + $0xc0] sm:$0x1] 0.0
      %296 = vst [vmem:[#allocation2 + $0xd8] sm:$0x1] 0.0
      %297 = vst [vmem:[#allocation2 + $0xf0] sm:$0x1] 0.0
      %298 = vst [vmem:[#allocation2 + $0x108] sm:$0x1] 0.0
      %299 = vst [vmem:[#allocation2 + $0x120] sm:$0x1] 0.0
      %300 = vst [vmem:[#allocation2 + $0x138] sm:$0x1] 0.0
      %301 = vst [vmem:[#allocation2 + $0x150] sm:$0x1] 0.0
      %302 = vst [vmem:[#allocation2 + $0x168] sm:$0x1] 0.0
      %303 = vst [vmem:[#allocation2 + $0x180] sm:$0x1] 0.0
      %304 = vst [vmem:[#allocation2 + $0x198] sm:$0x1] 0.0
      %305 = vst [vmem:[#allocation2 + $0x11] sm:$0x7f] 0.0
      %306 = vst [vmem:[#allocation2 + $0x29] sm:$0x7f] 0.0
      %307 = vst [vmem:[#allocation2 + $0x41] sm:$0x7f] 0.0
      %308 = vst [vmem:[#allocation2 + $0x59] sm:$0x7f] 0.0
      %309 = vst [vmem:[#allocation2 + $0x71] sm:$0x7f] 0.0
      %310 = vst [vmem:[#allocation2 + $0x89] sm:$0x7f] 0.0
      %311 = vst [vmem:[#allocation2 + $0xa1] sm:$0x7f] 0.0
      %312 = vst [vmem:[#allocation2 + $0xb9] sm:$0x7f] 0.0
      %313 = vst [vmem:[#allocation2 + $0xd1] sm:$0x7f] 0.0
      %314 = vst [vmem:[#allocation2 + $0xe9] sm:$0x7f] 0.0
      %315 = vst [vmem:[#allocation2 + $0x101] sm:$0x7f] 0.0
      %316 = vst [vmem:[#allocation2 + $0x119] sm:$0x7f] 0.0
      %317 = vst [vmem:[#allocation2 + $0x131] sm:$0x7f] 0.0
      %318 = vst [vmem:[#allocation2 + $0x149] sm:$0x7f] 0.0
      %319 = vst [vmem:[#allocation2 + $0x161] sm:$0x7f] 0.0
      %320 = vst [vmem:[#allocation2 + $0x179] sm:$0x7f] 0.0
      %321 = vst [vmem:[#allocation2 + $0x191] sm:$0x7f] 0.0
      %322 = vst [vmem:[#allocation2 + $0x1a9] sm:$0x7f] 0.0
      %v323 = vld [vmem:[%s273] sm:$0xf]
      %v324 = vld [vmem:[%s273 + $0x4] sm:$0xf]
      %v325 = vld [vmem:[%s273 + $0x8] sm:$0xf]
      %v326 = vld [vmem:[%s273 + $0xc] sm:$0xf]
      %v327 = vld [vmem:[%s273 + $0x10] sm:$0xf]
      %v328 = vld [vmem:[%s273 + $0x14] sm:$0xf]
      %v329 = vld [vmem:[%s273 + $0x18] sm:$0xf]
      %v330 = vld [vmem:[%s273 + $0x1c] sm:$0xf]
      %v331 = vld [vmem:[%s273 + $0x20] sm:$0xf]
      %v332 = vld [vmem:[%s273 + $0x24] sm:$0xf]
      %v333 = vld [vmem:[%s273 + $0x28] sm:$0xf]
      %v334 = vld [vmem:[%s273 + $0x2c] sm:$0xf]
      %v335 = vld [vmem:[%s273 + $0x30] sm:$0xf]
      %v336 = vld [vmem:[%s273 + $0x34] sm:$0xf]
      %v337 = vld [vmem:[%s273 + $0x38] sm:$0xf]
      %v338 = vld [vmem:[%s273 + $0x3c] sm:$0xf]
      %v339 = vld [vmem:[%s273 + $0x40] sm:$0xf]
      %v340 = vld [vmem:[%s273 + $0x44] sm:$0xf]
      %v341 = vld [vmem:[%s273 + $0x48] sm:$0xf]
      %v342 = vld [vmem:[%s273 + $0x4c] sm:$0xf]
      %v343 = vld [vmem:[%s273 + $0x50] sm:$0xf]
      %v344 = vld [vmem:[%s273 + $0x54] sm:$0xf]
      %v345 = vld [vmem:[%s273 + $0x58] sm:$0xf]
      %v346 = vld [vmem:[%s273 + $0x5c] sm:$0xf]
      %v347 = vld [vmem:[%s273 + $0x60] sm:$0xf]
      %v348 = vld [vmem:[%s273 + $0x64] sm:$0xf]
      %v349 = vld [vmem:[%s273 + $0x68] sm:$0xf]
      %v350 = vld [vmem:[%s273 + $0x6c] sm:$0xf]
      %v351 = vld [vmem:[%s273 + $0x70] sm:$0xf]
      %v352 = vld [vmem:[%s273 + $0x74] sm:$0xf]
      %v353 = vld [vmem:[%s273 + $0x78] sm:$0xf]
      %v354 = vld [vmem:[%s273 + $0x7c] sm:$0xf]
      %v355 = vunpack.c.l.bf16 %v323
      %v356 = vunpack.c.l.bf16 %v324
      %v357 = vunpack.c.l.bf16 %v325
      %v358 = vunpack.c.l.bf16 %v326
      %v359 = vunpack.c.l.bf16 %v327
      %v360 = vunpack.c.l.bf16 %v328
      %v361 = vunpack.c.l.bf16 %v329
      %v362 = vunpack.c.l.bf16 %v330
      %v363 = vunpack.c.l.bf16 %v331
      %v364 = vunpack.c.l.bf16 %v332
      %v365 = vunpack.c.l.bf16 %v333
      %v366 = vunpack.c.l.bf16 %v334
      %v367 = vunpack.c.l.bf16 %v335
      %v368 = vunpack.c.l.bf16 %v336
      %v369 = vunpack.c.l.bf16 %v337
      %v370 = vunpack.c.l.bf16 %v338
      %v371 = vunpack.c.l.bf16 %v339
      %v372 = vunpack.c.l.bf16 %v340
      %v373 = vunpack.c.l.bf16 %v341
      %v374 = vunpack.c.l.bf16 %v342
      %v375 = vunpack.c.l.bf16 %v343
      %v376 = vunpack.c.l.bf16 %v344
      %v377 = vunpack.c.l.bf16 %v345
      %v378 = vunpack.c.l.bf16 %v346
      %v379 = vunpack.c.l.bf16 %v347
      %v380 = vunpack.c.l.bf16 %v348
      %v381 = vunpack.c.l.bf16 %v349
      %v382 = vunpack.c.l.bf16 %v350
      %v383 = vunpack.c.l.bf16 %v351
      %v384 = vunpack.c.l.bf16 %v352
      %v385 = vunpack.c.l.bf16 %v353
      %v386 = vunpack.c.l.bf16 %v354
      %s387 = scalar_lea.vmem [#allocation2], 24
      %388 = vst [vmem:[%s387 + $0x1] sm:$0xff] %v355
      %389 = vst [vmem:[%s387 + $0x9] sm:$0xff] %v356
      %390 = vst [vmem:[%s387 + $0x19] sm:$0xff] %v357
      %391 = vst [vmem:[%s387 + $0x21] sm:$0xff] %v358
      %392 = vst [vmem:[%s387 + $0x31] sm:$0xff] %v359
      %393 = vst [vmem:[%s387 + $0x39] sm:$0xff] %v360
      %394 = vst [vmem:[%s387 + $0x49] sm:$0xff] %v361
      %395 = vst [vmem:[%s387 + $0x51] sm:$0xff] %v362
      %396 = vst [vmem:[%s387 + $0x61] sm:$0xff] %v363
      %397 = vst [vmem:[%s387 + $0x69] sm:$0xff] %v364
      %398 = vst [vmem:[%s387 + $0x79] sm:$0xff] %v365
      %399 = vst [vmem:[%s387 + $0x81] sm:$0xff] %v366
      %400 = vst [vmem:[%s387 + $0x91] sm:$0xff] %v367
      %401 = vst [vmem:[%s387 + $0x99] sm:$0xff] %v368
      %402 = vst [vmem:[%s387 + $0xa9] sm:$0xff] %v369
      %403 = vst [vmem:[%s387 + $0xb1] sm:$0xff] %v370
      %404 = vst [vmem:[%s387 + $0xc1] sm:$0xff] %v371
      %405 = vst [vmem:[%s387 + $0xc9] sm:$0xff] %v372
      %406 = vst [vmem:[%s387 + $0xd9] sm:$0xff] %v373
      %407 = vst [vmem:[%s387 + $0xe1] sm:$0xff] %v374
      %408 = vst [vmem:[%s387 + $0xf1] sm:$0xff] %v375
      %409 = vst [vmem:[%s387 + $0xf9] sm:$0xff] %v376
      %410 = vst [vmem:[%s387 + $0x109] sm:$0xff] %v377
      %411 = vst [vmem:[%s387 + $0x111] sm:$0xff] %v378
      %412 = vst [vmem:[%s387 + $0x121] sm:$0xff] %v379
      %413 = vst [vmem:[%s387 + $0x129] sm:$0xff] %v380
      %414 = vst [vmem:[%s387 + $0x139] sm:$0xff] %v381
      %415 = vst [vmem:[%s387 + $0x141] sm:$0xff] %v382
      %416 = vst [vmem:[%s387 + $0x151] sm:$0xff] %v383
      %417 = vst [vmem:[%s387 + $0x159] sm:$0xff] %v384
      %418 = vst [vmem:[%s387 + $0x169] sm:$0xff] %v385
      %419 = vst [vmem:[%s387 + $0x171] sm:$0xff] %v386
      %v420 = vld [vmem:[%s3] sm:$0x1]
      %v421 = vld [vmem:[%s4] sm:$0x1]
      %v422 = vld [vmem:[#allocation2] sm:$0xff]
      %v423 = vld [vmem:[#allocation2 + $0x8] sm:$0xff]
      %v424 = vld [vmem:[#allocation2 + $0x10] sm:$0xff]
      %v425 = vld [vmem:[#allocation2 + $0x18] sm:$0xff]
      %v426 = vld [vmem:[#allocation2 + $0x20] sm:$0xff]
      %v427 = vld [vmem:[#allocation2 + $0x28] sm:$0xff]
      %v428 = vld [vmem:[#allocation2 + $0x30] sm:$0xff]
      %v429 = vld [vmem:[#allocation2 + $0x38] sm:$0xff]
      %v430 = vld [vmem:[#allocation2 + $0x40] sm:$0xff]
      %v431 = vld [vmem:[#allocation2 + $0x48] sm:$0xff]
      %v432 = vld [vmem:[#allocation2 + $0x50] sm:$0xff]
      %v433 = vld [vmem:[#allocation2 + $0x58] sm:$0xff]
      %v434 = vld [vmem:[#allocation2 + $0x60] sm:$0xff]
      %v435 = vld [vmem:[#allocation2 + $0x68] sm:$0xff]
      %v436 = vld [vmem:[#allocation2 + $0x70] sm:$0xff]
      %v437 = vld [vmem:[#allocation2 + $0x78] sm:$0xff]
      %v438 = vld [vmem:[#allocation2 + $0x80] sm:$0xff]
      %v439 = vld [vmem:[#allocation2 + $0x88] sm:$0xff]
      %v440 = vld [vmem:[#allocation2 + $0x90] sm:$0xff]
      %v441 = vld [vmem:[#allocation2 + $0x98] sm:$0xff]
      %v442 = vld [vmem:[#allocation2 + $0xa0] sm:$0xff]
      %v443 = vld [vmem:[#allocation2 + $0xa8] sm:$0xff]
      %v444 = vld [vmem:[#allocation2 + $0xb0] sm:$0xff]
      %v445 = vld [vmem:[#allocation2 + $0xb8] sm:$0xff]
      %v446 = vld [vmem:[#allocation2 + $0xc0] sm:$0xff]
      %v447 = vld [vmem:[#allocation2 + $0xc8] sm:$0xff]
      %v448 = vld [vmem:[#allocation2 + $0xd0] sm:$0xff]
      %v449 = vld [vmem:[#allocation2 + $0xd8] sm:$0xff]
      %v450 = vld [vmem:[#allocation2 + $0xe0] sm:$0xff]
      %v451 = vld [vmem:[#allocation2 + $0xe8] sm:$0xff]
      %v452 = vld [vmem:[#allocation2 + $0xf0] sm:$0xff]
      %v453 = vld [vmem:[#allocation2 + $0xf8] sm:$0xff]
      %v454 = vld [vmem:[#allocation2 + $0x100] sm:$0xff]
      %v455 = vld [vmem:[#allocation2 + $0x108] sm:$0xff]
      %v456 = vld [vmem:[#allocation2 + $0x110] sm:$0xff]
      %v457 = vld [vmem:[#allocation2 + $0x118] sm:$0xff]
      %v458 = vld [vmem:[#allocation2 + $0x120] sm:$0xff]
      %v459 = vld [vmem:[#allocation2 + $0x128] sm:$0xff]
      %v460 = vld [vmem:[#allocation2 + $0x130] sm:$0xff]
      %v461 = vld [vmem:[#allocation2 + $0x138] sm:$0xff]
      %v462 = vld [vmem:[#allocation2 + $0x140] sm:$0xff]
      %v463 = vld [vmem:[#allocation2 + $0x148] sm:$0xff]
      %v464 = vld [vmem:[#allocation2 + $0x150] sm:$0xff]
      %v465 = vld [vmem:[#allocation2 + $0x158] sm:$0xff]
      %v466 = vld [vmem:[#allocation2 + $0x160] sm:$0xff]
      %v467 = vld [vmem:[#allocation2 + $0x168] sm:$0xff]
      %v468 = vld [vmem:[#allocation2 + $0x170] sm:$0xff]
      %v469 = vld [vmem:[#allocation2 + $0x178] sm:$0xff]
      %v470 = vpack.c.bf16 %v423, %v422
      %v471 = vpack.c.bf16 %v425, %v424
      %v472 = vpack.c.bf16 %v427, %v426
      %v473 = vpack.c.bf16 %v429, %v428
      %v474 = vpack.c.bf16 %v431, %v430
      %v475 = vpack.c.bf16 %v433, %v432
      %v476 = vpack.c.bf16 %v435, %v434
      %v477 = vpack.c.bf16 %v437, %v436
      %v478 = vpack.c.bf16 %v439, %v438
      %v479 = vpack.c.bf16 %v441, %v440
      %v480 = vpack.c.bf16 %v443, %v442
      %v481 = vpack.c.bf16 %v445, %v444
      %v482 = vpack.c.bf16 %v447, %v446
      %v483 = vpack.c.bf16 %v449, %v448
      %v484 = vpack.c.bf16 %v451, %v450
      %v485 = vpack.c.bf16 %v453, %v452
      %v486 = vpack.c.bf16 %v455, %v454
      %v487 = vpack.c.bf16 %v457, %v456
      %v488 = vpack.c.bf16 %v459, %v458
      %v489 = vpack.c.bf16 %v461, %v460
      %v490 = vpack.c.bf16 %v463, %v462
      %v491 = vpack.c.bf16 %v465, %v464
      %v492 = vpack.c.bf16 %v467, %v466
      %v493 = vpack.c.bf16 %v469, %v468
      %v494 = vld [vmem:[%s1] sm:$0xf]
      %v495 = vld [vmem:[%s1 + $0x4] sm:$0xf]
      %v496 = vld [vmem:[%s1 + $0x8] sm:$0xf]
      %v497 = vld [vmem:[%s1 + $0xc] sm:$0xf]
      %v498 = vld [vmem:[%s1 + $0x10] sm:$0xf]
      %v499 = vld [vmem:[%s1 + $0x14] sm:$0xf]
      %v500 = vld [vmem:[%s1 + $0x18] sm:$0xf]
      %v501 = vld [vmem:[%s1 + $0x1c] sm:$0xf]
      %v502 = vld [vmem:[%s1 + $0x20] sm:$0xf]
      %v503 = vld [vmem:[%s1 + $0x24] sm:$0xf]
      %v504 = vld [vmem:[%s1 + $0x28] sm:$0xf]
      %v505 = vld [vmem:[%s1 + $0x2c] sm:$0xf]
      %v506 = vld [vmem:[%s1 + $0x30] sm:$0xf]
      %v507 = vld [vmem:[%s1 + $0x34] sm:$0xf]
      %v508 = vld [vmem:[%s1 + $0x38] sm:$0xf]
      %v509 = vld [vmem:[%s1 + $0x3c] sm:$0xf]
      %v526 = vunpack.c.l.b16 %v494
      %v527 = vunpack.c.l.b16 %v495
      %v528 = vunpack.c.l.b16 %v496
      %v529 = vunpack.c.l.b16 %v497
      %v530 = vunpack.c.l.b16 %v498
      %v531 = vunpack.c.l.b16 %v499
      %v532 = vunpack.c.l.b16 %v500
      %v533 = vunpack.c.l.b16 %v501
      %v534 = vunpack.c.l.b16 %v502
      %v535 = vunpack.c.l.b16 %v503
      %v536 = vunpack.c.l.b16 %v504
      %v537 = vunpack.c.l.b16 %v505
      %v538 = vunpack.c.l.b16 %v506
      %v539 = vunpack.c.l.b16 %v507
      %v540 = vunpack.c.l.b16 %v508
      %v541 = vunpack.c.l.b16 %v509
      %v542 = vpack.c.b16 %v527, %v526
      %v543 = vpack.c.b16 %v529, %v528
      %v544 = vpack.c.b16 %v531, %v530
      %v545 = vpack.c.b16 %v533, %v532
      %v546 = vpack.c.b16 %v535, %v534
      %v547 = vpack.c.b16 %v537, %v536
      %v548 = vpack.c.b16 %v539, %v538
      %v549 = vpack.c.b16 %v541, %v540
      %558 = vmatprep.subr.bf16.mxu0 0
      %559 = vmatpush1.bf16.msra.mxu0 %v542
      %560 = vmatprep.subr.bf16.mxu0 0
      %561 = vmatpush1.bf16.msra.mxu0 %v543
      %562 = vmatprep.subr.bf16.mxu0 0
      %563 = vmatpush1.bf16.msra.mxu0 %v544
      %564 = vmatprep.subr.bf16.mxu0 0
      %565 = vmatpush1.bf16.msra.mxu0 %v545
      %566 = vmatprep.subr.bf16.mxu0 0
      %567 = vmatpush1.bf16.msra.mxu0 %v546
      %568 = vmatprep.subr.bf16.mxu0 0
      %569 = vmatpush1.bf16.msra.mxu0 %v547
      %570 = vmatprep.subr.bf16.mxu0 0
      %571 = vmatpush1.bf16.msra.mxu0 %v548
      %572 = vmatprep.subr.bf16.mxu0 0
      %573 = vmatpush1.bf16.msra.mxu0 %v549
      %574 = vmatprep.subr.bf16.mxu0 0
      %575 = vmatpush1.bf16.msra.mxu0 0
      %576 = vmatprep.subr.bf16.mxu0 0
      %577 = vmatpush1.bf16.msra.mxu0 0
      %578 = vmatprep.subr.bf16.mxu0 0
      %579 = vmatpush1.bf16.msra.mxu0 0
      %580 = vmatprep.subr.bf16.mxu0 0
      %581 = vmatpush1.bf16.msra.mxu0 0
      %582 = vmatprep.subr.bf16.mxu0 0
      %583 = vmatpush1.bf16.msra.mxu0 0
      %584 = vmatprep.subr.bf16.mxu0 0
      %585 = vmatpush1.bf16.msra.mxu0 0
      %586 = vmatprep.subr.bf16.mxu0 0
      %587 = vmatpush1.bf16.msra.mxu0 0
      %588 = vmatprep.subr.bf16.mxu0 0
      %589 = vmatpush1.bf16.msra.mxu0 0
      %590 = vmatprep.mubr.bf16.mxu0 0
      %591 = vmatmul.mubr.bf16.gmra.mrb[0].mxu0 %v470
      %v592 = vpop.f32.mrb[0].mxu0
      %v593 = vadd.f32 0.0, %v592
      %v594 = vpop.f32.mrb[0].mxu0
      %v595 = vpop.f32.mrb[0].mxu0
      %v596 = vadd.f32 0.0, %v595
      %v597 = vpop.f32.mrb[0].mxu0
      %598 = vmatprep.mubr.bf16.mxu0 0
      %599 = vmatmul.mubr.bf16.gmra.mrb[0].mxu0 %v471
      %v600 = vpop.f32.mrb[0].mxu0
      %v601 = vpop.f32.mrb[0].mxu0
      %v602 = vpop.f32.mrb[0].mxu0
      %v603 = vadd.f32 0.0, %v602
      %v604 = vpop.f32.mrb[0].mxu0
      %605 = vmatprep.mubr.bf16.mxu0 0
      %606 = vmatmul.mubr.bf16.gmra.mrb[0].mxu0 %v472
      %v607 = vpop.f32.mrb[0].mxu0
      %v608 = vadd.f32 0.0, %v607
      %v609 = vpop.f32.mrb[0].mxu0
      %v610 = vpop.f32.mrb[0].mxu0
      %v611 = vpop.f32.mrb[0].mxu0
      %612 = vmatprep.mubr.bf16.mxu0 0
      %613 = vmatmul.mubr.bf16.gmra.mrb[0].mxu0 %v473
      %v614 = vpop.f32.mrb[0].mxu0
      %v615 = vadd.f32 0.0, %v614
      %v616 = vpop.f32.mrb[0].mxu0
      %v617 = vpop.f32.mrb[0].mxu0
      %v618 = vadd.f32 0.0, %v617
      %v619 = vpop.f32.mrb[0].mxu0
      %620 = vmatprep.mubr.bf16.mxu0 0
      %621 = vmatmul.mubr.bf16.gmra.mrb[0].mxu0 %v474
      %v622 = vpop.f32.mrb[0].mxu0
      %v623 = vpop.f32.mrb[0].mxu0
      %v624 = vpop.f32.mrb[0].mxu0
      %v625 = vadd.f32 0.0, %v624
      %v626 = vpop.f32.mrb[0].mxu0
      %627 = vmatprep.mubr.bf16.mxu0 0
      %628 = vmatmul.mubr.bf16.gmra.mrb[0].mxu0 %v475
      %v629 = vpop.f32.mrb[0].mxu0
      %v630 = vadd.f32 0.0, %v629
      %v631 = vpop.f32.mrb[0].mxu0
      %v632 = vpop.f32.mrb[0].mxu0
      %v633 = vpop.f32.mrb[0].mxu0
      %634 = vmatprep.mubr.bf16.mxu0 0
      %635 = vmatmul.mubr.bf16.gmra.mrb[0].mxu0 %v476
      %v636 = vpop.f32.mrb[0].mxu0
      %v637 = vadd.f32 0.0, %v636
      %v638 = vpop.f32.mrb[0].mxu0
      %v639 = vpop.f32.mrb[0].mxu0
      %v640 = vadd.f32 0.0, %v639
      %v641 = vpop.f32.mrb[0].mxu0
      %642 = vmatprep.mubr.bf16.mxu0 0
      %643 = vmatmul.mubr.bf16.gmra.mrb[0].mxu0 %v477
      %v644 = vpop.f32.mrb[0].mxu0
      %v645 = vpop.f32.mrb[0].mxu0
      %v646 = vpop.f32.mrb[0].mxu0
      %v647 = vadd.f32 0.0, %v646
      %v648 = vpop.f32.mrb[0].mxu0
      %649 = vmatprep.mubr.bf16.mxu0 0
      %650 = vmatmul.mubr.bf16.gmra.mrb[0].mxu0 %v478
      %v651 = vpop.f32.mrb[0].mxu0
      %v652 = vadd.f32 0.0, %v651
      %v653 = vpop.f32.mrb[0].mxu0
      %v654 = vpop.f32.mrb[0].mxu0
      %v655 = vpop.f32.mrb[0].mxu0
      %656 = vmatprep.mubr.bf16.mxu0 0
      %657 = vmatmul.mubr.bf16.gmra.mrb[0].mxu0 %v479
      %v658 = vpop.f32.mrb[0].mxu0
      %v659 = vadd.f32 0.0, %v658
      %v660 = vpop.f32.mrb[0].mxu0
      %v661 = vpop.f32.mrb[0].mxu0
      %v662 = vadd.f32 0.0, %v661
      %v663 = vpop.f32.mrb[0].mxu0
      %664 = vmatprep.mubr.bf16.mxu0 0
      %665 = vmatmul.mubr.bf16.gmra.mrb[0].mxu0 %v480
      %v666 = vpop.f32.mrb[0].mxu0
      %v667 = vpop.f32.mrb[0].mxu0
      %v668 = vpop.f32.mrb[0].mxu0
      %v669 = vadd.f32 0.0, %v668
      %v670 = vpop.f32.mrb[0].mxu0
      %671 = vmatprep.mubr.bf16.mxu0 0
      %672 = vmatmul.mubr.bf16.gmra.mrb[0].mxu0 %v481
      %v673 = vpop.f32.mrb[0].mxu0
      %v674 = vadd.f32 0.0, %v673
      %v675 = vpop.f32.mrb[0].mxu0
      %v676 = vpop.f32.mrb[0].mxu0
      %v677 = vpop.f32.mrb[0].mxu0
      %678 = vmatprep.mubr.bf16.mxu0 0
      %679 = vmatmul.mubr.bf16.gmra.mrb[0].mxu0 %v482
      %v680 = vpop.f32.mrb[0].mxu0
      %v681 = vadd.f32 0.0, %v680
      %v682 = vpop.f32.mrb[0].mxu0
      %v683 = vpop.f32.mrb[0].mxu0
      %v684 = vadd.f32 0.0, %v683
      %v685 = vpop.f32.mrb[0].mxu0
      %686 = vmatprep.mubr.bf16.mxu0 0
      %687 = vmatmul.mubr.bf16.gmra.mrb[0].mxu0 %v483
      %v688 = vpop.f32.mrb[0].mxu0
      %v689 = vpop.f32.mrb[0].mxu0
      %v690 = vpop.f32.mrb[0].mxu0
      %v691 = vadd.f32 0.0, %v690
      %v692 = vpop.f32.mrb[0].mxu0
      %693 = vmatprep.mubr.bf16.mxu0 0
      %694 = vmatmul.mubr.bf16.gmra.mrb[0].mxu0 %v484
      %v695 = vpop.f32.mrb[0].mxu0
      %v696 = vadd.f32 0.0, %v695
      %v697 = vpop.f32.mrb[0].mxu0
      %v698 = vpop.f32.mrb[0].mxu0
      %v699 = vpop.f32.mrb[0].mxu0
      %700 = vmatprep.mubr.bf16.mxu0 0
      %701 = vmatmul.mubr.bf16.gmra.mrb[0].mxu0 %v485
      %v702 = vpop.f32.mrb[0].mxu0
      %v703 = vadd.f32 0.0, %v702
      %v704 = vpop.f32.mrb[0].mxu0
      %v705 = vpop.f32.mrb[0].mxu0
      %v706 = vadd.f32 0.0, %v705
      %v707 = vpop.f32.mrb[0].mxu0
      %708 = vmatprep.mubr.bf16.mxu0 0
      %709 = vmatmul.mubr.bf16.gmra.mrb[0].mxu0 %v486
      %v710 = vpop.f32.mrb[0].mxu0
      %v711 = vpop.f32.mrb[0].mxu0
      %v712 = vpop.f32.mrb[0].mxu0
      %v713 = vadd.f32 0.0, %v712
      %v714 = vpop.f32.mrb[0].mxu0
      %715 = vmatprep.mubr.bf16.mxu0 0
      %716 = vmatmul.mubr.bf16.gmra.mrb[0].mxu0 %v487
      %v717 = vpop.f32.mrb[0].mxu0
      %v718 = vadd.f32 0.0, %v717
      %v719 = vpop.f32.mrb[0].mxu0
      %v720 = vpop.f32.mrb[0].mxu0
      %v721 = vpop.f32.mrb[0].mxu0
      %722 = vmatprep.mubr.bf16.mxu0 0
      %723 = vmatmul.mubr.bf16.gmra.mrb[0].mxu0 %v488
      %v724 = vpop.f32.mrb[0].mxu0
      %v725 = vadd.f32 0.0, %v724
      %v726 = vpop.f32.mrb[0].mxu0
      %v727 = vpop.f32.mrb[0].mxu0
      %v728 = vadd.f32 0.0, %v727
      %v729 = vpop.f32.mrb[0].mxu0
      %730 = vmatprep.mubr.bf16.mxu0 0
      %731 = vmatmul.mubr.bf16.gmra.mrb[0].mxu0 %v489
      %v732 = vpop.f32.mrb[0].mxu0
      %v733 = vpop.f32.mrb[0].mxu0
      %v734 = vpop.f32.mrb[0].mxu0
      %v735 = vadd.f32 0.0, %v734
      %v736 = vpop.f32.mrb[0].mxu0
      %737 = vmatprep.mubr.bf16.mxu0 0
      %738 = vmatmul.mubr.bf16.gmra.mrb[0].mxu0 %v490
      %v739 = vpop.f32.mrb[0].mxu0
      %v740 = vadd.f32 0.0, %v739
      %v741 = vpop.f32.mrb[0].mxu0
      %v742 = vpop.f32.mrb[0].mxu0
      %v743 = vpop.f32.mrb[0].mxu0
      %744 = vmatprep.mubr.bf16.mxu0 0
      %745 = vmatmul.mubr.bf16.gmra.mrb[0].mxu0 %v491
      %v746 = vpop.f32.mrb[0].mxu0
      %v747 = vadd.f32 0.0, %v746
      %v748 = vpop.f32.mrb[0].mxu0
      %v749 = vpop.f32.mrb[0].mxu0
      %v750 = vadd.f32 0.0, %v749
      %v751 = vpop.f32.mrb[0].mxu0
      %752 = vmatprep.mubr.bf16.mxu0 0
      %753 = vmatmul.mubr.bf16.gmra.mrb[0].mxu0 %v492
      %v754 = vpop.f32.mrb[0].mxu0
      %v755 = vpop.f32.mrb[0].mxu0
      %v756 = vpop.f32.mrb[0].mxu0
      %v757 = vadd.f32 0.0, %v756
      %v758 = vpop.f32.mrb[0].mxu0
      %759 = vmatprep.mubr.bf16.mxu0 0
      %760 = vmatmul.mubr.bf16.gmra.mrb[0].mxu0 %v493
      %v761 = vpop.f32.mrb[0].mxu0
      %v762 = vadd.f32 0.0, %v761
      %v763 = vpop.f32.mrb[0].mxu0
      %v764 = vpop.f32.mrb[0].mxu0
      %v765 = vpop.f32.mrb[0].mxu0
      %766 = vdwg.mxu0
      %s767 = scalar_lea.vmem %s1, 64
      %v768 = vld [vmem:[%s767] sm:$0xf]
      %v769 = vld [vmem:[%s767 + $0x4] sm:$0xf]
      %v770 = vld [vmem:[%s767 + $0x8] sm:$0xf]
      %v771 = vld [vmem:[%s767 + $0xc] sm:$0xf]
      %v772 = vld [vmem:[%s767 + $0x10] sm:$0xf]
      %v773 = vld [vmem:[%s767 + $0x14] sm:$0xf]
      %v774 = vld [vmem:[%s767 + $0x18] sm:$0xf]
      %v775 = vld [vmem:[%s767 + $0x1c] sm:$0xf]
      %v776 = vld [vmem:[%s767 + $0x20] sm:$0xf]
      %v777 = vld [vmem:[%s767 + $0x24] sm:$0xf]
      %v778 = vld [vmem:[%s767 + $0x28] sm:$0xf]
      %v779 = vld [vmem:[%s767 + $0x2c] sm:$0xf]
      %v780 = vld [vmem:[%s767 + $0x30] sm:$0xf]
      %v781 = vld [vmem:[%s767 + $0x34] sm:$0xf]
      %v782 = vld [vmem:[%s767 + $0x38] sm:$0xf]
      %v783 = vld [vmem:[%s767 + $0x3c] sm:$0xf]
      %v800 = vunpack.c.l.b16 %v768
      %v801 = vunpack.c.l.b16 %v769
      %v802 = vunpack.c.l.b16 %v770
      %v803 = vunpack.c.l.b16 %v771
      %v804 = vunpack.c.l.b16 %v772
      %v805 = vunpack.c.l.b16 %v773
      %v806 = vunpack.c.l.b16 %v774
      %v807 = vunpack.c.l.b16 %v775
      %v808 = vunpack.c.l.b16 %v776
      %v809 = vunpack.c.l.b16 %v777
      %v810 = vunpack.c.l.b16 %v778
      %v811 = vunpack.c.l.b16 %v779
      %v812 = vunpack.c.l.b16 %v780
      %v813 = vunpack.c.l.b16 %v781
      %v814 = vunpack.c.l.b16 %v782
      %v815 = vunpack.c.l.b16 %v783
      %v816 = vpack.c.b16 %v801, %v800
      %v817 = vpack.c.b16 %v803, %v802
      %v818 = vpack.c.b16 %v805, %v804
      %v819 = vpack.c.b16 %v807, %v806
      %v820 = vpack.c.b16 %v809, %v808
      %v821 = vpack.c.b16 %v811, %v810
      %v822 = vpack.c.b16 %v813, %v812
      %v823 = vpack.c.b16 %v815, %v814
      %832 = vmatprep.subr.bf16.mxu0 0
      %833 = vmatpush1.bf16.msra.mxu0 %v816
      %834 = vmatprep.subr.bf16.mxu0 0
      %835 = vmatpush1.bf16.msra.mxu0 %v817
      %836 = vmatprep.subr.bf16.mxu0 0
      %837 = vmatpush1.bf16.msra.mxu0 %v818
      %838 = vmatprep.subr.bf16.mxu0 0
      %839 = vmatpush1.bf16.msra.mxu0 %v819
      %840 = vmatprep.subr.bf16.mxu0 0
      %841 = vmatpush1.bf16.msra.mxu0 %v820
      %842 = vmatprep.subr.bf16.mxu0 0
      %843 = vmatpush1.bf16.msra.mxu0 %v821
      %844 = vmatprep.subr.bf16.mxu0 0
      %845 = vmatpush1.bf16.msra.mxu0 %v822
      %846 = vmatprep.subr.bf16.mxu0 0
      %847 = vmatpush1.bf16.msra.mxu0 %v823
      %848 = vmatprep.subr.bf16.mxu0 0
      %849 = vmatpush1.bf16.msra.mxu0 0
      %850 = vmatprep.subr.bf16.mxu0 0
      %851 = vmatpush1.bf16.msra.mxu0 0
      %852 = vmatprep.subr.bf16.mxu0 0
      %853 = vmatpush1.bf16.msra.mxu0 0
      %854 = vmatprep.subr.bf16.mxu0 0
      %855 = vmatpush1.bf16.msra.mxu0 0
      %856 = vmatprep.subr.bf16.mxu0 0
      %857 = vmatpush1.bf16.msra.mxu0 0
      %858 = vmatprep.subr.bf16.mxu0 0
      %859 = vmatpush1.bf16.msra.mxu0 0
      %860 = vmatprep.subr.bf16.mxu0 0
      %861 = vmatpush1.bf16.msra.mxu0 0
      %862 = vmatprep.subr.bf16.mxu0 0
      %863 = vmatpush1.bf16.msra.mxu0 0
      %864 = vmatprep.mubr.bf16.mxu0 0
      %865 = vmatmul.mubr.bf16.gmra.mrb[0].mxu0 %v470
      %v866 = vpop.f32.mrb[0].mxu0
      %v867 = vadd.f32 0.0, %v866
      %v868 = vpop.f32.mrb[0].mxu0
      %v869 = vpop.f32.mrb[0].mxu0
      %v870 = vadd.f32 0.0, %v869
      %v871 = vpop.f32.mrb[0].mxu0
      %872 = vmatprep.mubr.bf16.mxu0 0
      %873 = vmatmul.mubr.bf16.gmra.mrb[0].mxu0 %v471
      %v874 = vpop.f32.mrb[0].mxu0
      %v875 = vadd.f32 0.0, %v874
      %v876 = vpop.f32.mrb[0].mxu0
      %v877 = vpop.f32.mrb[0].mxu0
      %v878 = vadd.f32 0.0, %v877
      %v879 = vpop.f32.mrb[0].mxu0
      %880 = vmatprep.mubr.bf16.mxu0 0
      %881 = vmatmul.mubr.bf16.gmra.mrb[0].mxu0 %v472
      %v882 = vpop.f32.mrb[0].mxu0
      %v883 = vadd.f32 0.0, %v882
      %v884 = vpop.f32.mrb[0].mxu0
      %v885 = vpop.f32.mrb[0].mxu0
      %v886 = vadd.f32 0.0, %v885
      %v887 = vpop.f32.mrb[0].mxu0
      %888 = vmatprep.mubr.bf16.mxu0 0
      %889 = vmatmul.mubr.bf16.gmra.mrb[0].mxu0 %v473
      %v890 = vpop.f32.mrb[0].mxu0
      %v891 = vadd.f32 0.0, %v890
      %v892 = vpop.f32.mrb[0].mxu0
      %v893 = vpop.f32.mrb[0].mxu0
      %v894 = vadd.f32 0.0, %v893
      %v895 = vpop.f32.mrb[0].mxu0
      %896 = vmatprep.mubr.bf16.mxu0 0
      %897 = vmatmul.mubr.bf16.gmra.mrb[0].mxu0 %v474
      %v898 = vpop.f32.mrb[0].mxu0
      %v899 = vadd.f32 0.0, %v898
      %v900 = vpop.f32.mrb[0].mxu0
      %v901 = vpop.f32.mrb[0].mxu0
      %v902 = vadd.f32 0.0, %v901
      %v903 = vpop.f32.mrb[0].mxu0
      %904 = vmatprep.mubr.bf16.mxu0 0
      %905 = vmatmul.mubr.bf16.gmra.mrb[0].mxu0 %v475
      %v906 = vpop.f32.mrb[0].mxu0
      %v907 = vadd.f32 0.0, %v906
      %v908 = vpop.f32.mrb[0].mxu0
      %v909 = vpop.f32.mrb[0].mxu0
      %v910 = vadd.f32 0.0, %v909
      %v911 = vpop.f32.mrb[0].mxu0
      %912 = vmatprep.mubr.bf16.mxu0 0
      %913 = vmatmul.mubr.bf16.gmra.mrb[0].mxu0 %v476
      %v914 = vpop.f32.mrb[0].mxu0
      %v915 = vadd.f32 0.0, %v914
      %v916 = vpop.f32.mrb[0].mxu0
      %v917 = vpop.f32.mrb[0].mxu0
      %v918 = vadd.f32 0.0, %v917
      %v919 = vpop.f32.mrb[0].mxu0
      %920 = vmatprep.mubr.bf16.mxu0 0
      %921 = vmatmul.mubr.bf16.gmra.mrb[0].mxu0 %v477
      %v922 = vpop.f32.mrb[0].mxu0
      %v923 = vadd.f32 0.0, %v922
      %v924 = vpop.f32.mrb[0].mxu0
      %v925 = vpop.f32.mrb[0].mxu0
      %v926 = vadd.f32 0.0, %v925
      %v927 = vpop.f32.mrb[0].mxu0
      %928 = vmatprep.mubr.bf16.mxu0 0
      %929 = vmatmul.mubr.bf16.gmra.mrb[0].mxu0 %v478
      %v930 = vpop.f32.mrb[0].mxu0
      %v931 = vadd.f32 0.0, %v930
      %v932 = vpop.f32.mrb[0].mxu0
      %v933 = vpop.f32.mrb[0].mxu0
      %v934 = vadd.f32 0.0, %v933
      %v935 = vpop.f32.mrb[0].mxu0
      %936 = vmatprep.mubr.bf16.mxu0 0
      %937 = vmatmul.mubr.bf16.gmra.mrb[0].mxu0 %v479
      %v938 = vpop.f32.mrb[0].mxu0
      %v939 = vadd.f32 0.0, %v938
      %v940 = vpop.f32.mrb[0].mxu0
      %v941 = vpop.f32.mrb[0].mxu0
      %v942 = vadd.f32 0.0, %v941
      %v943 = vpop.f32.mrb[0].mxu0
      %944 = vmatprep.mubr.bf16.mxu0 0
      %945 = vmatmul.mubr.bf16.gmra.mrb[0].mxu0 %v480
      %v946 = vpop.f32.mrb[0].mxu0
      %v947 = vadd.f32 0.0, %v946
      %v948 = vpop.f32.mrb[0].mxu0
      %v949 = vpop.f32.mrb[0].mxu0
      %v950 = vadd.f32 0.0, %v949
      %v951 = vpop.f32.mrb[0].mxu0
      %952 = vmatprep.mubr.bf16.mxu0 0
      %953 = vmatmul.mubr.bf16.gmra.mrb[0].mxu0 %v481
      %v954 = vpop.f32.mrb[0].mxu0
      %v955 = vadd.f32 0.0, %v954
      %v956 = vpop.f32.mrb[0].mxu0
      %v957 = vpop.f32.mrb[0].mxu0
      %v958 = vadd.f32 0.0, %v957
      %v959 = vpop.f32.mrb[0].mxu0
      %960 = vmatprep.mubr.bf16.mxu0 0
      %961 = vmatmul.mubr.bf16.gmra.mrb[0].mxu0 %v482
      %v962 = vpop.f32.mrb[0].mxu0
      %v963 = vadd.f32 0.0, %v962
      %v964 = vpop.f32.mrb[0].mxu0
      %v965 = vpop.f32.mrb[0].mxu0
      %v966 = vadd.f32 0.0, %v965
      %v967 = vpop.f32.mrb[0].mxu0
      %968 = vmatprep.mubr.bf16.mxu0 0
      %969 = vmatmul.mubr.bf16.gmra.mrb[0].mxu0 %v483
      %v970 = vpop.f32.mrb[0].mxu0
      %v971 = vadd.f32 0.0, %v970
      %v972 = vpop.f32.mrb[0].mxu0
      %v973 = vpop.f32.mrb[0].mxu0
      %v974 = vadd.f32 0.0, %v973
      %v975 = vpop.f32.mrb[0].mxu0
      %976 = vmatprep.mubr.bf16.mxu0 0
      %977 = vmatmul.mubr.bf16.gmra.mrb[0].mxu0 %v484
      %v978 = vpop.f32.mrb[0].mxu0
      %v979 = vadd.f32 0.0, %v978
      %v980 = vpop.f32.mrb[0].mxu0
      %v981 = vpop.f32.mrb[0].mxu0
      %v982 = vadd.f32 0.0, %v981
      %v983 = vpop.f32.mrb[0].mxu0
      %984 = vmatprep.mubr.bf16.mxu0 0
      %985 = vmatmul.mubr.bf16.gmra.mrb[0].mxu0 %v485
      %v986 = vpop.f32.mrb[0].mxu0
      %v987 = vadd.f32 0.0, %v986
      %v988 = vpop.f32.mrb[0].mxu0
      %v989 = vpop.f32.mrb[0].mxu0
      %v990 = vadd.f32 0.0, %v989
      %v991 = vpop.f32.mrb[0].mxu0
      %992 = vmatprep.mubr.bf16.mxu0 0
      %993 = vmatmul.mubr.bf16.gmra.mrb[0].mxu0 %v486
      %v994 = vpop.f32.mrb[0].mxu0
      %v995 = vadd.f32 0.0, %v994
      %v996 = vpop.f32.mrb[0].mxu0
      %v997 = vpop.f32.mrb[0].mxu0
      %v998 = vadd.f32 0.0, %v997
      %v999 = vpop.f32.mrb[0].mxu0
      %1000 = vmatprep.mubr.bf16.mxu0 0
      %1001 = vmatmul.mubr.bf16.gmra.mrb[0].mxu0 %v487
      %v1002 = vpop.f32.mrb[0].mxu0
      %v1003 = vadd.f32 0.0, %v1002
      %v1004 = vpop.f32.mrb[0].mxu0
      %v1005 = vpop.f32.mrb[0].mxu0
      %v1006 = vadd.f32 0.0, %v1005
      %v1007 = vpop.f32.mrb[0].mxu0
      %1008 = vmatprep.mubr.bf16.mxu0 0
      %1009 = vmatmul.mubr.bf16.gmra.mrb[0].mxu0 %v488
      %v1010 = vpop.f32.mrb[0].mxu0
      %v1011 = vadd.f32 0.0, %v1010
      %v1012 = vpop.f32.mrb[0].mxu0
      %v1013 = vpop.f32.mrb[0].mxu0
      %v1014 = vadd.f32 0.0, %v1013
      %v1015 = vpop.f32.mrb[0].mxu0
      %1016 = vmatprep.mubr.bf16.mxu0 0
      %1017 = vmatmul.mubr.bf16.gmra.mrb[0].mxu0 %v489
      %v1018 = vpop.f32.mrb[0].mxu0
      %v1019 = vadd.f32 0.0, %v1018
      %v1020 = vpop.f32.mrb[0].mxu0
      %v1021 = vpop.f32.mrb[0].mxu0
      %v1022 = vadd.f32 0.0, %v1021
      %v1023 = vpop.f32.mrb[0].mxu0
      %1024 = vmatprep.mubr.bf16.mxu0 0
      %1025 = vmatmul.mubr.bf16.gmra.mrb[0].mxu0 %v490
      %v1026 = vpop.f32.mrb[0].mxu0
      %v1027 = vadd.f32 0.0, %v1026
      %v1028 = vpop.f32.mrb[0].mxu0
      %v1029 = vpop.f32.mrb[0].mxu0
      %v1030 = vadd.f32 0.0, %v1029
      %v1031 = vpop.f32.mrb[0].mxu0
      %1032 = vmatprep.mubr.bf16.mxu0 0
      %1033 = vmatmul.mubr.bf16.gmra.mrb[0].mxu0 %v491
      %v1034 = vpop.f32.mrb[0].mxu0
      %v1035 = vadd.f32 0.0, %v1034
      %v1036 = vpop.f32.mrb[0].mxu0
      %v1037 = vpop.f32.mrb[0].mxu0
      %v1038 = vadd.f32 0.0, %v1037
      %v1039 = vpop.f32.mrb[0].mxu0
      %1040 = vmatprep.mubr.bf16.mxu0 0
      %1041 = vmatmul.mubr.bf16.gmra.mrb[0].mxu0 %v492
      %v1042 = vpop.f32.mrb[0].mxu0
      %v1043 = vadd.f32 0.0, %v1042
      %v1044 = vpop.f32.mrb[0].mxu0
      %v1045 = vpop.f32.mrb[0].mxu0
      %v1046 = vadd.f32 0.0, %v1045
      %v1047 = vpop.f32.mrb[0].mxu0
      %1048 = vmatprep.mubr.bf16.mxu0 0
      %1049 = vmatmul.mubr.bf16.gmra.mrb[0].mxu0 %v493
      %v1050 = vpop.f32.mrb[0].mxu0
      %v1051 = vadd.f32 0.0, %v1050
      %v1052 = vpop.f32.mrb[0].mxu0
      %v1053 = vpop.f32.mrb[0].mxu0
      %v1054 = vadd.f32 0.0, %v1053
      %v1055 = vpop.f32.mrb[0].mxu0
      %1056 = vdwg.mxu0
      %vm1105 = vcmask 1046528
      %v1106 = vrot.slane %v867, 1
      %v1107 = vrot.slane %v870, 1
      %v1108 = vsel %vm1105, %v1106, %v1107
      %v1109 = vrot.slane %v875, 1
      %v1110 = vsel %vm1105, %v1107, %v1109
      %v1111 = vrot.slane %v878, 1
      %v1112 = vrot.slane %v883, 1
      %v1113 = vsel %vm1105, %v1111, %v1112
      %v1114 = vrot.slane %v886, 1
      %v1115 = vsel %vm1105, %v1112, %v1114
      %v1116 = vrot.slane %v891, 1
      %v1117 = vrot.slane %v894, 1
      %v1118 = vsel %vm1105, %v1116, %v1117
      %v1119 = vrot.slane %v899, 1
      %v1120 = vsel %vm1105, %v1117, %v1119
      %v1121 = vrot.slane %v902, 1
      %v1122 = vrot.slane %v907, 1
      %v1123 = vsel %vm1105, %v1121, %v1122
      %v1124 = vrot.slane %v910, 1
      %v1125 = vsel %vm1105, %v1122, %v1124
      %v1126 = vrot.slane %v915, 1
      %v1127 = vrot.slane %v918, 1
      %v1128 = vsel %vm1105, %v1126, %v1127
      %v1129 = vrot.slane %v923, 1
      %v1130 = vsel %vm1105, %v1127, %v1129
      %v1131 = vrot.slane %v926, 1
      %v1132 = vrot.slane %v931, 1
      %v1133 = vsel %vm1105, %v1131, %v1132
      %v1134 = vrot.slane %v934, 1
      %v1135 = vsel %vm1105, %v1132, %v1134
      %v1136 = vrot.slane %v939, 1
      %v1137 = vrot.slane %v942, 1
      %v1138 = vsel %vm1105, %v1136, %v1137
      %v1139 = vrot.slane %v947, 1
      %v1140 = vsel %vm1105, %v1137, %v1139
      %v1141 = vrot.slane %v950, 1
      %v1142 = vrot.slane %v955, 1
      %v1143 = vsel %vm1105, %v1141, %v1142
      %v1144 = vrot.slane %v958, 1
      %v1145 = vsel %vm1105, %v1142, %v1144
      %v1146 = vrot.slane %v963, 1
      %v1147 = vrot.slane %v966, 1
      %v1148 = vsel %vm1105, %v1146, %v1147
      %v1149 = vrot.slane %v971, 1
      %v1150 = vsel %vm1105, %v1147, %v1149
      %v1151 = vrot.slane %v974, 1
      %v1152 = vrot.slane %v979, 1
      %v1153 = vsel %vm1105, %v1151, %v1152
      %v1154 = vrot.slane %v982, 1
      %v1155 = vsel %vm1105, %v1152, %v1154
      %v1156 = vrot.slane %v987, 1
      %v1157 = vrot.slane %v990, 1
      %v1158 = vsel %vm1105, %v1156, %v1157
      %v1159 = vrot.slane %v995, 1
      %v1160 = vsel %vm1105, %v1157, %v1159
      %v1161 = vrot.slane %v998, 1
      %v1162 = vrot.slane %v1003, 1
      %v1163 = vsel %vm1105, %v1161, %v1162
      %v1164 = vrot.slane %v1006, 1
      %v1165 = vsel %vm1105, %v1162, %v1164
      %v1166 = vrot.slane %v1011, 1
      %v1167 = vrot.slane %v1014, 1
      %v1168 = vsel %vm1105, %v1166, %v1167
      %v1169 = vrot.slane %v1019, 1
      %v1170 = vsel %vm1105, %v1167, %v1169
      %v1171 = vrot.slane %v1022, 1
      %v1172 = vrot.slane %v1027, 1
      %v1173 = vsel %vm1105, %v1171, %v1172
      %v1174 = vrot.slane %v1030, 1
      %v1175 = vsel %vm1105, %v1172, %v1174
      %v1176 = vrot.slane %v1035, 1
      %v1177 = vrot.slane %v1038, 1
      %v1178 = vsel %vm1105, %v1176, %v1177
      %v1179 = vrot.slane %v1043, 1
      %v1180 = vsel %vm1105, %v1177, %v1179
      %v1181 = vrot.slane %v1046, 1
      %v1182 = vrot.slane %v1051, 1
      %v1183 = vsel %vm1105, %v1181, %v1182
      %v1184 = vrot.slane %v1054, 1
      %v1185 = vsel %vm1105, %v1182, %v1184
      %v1218 = vadd.f32 %v593, %v1108
      %v1219 = vadd.f32 %v596, %v1110
      %v1220 = vadd.f32 %v603, %v1113
      %v1221 = vadd.f32 %v608, %v1115
      %v1222 = vadd.f32 %v615, %v1118
      %v1223 = vadd.f32 %v618, %v1120
      %v1224 = vadd.f32 %v625, %v1123
      %v1225 = vadd.f32 %v630, %v1125
      %v1226 = vadd.f32 %v637, %v1128
      %v1227 = vadd.f32 %v640, %v1130
      %v1228 = vadd.f32 %v647, %v1133
      %v1229 = vadd.f32 %v652, %v1135
      %v1230 = vadd.f32 %v659, %v1138
      %v1231 = vadd.f32 %v662, %v1140
      %v1232 = vadd.f32 %v669, %v1143
      %v1233 = vadd.f32 %v674, %v1145
      %v1234 = vadd.f32 %v681, %v1148
      %v1235 = vadd.f32 %v684, %v1150
      %v1236 = vadd.f32 %v691, %v1153
      %v1237 = vadd.f32 %v696, %v1155
      %v1238 = vadd.f32 %v703, %v1158
      %v1239 = vadd.f32 %v706, %v1160
      %v1240 = vadd.f32 %v713, %v1163
      %v1241 = vadd.f32 %v718, %v1165
      %v1242 = vadd.f32 %v725, %v1168
      %v1243 = vadd.f32 %v728, %v1170
      %v1244 = vadd.f32 %v735, %v1173
      %v1245 = vadd.f32 %v740, %v1175
      %v1246 = vadd.f32 %v747, %v1178
      %v1247 = vadd.f32 %v750, %v1180
      %v1248 = vadd.f32 %v757, %v1183
      %v1249 = vadd.f32 %v762, %v1185
      %s1250 = scalar_lea.vmem %s1, 128
      %v1251 = vld [vmem:[%s1250] sm:$0xf]
      %v1252 = vld [vmem:[%s1250 + $0x4] sm:$0xf]
      %v1253 = vld [vmem:[%s1250 + $0x8] sm:$0xf]
      %v1254 = vld [vmem:[%s1250 + $0xc] sm:$0xf]
      %v1255 = vld [vmem:[%s1250 + $0x10] sm:$0xf]
      %v1256 = vld [vmem:[%s1250 + $0x14] sm:$0xf]
      %v1257 = vld [vmem:[%s1250 + $0x18] sm:$0xf]
      %v1258 = vld [vmem:[%s1250 + $0x1c] sm:$0xf]
      %v1259 = vld [vmem:[%s1250 + $0x20] sm:$0xf]
      %v1260 = vld [vmem:[%s1250 + $0x24] sm:$0xf]
      %v1261 = vld [vmem:[%s1250 + $0x28] sm:$0xf]
      %v1262 = vld [vmem:[%s1250 + $0x2c] sm:$0xf]
      %v1263 = vld [vmem:[%s1250 + $0x30] sm:$0xf]
      %v1264 = vld [vmem:[%s1250 + $0x34] sm:$0xf]
      %v1265 = vld [vmem:[%s1250 + $0x38] sm:$0xf]
      %v1266 = vld [vmem:[%s1250 + $0x3c] sm:$0xf]
      %v1283 = vunpack.c.l.b16 %v1251
      %v1284 = vunpack.c.l.b16 %v1252
      %v1285 = vunpack.c.l.b16 %v1253
      %v1286 = vunpack.c.l.b16 %v1254
      %v1287 = vunpack.c.l.b16 %v1255
      %v1288 = vunpack.c.l.b16 %v1256
      %v1289 = vunpack.c.l.b16 %v1257
      %v1290 = vunpack.c.l.b16 %v1258
      %v1291 = vunpack.c.l.b16 %v1259
      %v1292 = vunpack.c.l.b16 %v1260
      %v1293 = vunpack.c.l.b16 %v1261
      %v1294 = vunpack.c.l.b16 %v1262
      %v1295 = vunpack.c.l.b16 %v1263
      %v1296 = vunpack.c.l.b16 %v1264
      %v1297 = vunpack.c.l.b16 %v1265
      %v1298 = vunpack.c.l.b16 %v1266
      %v1299 = vpack.c.b16 %v1284, %v1283
      %v1300 = vpack.c.b16 %v1286, %v1285
      %v1301 = vpack.c.b16 %v1288, %v1287
      %v1302 = vpack.c.b16 %v1290, %v1289
      %v1303 = vpack.c.b16 %v1292, %v1291
      %v1304 = vpack.c.b16 %v1294, %v1293
      %v1305 = vpack.c.b16 %v1296, %v1295
      %v1306 = vpack.c.b16 %v1298, %v1297
      %1315 = vmatprep.subr.bf16.mxu0 0
      %1316 = vmatpush1.bf16.msra.mxu0 %v1299
      %1317 = vmatprep.subr.bf16.mxu0 0
      %1318 = vmatpush1.bf16.msra.mxu0 %v1300
      %1319 = vmatprep.subr.bf16.mxu0 0
      %1320 = vmatpush1.bf16.msra.mxu0 %v1301
      %1321 = vmatprep.subr.bf16.mxu0 0
      %1322 = vmatpush1.bf16.msra.mxu0 %v1302
      %1323 = vmatprep.subr.bf16.mxu0 0
      %1324 = vmatpush1.bf16.msra.mxu0 %v1303
      %1325 = vmatprep.subr.bf16.mxu0 0
      %1326 = vmatpush1.bf16.msra.mxu0 %v1304
      %1327 = vmatprep.subr.bf16.mxu0 0
      %1328 = vmatpush1.bf16.msra.mxu0 %v1305
      %1329 = vmatprep.subr.bf16.mxu0 0
      %1330 = vmatpush1.bf16.msra.mxu0 %v1306
      %1331 = vmatprep.subr.bf16.mxu0 0
      %1332 = vmatpush1.bf16.msra.mxu0 0
      %1333 = vmatprep.subr.bf16.mxu0 0
      %1334 = vmatpush1.bf16.msra.mxu0 0
      %1335 = vmatprep.subr.bf16.mxu0 0
      %1336 = vmatpush1.bf16.msra.mxu0 0
      %1337 = vmatprep.subr.bf16.mxu0 0
      %1338 = vmatpush1.bf16.msra.mxu0 0
      %1339 = vmatprep.subr.bf16.mxu0 0
      %1340 = vmatpush1.bf16.msra.mxu0 0
      %1341 = vmatprep.subr.bf16.mxu0 0
      %1342 = vmatpush1.bf16.msra.mxu0 0
      %1343 = vmatprep.subr.bf16.mxu0 0
      %1344 = vmatpush1.bf16.msra.mxu0 0
      %1345 = vmatprep.subr.bf16.mxu0 0
      %1346 = vmatpush1.bf16.msra.mxu0 0
      %1347 = vmatprep.mubr.bf16.mxu0 0
      %1348 = vmatmul.mubr.bf16.gmra.mrb[0].mxu0 %v470
      %v1349 = vpop.f32.mrb[0].mxu0
      %v1350 = vadd.f32 0.0, %v1349
      %v1351 = vpop.f32.mrb[0].mxu0
      %v1352 = vpop.f32.mrb[0].mxu0
      %v1353 = vadd.f32 0.0, %v1352
      %v1354 = vpop.f32.mrb[0].mxu0
      %1355 = vmatprep.mubr.bf16.mxu0 0
      %1356 = vmatmul.mubr.bf16.gmra.mrb[0].mxu0 %v471
      %v1357 = vpop.f32.mrb[0].mxu0
      %v1358 = vadd.f32 0.0, %v1357
      %v1359 = vpop.f32.mrb[0].mxu0
      %v1360 = vpop.f32.mrb[0].mxu0
      %v1361 = vadd.f32 0.0, %v1360
      %v1362 = vpop.f32.mrb[0].mxu0
      %1363 = vmatprep.mubr.bf16.mxu0 0
      %1364 = vmatmul.mubr.bf16.gmra.mrb[0].mxu0 %v472
      %v1365 = vpop.f32.mrb[0].mxu0
      %v1366 = vadd.f32 0.0, %v1365
      %v1367 = vpop.f32.mrb[0].mxu0
      %v1368 = vpop.f32.mrb[0].mxu0
      %v1369 = vadd.f32 0.0, %v1368
      %v1370 = vpop.f32.mrb[0].mxu0
      %1371 = vmatprep.mubr.bf16.mxu0 0
      %1372 = vmatmul.mubr.bf16.gmra.mrb[0].mxu0 %v473
      %v1373 = vpop.f32.mrb[0].mxu0
      %v1374 = vadd.f32 0.0, %v1373
      %v1375 = vpop.f32.mrb[0].mxu0
      %v1376 = vpop.f32.mrb[0].mxu0
      %v1377 = vadd.f32 0.0, %v1376
      %v1378 = vpop.f32.mrb[0].mxu0
      %1379 = vmatprep.mubr.bf16.mxu0 0
      %1380 = vmatmul.mubr.bf16.gmra.mrb[0].mxu0 %v474
      %v1381 = vpop.f32.mrb[0].mxu0
      %v1382 = vadd.f32 0.0, %v1381
      %v1383 = vpop.f32.mrb[0].mxu0
      %v1384 = vpop.f32.mrb[0].mxu0
      %v1385 = vadd.f32 0.0, %v1384
      %v1386 = vpop.f32.mrb[0].mxu0
      %1387 = vmatprep.mubr.bf16.mxu0 0
      %1388 = vmatmul.mubr.bf16.gmra.mrb[0].mxu0 %v475
      %v1389 = vpop.f32.mrb[0].mxu0
      %v1390 = vadd.f32 0.0, %v1389
      %v1391 = vpop.f32.mrb[0].mxu0
      %v1392 = vpop.f32.mrb[0].mxu0
      %v1393 = vadd.f32 0.0, %v1392
      %v1394 = vpop.f32.mrb[0].mxu0
      %1395 = vmatprep.mubr.bf16.mxu0 0
      %1396 = vmatmul.mubr.bf16.gmra.mrb[0].mxu0 %v476
      %v1397 = vpop.f32.mrb[0].mxu0
      %v1398 = vadd.f32 0.0, %v1397
      %v1399 = vpop.f32.mrb[0].mxu0
      %v1400 = vpop.f32.mrb[0].mxu0
      %v1401 = vadd.f32 0.0, %v1400
      %v1402 = vpop.f32.mrb[0].mxu0
      %1403 = vmatprep.mubr.bf16.mxu0 0
      %1404 = vmatmul.mubr.bf16.gmra.mrb[0].mxu0 %v477
      %v1405 = vpop.f32.mrb[0].mxu0
      %v1406 = vadd.f32 0.0, %v1405
      %v1407 = vpop.f32.mrb[0].mxu0
      %v1408 = vpop.f32.mrb[0].mxu0
      %v1409 = vadd.f32 0.0, %v1408
      %v1410 = vpop.f32.mrb[0].mxu0
      %1411 = vmatprep.mubr.bf16.mxu0 0
      %1412 = vmatmul.mubr.bf16.gmra.mrb[0].mxu0 %v478
      %v1413 = vpop.f32.mrb[0].mxu0
      %v1414 = vadd.f32 0.0, %v1413
      %v1415 = vpop.f32.mrb[0].mxu0
      %v1416 = vpop.f32.mrb[0].mxu0
      %v1417 = vadd.f32 0.0, %v1416
      %v1418 = vpop.f32.mrb[0].mxu0
      %1419 = vmatprep.mubr.bf16.mxu0 0
      %1420 = vmatmul.mubr.bf16.gmra.mrb[0].mxu0 %v479
      %v1421 = vpop.f32.mrb[0].mxu0
      %v1422 = vadd.f32 0.0, %v1421
      %v1423 = vpop.f32.mrb[0].mxu0
      %v1424 = vpop.f32.mrb[0].mxu0
      %v1425 = vadd.f32 0.0, %v1424
      %v1426 = vpop.f32.mrb[0].mxu0
      %1427 = vmatprep.mubr.bf16.mxu0 0
      %1428 = vmatmul.mubr.bf16.gmra.mrb[0].mxu0 %v480
      %v1429 = vpop.f32.mrb[0].mxu0
      %v1430 = vadd.f32 0.0, %v1429
      %v1431 = vpop.f32.mrb[0].mxu0
      %v1432 = vpop.f32.mrb[0].mxu0
      %v1433 = vadd.f32 0.0, %v1432
      %v1434 = vpop.f32.mrb[0].mxu0
      %1435 = vmatprep.mubr.bf16.mxu0 0
      %1436 = vmatmul.mubr.bf16.gmra.mrb[0].mxu0 %v481
      %v1437 = vpop.f32.mrb[0].mxu0
      %v1438 = vadd.f32 0.0, %v1437
      %v1439 = vpop.f32.mrb[0].mxu0
      %v1440 = vpop.f32.mrb[0].mxu0
      %v1441 = vadd.f32 0.0, %v1440
      %v1442 = vpop.f32.mrb[0].mxu0
      %1443 = vmatprep.mubr.bf16.mxu0 0
      %1444 = vmatmul.mubr.bf16.gmra.mrb[0].mxu0 %v482
      %v1445 = vpop.f32.mrb[0].mxu0
      %v1446 = vadd.f32 0.0, %v1445
      %v1447 = vpop.f32.mrb[0].mxu0
      %v1448 = vpop.f32.mrb[0].mxu0
      %v1449 = vadd.f32 0.0, %v1448
      %v1450 = vpop.f32.mrb[0].mxu0
      %1451 = vmatprep.mubr.bf16.mxu0 0
      %1452 = vmatmul.mubr.bf16.gmra.mrb[0].mxu0 %v483
      %v1453 = vpop.f32.mrb[0].mxu0
      %v1454 = vadd.f32 0.0, %v1453
      %v1455 = vpop.f32.mrb[0].mxu0
      %v1456 = vpop.f32.mrb[0].mxu0
      %v1457 = vadd.f32 0.0, %v1456
      %v1458 = vpop.f32.mrb[0].mxu0
      %1459 = vmatprep.mubr.bf16.mxu0 0
      %1460 = vmatmul.mubr.bf16.gmra.mrb[0].mxu0 %v484
      %v1461 = vpop.f32.mrb[0].mxu0
      %v1462 = vadd.f32 0.0, %v1461
      %v1463 = vpop.f32.mrb[0].mxu0
      %v1464 = vpop.f32.mrb[0].mxu0
      %v1465 = vadd.f32 0.0, %v1464
      %v1466 = vpop.f32.mrb[0].mxu0
      %1467 = vmatprep.mubr.bf16.mxu0 0
      %1468 = vmatmul.mubr.bf16.gmra.mrb[0].mxu0 %v485
      %v1469 = vpop.f32.mrb[0].mxu0
      %v1470 = vadd.f32 0.0, %v1469
      %v1471 = vpop.f32.mrb[0].mxu0
      %v1472 = vpop.f32.mrb[0].mxu0
      %v1473 = vadd.f32 0.0, %v1472
      %v1474 = vpop.f32.mrb[0].mxu0
      %1475 = vmatprep.mubr.bf16.mxu0 0
      %1476 = vmatmul.mubr.bf16.gmra.mrb[0].mxu0 %v486
      %v1477 = vpop.f32.mrb[0].mxu0
      %v1478 = vadd.f32 0.0, %v1477
      %v1479 = vpop.f32.mrb[0].mxu0
      %v1480 = vpop.f32.mrb[0].mxu0
      %v1481 = vadd.f32 0.0, %v1480
      %v1482 = vpop.f32.mrb[0].mxu0
      %1483 = vmatprep.mubr.bf16.mxu0 0
      %1484 = vmatmul.mubr.bf16.gmra.mrb[0].mxu0 %v487
      %v1485 = vpop.f32.mrb[0].mxu0
      %v1486 = vadd.f32 0.0, %v1485
      %v1487 = vpop.f32.mrb[0].mxu0
      %v1488 = vpop.f32.mrb[0].mxu0
      %v1489 = vadd.f32 0.0, %v1488
      %v1490 = vpop.f32.mrb[0].mxu0
      %1491 = vmatprep.mubr.bf16.mxu0 0
      %1492 = vmatmul.mubr.bf16.gmra.mrb[0].mxu0 %v488
      %v1493 = vpop.f32.mrb[0].mxu0
      %v1494 = vadd.f32 0.0, %v1493
      %v1495 = vpop.f32.mrb[0].mxu0
      %v1496 = vpop.f32.mrb[0].mxu0
      %v1497 = vadd.f32 0.0, %v1496
      %v1498 = vpop.f32.mrb[0].mxu0
      %1499 = vmatprep.mubr.bf16.mxu0 0
      %1500 = vmatmul.mubr.bf16.gmra.mrb[0].mxu0 %v489
      %v1501 = vpop.f32.mrb[0].mxu0
      %v1502 = vadd.f32 0.0, %v1501
      %v1503 = vpop.f32.mrb[0].mxu0
      %v1504 = vpop.f32.mrb[0].mxu0
      %v1505 = vadd.f32 0.0, %v1504
      %v1506 = vpop.f32.mrb[0].mxu0
      %1507 = vmatprep.mubr.bf16.mxu0 0
      %1508 = vmatmul.mubr.bf16.gmra.mrb[0].mxu0 %v490
      %v1509 = vpop.f32.mrb[0].mxu0
      %v1510 = vadd.f32 0.0, %v1509
      %v1511 = vpop.f32.mrb[0].mxu0
      %v1512 = vpop.f32.mrb[0].mxu0
      %v1513 = vadd.f32 0.0, %v1512
      %v1514 = vpop.f32.mrb[0].mxu0
      %1515 = vmatprep.mubr.bf16.mxu0 0
      %1516 = vmatmul.mubr.bf16.gmra.mrb[0].mxu0 %v491
      %v1517 = vpop.f32.mrb[0].mxu0
      %v1518 = vadd.f32 0.0, %v1517
      %v1519 = vpop.f32.mrb[0].mxu0
      %v1520 = vpop.f32.mrb[0].mxu0
      %v1521 = vadd.f32 0.0, %v1520
      %v1522 = vpop.f32.mrb[0].mxu0
      %1523 = vmatprep.mubr.bf16.mxu0 0
      %1524 = vmatmul.mubr.bf16.gmra.mrb[0].mxu0 %v492
      %v1525 = vpop.f32.mrb[0].mxu0
      %v1526 = vadd.f32 0.0, %v1525
      %v1527 = vpop.f32.mrb[0].mxu0
      %v1528 = vpop.f32.mrb[0].mxu0
      %v1529 = vadd.f32 0.0, %v1528
      %v1530 = vpop.f32.mrb[0].mxu0
      %1531 = vmatprep.mubr.bf16.mxu0 0
      %1532 = vmatmul.mubr.bf16.gmra.mrb[0].mxu0 %v493
      %v1533 = vpop.f32.mrb[0].mxu0
      %v1534 = vadd.f32 0.0, %v1533
      %v1535 = vpop.f32.mrb[0].mxu0
      %v1536 = vpop.f32.mrb[0].mxu0
      %v1537 = vadd.f32 0.0, %v1536
      %v1538 = vpop.f32.mrb[0].mxu0
      %1539 = vdwg.mxu0
      %vm1588 = vcmask 1045504
      %v1589 = vrot.slane %v1350, 2
      %v1590 = vrot.slane %v1353, 2
      %v1591 = vsel %vm1588, %v1589, %v1590
      %v1592 = vrot.slane %v1358, 2
      %v1593 = vsel %vm1588, %v1590, %v1592
      %v1594 = vrot.slane %v1361, 2
      %v1595 = vrot.slane %v1366, 2
      %v1596 = vsel %vm1588, %v1594, %v1595
      %v1597 = vrot.slane %v1369, 2
      %v1598 = vsel %vm1588, %v1595, %v1597
      %v1599 = vrot.slane %v1374, 2
      %v1600 = vrot.slane %v1377, 2
      %v1601 = vsel %vm1588, %v1599, %v1600
      %v1602 = vrot.slane %v1382, 2
      %v1603 = vsel %vm1588, %v1600, %v1602
      %v1604 = vrot.slane %v1385, 2
      %v1605 = vrot.slane %v1390, 2
      %v1606 = vsel %vm1588, %v1604, %v1605
      %v1607 = vrot.slane %v1393, 2
      %v1608 = vsel %vm1588, %v1605, %v1607
      %v1609 = vrot.slane %v1398, 2
      %v1610 = vrot.slane %v1401, 2
      %v1611 = vsel %vm1588, %v1609, %v1610
      %v1612 = vrot.slane %v1406, 2
      %v1613 = vsel %vm1588, %v1610, %v1612
      %v1614 = vrot.slane %v1409, 2
      %v1615 = vrot.slane %v1414, 2
      %v1616 = vsel %vm1588, %v1614, %v1615
      %v1617 = vrot.slane %v1417, 2
      %v1618 = vsel %vm1588, %v1615, %v1617
      %v1619 = vrot.slane %v1422, 2
      %v1620 = vrot.slane %v1425, 2
      %v1621 = vsel %vm1588, %v1619, %v1620
      %v1622 = vrot.slane %v1430, 2
      %v1623 = vsel %vm1588, %v1620, %v1622
      %v1624 = vrot.slane %v1433, 2
      %v1625 = vrot.slane %v1438, 2
      %v1626 = vsel %vm1588, %v1624, %v1625
      %v1627 = vrot.slane %v1441, 2
      %v1628 = vsel %vm1588, %v1625, %v1627
      %v1629 = vrot.slane %v1446, 2
      %v1630 = vrot.slane %v1449, 2
      %v1631 = vsel %vm1588, %v1629, %v1630
      %v1632 = vrot.slane %v1454, 2
      %v1633 = vsel %vm1588, %v1630, %v1632
      %v1634 = vrot.slane %v1457, 2
      %v1635 = vrot.slane %v1462, 2
      %v1636 = vsel %vm1588, %v1634, %v1635
      %v1637 = vrot.slane %v1465, 2
      %v1638 = vsel %vm1588, %v1635, %v1637
      %v1639 = vrot.slane %v1470, 2
      %v1640 = vrot.slane %v1473, 2
      %v1641 = vsel %vm1588, %v1639, %v1640
      %v1642 = vrot.slane %v1478, 2
      %v1643 = vsel %vm1588, %v1640, %v1642
      %v1644 = vrot.slane %v1481, 2
      %v1645 = vrot.slane %v1486, 2
      %v1646 = vsel %vm1588, %v1644, %v1645
      %v1647 = vrot.slane %v1489, 2
      %v1648 = vsel %vm1588, %v1645, %v1647
      %v1649 = vrot.slane %v1494, 2
      %v1650 = vrot.slane %v1497, 2
      %v1651 = vsel %vm1588, %v1649, %v1650
      %v1652 = vrot.slane %v1502, 2
      %v1653 = vsel %vm1588, %v1650, %v1652
      %v1654 = vrot.slane %v1505, 2
      %v1655 = vrot.slane %v1510, 2
      %v1656 = vsel %vm1588, %v1654, %v1655
      %v1657 = vrot.slane %v1513, 2
      %v1658 = vsel %vm1588, %v1655, %v1657
      %v1659 = vrot.slane %v1518, 2
      %v1660 = vrot.slane %v1521, 2
      %v1661 = vsel %vm1588, %v1659, %v1660
      %v1662 = vrot.slane %v1526, 2
      %v1663 = vsel %vm1588, %v1660, %v1662
      %v1664 = vrot.slane %v1529, 2
      %v1665 = vrot.slane %v1534, 2
      %v1666 = vsel %vm1588, %v1664, %v1665
      %v1667 = vrot.slane %v1537, 2
      %v1668 = vsel %vm1588, %v1665, %v1667
      %v1701 = vadd.f32 %v1218, %v1591
      %v1702 = vadd.f32 %v1219, %v1593
      %v1703 = vadd.f32 %v1220, %v1596
      %v1704 = vadd.f32 %v1221, %v1598
      %v1705 = vadd.f32 %v1222, %v1601
      %v1706 = vadd.f32 %v1223, %v1603
      %v1707 = vadd.f32 %v1224, %v1606
      %v1708 = vadd.f32 %v1225, %v1608
      %v1709 = vadd.f32 %v1226, %v1611
      %v1710 = vadd.f32 %v1227, %v1613
      %v1711 = vadd.f32 %v1228, %v1616
      %v1712 = vadd.f32 %v1229, %v1618
      %v1713 = vadd.f32 %v1230, %v1621
      %v1714 = vadd.f32 %v1231, %v1623
      %v1715 = vadd.f32 %v1232, %v1626
      %v1716 = vadd.f32 %v1233, %v1628
      %v1717 = vadd.f32 %v1234, %v1631
      %v1718 = vadd.f32 %v1235, %v1633
      %v1719 = vadd.f32 %v1236, %v1636
      %v1720 = vadd.f32 %v1237, %v1638
      %v1721 = vadd.f32 %v1238, %v1641
      %v1722 = vadd.f32 %v1239, %v1643
      %v1723 = vadd.f32 %v1240, %v1646
      %v1724 = vadd.f32 %v1241, %v1648
      %v1725 = vadd.f32 %v1242, %v1651
      %v1726 = vadd.f32 %v1243, %v1653
      %v1727 = vadd.f32 %v1244, %v1656
      %v1728 = vadd.f32 %v1245, %v1658
      %v1729 = vadd.f32 %v1246, %v1661
      %v1730 = vadd.f32 %v1247, %v1663
      %v1731 = vadd.f32 %v1248, %v1666
      %v1732 = vadd.f32 %v1249, %v1668
      %v1733 = vld [vmem:[%s387] sm:$0xff]
      %v1734 = vld [vmem:[%s387 + $0x8] sm:$0xff]
      %v1735 = vld [vmem:[%s387 + $0x10] sm:$0xff]
      %v1736 = vld [vmem:[%s387 + $0x18] sm:$0xff]
      %v1737 = vld [vmem:[%s387 + $0x20] sm:$0xff]
      %v1738 = vld [vmem:[%s387 + $0x28] sm:$0xff]
      %v1739 = vld [vmem:[%s387 + $0x30] sm:$0xff]
      %v1740 = vld [vmem:[%s387 + $0x38] sm:$0xff]
      %v1741 = vld [vmem:[%s387 + $0x40] sm:$0xff]
      %v1742 = vld [vmem:[%s387 + $0x48] sm:$0xff]
      %v1743 = vld [vmem:[%s387 + $0x50] sm:$0xff]
      %v1744 = vld [vmem:[%s387 + $0x58] sm:$0xff]
      %v1745 = vld [vmem:[%s387 + $0x60] sm:$0xff]
      %v1746 = vld [vmem:[%s387 + $0x68] sm:$0xff]
      %v1747 = vld [vmem:[%s387 + $0x70] sm:$0xff]
      %v1748 = vld [vmem:[%s387 + $0x78] sm:$0xff]
      %v1749 = vld [vmem:[%s387 + $0x80] sm:$0xff]
      %v1750 = vld [vmem:[%s387 + $0x88] sm:$0xff]
      %v1751 = vld [vmem:[%s387 + $0x90] sm:$0xff]
      %v1752 = vld [vmem:[%s387 + $0x98] sm:$0xff]
      %v1753 = vld [vmem:[%s387 + $0xa0] sm:$0xff]
      %v1754 = vld [vmem:[%s387 + $0xa8] sm:$0xff]
      %v1755 = vld [vmem:[%s387 + $0xb0] sm:$0xff]
      %v1756 = vld [vmem:[%s387 + $0xb8] sm:$0xff]
      %v1757 = vld [vmem:[%s387 + $0xc0] sm:$0xff]
      %v1758 = vld [vmem:[%s387 + $0xc8] sm:$0xff]
      %v1759 = vld [vmem:[%s387 + $0xd0] sm:$0xff]
      %v1760 = vld [vmem:[%s387 + $0xd8] sm:$0xff]
      %v1761 = vld [vmem:[%s387 + $0xe0] sm:$0xff]
      %v1762 = vld [vmem:[%s387 + $0xe8] sm:$0xff]
      %v1763 = vld [vmem:[%s387 + $0xf0] sm:$0xff]
      %v1764 = vld [vmem:[%s387 + $0xf8] sm:$0xff]
      %v1765 = vld [vmem:[%s387 + $0x100] sm:$0xff]
      %v1766 = vld [vmem:[%s387 + $0x108] sm:$0xff]
      %v1767 = vld [vmem:[%s387 + $0x110] sm:$0xff]
      %v1768 = vld [vmem:[%s387 + $0x118] sm:$0xff]
      %v1769 = vld [vmem:[%s387 + $0x120] sm:$0xff]
      %v1770 = vld [vmem:[%s387 + $0x128] sm:$0xff]
      %v1771 = vld [vmem:[%s387 + $0x130] sm:$0xff]
      %v1772 = vld [vmem:[%s387 + $0x138] sm:$0xff]
      %v1773 = vld [vmem:[%s387 + $0x140] sm:$0xff]
      %v1774 = vld [vmem:[%s387 + $0x148] sm:$0xff]
      %v1775 = vld [vmem:[%s387 + $0x150] sm:$0xff]
      %v1776 = vld [vmem:[%s387 + $0x158] sm:$0xff]
      %v1777 = vld [vmem:[%s387 + $0x160] sm:$0xff]
      %v1778 = vld [vmem:[%s387 + $0x168] sm:$0xff]
      %v1779 = vld [vmem:[%s387 + $0x170] sm:$0xff]
      %v1780 = vld [vmem:[%s387 + $0x178] sm:$0xff]
      %v1781 = vpack.c.bf16 %v1734, %v1733
      %v1782 = vpack.c.bf16 %v1736, %v1735
      %v1783 = vpack.c.bf16 %v1738, %v1737
      %v1784 = vpack.c.bf16 %v1740, %v1739
      %v1785 = vpack.c.bf16 %v1742, %v1741
      %v1786 = vpack.c.bf16 %v1744, %v1743
      %v1787 = vpack.c.bf16 %v1746, %v1745
      %v1788 = vpack.c.bf16 %v1748, %v1747
      %v1789 = vpack.c.bf16 %v1750, %v1749
      %v1790 = vpack.c.bf16 %v1752, %v1751
      %v1791 = vpack.c.bf16 %v1754, %v1753
      %v1792 = vpack.c.bf16 %v1756, %v1755
      %v1793 = vpack.c.bf16 %v1758, %v1757
      %v1794 = vpack.c.bf16 %v1760, %v1759
      %v1795 = vpack.c.bf16 %v1762, %v1761
      %v1796 = vpack.c.bf16 %v1764, %v1763
      %v1797 = vpack.c.bf16 %v1766, %v1765
      %v1798 = vpack.c.bf16 %v1768, %v1767
      %v1799 = vpack.c.bf16 %v1770, %v1769
      %v1800 = vpack.c.bf16 %v1772, %v1771
      %v1801 = vpack.c.bf16 %v1774, %v1773
      %v1802 = vpack.c.bf16 %v1776, %v1775
      %v1803 = vpack.c.bf16 %v1778, %v1777
      %v1804 = vpack.c.bf16 %v1780, %v1779
      %s1805 = scalar_lea.vmem %s1, 192
      %v1806 = vld [vmem:[%s1805] sm:$0xf]
      %v1807 = vld [vmem:[%s1805 + $0x4] sm:$0xf]
      %v1808 = vld [vmem:[%s1805 + $0x8] sm:$0xf]
      %v1809 = vld [vmem:[%s1805 + $0xc] sm:$0xf]
      %v1810 = vld [vmem:[%s1805 + $0x10] sm:$0xf]
      %v1811 = vld [vmem:[%s1805 + $0x14] sm:$0xf]
      %v1812 = vld [vmem:[%s1805 + $0x18] sm:$0xf]
      %v1813 = vld [vmem:[%s1805 + $0x1c] sm:$0xf]
      %v1814 = vld [vmem:[%s1805 + $0x20] sm:$0xf]
      %v1815 = vld [vmem:[%s1805 + $0x24] sm:$0xf]
      %v1816 = vld [vmem:[%s1805 + $0x28] sm:$0xf]
      %v1817 = vld [vmem:[%s1805 + $0x2c] sm:$0xf]
      %v1818 = vld [vmem:[%s1805 + $0x30] sm:$0xf]
      %v1819 = vld [vmem:[%s1805 + $0x34] sm:$0xf]
      %v1820 = vld [vmem:[%s1805 + $0x38] sm:$0xf]
      %v1821 = vld [vmem:[%s1805 + $0x3c] sm:$0xf]
      %v1838 = vunpack.c.l.b16 %v1806
      %v1839 = vunpack.c.l.b16 %v1807
      %v1840 = vunpack.c.l.b16 %v1808
      %v1841 = vunpack.c.l.b16 %v1809
      %v1842 = vunpack.c.l.b16 %v1810
      %v1843 = vunpack.c.l.b16 %v1811
      %v1844 = vunpack.c.l.b16 %v1812
      %v1845 = vunpack.c.l.b16 %v1813
      %v1846 = vunpack.c.l.b16 %v1814
      %v1847 = vunpack.c.l.b16 %v1815
      %v1848 = vunpack.c.l.b16 %v1816
      %v1849 = vunpack.c.l.b16 %v1817
      %v1850 = vunpack.c.l.b16 %v1818
      %v1851 = vunpack.c.l.b16 %v1819
      %v1852 = vunpack.c.l.b16 %v1820
      %v1853 = vunpack.c.l.b16 %v1821
      %v1854 = vpack.c.b16 %v1839, %v1838
      %v1855 = vpack.c.b16 %v1841, %v1840
      %v1856 = vpack.c.b16 %v1843, %v1842
      %v1857 = vpack.c.b16 %v1845, %v1844
      %v1858 = vpack.c.b16 %v1847, %v1846
      %v1859 = vpack.c.b16 %v1849, %v1848
      %v1860 = vpack.c.b16 %v1851, %v1850
      %v1861 = vpack.c.b16 %v1853, %v1852
      %1870 = vmatprep.subr.bf16.mxu0 0
      %1871 = vmatpush1.bf16.msra.mxu0 %v1854
      %1872 = vmatprep.subr.bf16.mxu0 0
      %1873 = vmatpush1.bf16.msra.mxu0 %v1855
      %1874 = vmatprep.subr.bf16.mxu0 0
      %1875 = vmatpush1.bf16.msra.mxu0 %v1856
      %1876 = vmatprep.subr.bf16.mxu0 0
      %1877 = vmatpush1.bf16.msra.mxu0 %v1857
      %1878 = vmatprep.subr.bf16.mxu0 0
      %1879 = vmatpush1.bf16.msra.mxu0 %v1858
      %1880 = vmatprep.subr.bf16.mxu0 0
      %1881 = vmatpush1.bf16.msra.mxu0 %v1859
      %1882 = vmatprep.subr.bf16.mxu0 0
      %1883 = vmatpush1.bf16.msra.mxu0 %v1860
      %1884 = vmatprep.subr.bf16.mxu0 0
      %1885 = vmatpush1.bf16.msra.mxu0 %v1861
      %1886 = vmatprep.subr.bf16.mxu0 0
      %1887 = vmatpush1.bf16.msra.mxu0 0
      %1888 = vmatprep.subr.bf16.mxu0 0
      %1889 = vmatpush1.bf16.msra.mxu0 0
      %1890 = vmatprep.subr.bf16.mxu0 0
      %1891 = vmatpush1.bf16.msra.mxu0 0
      %1892 = vmatprep.subr.bf16.mxu0 0
      %1893 = vmatpush1.bf16.msra.mxu0 0
      %1894 = vmatprep.subr.bf16.mxu0 0
      %1895 = vmatpush1.bf16.msra.mxu0 0
      %1896 = vmatprep.subr.bf16.mxu0 0
      %1897 = vmatpush1.bf16.msra.mxu0 0
      %1898 = vmatprep.subr.bf16.mxu0 0
      %1899 = vmatpush1.bf16.msra.mxu0 0
      %1900 = vmatprep.subr.bf16.mxu0 0
      %1901 = vmatpush1.bf16.msra.mxu0 0
      %1902 = vmatprep.mubr.bf16.mxu0 0
      %1903 = vmatmul.mubr.bf16.gmra.mrb[0].mxu0 %v1781
      %v1904 = vpop.f32.mrb[0].mxu0
      %v1905 = vadd.f32 0.0, %v1904
      %v1906 = vpop.f32.mrb[0].mxu0
      %v1907 = vpop.f32.mrb[0].mxu0
      %v1908 = vadd.f32 0.0, %v1907
      %v1909 = vpop.f32.mrb[0].mxu0
      %1910 = vmatprep.mubr.bf16.mxu0 0
      %1911 = vmatmul.mubr.bf16.gmra.mrb[0].mxu0 %v1782
      %v1912 = vpop.f32.mrb[0].mxu0
      %v1913 = vpop.f32.mrb[0].mxu0
      %v1914 = vpop.f32.mrb[0].mxu0
      %v1915 = vadd.f32 0.0, %v1914
      %v1916 = vpop.f32.mrb[0].mxu0
      %1917 = vmatprep.mubr.bf16.mxu0 0
      %1918 = vmatmul.mubr.bf16.gmra.mrb[0].mxu0 %v1783
      %v1919 = vpop.f32.mrb[0].mxu0
      %v1920 = vadd.f32 0.0, %v1919
      %v1921 = vpop.f32.mrb[0].mxu0
      %v1922 = vpop.f32.mrb[0].mxu0
      %v1923 = vpop.f32.mrb[0].mxu0
      %1924 = vmatprep.mubr.bf16.mxu0 0
      %1925 = vmatmul.mubr.bf16.gmra.mrb[0].mxu0 %v1784
      %v1926 = vpop.f32.mrb[0].mxu0
      %v1927 = vadd.f32 0.0, %v1926
      %v1928 = vpop.f32.mrb[0].mxu0
      %v1929 = vpop.f32.mrb[0].mxu0
      %v1930 = vadd.f32 0.0, %v1929
      %v1931 = vpop.f32.mrb[0].mxu0
      %1932 = vmatprep.mubr.bf16.mxu0 0
      %1933 = vmatmul.mubr.bf16.gmra.mrb[0].mxu0 %v1785
      %v1934 = vpop.f32.mrb[0].mxu0
      %v1935 = vpop.f32.mrb[0].mxu0
      %v1936 = vpop.f32.mrb[0].mxu0
      %v1937 = vadd.f32 0.0, %v1936
      %v1938 = vpop.f32.mrb[0].mxu0
      %1939 = vmatprep.mubr.bf16.mxu0 0
      %1940 = vmatmul.mubr.bf16.gmra.mrb[0].mxu0 %v1786
      %v1941 = vpop.f32.mrb[0].mxu0
      %v1942 = vadd.f32 0.0, %v1941
      %v1943 = vpop.f32.mrb[0].mxu0
      %v1944 = vpop.f32.mrb[0].mxu0
      %v1945 = vpop.f32.mrb[0].mxu0
      %1946 = vmatprep.mubr.bf16.mxu0 0
      %1947 = vmatmul.mubr.bf16.gmra.mrb[0].mxu0 %v1787
      %v1948 = vpop.f32.mrb[0].mxu0
      %v1949 = vadd.f32 0.0, %v1948
      %v1950 = vpop.f32.mrb[0].mxu0
      %v1951 = vpop.f32.mrb[0].mxu0
      %v1952 = vadd.f32 0.0, %v1951
      %v1953 = vpop.f32.mrb[0].mxu0
      %1954 = vmatprep.mubr.bf16.mxu0 0
      %1955 = vmatmul.mubr.bf16.gmra.mrb[0].mxu0 %v1788
      %v1956 = vpop.f32.mrb[0].mxu0
      %v1957 = vpop.f32.mrb[0].mxu0
      %v1958 = vpop.f32.mrb[0].mxu0
      %v1959 = vadd.f32 0.0, %v1958
      %v1960 = vpop.f32.mrb[0].mxu0
      %1961 = vmatprep.mubr.bf16.mxu0 0
      %1962 = vmatmul.mubr.bf16.gmra.mrb[0].mxu0 %v1789
      %v1963 = vpop.f32.mrb[0].mxu0
      %v1964 = vadd.f32 0.0, %v1963
      %v1965 = vpop.f32.mrb[0].mxu0
      %v1966 = vpop.f32.mrb[0].mxu0
      %v1967 = vpop.f32.mrb[0].mxu0
      %1968 = vmatprep.mubr.bf16.mxu0 0
      %1969 = vmatmul.mubr.bf16.gmra.mrb[0].mxu0 %v1790
      %v1970 = vpop.f32.mrb[0].mxu0
      %v1971 = vadd.f32 0.0, %v1970
      %v1972 = vpop.f32.mrb[0].mxu0
      %v1973 = vpop.f32.mrb[0].mxu0
      %v1974 = vadd.f32 0.0, %v1973
      %v1975 = vpop.f32.mrb[0].mxu0
      %1976 = vmatprep.mubr.bf16.mxu0 0
      %1977 = vmatmul.mubr.bf16.gmra.mrb[0].mxu0 %v1791
      %v1978 = vpop.f32.mrb[0].mxu0
      %v1979 = vpop.f32.mrb[0].mxu0
      %v1980 = vpop.f32.mrb[0].mxu0
      %v1981 = vadd.f32 0.0, %v1980
      %v1982 = vpop.f32.mrb[0].mxu0
      %1983 = vmatprep.mubr.bf16.mxu0 0
      %1984 = vmatmul.mubr.bf16.gmra.mrb[0].mxu0 %v1792
      %v1985 = vpop.f32.mrb[0].mxu0
      %v1986 = vadd.f32 0.0, %v1985
      %v1987 = vpop.f32.mrb[0].mxu0
      %v1988 = vpop.f32.mrb[0].mxu0
      %v1989 = vpop.f32.mrb[0].mxu0
      %1990 = vmatprep.mubr.bf16.mxu0 0
      %1991 = vmatmul.mubr.bf16.gmra.mrb[0].mxu0 %v1793
      %v1992 = vpop.f32.mrb[0].mxu0
      %v1993 = vadd.f32 0.0, %v1992
      %v1994 = vpop.f32.mrb[0].mxu0
      %v1995 = vpop.f32.mrb[0].mxu0
      %v1996 = vadd.f32 0.0, %v1995
      %v1997 = vpop.f32.mrb[0].mxu0
      %1998 = vmatprep.mubr.bf16.mxu0 0
      %1999 = vmatmul.mubr.bf16.gmra.mrb[0].mxu0 %v1794
      %v2000 = vpop.f32.mrb[0].mxu0
      %v2001 = vpop.f32.mrb[0].mxu0
      %v2002 = vpop.f32.mrb[0].mxu0
      %v2003 = vadd.f32 0.0, %v2002
      %v2004 = vpop.f32.mrb[0].mxu0
      %2005 = vmatprep.mubr.bf16.mxu0 0
      %2006 = vmatmul.mubr.bf16.gmra.mrb[0].mxu0 %v1795
      %v2007 = vpop.f32.mrb[0].mxu0
      %v2008 = vadd.f32 0.0, %v2007
      %v2009 = vpop.f32.mrb[0].mxu0
      %v2010 = vpop.f32.mrb[0].mxu0
      %v2011 = vpop.f32.mrb[0].mxu0
      %2012 = vmatprep.mubr.bf16.mxu0 0
      %2013 = vmatmul.mubr.bf16.gmra.mrb[0].mxu0 %v1796
      %v2014 = vpop.f32.mrb[0].mxu0
      %v2015 = vadd.f32 0.0, %v2014
      %v2016 = vpop.f32.mrb[0].mxu0
      %v2017 = vpop.f32.mrb[0].mxu0
      %v2018 = vadd.f32 0.0, %v2017
      %v2019 = vpop.f32.mrb[0].mxu0
      %2020 = vmatprep.mubr.bf16.mxu0 0
      %2021 = vmatmul.mubr.bf16.gmra.mrb[0].mxu0 %v1797
      %v2022 = vpop.f32.mrb[0].mxu0
      %v2023 = vpop.f32.mrb[0].mxu0
      %v2024 = vpop.f32.mrb[0].mxu0
      %v2025 = vadd.f32 0.0, %v2024
      %v2026 = vpop.f32.mrb[0].mxu0
      %2027 = vmatprep.mubr.bf16.mxu0 0
      %2028 = vmatmul.mubr.bf16.gmra.mrb[0].mxu0 %v1798
      %v2029 = vpop.f32.mrb[0].mxu0
      %v2030 = vadd.f32 0.0, %v2029
      %v2031 = vpop.f32.mrb[0].mxu0
      %v2032 = vpop.f32.mrb[0].mxu0
      %v2033 = vpop.f32.mrb[0].mxu0
      %2034 = vmatprep.mubr.bf16.mxu0 0
      %2035 = vmatmul.mubr.bf16.gmra.mrb[0].mxu0 %v1799
      %v2036 = vpop.f32.mrb[0].mxu0
      %v2037 = vadd.f32 0.0, %v2036
      %v2038 = vpop.f32.mrb[0].mxu0
      %v2039 = vpop.f32.mrb[0].mxu0
      %v2040 = vadd.f32 0.0, %v2039
      %v2041 = vpop.f32.mrb[0].mxu0
      %2042 = vmatprep.mubr.bf16.mxu0 0
      %2043 = vmatmul.mubr.bf16.gmra.mrb[0].mxu0 %v1800
      %v2044 = vpop.f32.mrb[0].mxu0
      %v2045 = vpop.f32.mrb[0].mxu0
      %v2046 = vpop.f32.mrb[0].mxu0
      %v2047 = vadd.f32 0.0, %v2046
      %v2048 = vpop.f32.mrb[0].mxu0
      %2049 = vmatprep.mubr.bf16.mxu0 0
      %2050 = vmatmul.mubr.bf16.gmra.mrb[0].mxu0 %v1801
      %v2051 = vpop.f32.mrb[0].mxu0
      %v2052 = vadd.f32 0.0, %v2051
      %v2053 = vpop.f32.mrb[0].mxu0
      %v2054 = vpop.f32.mrb[0].mxu0
      %v2055 = vpop.f32.mrb[0].mxu0
      %2056 = vmatprep.mubr.bf16.mxu0 0
      %2057 = vmatmul.mubr.bf16.gmra.mrb[0].mxu0 %v1802
      %v2058 = vpop.f32.mrb[0].mxu0
      %v2059 = vadd.f32 0.0, %v2058
      %v2060 = vpop.f32.mrb[0].mxu0
      %v2061 = vpop.f32.mrb[0].mxu0
      %v2062 = vadd.f32 0.0, %v2061
      %v2063 = vpop.f32.mrb[0].mxu0
      %2064 = vmatprep.mubr.bf16.mxu0 0
      %2065 = vmatmul.mubr.bf16.gmra.mrb[0].mxu0 %v1803
      %v2066 = vpop.f32.mrb[0].mxu0
      %v2067 = vpop.f32.mrb[0].mxu0
      %v2068 = vpop.f32.mrb[0].mxu0
      %v2069 = vadd.f32 0.0, %v2068
      %v2070 = vpop.f32.mrb[0].mxu0
      %2071 = vmatprep.mubr.bf16.mxu0 0
      %2072 = vmatmul.mubr.bf16.gmra.mrb[0].mxu0 %v1804
      %v2073 = vpop.f32.mrb[0].mxu0
      %v2074 = vadd.f32 0.0, %v2073
      %v2075 = vpop.f32.mrb[0].mxu0
      %v2076 = vpop.f32.mrb[0].mxu0
      %v2077 = vpop.f32.mrb[0].mxu0
      %2078 = vdwg.mxu0
      %v2079 = vadd.f32 %v1701, %v1905
      %v2080 = vadd.f32 %v1702, %v1908
      %v2081 = vadd.f32 %v1703, %v1915
      %v2082 = vadd.f32 %v1704, %v1920
      %v2083 = vadd.f32 %v1705, %v1927
      %v2084 = vadd.f32 %v1706, %v1930
      %v2085 = vadd.f32 %v1707, %v1937
      %v2086 = vadd.f32 %v1708, %v1942
      %v2087 = vadd.f32 %v1709, %v1949
      %v2088 = vadd.f32 %v1710, %v1952
      %v2089 = vadd.f32 %v1711, %v1959
      %v2090 = vadd.f32 %v1712, %v1964
      %v2091 = vadd.f32 %v1713, %v1971
      %v2092 = vadd.f32 %v1714, %v1974
      %v2093 = vadd.f32 %v1715, %v1981
      %v2094 = vadd.f32 %v1716, %v1986
      %v2095 = vadd.f32 %v1717, %v1993
      %v2096 = vadd.f32 %v1718, %v1996
      %v2097 = vadd.f32 %v1719, %v2003
      %v2098 = vadd.f32 %v1720, %v2008
      %v2099 = vadd.f32 %v1721, %v2015
      %v2100 = vadd.f32 %v1722, %v2018
      %v2101 = vadd.f32 %v1723, %v2025
      %v2102 = vadd.f32 %v1724, %v2030
      %v2103 = vadd.f32 %v1725, %v2037
      %v2104 = vadd.f32 %v1726, %v2040
      %v2105 = vadd.f32 %v1727, %v2047
      %v2106 = vadd.f32 %v1728, %v2052
      %v2107 = vadd.f32 %v1729, %v2059
      %v2108 = vadd.f32 %v1730, %v2062
      %v2109 = vadd.f32 %v1731, %v2069
      %v2110 = vadd.f32 %v1732, %v2074
      %s2111 = scalar_lea.vmem %s1, 256
      %v2112 = vld [vmem:[%s2111] sm:$0xf]
      %v2113 = vld [vmem:[%s2111 + $0x4] sm:$0xf]
      %v2114 = vld [vmem:[%s2111 + $0x8] sm:$0xf]
      %v2115 = vld [vmem:[%s2111 + $0xc] sm:$0xf]
      %v2116 = vld [vmem:[%s2111 + $0x10] sm:$0xf]
      %v2117 = vld [vmem:[%s2111 + $0x14] sm:$0xf]
      %v2118 = vld [vmem:[%s2111 + $0x18] sm:$0xf]
      %v2119 = vld [vmem:[%s2111 + $0x1c] sm:$0xf]
      %v2120 = vld [vmem:[%s2111 + $0x20] sm:$0xf]
      %v2121 = vld [vmem:[%s2111 + $0x24] sm:$0xf]
      %v2122 = vld [vmem:[%s2111 + $0x28] sm:$0xf]
      %v2123 = vld [vmem:[%s2111 + $0x2c] sm:$0xf]
      %v2124 = vld [vmem:[%s2111 + $0x30] sm:$0xf]
      %v2125 = vld [vmem:[%s2111 + $0x34] sm:$0xf]
      %v2126 = vld [vmem:[%s2111 + $0x38] sm:$0xf]
      %v2127 = vld [vmem:[%s2111 + $0x3c] sm:$0xf]
      %v2144 = vunpack.c.l.b16 %v2112
      %v2145 = vunpack.c.l.b16 %v2113
      %v2146 = vunpack.c.l.b16 %v2114
      %v2147 = vunpack.c.l.b16 %v2115
      %v2148 = vunpack.c.l.b16 %v2116
      %v2149 = vunpack.c.l.b16 %v2117
      %v2150 = vunpack.c.l.b16 %v2118
      %v2151 = vunpack.c.l.b16 %v2119
      %v2152 = vunpack.c.l.b16 %v2120
      %v2153 = vunpack.c.l.b16 %v2121
      %v2154 = vunpack.c.l.b16 %v2122
      %v2155 = vunpack.c.l.b16 %v2123
      %v2156 = vunpack.c.l.b16 %v2124
      %v2157 = vunpack.c.l.b16 %v2125
      %v2158 = vunpack.c.l.b16 %v2126
      %v2159 = vunpack.c.l.b16 %v2127
      %v2160 = vpack.c.b16 %v2145, %v2144
      %v2161 = vpack.c.b16 %v2147, %v2146
      %v2162 = vpack.c.b16 %v2149, %v2148
      %v2163 = vpack.c.b16 %v2151, %v2150
      %v2164 = vpack.c.b16 %v2153, %v2152
      %v2165 = vpack.c.b16 %v2155, %v2154
      %v2166 = vpack.c.b16 %v2157, %v2156
      %v2167 = vpack.c.b16 %v2159, %v2158
      %2176 = vmatprep.subr.bf16.mxu0 0
      %2177 = vmatpush1.bf16.msra.mxu0 %v2160
      %2178 = vmatprep.subr.bf16.mxu0 0
      %2179 = vmatpush1.bf16.msra.mxu0 %v2161
      %2180 = vmatprep.subr.bf16.mxu0 0
      %2181 = vmatpush1.bf16.msra.mxu0 %v2162
      %2182 = vmatprep.subr.bf16.mxu0 0
      %2183 = vmatpush1.bf16.msra.mxu0 %v2163
      %2184 = vmatprep.subr.bf16.mxu0 0
      %2185 = vmatpush1.bf16.msra.mxu0 %v2164
      %2186 = vmatprep.subr.bf16.mxu0 0
      %2187 = vmatpush1.bf16.msra.mxu0 %v2165
      %2188 = vmatprep.subr.bf16.mxu0 0
      %2189 = vmatpush1.bf16.msra.mxu0 %v2166
      %2190 = vmatprep.subr.bf16.mxu0 0
      %2191 = vmatpush1.bf16.msra.mxu0 %v2167
      %2192 = vmatprep.subr.bf16.mxu0 0
      %2193 = vmatpush1.bf16.msra.mxu0 0
      %2194 = vmatprep.subr.bf16.mxu0 0
      %2195 = vmatpush1.bf16.msra.mxu0 0
      %2196 = vmatprep.subr.bf16.mxu0 0
      %2197 = vmatpush1.bf16.msra.mxu0 0
      %2198 = vmatprep.subr.bf16.mxu0 0
      %2199 = vmatpush1.bf16.msra.mxu0 0
      %2200 = vmatprep.subr.bf16.mxu0 0
      %2201 = vmatpush1.bf16.msra.mxu0 0
      %2202 = vmatprep.subr.bf16.mxu0 0
      %2203 = vmatpush1.bf16.msra.mxu0 0
      %2204 = vmatprep.subr.bf16.mxu0 0
      %2205 = vmatpush1.bf16.msra.mxu0 0
      %2206 = vmatprep.subr.bf16.mxu0 0
      %2207 = vmatpush1.bf16.msra.mxu0 0
      %2208 = vmatprep.mubr.bf16.mxu0 0
      %2209 = vmatmul.mubr.bf16.gmra.mrb[0].mxu0 %v1781
      %v2210 = vpop.f32.mrb[0].mxu0
      %v2211 = vadd.f32 0.0, %v2210
      %v2212 = vpop.f32.mrb[0].mxu0
      %v2213 = vpop.f32.mrb[0].mxu0
      %v2214 = vadd.f32 0.0, %v2213
      %v2215 = vpop.f32.mrb[0].mxu0
      %2216 = vmatprep.mubr.bf16.mxu0 0
      %2217 = vmatmul.mubr.bf16.gmra.mrb[0].mxu0 %v1782
      %v2218 = vpop.f32.mrb[0].mxu0
      %v2219 = vadd.f32 0.0, %v2218
      %v2220 = vpop.f32.mrb[0].mxu0
      %v2221 = vpop.f32.mrb[0].mxu0
      %v2222 = vadd.f32 0.0, %v2221
      %v2223 = vpop.f32.mrb[0].mxu0
      %2224 = vmatprep.mubr.bf16.mxu0 0
      %2225 = vmatmul.mubr.bf16.gmra.mrb[0].mxu0 %v1783
      %v2226 = vpop.f32.mrb[0].mxu0
      %v2227 = vadd.f32 0.0, %v2226
      %v2228 = vpop.f32.mrb[0].mxu0
      %v2229 = vpop.f32.mrb[0].mxu0
      %v2230 = vadd.f32 0.0, %v2229
      %v2231 = vpop.f32.mrb[0].mxu0
      %2232 = vmatprep.mubr.bf16.mxu0 0
      %2233 = vmatmul.mubr.bf16.gmra.mrb[0].mxu0 %v1784
      %v2234 = vpop.f32.mrb[0].mxu0
      %v2235 = vadd.f32 0.0, %v2234
      %v2236 = vpop.f32.mrb[0].mxu0
      %v2237 = vpop.f32.mrb[0].mxu0
      %v2238 = vadd.f32 0.0, %v2237
      %v2239 = vpop.f32.mrb[0].mxu0
      %2240 = vmatprep.mubr.bf16.mxu0 0
      %2241 = vmatmul.mubr.bf16.gmra.mrb[0].mxu0 %v1785
      %v2242 = vpop.f32.mrb[0].mxu0
      %v2243 = vadd.f32 0.0, %v2242
      %v2244 = vpop.f32.mrb[0].mxu0
      %v2245 = vpop.f32.mrb[0].mxu0
      %v2246 = vadd.f32 0.0, %v2245
      %v2247 = vpop.f32.mrb[0].mxu0
      %2248 = vmatprep.mubr.bf16.mxu0 0
      %2249 = vmatmul.mubr.bf16.gmra.mrb[0].mxu0 %v1786
      %v2250 = vpop.f32.mrb[0].mxu0
      %v2251 = vadd.f32 0.0, %v2250
      %v2252 = vpop.f32.mrb[0].mxu0
      %v2253 = vpop.f32.mrb[0].mxu0
      %v2254 = vadd.f32 0.0, %v2253
      %v2255 = vpop.f32.mrb[0].mxu0
      %2256 = vmatprep.mubr.bf16.mxu0 0
      %2257 = vmatmul.mubr.bf16.gmra.mrb[0].mxu0 %v1787
      %v2258 = vpop.f32.mrb[0].mxu0
      %v2259 = vadd.f32 0.0, %v2258
      %v2260 = vpop.f32.mrb[0].mxu0
      %v2261 = vpop.f32.mrb[0].mxu0
      %v2262 = vadd.f32 0.0, %v2261
      %v2263 = vpop.f32.mrb[0].mxu0
      %2264 = vmatprep.mubr.bf16.mxu0 0
      %2265 = vmatmul.mubr.bf16.gmra.mrb[0].mxu0 %v1788
      %v2266 = vpop.f32.mrb[0].mxu0
      %v2267 = vadd.f32 0.0, %v2266
      %v2268 = vpop.f32.mrb[0].mxu0
      %v2269 = vpop.f32.mrb[0].mxu0
      %v2270 = vadd.f32 0.0, %v2269
      %v2271 = vpop.f32.mrb[0].mxu0
      %2272 = vmatprep.mubr.bf16.mxu0 0
      %2273 = vmatmul.mubr.bf16.gmra.mrb[0].mxu0 %v1789
      %v2274 = vpop.f32.mrb[0].mxu0
      %v2275 = vadd.f32 0.0, %v2274
      %v2276 = vpop.f32.mrb[0].mxu0
      %v2277 = vpop.f32.mrb[0].mxu0
      %v2278 = vadd.f32 0.0, %v2277
      %v2279 = vpop.f32.mrb[0].mxu0
      %2280 = vmatprep.mubr.bf16.mxu0 0
      %2281 = vmatmul.mubr.bf16.gmra.mrb[0].mxu0 %v1790
      %v2282 = vpop.f32.mrb[0].mxu0
      %v2283 = vadd.f32 0.0, %v2282
      %v2284 = vpop.f32.mrb[0].mxu0
      %v2285 = vpop.f32.mrb[0].mxu0
      %v2286 = vadd.f32 0.0, %v2285
      %v2287 = vpop.f32.mrb[0].mxu0
      %2288 = vmatprep.mubr.bf16.mxu0 0
      %2289 = vmatmul.mubr.bf16.gmra.mrb[0].mxu0 %v1791
      %v2290 = vpop.f32.mrb[0].mxu0
      %v2291 = vadd.f32 0.0, %v2290
      %v2292 = vpop.f32.mrb[0].mxu0
      %v2293 = vpop.f32.mrb[0].mxu0
      %v2294 = vadd.f32 0.0, %v2293
      %v2295 = vpop.f32.mrb[0].mxu0
      %2296 = vmatprep.mubr.bf16.mxu0 0
      %2297 = vmatmul.mubr.bf16.gmra.mrb[0].mxu0 %v1792
      %v2298 = vpop.f32.mrb[0].mxu0
      %v2299 = vadd.f32 0.0, %v2298
      %v2300 = vpop.f32.mrb[0].mxu0
      %v2301 = vpop.f32.mrb[0].mxu0
      %v2302 = vadd.f32 0.0, %v2301
      %v2303 = vpop.f32.mrb[0].mxu0
      %2304 = vmatprep.mubr.bf16.mxu0 0
      %2305 = vmatmul.mubr.bf16.gmra.mrb[0].mxu0 %v1793
      %v2306 = vpop.f32.mrb[0].mxu0
      %v2307 = vadd.f32 0.0, %v2306
      %v2308 = vpop.f32.mrb[0].mxu0
      %v2309 = vpop.f32.mrb[0].mxu0
      %v2310 = vadd.f32 0.0, %v2309
      %v2311 = vpop.f32.mrb[0].mxu0
      %2312 = vmatprep.mubr.bf16.mxu0 0
      %2313 = vmatmul.mubr.bf16.gmra.mrb[0].mxu0 %v1794
      %v2314 = vpop.f32.mrb[0].mxu0
      %v2315 = vadd.f32 0.0, %v2314
      %v2316 = vpop.f32.mrb[0].mxu0
      %v2317 = vpop.f32.mrb[0].mxu0
      %v2318 = vadd.f32 0.0, %v2317
      %v2319 = vpop.f32.mrb[0].mxu0
      %2320 = vmatprep.mubr.bf16.mxu0 0
      %2321 = vmatmul.mubr.bf16.gmra.mrb[0].mxu0 %v1795
      %v2322 = vpop.f32.mrb[0].mxu0
      %v2323 = vadd.f32 0.0, %v2322
      %v2324 = vpop.f32.mrb[0].mxu0
      %v2325 = vpop.f32.mrb[0].mxu0
      %v2326 = vadd.f32 0.0, %v2325
      %v2327 = vpop.f32.mrb[0].mxu0
      %2328 = vmatprep.mubr.bf16.mxu0 0
      %2329 = vmatmul.mubr.bf16.gmra.mrb[0].mxu0 %v1796
      %v2330 = vpop.f32.mrb[0].mxu0
      %v2331 = vadd.f32 0.0, %v2330
      %v2332 = vpop.f32.mrb[0].mxu0
      %v2333 = vpop.f32.mrb[0].mxu0
      %v2334 = vadd.f32 0.0, %v2333
      %v2335 = vpop.f32.mrb[0].mxu0
      %2336 = vmatprep.mubr.bf16.mxu0 0
      %2337 = vmatmul.mubr.bf16.gmra.mrb[0].mxu0 %v1797
      %v2338 = vpop.f32.mrb[0].mxu0
      %v2339 = vadd.f32 0.0, %v2338
      %v2340 = vpop.f32.mrb[0].mxu0
      %v2341 = vpop.f32.mrb[0].mxu0
      %v2342 = vadd.f32 0.0, %v2341
      %v2343 = vpop.f32.mrb[0].mxu0
      %2344 = vmatprep.mubr.bf16.mxu0 0
      %2345 = vmatmul.mubr.bf16.gmra.mrb[0].mxu0 %v1798
      %v2346 = vpop.f32.mrb[0].mxu0
      %v2347 = vadd.f32 0.0, %v2346
      %v2348 = vpop.f32.mrb[0].mxu0
      %v2349 = vpop.f32.mrb[0].mxu0
      %v2350 = vadd.f32 0.0, %v2349
      %v2351 = vpop.f32.mrb[0].mxu0
      %2352 = vmatprep.mubr.bf16.mxu0 0
      %2353 = vmatmul.mubr.bf16.gmra.mrb[0].mxu0 %v1799
      %v2354 = vpop.f32.mrb[0].mxu0
      %v2355 = vadd.f32 0.0, %v2354
      %v2356 = vpop.f32.mrb[0].mxu0
      %v2357 = vpop.f32.mrb[0].mxu0
      %v2358 = vadd.f32 0.0, %v2357
      %v2359 = vpop.f32.mrb[0].mxu0
      %2360 = vmatprep.mubr.bf16.mxu0 0
      %2361 = vmatmul.mubr.bf16.gmra.mrb[0].mxu0 %v1800
      %v2362 = vpop.f32.mrb[0].mxu0
      %v2363 = vadd.f32 0.0, %v2362
      %v2364 = vpop.f32.mrb[0].mxu0
      %v2365 = vpop.f32.mrb[0].mxu0
      %v2366 = vadd.f32 0.0, %v2365
      %v2367 = vpop.f32.mrb[0].mxu0
      %2368 = vmatprep.mubr.bf16.mxu0 0
      %2369 = vmatmul.mubr.bf16.gmra.mrb[0].mxu0 %v1801
      %v2370 = vpop.f32.mrb[0].mxu0
      %v2371 = vadd.f32 0.0, %v2370
      %v2372 = vpop.f32.mrb[0].mxu0
      %v2373 = vpop.f32.mrb[0].mxu0
      %v2374 = vadd.f32 0.0, %v2373
      %v2375 = vpop.f32.mrb[0].mxu0
      %2376 = vmatprep.mubr.bf16.mxu0 0
      %2377 = vmatmul.mubr.bf16.gmra.mrb[0].mxu0 %v1802
      %v2378 = vpop.f32.mrb[0].mxu0
      %v2379 = vadd.f32 0.0, %v2378
      %v2380 = vpop.f32.mrb[0].mxu0
      %v2381 = vpop.f32.mrb[0].mxu0
      %v2382 = vadd.f32 0.0, %v2381
      %v2383 = vpop.f32.mrb[0].mxu0
      %2384 = vmatprep.mubr.bf16.mxu0 0
      %2385 = vmatmul.mubr.bf16.gmra.mrb[0].mxu0 %v1803
      %v2386 = vpop.f32.mrb[0].mxu0
      %v2387 = vadd.f32 0.0, %v2386
      %v2388 = vpop.f32.mrb[0].mxu0
      %v2389 = vpop.f32.mrb[0].mxu0
      %v2390 = vadd.f32 0.0, %v2389
      %v2391 = vpop.f32.mrb[0].mxu0
      %2392 = vmatprep.mubr.bf16.mxu0 0
      %2393 = vmatmul.mubr.bf16.gmra.mrb[0].mxu0 %v1804
      %v2394 = vpop.f32.mrb[0].mxu0
      %v2395 = vadd.f32 0.0, %v2394
      %v2396 = vpop.f32.mrb[0].mxu0
      %v2397 = vpop.f32.mrb[0].mxu0
      %v2398 = vadd.f32 0.0, %v2397
      %v2399 = vpop.f32.mrb[0].mxu0
      %2400 = vdwg.mxu0
      %v2449 = vrot.slane %v2211, 1
      %v2450 = vrot.slane %v2214, 1
      %v2451 = vsel %vm1105, %v2449, %v2450
      %v2452 = vrot.slane %v2219, 1
      %v2453 = vsel %vm1105, %v2450, %v2452
      %v2454 = vrot.slane %v2222, 1
      %v2455 = vrot.slane %v2227, 1
      %v2456 = vsel %vm1105, %v2454, %v2455
      %v2457 = vrot.slane %v2230, 1
      %v2458 = vsel %vm1105, %v2455, %v2457
      %v2459 = vrot.slane %v2235, 1
      %v2460 = vrot.slane %v2238, 1
      %v2461 = vsel %vm1105, %v2459, %v2460
      %v2462 = vrot.slane %v2243, 1
      %v2463 = vsel %vm1105, %v2460, %v2462
      %v2464 = vrot.slane %v2246, 1
      %v2465 = vrot.slane %v2251, 1
      %v2466 = vsel %vm1105, %v2464, %v2465
      %v2467 = vrot.slane %v2254, 1
      %v2468 = vsel %vm1105, %v2465, %v2467
      %v2469 = vrot.slane %v2259, 1
      %v2470 = vrot.slane %v2262, 1
      %v2471 = vsel %vm1105, %v2469, %v2470
      %v2472 = vrot.slane %v2267, 1
      %v2473 = vsel %vm1105, %v2470, %v2472
      %v2474 = vrot.slane %v2270, 1
      %v2475 = vrot.slane %v2275, 1
      %v2476 = vsel %vm1105, %v2474, %v2475
      %v2477 = vrot.slane %v2278, 1
      %v2478 = vsel %vm1105, %v2475, %v2477
      %v2479 = vrot.slane %v2283, 1
      %v2480 = vrot.slane %v2286, 1
      %v2481 = vsel %vm1105, %v2479, %v2480
      %v2482 = vrot.slane %v2291, 1
      %v2483 = vsel %vm1105, %v2480, %v2482
      %v2484 = vrot.slane %v2294, 1
      %v2485 = vrot.slane %v2299, 1
      %v2486 = vsel %vm1105, %v2484, %v2485
      %v2487 = vrot.slane %v2302, 1
      %v2488 = vsel %vm1105, %v2485, %v2487
      %v2489 = vrot.slane %v2307, 1
      %v2490 = vrot.slane %v2310, 1
      %v2491 = vsel %vm1105, %v2489, %v2490
      %v2492 = vrot.slane %v2315, 1
      %v2493 = vsel %vm1105, %v2490, %v2492
      %v2494 = vrot.slane %v2318, 1
      %v2495 = vrot.slane %v2323, 1
      %v2496 = vsel %vm1105, %v2494, %v2495
      %v2497 = vrot.slane %v2326, 1
      %v2498 = vsel %vm1105, %v2495, %v2497
      %v2499 = vrot.slane %v2331, 1
      %v2500 = vrot.slane %v2334, 1
      %v2501 = vsel %vm1105, %v2499, %v2500
      %v2502 = vrot.slane %v2339, 1
      %v2503 = vsel %vm1105, %v2500, %v2502
      %v2504 = vrot.slane %v2342, 1
      %v2505 = vrot.slane %v2347, 1
      %v2506 = vsel %vm1105, %v2504, %v2505
      %v2507 = vrot.slane %v2350, 1
      %v2508 = vsel %vm1105, %v2505, %v2507
      %v2509 = vrot.slane %v2355, 1
      %v2510 = vrot.slane %v2358, 1
      %v2511 = vsel %vm1105, %v2509, %v2510
      %v2512 = vrot.slane %v2363, 1
      %v2513 = vsel %vm1105, %v2510, %v2512
      %v2514 = vrot.slane %v2366, 1
      %v2515 = vrot.slane %v2371, 1
      %v2516 = vsel %vm1105, %v2514, %v2515
      %v2517 = vrot.slane %v2374, 1
      %v2518 = vsel %vm1105, %v2515, %v2517
      %v2519 = vrot.slane %v2379, 1
      %v2520 = vrot.slane %v2382, 1
      %v2521 = vsel %vm1105, %v2519, %v2520
      %v2522 = vrot.slane %v2387, 1
      %v2523 = vsel %vm1105, %v2520, %v2522
      %v2524 = vrot.slane %v2390, 1
      %v2525 = vrot.slane %v2395, 1
      %v2526 = vsel %vm1105, %v2524, %v2525
      %v2527 = vrot.slane %v2398, 1
      %v2528 = vsel %vm1105, %v2525, %v2527
      %v2561 = vadd.f32 %v2079, %v2451
      %v2562 = vadd.f32 %v2080, %v2453
      %v2563 = vadd.f32 %v2081, %v2456
      %v2564 = vadd.f32 %v2082, %v2458
      %v2565 = vadd.f32 %v2083, %v2461
      %v2566 = vadd.f32 %v2084, %v2463
      %v2567 = vadd.f32 %v2085, %v2466
      %v2568 = vadd.f32 %v2086, %v2468
      %v2569 = vadd.f32 %v2087, %v2471
      %v2570 = vadd.f32 %v2088, %v2473
      %v2571 = vadd.f32 %v2089, %v2476
      %v2572 = vadd.f32 %v2090, %v2478
      %v2573 = vadd.f32 %v2091, %v2481
      %v2574 = vadd.f32 %v2092, %v2483
      %v2575 = vadd.f32 %v2093, %v2486
      %v2576 = vadd.f32 %v2094, %v2488
      %v2577 = vadd.f32 %v2095, %v2491
      %v2578 = vadd.f32 %v2096, %v2493
      %v2579 = vadd.f32 %v2097, %v2496
      %v2580 = vadd.f32 %v2098, %v2498
      %v2581 = vadd.f32 %v2099, %v2501
      %v2582 = vadd.f32 %v2100, %v2503
      %v2583 = vadd.f32 %v2101, %v2506
      %v2584 = vadd.f32 %v2102, %v2508
      %v2585 = vadd.f32 %v2103, %v2511
      %v2586 = vadd.f32 %v2104, %v2513
      %v2587 = vadd.f32 %v2105, %v2516
      %v2588 = vadd.f32 %v2106, %v2518
      %v2589 = vadd.f32 %v2107, %v2521
      %v2590 = vadd.f32 %v2108, %v2523
      %v2591 = vadd.f32 %v2109, %v2526
      %v2592 = vadd.f32 %v2110, %v2528
      %s2593 = scalar_lea.vmem %s1, 320
      %v2594 = vld [vmem:[%s2593] sm:$0xf]
      %v2595 = vld [vmem:[%s2593 + $0x4] sm:$0xf]
      %v2596 = vld [vmem:[%s2593 + $0x8] sm:$0xf]
      %v2597 = vld [vmem:[%s2593 + $0xc] sm:$0xf]
      %v2598 = vld [vmem:[%s2593 + $0x10] sm:$0xf]
      %v2599 = vld [vmem:[%s2593 + $0x14] sm:$0xf]
      %v2600 = vld [vmem:[%s2593 + $0x18] sm:$0xf]
      %v2601 = vld [vmem:[%s2593 + $0x1c] sm:$0xf]
      %v2602 = vld [vmem:[%s2593 + $0x20] sm:$0xf]
      %v2603 = vld [vmem:[%s2593 + $0x24] sm:$0xf]
      %v2604 = vld [vmem:[%s2593 + $0x28] sm:$0xf]
      %v2605 = vld [vmem:[%s2593 + $0x2c] sm:$0xf]
      %v2606 = vld [vmem:[%s2593 + $0x30] sm:$0xf]
      %v2607 = vld [vmem:[%s2593 + $0x34] sm:$0xf]
      %v2608 = vld [vmem:[%s2593 + $0x38] sm:$0xf]
      %v2609 = vld [vmem:[%s2593 + $0x3c] sm:$0xf]
      %v2626 = vunpack.c.l.b16 %v2594
      %v2627 = vunpack.c.l.b16 %v2595
      %v2628 = vunpack.c.l.b16 %v2596
      %v2629 = vunpack.c.l.b16 %v2597
      %v2630 = vunpack.c.l.b16 %v2598
      %v2631 = vunpack.c.l.b16 %v2599
      %v2632 = vunpack.c.l.b16 %v2600
      %v2633 = vunpack.c.l.b16 %v2601
      %v2634 = vunpack.c.l.b16 %v2602
      %v2635 = vunpack.c.l.b16 %v2603
      %v2636 = vunpack.c.l.b16 %v2604
      %v2637 = vunpack.c.l.b16 %v2605
      %v2638 = vunpack.c.l.b16 %v2606
      %v2639 = vunpack.c.l.b16 %v2607
      %v2640 = vunpack.c.l.b16 %v2608
      %v2641 = vunpack.c.l.b16 %v2609
      %v2642 = vpack.c.b16 %v2627, %v2626
      %v2643 = vpack.c.b16 %v2629, %v2628
      %v2644 = vpack.c.b16 %v2631, %v2630
      %v2645 = vpack.c.b16 %v2633, %v2632
      %v2646 = vpack.c.b16 %v2635, %v2634
      %v2647 = vpack.c.b16 %v2637, %v2636
      %v2648 = vpack.c.b16 %v2639, %v2638
      %v2649 = vpack.c.b16 %v2641, %v2640
      %2658 = vmatprep.subr.bf16.mxu0 0
      %2659 = vmatpush1.bf16.msra.mxu0 %v2642
      %2660 = vmatprep.subr.bf16.mxu0 0
      %2661 = vmatpush1.bf16.msra.mxu0 %v2643
      %2662 = vmatprep.subr.bf16.mxu0 0
      %2663 = vmatpush1.bf16.msra.mxu0 %v2644
      %2664 = vmatprep.subr.bf16.mxu0 0
      %2665 = vmatpush1.bf16.msra.mxu0 %v2645
      %2666 = vmatprep.subr.bf16.mxu0 0
      %2667 = vmatpush1.bf16.msra.mxu0 %v2646
      %2668 = vmatprep.subr.bf16.mxu0 0
      %2669 = vmatpush1.bf16.msra.mxu0 %v2647
      %2670 = vmatprep.subr.bf16.mxu0 0
      %2671 = vmatpush1.bf16.msra.mxu0 %v2648
      %2672 = vmatprep.subr.bf16.mxu0 0
      %2673 = vmatpush1.bf16.msra.mxu0 %v2649
      %2674 = vmatprep.subr.bf16.mxu0 0
      %2675 = vmatpush1.bf16.msra.mxu0 0
      %2676 = vmatprep.subr.bf16.mxu0 0
      %2677 = vmatpush1.bf16.msra.mxu0 0
      %2678 = vmatprep.subr.bf16.mxu0 0
      %2679 = vmatpush1.bf16.msra.mxu0 0
      %2680 = vmatprep.subr.bf16.mxu0 0
      %2681 = vmatpush1.bf16.msra.mxu0 0
      %2682 = vmatprep.subr.bf16.mxu0 0
      %2683 = vmatpush1.bf16.msra.mxu0 0
      %2684 = vmatprep.subr.bf16.mxu0 0
      %2685 = vmatpush1.bf16.msra.mxu0 0
      %2686 = vmatprep.subr.bf16.mxu0 0
      %2687 = vmatpush1.bf16.msra.mxu0 0
      %2688 = vmatprep.subr.bf16.mxu0 0
      %2689 = vmatpush1.bf16.msra.mxu0 0
      %2690 = vmatprep.mubr.bf16.mxu0 0
      %2691 = vmatmul.mubr.bf16.gmra.mrb[0].mxu0 %v1781
      %v2692 = vpop.f32.mrb[0].mxu0
      %v2693 = vadd.f32 0.0, %v2692
      %v2694 = vpop.f32.mrb[0].mxu0
      %v2695 = vpop.f32.mrb[0].mxu0
      %v2696 = vadd.f32 0.0, %v2695
      %v2697 = vpop.f32.mrb[0].mxu0
      %2698 = vmatprep.mubr.bf16.mxu0 0
      %2699 = vmatmul.mubr.bf16.gmra.mrb[0].mxu0 %v1782
      %v2700 = vpop.f32.mrb[0].mxu0
      %v2701 = vadd.f32 0.0, %v2700
      %v2702 = vpop.f32.mrb[0].mxu0
      %v2703 = vpop.f32.mrb[0].mxu0
      %v2704 = vadd.f32 0.0, %v2703
      %v2705 = vpop.f32.mrb[0].mxu0
      %2706 = vmatprep.mubr.bf16.mxu0 0
      %2707 = vmatmul.mubr.bf16.gmra.mrb[0].mxu0 %v1783
      %v2708 = vpop.f32.mrb[0].mxu0
      %v2709 = vadd.f32 0.0, %v2708
      %v2710 = vpop.f32.mrb[0].mxu0
      %v2711 = vpop.f32.mrb[0].mxu0
      %v2712 = vadd.f32 0.0, %v2711
      %v2713 = vpop.f32.mrb[0].mxu0
      %2714 = vmatprep.mubr.bf16.mxu0 0
      %2715 = vmatmul.mubr.bf16.gmra.mrb[0].mxu0 %v1784
      %v2716 = vpop.f32.mrb[0].mxu0
      %v2717 = vadd.f32 0.0, %v2716
      %v2718 = vpop.f32.mrb[0].mxu0
      %v2719 = vpop.f32.mrb[0].mxu0
      %v2720 = vadd.f32 0.0, %v2719
      %v2721 = vpop.f32.mrb[0].mxu0
      %2722 = vmatprep.mubr.bf16.mxu0 0
      %2723 = vmatmul.mubr.bf16.gmra.mrb[0].mxu0 %v1785
      %v2724 = vpop.f32.mrb[0].mxu0
      %v2725 = vadd.f32 0.0, %v2724
      %v2726 = vpop.f32.mrb[0].mxu0
      %v2727 = vpop.f32.mrb[0].mxu0
      %v2728 = vadd.f32 0.0, %v2727
      %v2729 = vpop.f32.mrb[0].mxu0
      %2730 = vmatprep.mubr.bf16.mxu0 0
      %2731 = vmatmul.mubr.bf16.gmra.mrb[0].mxu0 %v1786
      %v2732 = vpop.f32.mrb[0].mxu0
      %v2733 = vadd.f32 0.0, %v2732
      %v2734 = vpop.f32.mrb[0].mxu0
      %v2735 = vpop.f32.mrb[0].mxu0
      %v2736 = vadd.f32 0.0, %v2735
      %v2737 = vpop.f32.mrb[0].mxu0
      %2738 = vmatprep.mubr.bf16.mxu0 0
      %2739 = vmatmul.mubr.bf16.gmra.mrb[0].mxu0 %v1787
      %v2740 = vpop.f32.mrb[0].mxu0
      %v2741 = vadd.f32 0.0, %v2740
      %v2742 = vpop.f32.mrb[0].mxu0
      %v2743 = vpop.f32.mrb[0].mxu0
      %v2744 = vadd.f32 0.0, %v2743
      %v2745 = vpop.f32.mrb[0].mxu0
      %2746 = vmatprep.mubr.bf16.mxu0 0
      %2747 = vmatmul.mubr.bf16.gmra.mrb[0].mxu0 %v1788
      %v2748 = vpop.f32.mrb[0].mxu0
      %v2749 = vadd.f32 0.0, %v2748
      %v2750 = vpop.f32.mrb[0].mxu0
      %v2751 = vpop.f32.mrb[0].mxu0
      %v2752 = vadd.f32 0.0, %v2751
      %v2753 = vpop.f32.mrb[0].mxu0
      %2754 = vmatprep.mubr.bf16.mxu0 0
      %2755 = vmatmul.mubr.bf16.gmra.mrb[0].mxu0 %v1789
      %v2756 = vpop.f32.mrb[0].mxu0
      %v2757 = vadd.f32 0.0, %v2756
      %v2758 = vpop.f32.mrb[0].mxu0
      %v2759 = vpop.f32.mrb[0].mxu0
      %v2760 = vadd.f32 0.0, %v2759
      %v2761 = vpop.f32.mrb[0].mxu0
      %2762 = vmatprep.mubr.bf16.mxu0 0
      %2763 = vmatmul.mubr.bf16.gmra.mrb[0].mxu0 %v1790
      %v2764 = vpop.f32.mrb[0].mxu0
      %v2765 = vadd.f32 0.0, %v2764
      %v2766 = vpop.f32.mrb[0].mxu0
      %v2767 = vpop.f32.mrb[0].mxu0
      %v2768 = vadd.f32 0.0, %v2767
      %v2769 = vpop.f32.mrb[0].mxu0
      %2770 = vmatprep.mubr.bf16.mxu0 0
      %2771 = vmatmul.mubr.bf16.gmra.mrb[0].mxu0 %v1791
      %v2772 = vpop.f32.mrb[0].mxu0
      %v2773 = vadd.f32 0.0, %v2772
      %v2774 = vpop.f32.mrb[0].mxu0
      %v2775 = vpop.f32.mrb[0].mxu0
      %v2776 = vadd.f32 0.0, %v2775
      %v2777 = vpop.f32.mrb[0].mxu0
      %2778 = vmatprep.mubr.bf16.mxu0 0
      %2779 = vmatmul.mubr.bf16.gmra.mrb[0].mxu0 %v1792
      %v2780 = vpop.f32.mrb[0].mxu0
      %v2781 = vadd.f32 0.0, %v2780
      %v2782 = vpop.f32.mrb[0].mxu0
      %v2783 = vpop.f32.mrb[0].mxu0
      %v2784 = vadd.f32 0.0, %v2783
      %v2785 = vpop.f32.mrb[0].mxu0
      %2786 = vmatprep.mubr.bf16.mxu0 0
      %2787 = vmatmul.mubr.bf16.gmra.mrb[0].mxu0 %v1793
      %v2788 = vpop.f32.mrb[0].mxu0
      %v2789 = vadd.f32 0.0, %v2788
      %v2790 = vpop.f32.mrb[0].mxu0
      %v2791 = vpop.f32.mrb[0].mxu0
      %v2792 = vadd.f32 0.0, %v2791
      %v2793 = vpop.f32.mrb[0].mxu0
      %2794 = vmatprep.mubr.bf16.mxu0 0
      %2795 = vmatmul.mubr.bf16.gmra.mrb[0].mxu0 %v1794
      %v2796 = vpop.f32.mrb[0].mxu0
      %v2797 = vadd.f32 0.0, %v2796
      %v2798 = vpop.f32.mrb[0].mxu0
      %v2799 = vpop.f32.mrb[0].mxu0
      %v2800 = vadd.f32 0.0, %v2799
      %v2801 = vpop.f32.mrb[0].mxu0
      %2802 = vmatprep.mubr.bf16.mxu0 0
      %2803 = vmatmul.mubr.bf16.gmra.mrb[0].mxu0 %v1795
      %v2804 = vpop.f32.mrb[0].mxu0
      %v2805 = vadd.f32 0.0, %v2804
      %v2806 = vpop.f32.mrb[0].mxu0
      %v2807 = vpop.f32.mrb[0].mxu0
      %v2808 = vadd.f32 0.0, %v2807
      %v2809 = vpop.f32.mrb[0].mxu0
      %2810 = vmatprep.mubr.bf16.mxu0 0
      %2811 = vmatmul.mubr.bf16.gmra.mrb[0].mxu0 %v1796
      %v2812 = vpop.f32.mrb[0].mxu0
      %v2813 = vadd.f32 0.0, %v2812
      %v2814 = vpop.f32.mrb[0].mxu0
      %v2815 = vpop.f32.mrb[0].mxu0
      %v2816 = vadd.f32 0.0, %v2815
      %v2817 = vpop.f32.mrb[0].mxu0
      %2818 = vmatprep.mubr.bf16.mxu0 0
      %2819 = vmatmul.mubr.bf16.gmra.mrb[0].mxu0 %v1797
      %v2820 = vpop.f32.mrb[0].mxu0
      %v2821 = vadd.f32 0.0, %v2820
      %v2822 = vpop.f32.mrb[0].mxu0
      %v2823 = vpop.f32.mrb[0].mxu0
      %v2824 = vadd.f32 0.0, %v2823
      %v2825 = vpop.f32.mrb[0].mxu0
      %2826 = vmatprep.mubr.bf16.mxu0 0
      %2827 = vmatmul.mubr.bf16.gmra.mrb[0].mxu0 %v1798
      %v2828 = vpop.f32.mrb[0].mxu0
      %v2829 = vadd.f32 0.0, %v2828
      %v2830 = vpop.f32.mrb[0].mxu0
      %v2831 = vpop.f32.mrb[0].mxu0
      %v2832 = vadd.f32 0.0, %v2831
      %v2833 = vpop.f32.mrb[0].mxu0
      %2834 = vmatprep.mubr.bf16.mxu0 0
      %2835 = vmatmul.mubr.bf16.gmra.mrb[0].mxu0 %v1799
      %v2836 = vpop.f32.mrb[0].mxu0
      %v2837 = vadd.f32 0.0, %v2836
      %v2838 = vpop.f32.mrb[0].mxu0
      %v2839 = vpop.f32.mrb[0].mxu0
      %v2840 = vadd.f32 0.0, %v2839
      %v2841 = vpop.f32.mrb[0].mxu0
      %2842 = vmatprep.mubr.bf16.mxu0 0
      %2843 = vmatmul.mubr.bf16.gmra.mrb[0].mxu0 %v1800
      %v2844 = vpop.f32.mrb[0].mxu0
      %v2845 = vadd.f32 0.0, %v2844
      %v2846 = vpop.f32.mrb[0].mxu0
      %v2847 = vpop.f32.mrb[0].mxu0
      %v2848 = vadd.f32 0.0, %v2847
      %v2849 = vpop.f32.mrb[0].mxu0
      %2850 = vmatprep.mubr.bf16.mxu0 0
      %2851 = vmatmul.mubr.bf16.gmra.mrb[0].mxu0 %v1801
      %v2852 = vpop.f32.mrb[0].mxu0
      %v2853 = vadd.f32 0.0, %v2852
      %v2854 = vpop.f32.mrb[0].mxu0
      %v2855 = vpop.f32.mrb[0].mxu0
      %v2856 = vadd.f32 0.0, %v2855
      %v2857 = vpop.f32.mrb[0].mxu0
      %2858 = vmatprep.mubr.bf16.mxu0 0
      %2859 = vmatmul.mubr.bf16.gmra.mrb[0].mxu0 %v1802
      %v2860 = vpop.f32.mrb[0].mxu0
      %v2861 = vadd.f32 0.0, %v2860
      %v2862 = vpop.f32.mrb[0].mxu0
      %v2863 = vpop.f32.mrb[0].mxu0
      %v2864 = vadd.f32 0.0, %v2863
      %v2865 = vpop.f32.mrb[0].mxu0
      %2866 = vmatprep.mubr.bf16.mxu0 0
      %2867 = vmatmul.mubr.bf16.gmra.mrb[0].mxu0 %v1803
      %v2868 = vpop.f32.mrb[0].mxu0
      %v2869 = vadd.f32 0.0, %v2868
      %v2870 = vpop.f32.mrb[0].mxu0
      %v2871 = vpop.f32.mrb[0].mxu0
      %v2872 = vadd.f32 0.0, %v2871
      %v2873 = vpop.f32.mrb[0].mxu0
      %2874 = vmatprep.mubr.bf16.mxu0 0
      %2875 = vmatmul.mubr.bf16.gmra.mrb[0].mxu0 %v1804
      %v2876 = vpop.f32.mrb[0].mxu0
      %v2877 = vadd.f32 0.0, %v2876
      %v2878 = vpop.f32.mrb[0].mxu0
      %v2879 = vpop.f32.mrb[0].mxu0
      %v2880 = vadd.f32 0.0, %v2879
      %v2881 = vpop.f32.mrb[0].mxu0
      %2882 = vdwg.mxu0
      %v2931 = vrot.slane %v2693, 2
      %v2932 = vrot.slane %v2696, 2
      %v2933 = vsel %vm1588, %v2931, %v2932
      %v2934 = vrot.slane %v2701, 2
      %v2935 = vsel %vm1588, %v2932, %v2934
      %v2936 = vrot.slane %v2704, 2
      %v2937 = vrot.slane %v2709, 2
      %v2938 = vsel %vm1588, %v2936, %v2937
      %v2939 = vrot.slane %v2712, 2
      %v2940 = vsel %vm1588, %v2937, %v2939
      %v2941 = vrot.slane %v2717, 2
      %v2942 = vrot.slane %v2720, 2
      %v2943 = vsel %vm1588, %v2941, %v2942
      %v2944 = vrot.slane %v2725, 2
      %v2945 = vsel %vm1588, %v2942, %v2944
      %v2946 = vrot.slane %v2728, 2
      %v2947 = vrot.slane %v2733, 2
      %v2948 = vsel %vm1588, %v2946, %v2947
      %v2949 = vrot.slane %v2736, 2
      %v2950 = vsel %vm1588, %v2947, %v2949
      %v2951 = vrot.slane %v2741, 2
      %v2952 = vrot.slane %v2744, 2
      %v2953 = vsel %vm1588, %v2951, %v2952
      %v2954 = vrot.slane %v2749, 2
      %v2955 = vsel %vm1588, %v2952, %v2954
      %v2956 = vrot.slane %v2752, 2
      %v2957 = vrot.slane %v2757, 2
      %v2958 = vsel %vm1588, %v2956, %v2957
      %v2959 = vrot.slane %v2760, 2
      %v2960 = vsel %vm1588, %v2957, %v2959
      %v2961 = vrot.slane %v2765, 2
      %v2962 = vrot.slane %v2768, 2
      %v2963 = vsel %vm1588, %v2961, %v2962
      %v2964 = vrot.slane %v2773, 2
      %v2965 = vsel %vm1588, %v2962, %v2964
      %v2966 = vrot.slane %v2776, 2
      %v2967 = vrot.slane %v2781, 2
      %v2968 = vsel %vm1588, %v2966, %v2967
      %v2969 = vrot.slane %v2784, 2
      %v2970 = vsel %vm1588, %v2967, %v2969
      %v2971 = vrot.slane %v2789, 2
      %v2972 = vrot.slane %v2792, 2
      %v2973 = vsel %vm1588, %v2971, %v2972
      %v2974 = vrot.slane %v2797, 2
      %v2975 = vsel %vm1588, %v2972, %v2974
      %v2976 = vrot.slane %v2800, 2
      %v2977 = vrot.slane %v2805, 2
      %v2978 = vsel %vm1588, %v2976, %v2977
      %v2979 = vrot.slane %v2808, 2
      %v2980 = vsel %vm1588, %v2977, %v2979
      %v2981 = vrot.slane %v2813, 2
      %v2982 = vrot.slane %v2816, 2
      %v2983 = vsel %vm1588, %v2981, %v2982
      %v2984 = vrot.slane %v2821, 2
      %v2985 = vsel %vm1588, %v2982, %v2984
      %v2986 = vrot.slane %v2824, 2
      %v2987 = vrot.slane %v2829, 2
      %v2988 = vsel %vm1588, %v2986, %v2987
      %v2989 = vrot.slane %v2832, 2
      %v2990 = vsel %vm1588, %v2987, %v2989
      %v2991 = vrot.slane %v2837, 2
      %v2992 = vrot.slane %v2840, 2
      %v2993 = vsel %vm1588, %v2991, %v2992
      %v2994 = vrot.slane %v2845, 2
      %v2995 = vsel %vm1588, %v2992, %v2994
      %v2996 = vrot.slane %v2848, 2
      %v2997 = vrot.slane %v2853, 2
      %v2998 = vsel %vm1588, %v2996, %v2997
      %v2999 = vrot.slane %v2856, 2
      %v3000 = vsel %vm1588, %v2997, %v2999
      %v3001 = vrot.slane %v2861, 2
      %v3002 = vrot.slane %v2864, 2
      %v3003 = vsel %vm1588, %v3001, %v3002
      %v3004 = vrot.slane %v2869, 2
      %v3005 = vsel %vm1588, %v3002, %v3004
      %v3006 = vrot.slane %v2872, 2
      %v3007 = vrot.slane %v2877, 2
      %v3008 = vsel %vm1588, %v3006, %v3007
      %v3009 = vrot.slane %v2880, 2
      %v3010 = vsel %vm1588, %v3007, %v3009
      %v3043 = vadd.f32 %v2561, %v2933
      %v3044 = vadd.f32 %v2562, %v2935
      %v3045 = vadd.f32 %v2563, %v2938
      %v3046 = vadd.f32 %v2564, %v2940
      %v3047 = vadd.f32 %v2565, %v2943
      %v3048 = vadd.f32 %v2566, %v2945
      %v3049 = vadd.f32 %v2567, %v2948
      %v3050 = vadd.f32 %v2568, %v2950
      %v3051 = vadd.f32 %v2569, %v2953
      %v3052 = vadd.f32 %v2570, %v2955
      %v3053 = vadd.f32 %v2571, %v2958
      %v3054 = vadd.f32 %v2572, %v2960
      %v3055 = vadd.f32 %v2573, %v2963
      %v3056 = vadd.f32 %v2574, %v2965
      %v3057 = vadd.f32 %v2575, %v2968
      %v3058 = vadd.f32 %v2576, %v2970
      %v3059 = vadd.f32 %v2577, %v2973
      %v3060 = vadd.f32 %v2578, %v2975
      %v3061 = vadd.f32 %v2579, %v2978
      %v3062 = vadd.f32 %v2580, %v2980
      %v3063 = vadd.f32 %v2581, %v2983
      %v3064 = vadd.f32 %v2582, %v2985
      %v3065 = vadd.f32 %v2583, %v2988
      %v3066 = vadd.f32 %v2584, %v2990
      %v3067 = vadd.f32 %v2585, %v2993
      %v3068 = vadd.f32 %v2586, %v2995
      %v3069 = vadd.f32 %v2587, %v2998
      %v3070 = vadd.f32 %v2588, %v3000
      %v3071 = vadd.f32 %v2589, %v3003
      %v3072 = vadd.f32 %v2590, %v3005
      %v3073 = vadd.f32 %v2591, %v3008
      %v3074 = vadd.f32 %v2592, %v3010
      %s3075 = scalar_lea.vmem [#allocation2], 48
      %v3076 = vld [vmem:[%s3075] sm:$0xff]
      %v3077 = vld [vmem:[%s3075 + $0x8] sm:$0xff]
      %v3078 = vld [vmem:[%s3075 + $0x10] sm:$0xff]
      %v3079 = vld [vmem:[%s3075 + $0x18] sm:$0xff]
      %v3080 = vld [vmem:[%s3075 + $0x20] sm:$0xff]
      %v3081 = vld [vmem:[%s3075 + $0x28] sm:$0xff]
      %v3082 = vld [vmem:[%s3075 + $0x30] sm:$0xff]
      %v3083 = vld [vmem:[%s3075 + $0x38] sm:$0xff]
      %v3084 = vld [vmem:[%s3075 + $0x40] sm:$0xff]
      %v3085 = vld [vmem:[%s3075 + $0x48] sm:$0xff]
      %v3086 = vld [vmem:[%s3075 + $0x50] sm:$0xff]
      %v3087 = vld [vmem:[%s3075 + $0x58] sm:$0xff]
      %v3088 = vld [vmem:[%s3075 + $0x60] sm:$0xff]
      %v3089 = vld [vmem:[%s3075 + $0x68] sm:$0xff]
      %v3090 = vld [vmem:[%s3075 + $0x70] sm:$0xff]
      %v3091 = vld [vmem:[%s3075 + $0x78] sm:$0xff]
      %v3092 = vld [vmem:[%s3075 + $0x80] sm:$0xff]
      %v3093 = vld [vmem:[%s3075 + $0x88] sm:$0xff]
      %v3094 = vld [vmem:[%s3075 + $0x90] sm:$0xff]
      %v3095 = vld [vmem:[%s3075 + $0x98] sm:$0xff]
      %v3096 = vld [vmem:[%s3075 + $0xa0] sm:$0xff]
      %v3097 = vld [vmem:[%s3075 + $0xa8] sm:$0xff]
      %v3098 = vld [vmem:[%s3075 + $0xb0] sm:$0xff]
      %v3099 = vld [vmem:[%s3075 + $0xb8] sm:$0xff]
      %v3100 = vld [vmem:[%s3075 + $0xc0] sm:$0xff]
      %v3101 = vld [vmem:[%s3075 + $0xc8] sm:$0xff]
      %v3102 = vld [vmem:[%s3075 + $0xd0] sm:$0xff]
      %v3103 = vld [vmem:[%s3075 + $0xd8] sm:$0xff]
      %v3104 = vld [vmem:[%s3075 + $0xe0] sm:$0xff]
      %v3105 = vld [vmem:[%s3075 + $0xe8] sm:$0xff]
      %v3106 = vld [vmem:[%s3075 + $0xf0] sm:$0xff]
      %v3107 = vld [vmem:[%s3075 + $0xf8] sm:$0xff]
      %v3108 = vld [vmem:[%s3075 + $0x100] sm:$0xff]
      %v3109 = vld [vmem:[%s3075 + $0x108] sm:$0xff]
      %v3110 = vld [vmem:[%s3075 + $0x110] sm:$0xff]
      %v3111 = vld [vmem:[%s3075 + $0x118] sm:$0xff]
      %v3112 = vld [vmem:[%s3075 + $0x120] sm:$0xff]
      %v3113 = vld [vmem:[%s3075 + $0x128] sm:$0xff]
      %v3114 = vld [vmem:[%s3075 + $0x130] sm:$0xff]
      %v3115 = vld [vmem:[%s3075 + $0x138] sm:$0xff]
      %v3116 = vld [vmem:[%s3075 + $0x140] sm:$0xff]
      %v3117 = vld [vmem:[%s3075 + $0x148] sm:$0xff]
      %v3118 = vld [vmem:[%s3075 + $0x150] sm:$0xff]
      %v3119 = vld [vmem:[%s3075 + $0x158] sm:$0xff]
      %v3120 = vld [vmem:[%s3075 + $0x160] sm:$0xff]
      %v3121 = vld [vmem:[%s3075 + $0x168] sm:$0xff]
      %v3122 = vld [vmem:[%s3075 + $0x170] sm:$0xff]
      %v3123 = vld [vmem:[%s3075 + $0x178] sm:$0xff]
      %v3124 = vpack.c.bf16 %v3077, %v3076
      %v3125 = vpack.c.bf16 %v3079, %v3078
      %v3126 = vpack.c.bf16 %v3081, %v3080
      %v3127 = vpack.c.bf16 %v3083, %v3082
      %v3128 = vpack.c.bf16 %v3085, %v3084
      %v3129 = vpack.c.bf16 %v3087, %v3086
      %v3130 = vpack.c.bf16 %v3089, %v3088
      %v3131 = vpack.c.bf16 %v3091, %v3090
      %v3132 = vpack.c.bf16 %v3093, %v3092
      %v3133 = vpack.c.bf16 %v3095, %v3094
      %v3134 = vpack.c.bf16 %v3097, %v3096
      %v3135 = vpack.c.bf16 %v3099, %v3098
      %v3136 = vpack.c.bf16 %v3101, %v3100
      %v3137 = vpack.c.bf16 %v3103, %v3102
      %v3138 = vpack.c.bf16 %v3105, %v3104
      %v3139 = vpack.c.bf16 %v3107, %v3106
      %v3140 = vpack.c.bf16 %v3109, %v3108
      %v3141 = vpack.c.bf16 %v3111, %v3110
      %v3142 = vpack.c.bf16 %v3113, %v3112
      %v3143 = vpack.c.bf16 %v3115, %v3114
      %v3144 = vpack.c.bf16 %v3117, %v3116
      %v3145 = vpack.c.bf16 %v3119, %v3118
      %v3146 = vpack.c.bf16 %v3121, %v3120
      %v3147 = vpack.c.bf16 %v3123, %v3122
      %s3148 = scalar_lea.vmem %s1, 384
      %v3149 = vld [vmem:[%s3148] sm:$0xf]
      %v3150 = vld [vmem:[%s3148 + $0x4] sm:$0xf]
      %v3151 = vld [vmem:[%s3148 + $0x8] sm:$0xf]
      %v3152 = vld [vmem:[%s3148 + $0xc] sm:$0xf]
      %v3153 = vld [vmem:[%s3148 + $0x10] sm:$0xf]
      %v3154 = vld [vmem:[%s3148 + $0x14] sm:$0xf]
      %v3155 = vld [vmem:[%s3148 + $0x18] sm:$0xf]
      %v3156 = vld [vmem:[%s3148 + $0x1c] sm:$0xf]
      %v3157 = vld [vmem:[%s3148 + $0x20] sm:$0xf]
      %v3158 = vld [vmem:[%s3148 + $0x24] sm:$0xf]
      %v3159 = vld [vmem:[%s3148 + $0x28] sm:$0xf]
      %v3160 = vld [vmem:[%s3148 + $0x2c] sm:$0xf]
      %v3161 = vld [vmem:[%s3148 + $0x30] sm:$0xf]
      %v3162 = vld [vmem:[%s3148 + $0x34] sm:$0xf]
      %v3163 = vld [vmem:[%s3148 + $0x38] sm:$0xf]
      %v3164 = vld [vmem:[%s3148 + $0x3c] sm:$0xf]
      %v3181 = vunpack.c.l.b16 %v3149
      %v3182 = vunpack.c.l.b16 %v3150
      %v3183 = vunpack.c.l.b16 %v3151
      %v3184 = vunpack.c.l.b16 %v3152
      %v3185 = vunpack.c.l.b16 %v3153
      %v3186 = vunpack.c.l.b16 %v3154
      %v3187 = vunpack.c.l.b16 %v3155
      %v3188 = vunpack.c.l.b16 %v3156
      %v3189 = vunpack.c.l.b16 %v3157
      %v3190 = vunpack.c.l.b16 %v3158
      %v3191 = vunpack.c.l.b16 %v3159
      %v3192 = vunpack.c.l.b16 %v3160
      %v3193 = vunpack.c.l.b16 %v3161
      %v3194 = vunpack.c.l.b16 %v3162
      %v3195 = vunpack.c.l.b16 %v3163
      %v3196 = vunpack.c.l.b16 %v3164
      %v3197 = vpack.c.b16 %v3182, %v3181
      %v3198 = vpack.c.b16 %v3184, %v3183
      %v3199 = vpack.c.b16 %v3186, %v3185
      %v3200 = vpack.c.b16 %v3188, %v3187
      %v3201 = vpack.c.b16 %v3190, %v3189
      %v3202 = vpack.c.b16 %v3192, %v3191
      %v3203 = vpack.c.b16 %v3194, %v3193
      %v3204 = vpack.c.b16 %v3196, %v3195
      %3213 = vmatprep.subr.bf16.mxu0 0
      %3214 = vmatpush1.bf16.msra.mxu0 %v3197
      %3215 = vmatprep.subr.bf16.mxu0 0
      %3216 = vmatpush1.bf16.msra.mxu0 %v3198
      %3217 = vmatprep.subr.bf16.mxu0 0
      %3218 = vmatpush1.bf16.msra.mxu0 %v3199
      %3219 = vmatprep.subr.bf16.mxu0 0
      %3220 = vmatpush1.bf16.msra.mxu0 %v3200
      %3221 = vmatprep.subr.bf16.mxu0 0
      %3222 = vmatpush1.bf16.msra.mxu0 %v3201
      %3223 = vmatprep.subr.bf16.mxu0 0
      %3224 = vmatpush1.bf16.msra.mxu0 %v3202
      %3225 = vmatprep.subr.bf16.mxu0 0
      %3226 = vmatpush1.bf16.msra.mxu0 %v3203
      %3227 = vmatprep.subr.bf16.mxu0 0
      %3228 = vmatpush1.bf16.msra.mxu0 %v3204
      %3229 = vmatprep.subr.bf16.mxu0 0
      %3230 = vmatpush1.bf16.msra.mxu0 0
      %3231 = vmatprep.subr.bf16.mxu0 0
      %3232 = vmatpush1.bf16.msra.mxu0 0
      %3233 = vmatprep.subr.bf16.mxu0 0
      %3234 = vmatpush1.bf16.msra.mxu0 0
      %3235 = vmatprep.subr.bf16.mxu0 0
      %3236 = vmatpush1.bf16.msra.mxu0 0
      %3237 = vmatprep.subr.bf16.mxu0 0
      %3238 = vmatpush1.bf16.msra.mxu0 0
      %3239 = vmatprep.subr.bf16.mxu0 0
      %3240 = vmatpush1.bf16.msra.mxu0 0
      %3241 = vmatprep.subr.bf16.mxu0 0
      %3242 = vmatpush1.bf16.msra.mxu0 0
      %3243 = vmatprep.subr.bf16.mxu0 0
      %3244 = vmatpush1.bf16.msra.mxu0 0
      %3245 = vmatprep.mubr.bf16.mxu0 0
      %3246 = vmatmul.mubr.bf16.gmra.mrb[0].mxu0 %v3124
      %v3247 = vpop.f32.mrb[0].mxu0
      %v3248 = vadd.f32 0.0, %v3247
      %v3249 = vpop.f32.mrb[0].mxu0
      %v3250 = vpop.f32.mrb[0].mxu0
      %v3251 = vadd.f32 0.0, %v3250
      %v3252 = vpop.f32.mrb[0].mxu0
      %3253 = vmatprep.mubr.bf16.mxu0 0
      %3254 = vmatmul.mubr.bf16.gmra.mrb[0].mxu0 %v3125
      %v3255 = vpop.f32.mrb[0].mxu0
      %v3256 = vpop.f32.mrb[0].mxu0
      %v3257 = vpop.f32.mrb[0].mxu0
      %v3258 = vadd.f32 0.0, %v3257
      %v3259 = vpop.f32.mrb[0].mxu0
      %3260 = vmatprep.mubr.bf16.mxu0 0
      %3261 = vmatmul.mubr.bf16.gmra.mrb[0].mxu0 %v3126
      %v3262 = vpop.f32.mrb[0].mxu0
      %v3263 = vadd.f32 0.0, %v3262
      %v3264 = vpop.f32.mrb[0].mxu0
      %v3265 = vpop.f32.mrb[0].mxu0
      %v3266 = vpop.f32.mrb[0].mxu0
      %3267 = vmatprep.mubr.bf16.mxu0 0
      %3268 = vmatmul.mubr.bf16.gmra.mrb[0].mxu0 %v3127
      %v3269 = vpop.f32.mrb[0].mxu0
      %v3270 = vadd.f32 0.0, %v3269
      %v3271 = vpop.f32.mrb[0].mxu0
      %v3272 = vpop.f32.mrb[0].mxu0
      %v3273 = vadd.f32 0.0, %v3272
      %v3274 = vpop.f32.mrb[0].mxu0
      %3275 = vmatprep.mubr.bf16.mxu0 0
      %3276 = vmatmul.mubr.bf16.gmra.mrb[0].mxu0 %v3128
      %v3277 = vpop.f32.mrb[0].mxu0
      %v3278 = vpop.f32.mrb[0].mxu0
      %v3279 = vpop.f32.mrb[0].mxu0
      %v3280 = vadd.f32 0.0, %v3279
      %v3281 = vpop.f32.mrb[0].mxu0
      %3282 = vmatprep.mubr.bf16.mxu0 0
      %3283 = vmatmul.mubr.bf16.gmra.mrb[0].mxu0 %v3129
      %v3284 = vpop.f32.mrb[0].mxu0
      %v3285 = vadd.f32 0.0, %v3284
      %v3286 = vpop.f32.mrb[0].mxu0
      %v3287 = vpop.f32.mrb[0].mxu0
      %v3288 = vpop.f32.mrb[0].mxu0
      %3289 = vmatprep.mubr.bf16.mxu0 0
      %3290 = vmatmul.mubr.bf16.gmra.mrb[0].mxu0 %v3130
      %v3291 = vpop.f32.mrb[0].mxu0
      %v3292 = vadd.f32 0.0, %v3291
      %v3293 = vpop.f32.mrb[0].mxu0
      %v3294 = vpop.f32.mrb[0].mxu0
      %v3295 = vadd.f32 0.0, %v3294
      %v3296 = vpop.f32.mrb[0].mxu0
      %3297 = vmatprep.mubr.bf16.mxu0 0
      %3298 = vmatmul.mubr.bf16.gmra.mrb[0].mxu0 %v3131
      %v3299 = vpop.f32.mrb[0].mxu0
      %v3300 = vpop.f32.mrb[0].mxu0
      %v3301 = vpop.f32.mrb[0].mxu0
      %v3302 = vadd.f32 0.0, %v3301
      %v3303 = vpop.f32.mrb[0].mxu0
      %3304 = vmatprep.mubr.bf16.mxu0 0
      %3305 = vmatmul.mubr.bf16.gmra.mrb[0].mxu0 %v3132
      %v3306 = vpop.f32.mrb[0].mxu0
      %v3307 = vadd.f32 0.0, %v3306
      %v3308 = vpop.f32.mrb[0].mxu0
      %v3309 = vpop.f32.mrb[0].mxu0
      %v3310 = vpop.f32.mrb[0].mxu0
      %3311 = vmatprep.mubr.bf16.mxu0 0
      %3312 = vmatmul.mubr.bf16.gmra.mrb[0].mxu0 %v3133
      %v3313 = vpop.f32.mrb[0].mxu0
      %v3314 = vadd.f32 0.0, %v3313
      %v3315 = vpop.f32.mrb[0].mxu0
      %v3316 = vpop.f32.mrb[0].mxu0
      %v3317 = vadd.f32 0.0, %v3316
      %v3318 = vpop.f32.mrb[0].mxu0
      %3319 = vmatprep.mubr.bf16.mxu0 0
      %3320 = vmatmul.mubr.bf16.gmra.mrb[0].mxu0 %v3134
      %v3321 = vpop.f32.mrb[0].mxu0
      %v3322 = vpop.f32.mrb[0].mxu0
      %v3323 = vpop.f32.mrb[0].mxu0
      %v3324 = vadd.f32 0.0, %v3323
      %v3325 = vpop.f32.mrb[0].mxu0
      %3326 = vmatprep.mubr.bf16.mxu0 0
      %3327 = vmatmul.mubr.bf16.gmra.mrb[0].mxu0 %v3135
      %v3328 = vpop.f32.mrb[0].mxu0
      %v3329 = vadd.f32 0.0, %v3328
      %v3330 = vpop.f32.mrb[0].mxu0
      %v3331 = vpop.f32.mrb[0].mxu0
      %v3332 = vpop.f32.mrb[0].mxu0
      %3333 = vmatprep.mubr.bf16.mxu0 0
      %3334 = vmatmul.mubr.bf16.gmra.mrb[0].mxu0 %v3136
      %v3335 = vpop.f32.mrb[0].mxu0
      %v3336 = vadd.f32 0.0, %v3335
      %v3337 = vpop.f32.mrb[0].mxu0
      %v3338 = vpop.f32.mrb[0].mxu0
      %v3339 = vadd.f32 0.0, %v3338
      %v3340 = vpop.f32.mrb[0].mxu0
      %3341 = vmatprep.mubr.bf16.mxu0 0
      %3342 = vmatmul.mubr.bf16.gmra.mrb[0].mxu0 %v3137
      %v3343 = vpop.f32.mrb[0].mxu0
      %v3344 = vpop.f32.mrb[0].mxu0
      %v3345 = vpop.f32.mrb[0].mxu0
      %v3346 = vadd.f32 0.0, %v3345
      %v3347 = vpop.f32.mrb[0].mxu0
      %3348 = vmatprep.mubr.bf16.mxu0 0
      %3349 = vmatmul.mubr.bf16.gmra.mrb[0].mxu0 %v3138
      %v3350 = vpop.f32.mrb[0].mxu0
      %v3351 = vadd.f32 0.0, %v3350
      %v3352 = vpop.f32.mrb[0].mxu0
      %v3353 = vpop.f32.mrb[0].mxu0
      %v3354 = vpop.f32.mrb[0].mxu0
      %3355 = vmatprep.mubr.bf16.mxu0 0
      %3356 = vmatmul.mubr.bf16.gmra.mrb[0].mxu0 %v3139
      %v3357 = vpop.f32.mrb[0].mxu0
      %v3358 = vadd.f32 0.0, %v3357
      %v3359 = vpop.f32.mrb[0].mxu0
      %v3360 = vpop.f32.mrb[0].mxu0
      %v3361 = vadd.f32 0.0, %v3360
      %v3362 = vpop.f32.mrb[0].mxu0
      %3363 = vmatprep.mubr.bf16.mxu0 0
      %3364 = vmatmul.mubr.bf16.gmra.mrb[0].mxu0 %v3140
      %v3365 = vpop.f32.mrb[0].mxu0
      %v3366 = vpop.f32.mrb[0].mxu0
      %v3367 = vpop.f32.mrb[0].mxu0
      %v3368 = vadd.f32 0.0, %v3367
      %v3369 = vpop.f32.mrb[0].mxu0
      %3370 = vmatprep.mubr.bf16.mxu0 0
      %3371 = vmatmul.mubr.bf16.gmra.mrb[0].mxu0 %v3141
      %v3372 = vpop.f32.mrb[0].mxu0
      %v3373 = vadd.f32 0.0, %v3372
      %v3374 = vpop.f32.mrb[0].mxu0
      %v3375 = vpop.f32.mrb[0].mxu0
      %v3376 = vpop.f32.mrb[0].mxu0
      %3377 = vmatprep.mubr.bf16.mxu0 0
      %3378 = vmatmul.mubr.bf16.gmra.mrb[0].mxu0 %v3142
      %v3379 = vpop.f32.mrb[0].mxu0
      %v3380 = vadd.f32 0.0, %v3379
      %v3381 = vpop.f32.mrb[0].mxu0
      %v3382 = vpop.f32.mrb[0].mxu0
      %v3383 = vadd.f32 0.0, %v3382
      %v3384 = vpop.f32.mrb[0].mxu0
      %3385 = vmatprep.mubr.bf16.mxu0 0
      %3386 = vmatmul.mubr.bf16.gmra.mrb[0].mxu0 %v3143
      %v3387 = vpop.f32.mrb[0].mxu0
      %v3388 = vpop.f32.mrb[0].mxu0
      %v3389 = vpop.f32.mrb[0].mxu0
      %v3390 = vadd.f32 0.0, %v3389
      %v3391 = vpop.f32.mrb[0].mxu0
      %3392 = vmatprep.mubr.bf16.mxu0 0
      %3393 = vmatmul.mubr.bf16.gmra.mrb[0].mxu0 %v3144
      %v3394 = vpop.f32.mrb[0].mxu0
      %v3395 = vadd.f32 0.0, %v3394
      %v3396 = vpop.f32.mrb[0].mxu0
      %v3397 = vpop.f32.mrb[0].mxu0
      %v3398 = vpop.f32.mrb[0].mxu0
      %3399 = vmatprep.mubr.bf16.mxu0 0
      %3400 = vmatmul.mubr.bf16.gmra.mrb[0].mxu0 %v3145
      %v3401 = vpop.f32.mrb[0].mxu0
      %v3402 = vadd.f32 0.0, %v3401
      %v3403 = vpop.f32.mrb[0].mxu0
      %v3404 = vpop.f32.mrb[0].mxu0
      %v3405 = vadd.f32 0.0, %v3404
      %v3406 = vpop.f32.mrb[0].mxu0
      %3407 = vmatprep.mubr.bf16.mxu0 0
      %3408 = vmatmul.mubr.bf16.gmra.mrb[0].mxu0 %v3146
      %v3409 = vpop.f32.mrb[0].mxu0
      %v3410 = vpop.f32.mrb[0].mxu0
      %v3411 = vpop.f32.mrb[0].mxu0
      %v3412 = vadd.f32 0.0, %v3411
      %v3413 = vpop.f32.mrb[0].mxu0
      %3414 = vmatprep.mubr.bf16.mxu0 0
      %3415 = vmatmul.mubr.bf16.gmra.mrb[0].mxu0 %v3147
      %v3416 = vpop.f32.mrb[0].mxu0
      %v3417 = vadd.f32 0.0, %v3416
      %v3418 = vpop.f32.mrb[0].mxu0
      %v3419 = vpop.f32.mrb[0].mxu0
      %v3420 = vpop.f32.mrb[0].mxu0
      %3421 = vdwg.mxu0
      %v3422 = vadd.f32 %v3043, %v3248
      %v3423 = vadd.f32 %v3044, %v3251
      %v3424 = vadd.f32 %v3045, %v3258
      %v3425 = vadd.f32 %v3046, %v3263
      %v3426 = vadd.f32 %v3047, %v3270
      %v3427 = vadd.f32 %v3048, %v3273
      %v3428 = vadd.f32 %v3049, %v3280
      %v3429 = vadd.f32 %v3050, %v3285
      %v3430 = vadd.f32 %v3051, %v3292
      %v3431 = vadd.f32 %v3052, %v3295
      %v3432 = vadd.f32 %v3053, %v3302
      %v3433 = vadd.f32 %v3054, %v3307
      %v3434 = vadd.f32 %v3055, %v3314
      %v3435 = vadd.f32 %v3056, %v3317
      %v3436 = vadd.f32 %v3057, %v3324
      %v3437 = vadd.f32 %v3058, %v3329
      %v3438 = vadd.f32 %v3059, %v3336
      %v3439 = vadd.f32 %v3060, %v3339
      %v3440 = vadd.f32 %v3061, %v3346
      %v3441 = vadd.f32 %v3062, %v3351
      %v3442 = vadd.f32 %v3063, %v3358
      %v3443 = vadd.f32 %v3064, %v3361
      %v3444 = vadd.f32 %v3065, %v3368
      %v3445 = vadd.f32 %v3066, %v3373
      %v3446 = vadd.f32 %v3067, %v3380
      %v3447 = vadd.f32 %v3068, %v3383
      %v3448 = vadd.f32 %v3069, %v3390
      %v3449 = vadd.f32 %v3070, %v3395
      %v3450 = vadd.f32 %v3071, %v3402
      %v3451 = vadd.f32 %v3072, %v3405
      %v3452 = vadd.f32 %v3073, %v3412
      %v3453 = vadd.f32 %v3074, %v3417
      %s3454 = scalar_lea.vmem %s1, 448
      %v3455 = vld [vmem:[%s3454] sm:$0xf]
      %v3456 = vld [vmem:[%s3454 + $0x4] sm:$0xf]
      %v3457 = vld [vmem:[%s3454 + $0x8] sm:$0xf]
      %v3458 = vld [vmem:[%s3454 + $0xc] sm:$0xf]
      %v3459 = vld [vmem:[%s3454 + $0x10] sm:$0xf]
      %v3460 = vld [vmem:[%s3454 + $0x14] sm:$0xf]
      %v3461 = vld [vmem:[%s3454 + $0x18] sm:$0xf]
      %v3462 = vld [vmem:[%s3454 + $0x1c] sm:$0xf]
      %v3463 = vld [vmem:[%s3454 + $0x20] sm:$0xf]
      %v3464 = vld [vmem:[%s3454 + $0x24] sm:$0xf]
      %v3465 = vld [vmem:[%s3454 + $0x28] sm:$0xf]
      %v3466 = vld [vmem:[%s3454 + $0x2c] sm:$0xf]
      %v3467 = vld [vmem:[%s3454 + $0x30] sm:$0xf]
      %v3468 = vld [vmem:[%s3454 + $0x34] sm:$0xf]
      %v3469 = vld [vmem:[%s3454 + $0x38] sm:$0xf]
      %v3470 = vld [vmem:[%s3454 + $0x3c] sm:$0xf]
      %v3487 = vunpack.c.l.b16 %v3455
      %v3488 = vunpack.c.l.b16 %v3456
      %v3489 = vunpack.c.l.b16 %v3457
      %v3490 = vunpack.c.l.b16 %v3458
      %v3491 = vunpack.c.l.b16 %v3459
      %v3492 = vunpack.c.l.b16 %v3460
      %v3493 = vunpack.c.l.b16 %v3461
      %v3494 = vunpack.c.l.b16 %v3462
      %v3495 = vunpack.c.l.b16 %v3463
      %v3496 = vunpack.c.l.b16 %v3464
      %v3497 = vunpack.c.l.b16 %v3465
      %v3498 = vunpack.c.l.b16 %v3466
      %v3499 = vunpack.c.l.b16 %v3467
      %v3500 = vunpack.c.l.b16 %v3468
      %v3501 = vunpack.c.l.b16 %v3469
      %v3502 = vunpack.c.l.b16 %v3470
      %v3503 = vpack.c.b16 %v3488, %v3487
      %v3504 = vpack.c.b16 %v3490, %v3489
      %v3505 = vpack.c.b16 %v3492, %v3491
      %v3506 = vpack.c.b16 %v3494, %v3493
      %v3507 = vpack.c.b16 %v3496, %v3495
      %v3508 = vpack.c.b16 %v3498, %v3497
      %v3509 = vpack.c.b16 %v3500, %v3499
      %v3510 = vpack.c.b16 %v3502, %v3501
      %3519 = vmatprep.subr.bf16.mxu0 0
      %3520 = vmatpush1.bf16.msra.mxu0 %v3503
      %3521 = vmatprep.subr.bf16.mxu0 0
      %3522 = vmatpush1.bf16.msra.mxu0 %v3504
      %3523 = vmatprep.subr.bf16.mxu0 0
      %3524 = vmatpush1.bf16.msra.mxu0 %v3505
      %3525 = vmatprep.subr.bf16.mxu0 0
      %3526 = vmatpush1.bf16.msra.mxu0 %v3506
      %3527 = vmatprep.subr.bf16.mxu0 0
      %3528 = vmatpush1.bf16.msra.mxu0 %v3507
      %3529 = vmatprep.subr.bf16.mxu0 0
      %3530 = vmatpush1.bf16.msra.mxu0 %v3508
      %3531 = vmatprep.subr.bf16.mxu0 0
      %3532 = vmatpush1.bf16.msra.mxu0 %v3509
      %3533 = vmatprep.subr.bf16.mxu0 0
      %3534 = vmatpush1.bf16.msra.mxu0 %v3510
      %3535 = vmatprep.subr.bf16.mxu0 0
      %3536 = vmatpush1.bf16.msra.mxu0 0
      %3537 = vmatprep.subr.bf16.mxu0 0
      %3538 = vmatpush1.bf16.msra.mxu0 0
      %3539 = vmatprep.subr.bf16.mxu0 0
      %3540 = vmatpush1.bf16.msra.mxu0 0
      %3541 = vmatprep.subr.bf16.mxu0 0
      %3542 = vmatpush1.bf16.msra.mxu0 0
      %3543 = vmatprep.subr.bf16.mxu0 0
      %3544 = vmatpush1.bf16.msra.mxu0 0
      %3545 = vmatprep.subr.bf16.mxu0 0
      %3546 = vmatpush1.bf16.msra.mxu0 0
      %3547 = vmatprep.subr.bf16.mxu0 0
      %3548 = vmatpush1.bf16.msra.mxu0 0
      %3549 = vmatprep.subr.bf16.mxu0 0
      %3550 = vmatpush1.bf16.msra.mxu0 0
      %3551 = vmatprep.mubr.bf16.mxu0 0
      %3552 = vmatmul.mubr.bf16.gmra.mrb[0].mxu0 %v3124
      %v3553 = vpop.f32.mrb[0].mxu0
      %v3554 = vadd.f32 0.0, %v3553
      %v3555 = vpop.f32.mrb[0].mxu0
      %v3556 = vpop.f32.mrb[0].mxu0
      %v3557 = vadd.f32 0.0, %v3556
      %v3558 = vpop.f32.mrb[0].mxu0
      %3559 = vmatprep.mubr.bf16.mxu0 0
      %3560 = vmatmul.mubr.bf16.gmra.mrb[0].mxu0 %v3125
      %v3561 = vpop.f32.mrb[0].mxu0
      %v3562 = vadd.f32 0.0, %v3561
      %v3563 = vpop.f32.mrb[0].mxu0
      %v3564 = vpop.f32.mrb[0].mxu0
      %v3565 = vadd.f32 0.0, %v3564
      %v3566 = vpop.f32.mrb[0].mxu0
      %3567 = vmatprep.mubr.bf16.mxu0 0
      %3568 = vmatmul.mubr.bf16.gmra.mrb[0].mxu0 %v3126
      %v3569 = vpop.f32.mrb[0].mxu0
      %v3570 = vadd.f32 0.0, %v3569
      %v3571 = vpop.f32.mrb[0].mxu0
      %v3572 = vpop.f32.mrb[0].mxu0
      %v3573 = vadd.f32 0.0, %v3572
      %v3574 = vpop.f32.mrb[0].mxu0
      %3575 = vmatprep.mubr.bf16.mxu0 0
      %3576 = vmatmul.mubr.bf16.gmra.mrb[0].mxu0 %v3127
      %v3577 = vpop.f32.mrb[0].mxu0
      %v3578 = vadd.f32 0.0, %v3577
      %v3579 = vpop.f32.mrb[0].mxu0
      %v3580 = vpop.f32.mrb[0].mxu0
      %v3581 = vadd.f32 0.0, %v3580
      %v3582 = vpop.f32.mrb[0].mxu0
      %3583 = vmatprep.mubr.bf16.mxu0 0
      %3584 = vmatmul.mubr.bf16.gmra.mrb[0].mxu0 %v3128
      %v3585 = vpop.f32.mrb[0].mxu0
      %v3586 = vadd.f32 0.0, %v3585
      %v3587 = vpop.f32.mrb[0].mxu0
      %v3588 = vpop.f32.mrb[0].mxu0
      %v3589 = vadd.f32 0.0, %v3588
      %v3590 = vpop.f32.mrb[0].mxu0
      %3591 = vmatprep.mubr.bf16.mxu0 0
      %3592 = vmatmul.mubr.bf16.gmra.mrb[0].mxu0 %v3129
      %v3593 = vpop.f32.mrb[0].mxu0
      %v3594 = vadd.f32 0.0, %v3593
      %v3595 = vpop.f32.mrb[0].mxu0
      %v3596 = vpop.f32.mrb[0].mxu0
      %v3597 = vadd.f32 0.0, %v3596
      %v3598 = vpop.f32.mrb[0].mxu0
      %3599 = vmatprep.mubr.bf16.mxu0 0
      %3600 = vmatmul.mubr.bf16.gmra.mrb[0].mxu0 %v3130
      %v3601 = vpop.f32.mrb[0].mxu0
      %v3602 = vadd.f32 0.0, %v3601
      %v3603 = vpop.f32.mrb[0].mxu0
      %v3604 = vpop.f32.mrb[0].mxu0
      %v3605 = vadd.f32 0.0, %v3604
      %v3606 = vpop.f32.mrb[0].mxu0
      %3607 = vmatprep.mubr.bf16.mxu0 0
      %3608 = vmatmul.mubr.bf16.gmra.mrb[0].mxu0 %v3131
      %v3609 = vpop.f32.mrb[0].mxu0
      %v3610 = vadd.f32 0.0, %v3609
      %v3611 = vpop.f32.mrb[0].mxu0
      %v3612 = vpop.f32.mrb[0].mxu0
      %v3613 = vadd.f32 0.0, %v3612
      %v3614 = vpop.f32.mrb[0].mxu0
      %3615 = vmatprep.mubr.bf16.mxu0 0
      %3616 = vmatmul.mubr.bf16.gmra.mrb[0].mxu0 %v3132
      %v3617 = vpop.f32.mrb[0].mxu0
      %v3618 = vadd.f32 0.0, %v3617
      %v3619 = vpop.f32.mrb[0].mxu0
      %v3620 = vpop.f32.mrb[0].mxu0
      %v3621 = vadd.f32 0.0, %v3620
      %v3622 = vpop.f32.mrb[0].mxu0
      %3623 = vmatprep.mubr.bf16.mxu0 0
      %3624 = vmatmul.mubr.bf16.gmra.mrb[0].mxu0 %v3133
      %v3625 = vpop.f32.mrb[0].mxu0
      %v3626 = vadd.f32 0.0, %v3625
      %v3627 = vpop.f32.mrb[0].mxu0
      %v3628 = vpop.f32.mrb[0].mxu0
      %v3629 = vadd.f32 0.0, %v3628
      %v3630 = vpop.f32.mrb[0].mxu0
      %3631 = vmatprep.mubr.bf16.mxu0 0
      %3632 = vmatmul.mubr.bf16.gmra.mrb[0].mxu0 %v3134
      %v3633 = vpop.f32.mrb[0].mxu0
      %v3634 = vadd.f32 0.0, %v3633
      %v3635 = vpop.f32.mrb[0].mxu0
      %v3636 = vpop.f32.mrb[0].mxu0
      %v3637 = vadd.f32 0.0, %v3636
      %v3638 = vpop.f32.mrb[0].mxu0
      %3639 = vmatprep.mubr.bf16.mxu0 0
      %3640 = vmatmul.mubr.bf16.gmra.mrb[0].mxu0 %v3135
      %v3641 = vpop.f32.mrb[0].mxu0
      %v3642 = vadd.f32 0.0, %v3641
      %v3643 = vpop.f32.mrb[0].mxu0
      %v3644 = vpop.f32.mrb[0].mxu0
      %v3645 = vadd.f32 0.0, %v3644
      %v3646 = vpop.f32.mrb[0].mxu0
      %3647 = vmatprep.mubr.bf16.mxu0 0
      %3648 = vmatmul.mubr.bf16.gmra.mrb[0].mxu0 %v3136
      %v3649 = vpop.f32.mrb[0].mxu0
      %v3650 = vadd.f32 0.0, %v3649
      %v3651 = vpop.f32.mrb[0].mxu0
      %v3652 = vpop.f32.mrb[0].mxu0
      %v3653 = vadd.f32 0.0, %v3652
      %v3654 = vpop.f32.mrb[0].mxu0
      %3655 = vmatprep.mubr.bf16.mxu0 0
      %3656 = vmatmul.mubr.bf16.gmra.mrb[0].mxu0 %v3137
      %v3657 = vpop.f32.mrb[0].mxu0
      %v3658 = vadd.f32 0.0, %v3657
      %v3659 = vpop.f32.mrb[0].mxu0
      %v3660 = vpop.f32.mrb[0].mxu0
      %v3661 = vadd.f32 0.0, %v3660
      %v3662 = vpop.f32.mrb[0].mxu0
      %3663 = vmatprep.mubr.bf16.mxu0 0
      %3664 = vmatmul.mubr.bf16.gmra.mrb[0].mxu0 %v3138
      %v3665 = vpop.f32.mrb[0].mxu0
      %v3666 = vadd.f32 0.0, %v3665
      %v3667 = vpop.f32.mrb[0].mxu0
      %v3668 = vpop.f32.mrb[0].mxu0
      %v3669 = vadd.f32 0.0, %v3668
      %v3670 = vpop.f32.mrb[0].mxu0
      %3671 = vmatprep.mubr.bf16.mxu0 0
      %3672 = vmatmul.mubr.bf16.gmra.mrb[0].mxu0 %v3139
      %v3673 = vpop.f32.mrb[0].mxu0
      %v3674 = vadd.f32 0.0, %v3673
      %v3675 = vpop.f32.mrb[0].mxu0
      %v3676 = vpop.f32.mrb[0].mxu0
      %v3677 = vadd.f32 0.0, %v3676
      %v3678 = vpop.f32.mrb[0].mxu0
      %3679 = vmatprep.mubr.bf16.mxu0 0
      %3680 = vmatmul.mubr.bf16.gmra.mrb[0].mxu0 %v3140
      %v3681 = vpop.f32.mrb[0].mxu0
      %v3682 = vadd.f32 0.0, %v3681
      %v3683 = vpop.f32.mrb[0].mxu0
      %v3684 = vpop.f32.mrb[0].mxu0
      %v3685 = vadd.f32 0.0, %v3684
      %v3686 = vpop.f32.mrb[0].mxu0
      %3687 = vmatprep.mubr.bf16.mxu0 0
      %3688 = vmatmul.mubr.bf16.gmra.mrb[0].mxu0 %v3141
      %v3689 = vpop.f32.mrb[0].mxu0
      %v3690 = vadd.f32 0.0, %v3689
      %v3691 = vpop.f32.mrb[0].mxu0
      %v3692 = vpop.f32.mrb[0].mxu0
      %v3693 = vadd.f32 0.0, %v3692
      %v3694 = vpop.f32.mrb[0].mxu0
      %3695 = vmatprep.mubr.bf16.mxu0 0
      %3696 = vmatmul.mubr.bf16.gmra.mrb[0].mxu0 %v3142
      %v3697 = vpop.f32.mrb[0].mxu0
      %v3698 = vadd.f32 0.0, %v3697
      %v3699 = vpop.f32.mrb[0].mxu0
      %v3700 = vpop.f32.mrb[0].mxu0
      %v3701 = vadd.f32 0.0, %v3700
      %v3702 = vpop.f32.mrb[0].mxu0
      %3703 = vmatprep.mubr.bf16.mxu0 0
      %3704 = vmatmul.mubr.bf16.gmra.mrb[0].mxu0 %v3143
      %v3705 = vpop.f32.mrb[0].mxu0
      %v3706 = vadd.f32 0.0, %v3705
      %v3707 = vpop.f32.mrb[0].mxu0
      %v3708 = vpop.f32.mrb[0].mxu0
      %v3709 = vadd.f32 0.0, %v3708
      %v3710 = vpop.f32.mrb[0].mxu0
      %3711 = vmatprep.mubr.bf16.mxu0 0
      %3712 = vmatmul.mubr.bf16.gmra.mrb[0].mxu0 %v3144
      %v3713 = vpop.f32.mrb[0].mxu0
      %v3714 = vadd.f32 0.0, %v3713
      %v3715 = vpop.f32.mrb[0].mxu0
      %v3716 = vpop.f32.mrb[0].mxu0
      %v3717 = vadd.f32 0.0, %v3716
      %v3718 = vpop.f32.mrb[0].mxu0
      %3719 = vmatprep.mubr.bf16.mxu0 0
      %3720 = vmatmul.mubr.bf16.gmra.mrb[0].mxu0 %v3145
      %v3721 = vpop.f32.mrb[0].mxu0
      %v3722 = vadd.f32 0.0, %v3721
      %v3723 = vpop.f32.mrb[0].mxu0
      %v3724 = vpop.f32.mrb[0].mxu0
      %v3725 = vadd.f32 0.0, %v3724
      %v3726 = vpop.f32.mrb[0].mxu0
      %3727 = vmatprep.mubr.bf16.mxu0 0
      %3728 = vmatmul.mubr.bf16.gmra.mrb[0].mxu0 %v3146
      %v3729 = vpop.f32.mrb[0].mxu0
      %v3730 = vadd.f32 0.0, %v3729
      %v3731 = vpop.f32.mrb[0].mxu0
      %v3732 = vpop.f32.mrb[0].mxu0
      %v3733 = vadd.f32 0.0, %v3732
      %v3734 = vpop.f32.mrb[0].mxu0
      %3735 = vmatprep.mubr.bf16.mxu0 0
      %3736 = vmatmul.mubr.bf16.gmra.mrb[0].mxu0 %v3147
      %v3737 = vpop.f32.mrb[0].mxu0
      %v3738 = vadd.f32 0.0, %v3737
      %v3739 = vpop.f32.mrb[0].mxu0
      %v3740 = vpop.f32.mrb[0].mxu0
      %v3741 = vadd.f32 0.0, %v3740
      %v3742 = vpop.f32.mrb[0].mxu0
      %3743 = vdwg.mxu0
      %v3792 = vrot.slane %v3554, 1
      %v3793 = vrot.slane %v3557, 1
      %v3794 = vsel %vm1105, %v3792, %v3793
      %v3795 = vrot.slane %v3562, 1
      %v3796 = vsel %vm1105, %v3793, %v3795
      %v3797 = vrot.slane %v3565, 1
      %v3798 = vrot.slane %v3570, 1
      %v3799 = vsel %vm1105, %v3797, %v3798
      %v3800 = vrot.slane %v3573, 1
      %v3801 = vsel %vm1105, %v3798, %v3800
      %v3802 = vrot.slane %v3578, 1
      %v3803 = vrot.slane %v3581, 1
      %v3804 = vsel %vm1105, %v3802, %v3803
      %v3805 = vrot.slane %v3586, 1
      %v3806 = vsel %vm1105, %v3803, %v3805
      %v3807 = vrot.slane %v3589, 1
      %v3808 = vrot.slane %v3594, 1
      %v3809 = vsel %vm1105, %v3807, %v3808
      %v3810 = vrot.slane %v3597, 1
      %v3811 = vsel %vm1105, %v3808, %v3810
      %v3812 = vrot.slane %v3602, 1
      %v3813 = vrot.slane %v3605, 1
      %v3814 = vsel %vm1105, %v3812, %v3813
      %v3815 = vrot.slane %v3610, 1
      %v3816 = vsel %vm1105, %v3813, %v3815
      %v3817 = vrot.slane %v3613, 1
      %v3818 = vrot.slane %v3618, 1
      %v3819 = vsel %vm1105, %v3817, %v3818
      %v3820 = vrot.slane %v3621, 1
      %v3821 = vsel %vm1105, %v3818, %v3820
      %v3822 = vrot.slane %v3626, 1
      %v3823 = vrot.slane %v3629, 1
      %v3824 = vsel %vm1105, %v3822, %v3823
      %v3825 = vrot.slane %v3634, 1
      %v3826 = vsel %vm1105, %v3823, %v3825
      %v3827 = vrot.slane %v3637, 1
      %v3828 = vrot.slane %v3642, 1
      %v3829 = vsel %vm1105, %v3827, %v3828
      %v3830 = vrot.slane %v3645, 1
      %v3831 = vsel %vm1105, %v3828, %v3830
      %v3832 = vrot.slane %v3650, 1
      %v3833 = vrot.slane %v3653, 1
      %v3834 = vsel %vm1105, %v3832, %v3833
      %v3835 = vrot.slane %v3658, 1
      %v3836 = vsel %vm1105, %v3833, %v3835
      %v3837 = vrot.slane %v3661, 1
      %v3838 = vrot.slane %v3666, 1
      %v3839 = vsel %vm1105, %v3837, %v3838
      %v3840 = vrot.slane %v3669, 1
      %v3841 = vsel %vm1105, %v3838, %v3840
      %v3842 = vrot.slane %v3674, 1
      %v3843 = vrot.slane %v3677, 1
      %v3844 = vsel %vm1105, %v3842, %v3843
      %v3845 = vrot.slane %v3682, 1
      %v3846 = vsel %vm1105, %v3843, %v3845
      %v3847 = vrot.slane %v3685, 1
      %v3848 = vrot.slane %v3690, 1
      %v3849 = vsel %vm1105, %v3847, %v3848
      %v3850 = vrot.slane %v3693, 1
      %v3851 = vsel %vm1105, %v3848, %v3850
      %v3852 = vrot.slane %v3698, 1
      %v3853 = vrot.slane %v3701, 1
      %v3854 = vsel %vm1105, %v3852, %v3853
      %v3855 = vrot.slane %v3706, 1
      %v3856 = vsel %vm1105, %v3853, %v3855
      %v3857 = vrot.slane %v3709, 1
      %v3858 = vrot.slane %v3714, 1
      %v3859 = vsel %vm1105, %v3857, %v3858
      %v3860 = vrot.slane %v3717, 1
      %v3861 = vsel %vm1105, %v3858, %v3860
      %v3862 = vrot.slane %v3722, 1
      %v3863 = vrot.slane %v3725, 1
      %v3864 = vsel %vm1105, %v3862, %v3863
      %v3865 = vrot.slane %v3730, 1
      %v3866 = vsel %vm1105, %v3863, %v3865
      %v3867 = vrot.slane %v3733, 1
      %v3868 = vrot.slane %v3738, 1
      %v3869 = vsel %vm1105, %v3867, %v3868
      %v3870 = vrot.slane %v3741, 1
      %v3871 = vsel %vm1105, %v3868, %v3870
      %v3904 = vadd.f32 %v3422, %v3794
      %v3905 = vadd.f32 %v3423, %v3796
      %v3906 = vadd.f32 %v3424, %v3799
      %v3907 = vadd.f32 %v3425, %v3801
      %v3908 = vadd.f32 %v3426, %v3804
      %v3909 = vadd.f32 %v3427, %v3806
      %v3910 = vadd.f32 %v3428, %v3809
      %v3911 = vadd.f32 %v3429, %v3811
      %v3912 = vadd.f32 %v3430, %v3814
      %v3913 = vadd.f32 %v3431, %v3816
      %v3914 = vadd.f32 %v3432, %v3819
      %v3915 = vadd.f32 %v3433, %v3821
      %v3916 = vadd.f32 %v3434, %v3824
      %v3917 = vadd.f32 %v3435, %v3826
      %v3918 = vadd.f32 %v3436, %v3829
      %v3919 = vadd.f32 %v3437, %v3831
      %v3920 = vadd.f32 %v3438, %v3834
      %v3921 = vadd.f32 %v3439, %v3836
      %v3922 = vadd.f32 %v3440, %v3839
      %v3923 = vadd.f32 %v3441, %v3841
      %v3924 = vadd.f32 %v3442, %v3844
      %v3925 = vadd.f32 %v3443, %v3846
      %v3926 = vadd.f32 %v3444, %v3849
      %v3927 = vadd.f32 %v3445, %v3851
      %v3928 = vadd.f32 %v3446, %v3854
      %v3929 = vadd.f32 %v3447, %v3856
      %v3930 = vadd.f32 %v3448, %v3859
      %v3931 = vadd.f32 %v3449, %v3861
      %v3932 = vadd.f32 %v3450, %v3864
      %v3933 = vadd.f32 %v3451, %v3866
      %v3934 = vadd.f32 %v3452, %v3869
      %v3935 = vadd.f32 %v3453, %v3871
      %s3936 = scalar_lea.vmem %s1, 512
      %v3937 = vld [vmem:[%s3936] sm:$0xf]
      %v3938 = vld [vmem:[%s3936 + $0x4] sm:$0xf]
      %v3939 = vld [vmem:[%s3936 + $0x8] sm:$0xf]
      %v3940 = vld [vmem:[%s3936 + $0xc] sm:$0xf]
      %v3941 = vld [vmem:[%s3936 + $0x10] sm:$0xf]
      %v3942 = vld [vmem:[%s3936 + $0x14] sm:$0xf]
      %v3943 = vld [vmem:[%s3936 + $0x18] sm:$0xf]
      %v3944 = vld [vmem:[%s3936 + $0x1c] sm:$0xf]
      %v3945 = vld [vmem:[%s3936 + $0x20] sm:$0xf]
      %v3946 = vld [vmem:[%s3936 + $0x24] sm:$0xf]
      %v3947 = vld [vmem:[%s3936 + $0x28] sm:$0xf]
      %v3948 = vld [vmem:[%s3936 + $0x2c] sm:$0xf]
      %v3949 = vld [vmem:[%s3936 + $0x30] sm:$0xf]
      %v3950 = vld [vmem:[%s3936 + $0x34] sm:$0xf]
      %v3951 = vld [vmem:[%s3936 + $0x38] sm:$0xf]
      %v3952 = vld [vmem:[%s3936 + $0x3c] sm:$0xf]
      %v3969 = vunpack.c.l.b16 %v3937
      %v3970 = vunpack.c.l.b16 %v3938
      %v3971 = vunpack.c.l.b16 %v3939
      %v3972 = vunpack.c.l.b16 %v3940
      %v3973 = vunpack.c.l.b16 %v3941
      %v3974 = vunpack.c.l.b16 %v3942
      %v3975 = vunpack.c.l.b16 %v3943
      %v3976 = vunpack.c.l.b16 %v3944
      %v3977 = vunpack.c.l.b16 %v3945
      %v3978 = vunpack.c.l.b16 %v3946
      %v3979 = vunpack.c.l.b16 %v3947
      %v3980 = vunpack.c.l.b16 %v3948
      %v3981 = vunpack.c.l.b16 %v3949
      %v3982 = vunpack.c.l.b16 %v3950
      %v3983 = vunpack.c.l.b16 %v3951
      %v3984 = vunpack.c.l.b16 %v3952
      %v3985 = vpack.c.b16 %v3970, %v3969
      %v3986 = vpack.c.b16 %v3972, %v3971
      %v3987 = vpack.c.b16 %v3974, %v3973
      %v3988 = vpack.c.b16 %v3976, %v3975
      %v3989 = vpack.c.b16 %v3978, %v3977
      %v3990 = vpack.c.b16 %v3980, %v3979
      %v3991 = vpack.c.b16 %v3982, %v3981
      %v3992 = vpack.c.b16 %v3984, %v3983
      %4001 = vmatprep.subr.bf16.mxu0 0
      %4002 = vmatpush1.bf16.msra.mxu0 %v3985
      %4003 = vmatprep.subr.bf16.mxu0 0
      %4004 = vmatpush1.bf16.msra.mxu0 %v3986
      %4005 = vmatprep.subr.bf16.mxu0 0
      %4006 = vmatpush1.bf16.msra.mxu0 %v3987
      %4007 = vmatprep.subr.bf16.mxu0 0
      %4008 = vmatpush1.bf16.msra.mxu0 %v3988
      %4009 = vmatprep.subr.bf16.mxu0 0
      %4010 = vmatpush1.bf16.msra.mxu0 %v3989
      %4011 = vmatprep.subr.bf16.mxu0 0
      %4012 = vmatpush1.bf16.msra.mxu0 %v3990
      %4013 = vmatprep.subr.bf16.mxu0 0
      %4014 = vmatpush1.bf16.msra.mxu0 %v3991
      %4015 = vmatprep.subr.bf16.mxu0 0
      %4016 = vmatpush1.bf16.msra.mxu0 %v3992
      %4017 = vmatprep.subr.bf16.mxu0 0
      %4018 = vmatpush1.bf16.msra.mxu0 0
      %4019 = vmatprep.subr.bf16.mxu0 0
      %4020 = vmatpush1.bf16.msra.mxu0 0
      %4021 = vmatprep.subr.bf16.mxu0 0
      %4022 = vmatpush1.bf16.msra.mxu0 0
      %4023 = vmatprep.subr.bf16.mxu0 0
      %4024 = vmatpush1.bf16.msra.mxu0 0
      %4025 = vmatprep.subr.bf16.mxu0 0
      %4026 = vmatpush1.bf16.msra.mxu0 0
      %4027 = vmatprep.subr.bf16.mxu0 0
      %4028 = vmatpush1.bf16.msra.mxu0 0
      %4029 = vmatprep.subr.bf16.mxu0 0
      %4030 = vmatpush1.bf16.msra.mxu0 0
      %4031 = vmatprep.subr.bf16.mxu0 0
      %4032 = vmatpush1.bf16.msra.mxu0 0
      %4033 = vmatprep.mubr.bf16.mxu0 0
      %4034 = vmatmul.mubr.bf16.gmra.mrb[0].mxu0 %v3124
      %v4035 = vpop.f32.mrb[0].mxu0
      %v4036 = vadd.f32 0.0, %v4035
      %v4037 = vpop.f32.mrb[0].mxu0
      %v4038 = vpop.f32.mrb[0].mxu0
      %v4039 = vadd.f32 0.0, %v4038
      %v4040 = vpop.f32.mrb[0].mxu0
      %4041 = vmatprep.mubr.bf16.mxu0 0
      %4042 = vmatmul.mubr.bf16.gmra.mrb[0].mxu0 %v3125
      %v4043 = vpop.f32.mrb[0].mxu0
      %v4044 = vadd.f32 0.0, %v4043
      %v4045 = vpop.f32.mrb[0].mxu0
      %v4046 = vpop.f32.mrb[0].mxu0
      %v4047 = vadd.f32 0.0, %v4046
      %v4048 = vpop.f32.mrb[0].mxu0
      %4049 = vmatprep.mubr.bf16.mxu0 0
      %4050 = vmatmul.mubr.bf16.gmra.mrb[0].mxu0 %v3126
      %v4051 = vpop.f32.mrb[0].mxu0
      %v4052 = vadd.f32 0.0, %v4051
      %v4053 = vpop.f32.mrb[0].mxu0
      %v4054 = vpop.f32.mrb[0].mxu0
      %v4055 = vadd.f32 0.0, %v4054
      %v4056 = vpop.f32.mrb[0].mxu0
      %4057 = vmatprep.mubr.bf16.mxu0 0
      %4058 = vmatmul.mubr.bf16.gmra.mrb[0].mxu0 %v3127
      %v4059 = vpop.f32.mrb[0].mxu0
      %v4060 = vadd.f32 0.0, %v4059
      %v4061 = vpop.f32.mrb[0].mxu0
      %v4062 = vpop.f32.mrb[0].mxu0
      %v4063 = vadd.f32 0.0, %v4062
      %v4064 = vpop.f32.mrb[0].mxu0
      %4065 = vmatprep.mubr.bf16.mxu0 0
      %4066 = vmatmul.mubr.bf16.gmra.mrb[0].mxu0 %v3128
      %v4067 = vpop.f32.mrb[0].mxu0
      %v4068 = vadd.f32 0.0, %v4067
      %v4069 = vpop.f32.mrb[0].mxu0
      %v4070 = vpop.f32.mrb[0].mxu0
      %v4071 = vadd.f32 0.0, %v4070
      %v4072 = vpop.f32.mrb[0].mxu0
      %4073 = vmatprep.mubr.bf16.mxu0 0
      %4074 = vmatmul.mubr.bf16.gmra.mrb[0].mxu0 %v3129
      %v4075 = vpop.f32.mrb[0].mxu0
      %v4076 = vadd.f32 0.0, %v4075
      %v4077 = vpop.f32.mrb[0].mxu0
      %v4078 = vpop.f32.mrb[0].mxu0
      %v4079 = vadd.f32 0.0, %v4078
      %v4080 = vpop.f32.mrb[0].mxu0
      %4081 = vmatprep.mubr.bf16.mxu0 0
      %4082 = vmatmul.mubr.bf16.gmra.mrb[0].mxu0 %v3130
      %v4083 = vpop.f32.mrb[0].mxu0
      %v4084 = vadd.f32 0.0, %v4083
      %v4085 = vpop.f32.mrb[0].mxu0
      %v4086 = vpop.f32.mrb[0].mxu0
      %v4087 = vadd.f32 0.0, %v4086
      %v4088 = vpop.f32.mrb[0].mxu0
      %4089 = vmatprep.mubr.bf16.mxu0 0
      %4090 = vmatmul.mubr.bf16.gmra.mrb[0].mxu0 %v3131
      %v4091 = vpop.f32.mrb[0].mxu0
      %v4092 = vadd.f32 0.0, %v4091
      %v4093 = vpop.f32.mrb[0].mxu0
      %v4094 = vpop.f32.mrb[0].mxu0
      %v4095 = vadd.f32 0.0, %v4094
      %v4096 = vpop.f32.mrb[0].mxu0
      %4097 = vmatprep.mubr.bf16.mxu0 0
      %4098 = vmatmul.mubr.bf16.gmra.mrb[0].mxu0 %v3132
      %v4099 = vpop.f32.mrb[0].mxu0
      %v4100 = vadd.f32 0.0, %v4099
      %v4101 = vpop.f32.mrb[0].mxu0
      %v4102 = vpop.f32.mrb[0].mxu0
      %v4103 = vadd.f32 0.0, %v4102
      %v4104 = vpop.f32.mrb[0].mxu0
      %4105 = vmatprep.mubr.bf16.mxu0 0
      %4106 = vmatmul.mubr.bf16.gmra.mrb[0].mxu0 %v3133
      %v4107 = vpop.f32.mrb[0].mxu0
      %v4108 = vadd.f32 0.0, %v4107
      %v4109 = vpop.f32.mrb[0].mxu0
      %v4110 = vpop.f32.mrb[0].mxu0
      %v4111 = vadd.f32 0.0, %v4110
      %v4112 = vpop.f32.mrb[0].mxu0
      %4113 = vmatprep.mubr.bf16.mxu0 0
      %4114 = vmatmul.mubr.bf16.gmra.mrb[0].mxu0 %v3134
      %v4115 = vpop.f32.mrb[0].mxu0
      %v4116 = vadd.f32 0.0, %v4115
      %v4117 = vpop.f32.mrb[0].mxu0
      %v4118 = vpop.f32.mrb[0].mxu0
      %v4119 = vadd.f32 0.0, %v4118
      %v4120 = vpop.f32.mrb[0].mxu0
      %4121 = vmatprep.mubr.bf16.mxu0 0
      %4122 = vmatmul.mubr.bf16.gmra.mrb[0].mxu0 %v3135
      %v4123 = vpop.f32.mrb[0].mxu0
      %v4124 = vadd.f32 0.0, %v4123
      %v4125 = vpop.f32.mrb[0].mxu0
      %v4126 = vpop.f32.mrb[0].mxu0
      %v4127 = vadd.f32 0.0, %v4126
      %v4128 = vpop.f32.mrb[0].mxu0
      %4129 = vmatprep.mubr.bf16.mxu0 0
      %4130 = vmatmul.mubr.bf16.gmra.mrb[0].mxu0 %v3136
      %v4131 = vpop.f32.mrb[0].mxu0
      %v4132 = vadd.f32 0.0, %v4131
      %v4133 = vpop.f32.mrb[0].mxu0
      %v4134 = vpop.f32.mrb[0].mxu0
      %v4135 = vadd.f32 0.0, %v4134
      %v4136 = vpop.f32.mrb[0].mxu0
      %4137 = vmatprep.mubr.bf16.mxu0 0
      %4138 = vmatmul.mubr.bf16.gmra.mrb[0].mxu0 %v3137
      %v4139 = vpop.f32.mrb[0].mxu0
      %v4140 = vadd.f32 0.0, %v4139
      %v4141 = vpop.f32.mrb[0].mxu0
      %v4142 = vpop.f32.mrb[0].mxu0
      %v4143 = vadd.f32 0.0, %v4142
      %v4144 = vpop.f32.mrb[0].mxu0
      %4145 = vmatprep.mubr.bf16.mxu0 0
      %4146 = vmatmul.mubr.bf16.gmra.mrb[0].mxu0 %v3138
      %v4147 = vpop.f32.mrb[0].mxu0
      %v4148 = vadd.f32 0.0, %v4147
      %v4149 = vpop.f32.mrb[0].mxu0
      %v4150 = vpop.f32.mrb[0].mxu0
      %v4151 = vadd.f32 0.0, %v4150
      %v4152 = vpop.f32.mrb[0].mxu0
      %4153 = vmatprep.mubr.bf16.mxu0 0
      %4154 = vmatmul.mubr.bf16.gmra.mrb[0].mxu0 %v3139
      %v4155 = vpop.f32.mrb[0].mxu0
      %v4156 = vadd.f32 0.0, %v4155
      %v4157 = vpop.f32.mrb[0].mxu0
      %v4158 = vpop.f32.mrb[0].mxu0
      %v4159 = vadd.f32 0.0, %v4158
      %v4160 = vpop.f32.mrb[0].mxu0
      %4161 = vmatprep.mubr.bf16.mxu0 0
      %4162 = vmatmul.mubr.bf16.gmra.mrb[0].mxu0 %v3140
      %v4163 = vpop.f32.mrb[0].mxu0
      %v4164 = vadd.f32 0.0, %v4163
      %v4165 = vpop.f32.mrb[0].mxu0
      %v4166 = vpop.f32.mrb[0].mxu0
      %v4167 = vadd.f32 0.0, %v4166
      %v4168 = vpop.f32.mrb[0].mxu0
      %4169 = vmatprep.mubr.bf16.mxu0 0
      %4170 = vmatmul.mubr.bf16.gmra.mrb[0].mxu0 %v3141
      %v4171 = vpop.f32.mrb[0].mxu0
      %v4172 = vadd.f32 0.0, %v4171
      %v4173 = vpop.f32.mrb[0].mxu0
      %v4174 = vpop.f32.mrb[0].mxu0
      %v4175 = vadd.f32 0.0, %v4174
      %v4176 = vpop.f32.mrb[0].mxu0
      %4177 = vmatprep.mubr.bf16.mxu0 0
      %4178 = vmatmul.mubr.bf16.gmra.mrb[0].mxu0 %v3142
      %v4179 = vpop.f32.mrb[0].mxu0
      %v4180 = vadd.f32 0.0, %v4179
      %v4181 = vpop.f32.mrb[0].mxu0
      %v4182 = vpop.f32.mrb[0].mxu0
      %v4183 = vadd.f32 0.0, %v4182
      %v4184 = vpop.f32.mrb[0].mxu0
      %4185 = vmatprep.mubr.bf16.mxu0 0
      %4186 = vmatmul.mubr.bf16.gmra.mrb[0].mxu0 %v3143
      %v4187 = vpop.f32.mrb[0].mxu0
      %v4188 = vadd.f32 0.0, %v4187
      %v4189 = vpop.f32.mrb[0].mxu0
      %v4190 = vpop.f32.mrb[0].mxu0
      %v4191 = vadd.f32 0.0, %v4190
      %v4192 = vpop.f32.mrb[0].mxu0
      %4193 = vmatprep.mubr.bf16.mxu0 0
      %4194 = vmatmul.mubr.bf16.gmra.mrb[0].mxu0 %v3144
      %v4195 = vpop.f32.mrb[0].mxu0
      %v4196 = vadd.f32 0.0, %v4195
      %v4197 = vpop.f32.mrb[0].mxu0
      %v4198 = vpop.f32.mrb[0].mxu0
      %v4199 = vadd.f32 0.0, %v4198
      %v4200 = vpop.f32.mrb[0].mxu0
      %4201 = vmatprep.mubr.bf16.mxu0 0
      %4202 = vmatmul.mubr.bf16.gmra.mrb[0].mxu0 %v3145
      %v4203 = vpop.f32.mrb[0].mxu0
      %v4204 = vadd.f32 0.0, %v4203
      %v4205 = vpop.f32.mrb[0].mxu0
      %v4206 = vpop.f32.mrb[0].mxu0
      %v4207 = vadd.f32 0.0, %v4206
      %v4208 = vpop.f32.mrb[0].mxu0
      %4209 = vmatprep.mubr.bf16.mxu0 0
      %4210 = vmatmul.mubr.bf16.gmra.mrb[0].mxu0 %v3146
      %v4211 = vpop.f32.mrb[0].mxu0
      %v4212 = vadd.f32 0.0, %v4211
      %v4213 = vpop.f32.mrb[0].mxu0
      %v4214 = vpop.f32.mrb[0].mxu0
      %v4215 = vadd.f32 0.0, %v4214
      %v4216 = vpop.f32.mrb[0].mxu0
      %4217 = vmatprep.mubr.bf16.mxu0 0
      %4218 = vmatmul.mubr.bf16.gmra.mrb[0].mxu0 %v3147
      %v4219 = vpop.f32.mrb[0].mxu0
      %v4220 = vadd.f32 0.0, %v4219
      %v4221 = vpop.f32.mrb[0].mxu0
      %v4222 = vpop.f32.mrb[0].mxu0
      %v4223 = vadd.f32 0.0, %v4222
      %v4224 = vpop.f32.mrb[0].mxu0
      %4225 = vdwg.mxu0
      %v4274 = vrot.slane %v4036, 2
      %v4275 = vrot.slane %v4039, 2
      %v4276 = vsel %vm1588, %v4274, %v4275
      %v4277 = vrot.slane %v4044, 2
      %v4278 = vsel %vm1588, %v4275, %v4277
      %v4279 = vrot.slane %v4047, 2
      %v4280 = vrot.slane %v4052, 2
      %v4281 = vsel %vm1588, %v4279, %v4280
      %v4282 = vrot.slane %v4055, 2
      %v4283 = vsel %vm1588, %v4280, %v4282
      %v4284 = vrot.slane %v4060, 2
      %v4285 = vrot.slane %v4063, 2
      %v4286 = vsel %vm1588, %v4284, %v4285
      %v4287 = vrot.slane %v4068, 2
      %v4288 = vsel %vm1588, %v4285, %v4287
      %v4289 = vrot.slane %v4071, 2
      %v4290 = vrot.slane %v4076, 2
      %v4291 = vsel %vm1588, %v4289, %v4290
      %v4292 = vrot.slane %v4079, 2
      %v4293 = vsel %vm1588, %v4290, %v4292
      %v4294 = vrot.slane %v4084, 2
      %v4295 = vrot.slane %v4087, 2
      %v4296 = vsel %vm1588, %v4294, %v4295
      %v4297 = vrot.slane %v4092, 2
      %v4298 = vsel %vm1588, %v4295, %v4297
      %v4299 = vrot.slane %v4095, 2
      %v4300 = vrot.slane %v4100, 2
      %v4301 = vsel %vm1588, %v4299, %v4300
      %v4302 = vrot.slane %v4103, 2
      %v4303 = vsel %vm1588, %v4300, %v4302
      %v4304 = vrot.slane %v4108, 2
      %v4305 = vrot.slane %v4111, 2
      %v4306 = vsel %vm1588, %v4304, %v4305
      %v4307 = vrot.slane %v4116, 2
      %v4308 = vsel %vm1588, %v4305, %v4307
      %v4309 = vrot.slane %v4119, 2
      %v4310 = vrot.slane %v4124, 2
      %v4311 = vsel %vm1588, %v4309, %v4310
      %v4312 = vrot.slane %v4127, 2
      %v4313 = vsel %vm1588, %v4310, %v4312
      %v4314 = vrot.slane %v4132, 2
      %v4315 = vrot.slane %v4135, 2
      %v4316 = vsel %vm1588, %v4314, %v4315
      %v4317 = vrot.slane %v4140, 2
      %v4318 = vsel %vm1588, %v4315, %v4317
      %v4319 = vrot.slane %v4143, 2
      %v4320 = vrot.slane %v4148, 2
      %v4321 = vsel %vm1588, %v4319, %v4320
      %v4322 = vrot.slane %v4151, 2
      %v4323 = vsel %vm1588, %v4320, %v4322
      %v4324 = vrot.slane %v4156, 2
      %v4325 = vrot.slane %v4159, 2
      %v4326 = vsel %vm1588, %v4324, %v4325
      %v4327 = vrot.slane %v4164, 2
      %v4328 = vsel %vm1588, %v4325, %v4327
      %v4329 = vrot.slane %v4167, 2
      %v4330 = vrot.slane %v4172, 2
      %v4331 = vsel %vm1588, %v4329, %v4330
      %v4332 = vrot.slane %v4175, 2
      %v4333 = vsel %vm1588, %v4330, %v4332
      %v4334 = vrot.slane %v4180, 2
      %v4335 = vrot.slane %v4183, 2
      %v4336 = vsel %vm1588, %v4334, %v4335
      %v4337 = vrot.slane %v4188, 2
      %v4338 = vsel %vm1588, %v4335, %v4337
      %v4339 = vrot.slane %v4191, 2
      %v4340 = vrot.slane %v4196, 2
      %v4341 = vsel %vm1588, %v4339, %v4340
      %v4342 = vrot.slane %v4199, 2
      %v4343 = vsel %vm1588, %v4340, %v4342
      %v4344 = vrot.slane %v4204, 2
      %v4345 = vrot.slane %v4207, 2
      %v4346 = vsel %vm1588, %v4344, %v4345
      %v4347 = vrot.slane %v4212, 2
      %v4348 = vsel %vm1588, %v4345, %v4347
      %v4349 = vrot.slane %v4215, 2
      %v4350 = vrot.slane %v4220, 2
      %v4351 = vsel %vm1588, %v4349, %v4350
      %v4352 = vrot.slane %v4223, 2
      %v4353 = vsel %vm1588, %v4350, %v4352
      %v4386 = vadd.f32 %v3904, %v4276
      %v4387 = vadd.f32 %v3905, %v4278
      %v4388 = vadd.f32 %v3906, %v4281
      %v4389 = vadd.f32 %v3907, %v4283
      %v4390 = vadd.f32 %v3908, %v4286
      %v4391 = vadd.f32 %v3909, %v4288
      %v4392 = vadd.f32 %v3910, %v4291
      %v4393 = vadd.f32 %v3911, %v4293
      %v4394 = vadd.f32 %v3912, %v4296
      %v4395 = vadd.f32 %v3913, %v4298
      %v4396 = vadd.f32 %v3914, %v4301
      %v4397 = vadd.f32 %v3915, %v4303
      %v4398 = vadd.f32 %v3916, %v4306
      %v4399 = vadd.f32 %v3917, %v4308
      %v4400 = vadd.f32 %v3918, %v4311
      %v4401 = vadd.f32 %v3919, %v4313
      %v4402 = vadd.f32 %v3920, %v4316
      %v4403 = vadd.f32 %v3921, %v4318
      %v4404 = vadd.f32 %v3922, %v4321
      %v4405 = vadd.f32 %v3923, %v4323
      %v4406 = vadd.f32 %v3924, %v4326
      %v4407 = vadd.f32 %v3925, %v4328
      %v4408 = vadd.f32 %v3926, %v4331
      %v4409 = vadd.f32 %v3927, %v4333
      %v4410 = vadd.f32 %v3928, %v4336
      %v4411 = vadd.f32 %v3929, %v4338
      %v4412 = vadd.f32 %v3930, %v4341
      %v4413 = vadd.f32 %v3931, %v4343
      %v4414 = vadd.f32 %v3932, %v4346
      %v4415 = vadd.f32 %v3933, %v4348
      %v4416 = vadd.f32 %v3934, %v4351
      %v4417 = vadd.f32 %v3935, %v4353
      %v4419 = vlaneseq
      %v4420 = vshrl.u32 %v4419, 7
      %v4421 = vsub.s32 0, %v4420
      %v4422 = vrot.slane %v420, %v4421
      %v4424 = vmul.f32 %v4386, %v4422
      %v4425 = vmul.f32 %v4387, %v4422
      %v4426 = vmul.f32 %v4388, %v4422
      %v4427 = vmul.f32 %v4389, %v4422
      %v4428 = vmul.f32 %v4390, %v4422
      %v4429 = vmul.f32 %v4391, %v4422
      %v4430 = vmul.f32 %v4392, %v4422
      %v4431 = vmul.f32 %v4393, %v4422
      %v4432 = vmul.f32 %v4394, %v4422
      %v4433 = vmul.f32 %v4395, %v4422
      %v4434 = vmul.f32 %v4396, %v4422
      %v4435 = vmul.f32 %v4397, %v4422
      %v4436 = vmul.f32 %v4398, %v4422
      %v4437 = vmul.f32 %v4399, %v4422
      %v4438 = vmul.f32 %v4400, %v4422
      %v4439 = vmul.f32 %v4401, %v4422
      %v4440 = vmul.f32 %v4402, %v4422
      %v4441 = vmul.f32 %v4403, %v4422
      %v4442 = vmul.f32 %v4404, %v4422
      %v4443 = vmul.f32 %v4405, %v4422
      %v4444 = vmul.f32 %v4406, %v4422
      %v4445 = vmul.f32 %v4407, %v4422
      %v4446 = vmul.f32 %v4408, %v4422
      %v4447 = vmul.f32 %v4409, %v4422
      %v4448 = vmul.f32 %v4410, %v4422
      %v4449 = vmul.f32 %v4411, %v4422
      %v4450 = vmul.f32 %v4412, %v4422
      %v4451 = vmul.f32 %v4413, %v4422
      %v4452 = vmul.f32 %v4414, %v4422
      %v4453 = vmul.f32 %v4415, %v4422
      %v4454 = vmul.f32 %v4416, %v4422
      %v4455 = vmul.f32 %v4417, %v4422
      %v4457 = vlaneseq
      %v4458 = vshrl.u32 %v4457, 7
      %v4459 = vsub.s32 0, %v4458
      %v4460 = vrot.slane %v421, %v4459
      %v4462 = vadd.f32 %v4424, %v4460
      %v4463 = vadd.f32 %v4425, %v4460
      %v4464 = vadd.f32 %v4426, %v4460
      %v4465 = vadd.f32 %v4427, %v4460
      %v4466 = vadd.f32 %v4428, %v4460
      %v4467 = vadd.f32 %v4429, %v4460
      %v4468 = vadd.f32 %v4430, %v4460
      %v4469 = vadd.f32 %v4431, %v4460
      %v4470 = vadd.f32 %v4432, %v4460
      %v4471 = vadd.f32 %v4433, %v4460
      %v4472 = vadd.f32 %v4434, %v4460
      %v4473 = vadd.f32 %v4435, %v4460
      %v4474 = vadd.f32 %v4436, %v4460
      %v4475 = vadd.f32 %v4437, %v4460
      %v4476 = vadd.f32 %v4438, %v4460
      %v4477 = vadd.f32 %v4439, %v4460
      %v4478 = vadd.f32 %v4440, %v4460
      %v4479 = vadd.f32 %v4441, %v4460
      %v4480 = vadd.f32 %v4442, %v4460
      %v4481 = vadd.f32 %v4443, %v4460
      %v4482 = vadd.f32 %v4444, %v4460
      %v4483 = vadd.f32 %v4445, %v4460
      %v4484 = vadd.f32 %v4446, %v4460
      %v4485 = vadd.f32 %v4447, %v4460
      %v4486 = vadd.f32 %v4448, %v4460
      %v4487 = vadd.f32 %v4449, %v4460
      %v4488 = vadd.f32 %v4450, %v4460
      %v4489 = vadd.f32 %v4451, %v4460
      %v4490 = vadd.f32 %v4452, %v4460
      %v4491 = vadd.f32 %v4453, %v4460
      %v4492 = vadd.f32 %v4454, %v4460
      %v4493 = vadd.f32 %v4455, %v4460
      %v4494 = vmax.f32 %v4462, 0.0
      %v4495 = vmax.f32 %v4463, 0.0
      %v4496 = vmax.f32 %v4464, 0.0
      %v4497 = vmax.f32 %v4465, 0.0
      %v4498 = vmax.f32 %v4466, 0.0
      %v4499 = vmax.f32 %v4467, 0.0
      %v4500 = vmax.f32 %v4468, 0.0
      %v4501 = vmax.f32 %v4469, 0.0
      %v4502 = vmax.f32 %v4470, 0.0
      %v4503 = vmax.f32 %v4471, 0.0
      %v4504 = vmax.f32 %v4472, 0.0
      %v4505 = vmax.f32 %v4473, 0.0
      %v4506 = vmax.f32 %v4474, 0.0
      %v4507 = vmax.f32 %v4475, 0.0
      %v4508 = vmax.f32 %v4476, 0.0
      %v4509 = vmax.f32 %v4477, 0.0
      %v4510 = vmax.f32 %v4478, 0.0
      %v4511 = vmax.f32 %v4479, 0.0
      %v4512 = vmax.f32 %v4480, 0.0
      %v4513 = vmax.f32 %v4481, 0.0
      %v4514 = vmax.f32 %v4482, 0.0
      %v4515 = vmax.f32 %v4483, 0.0
      %v4516 = vmax.f32 %v4484, 0.0
      %v4517 = vmax.f32 %v4485, 0.0
      %v4518 = vmax.f32 %v4486, 0.0
      %v4519 = vmax.f32 %v4487, 0.0
      %v4520 = vmax.f32 %v4488, 0.0
      %v4521 = vmax.f32 %v4489, 0.0
      %v4522 = vmax.f32 %v4490, 0.0
      %v4523 = vmax.f32 %v4491, 0.0
      %v4524 = vmax.f32 %v4492, 0.0
      %v4525 = vmax.f32 %v4493, 0.0
      %4526 = vst [vmem:[%s387 + $0x1] sm:$0xff] %v4494
      %4527 = vst [vmem:[%s387 + $0x9] sm:$0xff] %v4495
      %4528 = vst [vmem:[%s387 + $0x19] sm:$0xff] %v4496
      %4529 = vst [vmem:[%s387 + $0x21] sm:$0xff] %v4497
      %4530 = vst [vmem:[%s387 + $0x31] sm:$0xff] %v4498
      %4531 = vst [vmem:[%s387 + $0x39] sm:$0xff] %v4499
      %4532 = vst [vmem:[%s387 + $0x49] sm:$0xff] %v4500
      %4533 = vst [vmem:[%s387 + $0x51] sm:$0xff] %v4501
      %4534 = vst [vmem:[%s387 + $0x61] sm:$0xff] %v4502
      %4535 = vst [vmem:[%s387 + $0x69] sm:$0xff] %v4503
      %4536 = vst [vmem:[%s387 + $0x79] sm:$0xff] %v4504
      %4537 = vst [vmem:[%s387 + $0x81] sm:$0xff] %v4505
      %4538 = vst [vmem:[%s387 + $0x91] sm:$0xff] %v4506
      %4539 = vst [vmem:[%s387 + $0x99] sm:$0xff] %v4507
      %4540 = vst [vmem:[%s387 + $0xa9] sm:$0xff] %v4508
      %4541 = vst [vmem:[%s387 + $0xb1] sm:$0xff] %v4509
      %4542 = vst [vmem:[%s387 + $0xc1] sm:$0xff] %v4510
      %4543 = vst [vmem:[%s387 + $0xc9] sm:$0xff] %v4511
      %4544 = vst [vmem:[%s387 + $0xd9] sm:$0xff] %v4512
      %4545 = vst [vmem:[%s387 + $0xe1] sm:$0xff] %v4513
      %4546 = vst [vmem:[%s387 + $0xf1] sm:$0xff] %v4514
      %4547 = vst [vmem:[%s387 + $0xf9] sm:$0xff] %v4515
      %4548 = vst [vmem:[%s387 + $0x109] sm:$0xff] %v4516
      %4549 = vst [vmem:[%s387 + $0x111] sm:$0xff] %v4517
      %4550 = vst [vmem:[%s387 + $0x121] sm:$0xff] %v4518
      %4551 = vst [vmem:[%s387 + $0x129] sm:$0xff] %v4519
      %4552 = vst [vmem:[%s387 + $0x139] sm:$0xff] %v4520
      %4553 = vst [vmem:[%s387 + $0x141] sm:$0xff] %v4521
      %4554 = vst [vmem:[%s387 + $0x151] sm:$0xff] %v4522
      %4555 = vst [vmem:[%s387 + $0x159] sm:$0xff] %v4523
      %4556 = vst [vmem:[%s387 + $0x169] sm:$0xff] %v4524
      %4557 = vst [vmem:[%s387 + $0x171] sm:$0xff] %v4525
      %v4558 = vld [vmem:[%s5] sm:$0x1]
      %v4559 = vld [vmem:[%s6] sm:$0x1]
      %v4560 = vld [vmem:[#allocation2] sm:$0xff]
      %v4561 = vld [vmem:[#allocation2 + $0x8] sm:$0xff]
      %v4562 = vld [vmem:[#allocation2 + $0x10] sm:$0xff]
      %v4563 = vld [vmem:[#allocation2 + $0x18] sm:$0xff]
      %v4564 = vld [vmem:[#allocation2 + $0x20] sm:$0xff]
      %v4565 = vld [vmem:[#allocation2 + $0x28] sm:$0xff]
      %v4566 = vld [vmem:[#allocation2 + $0x30] sm:$0xff]
      %v4567 = vld [vmem:[#allocation2 + $0x38] sm:$0xff]
      %v4568 = vld [vmem:[#allocation2 + $0x40] sm:$0xff]
      %v4569 = vld [vmem:[#allocation2 + $0x48] sm:$0xff]
      %v4570 = vld [vmem:[#allocation2 + $0x50] sm:$0xff]
      %v4571 = vld [vmem:[#allocation2 + $0x58] sm:$0xff]
      %v4572 = vld [vmem:[#allocation2 + $0x60] sm:$0xff]
      %v4573 = vld [vmem:[#allocation2 + $0x68] sm:$0xff]
      %v4574 = vld [vmem:[#allocation2 + $0x70] sm:$0xff]
      %v4575 = vld [vmem:[#allocation2 + $0x78] sm:$0xff]
      %v4576 = vld [vmem:[#allocation2 + $0x80] sm:$0xff]
      %v4577 = vld [vmem:[#allocation2 + $0x88] sm:$0xff]
      %v4578 = vld [vmem:[#allocation2 + $0x90] sm:$0xff]
      %v4579 = vld [vmem:[#allocation2 + $0x98] sm:$0xff]
      %v4580 = vld [vmem:[#allocation2 + $0xa0] sm:$0xff]
      %v4581 = vld [vmem:[#allocation2 + $0xa8] sm:$0xff]
      %v4582 = vld [vmem:[#allocation2 + $0xb0] sm:$0xff]
      %v4583 = vld [vmem:[#allocation2 + $0xb8] sm:$0xff]
      %v4584 = vld [vmem:[#allocation2 + $0xc0] sm:$0xff]
      %v4585 = vld [vmem:[#allocation2 + $0xc8] sm:$0xff]
      %v4586 = vld [vmem:[#allocation2 + $0xd0] sm:$0xff]
      %v4587 = vld [vmem:[#allocation2 + $0xd8] sm:$0xff]
      %v4588 = vld [vmem:[#allocation2 + $0xe0] sm:$0xff]
      %v4589 = vld [vmem:[#allocation2 + $0xe8] sm:$0xff]
      %v4590 = vld [vmem:[#allocation2 + $0xf0] sm:$0xff]
      %v4591 = vld [vmem:[#allocation2 + $0xf8] sm:$0xff]
      %v4592 = vld [vmem:[#allocation2 + $0x100] sm:$0xff]
      %v4593 = vld [vmem:[#allocation2 + $0x108] sm:$0xff]
      %v4594 = vld [vmem:[#allocation2 + $0x110] sm:$0xff]
      %v4595 = vld [vmem:[#allocation2 + $0x118] sm:$0xff]
      %v4596 = vld [vmem:[#allocation2 + $0x120] sm:$0xff]
      %v4597 = vld [vmem:[#allocation2 + $0x128] sm:$0xff]
      %v4598 = vld [vmem:[#allocation2 + $0x130] sm:$0xff]
      %v4599 = vld [vmem:[#allocation2 + $0x138] sm:$0xff]
      %v4600 = vld [vmem:[#allocation2 + $0x140] sm:$0xff]
      %v4601 = vld [vmem:[#allocation2 + $0x148] sm:$0xff]
      %v4602 = vld [vmem:[#allocation2 + $0x150] sm:$0xff]
      %v4603 = vld [vmem:[#allocation2 + $0x158] sm:$0xff]
      %v4604 = vld [vmem:[#allocation2 + $0x160] sm:$0xff]
      %v4605 = vld [vmem:[#allocation2 + $0x168] sm:$0xff]
      %v4606 = vld [vmem:[#allocation2 + $0x170] sm:$0xff]
      %v4607 = vld [vmem:[#allocation2 + $0x178] sm:$0xff]
      %v4608 = vpack.c.bf16 %v4561, %v4560
      %v4609 = vpack.c.bf16 %v4563, %v4562
      %v4610 = vpack.c.bf16 %v4565, %v4564
      %v4611 = vpack.c.bf16 %v4567, %v4566
      %v4612 = vpack.c.bf16 %v4569, %v4568
      %v4613 = vpack.c.bf16 %v4571, %v4570
      %v4614 = vpack.c.bf16 %v4573, %v4572
      %v4615 = vpack.c.bf16 %v4575, %v4574
      %v4616 = vpack.c.bf16 %v4577, %v4576
      %v4617 = vpack.c.bf16 %v4579, %v4578
      %v4618 = vpack.c.bf16 %v4581, %v4580
      %v4619 = vpack.c.bf16 %v4583, %v4582
      %v4620 = vpack.c.bf16 %v4585, %v4584
      %v4621 = vpack.c.bf16 %v4587, %v4586
      %v4622 = vpack.c.bf16 %v4589, %v4588
      %v4623 = vpack.c.bf16 %v4591, %v4590
      %v4624 = vpack.c.bf16 %v4593, %v4592
      %v4625 = vpack.c.bf16 %v4595, %v4594
      %v4626 = vpack.c.bf16 %v4597, %v4596
      %v4627 = vpack.c.bf16 %v4599, %v4598
      %v4628 = vpack.c.bf16 %v4601, %v4600
      %v4629 = vpack.c.bf16 %v4603, %v4602
      %v4630 = vpack.c.bf16 %v4605, %v4604
      %v4631 = vpack.c.bf16 %v4607, %v4606
      %v4632 = vld [vmem:[%s2] sm:$0xf]
      %v4633 = vld [vmem:[%s2 + $0x4] sm:$0xf]
      %v4634 = vld [vmem:[%s2 + $0x8] sm:$0xf]
      %v4635 = vld [vmem:[%s2 + $0xc] sm:$0xf]
      %v4636 = vld [vmem:[%s2 + $0x10] sm:$0xf]
      %v4637 = vld [vmem:[%s2 + $0x14] sm:$0xf]
      %v4638 = vld [vmem:[%s2 + $0x18] sm:$0xf]
      %v4639 = vld [vmem:[%s2 + $0x1c] sm:$0xf]
      %v4640 = vld [vmem:[%s2 + $0x20] sm:$0xf]
      %v4641 = vld [vmem:[%s2 + $0x24] sm:$0xf]
      %v4642 = vld [vmem:[%s2 + $0x28] sm:$0xf]
      %v4643 = vld [vmem:[%s2 + $0x2c] sm:$0xf]
      %v4644 = vld [vmem:[%s2 + $0x30] sm:$0xf]
      %v4645 = vld [vmem:[%s2 + $0x34] sm:$0xf]
      %v4646 = vld [vmem:[%s2 + $0x38] sm:$0xf]
      %v4647 = vld [vmem:[%s2 + $0x3c] sm:$0xf]
      %v4664 = vunpack.c.l.b16 %v4632
      %v4665 = vunpack.c.l.b16 %v4633
      %v4666 = vunpack.c.l.b16 %v4634
      %v4667 = vunpack.c.l.b16 %v4635
      %v4668 = vunpack.c.l.b16 %v4636
      %v4669 = vunpack.c.l.b16 %v4637
      %v4670 = vunpack.c.l.b16 %v4638
      %v4671 = vunpack.c.l.b16 %v4639
      %v4672 = vunpack.c.l.b16 %v4640
      %v4673 = vunpack.c.l.b16 %v4641
      %v4674 = vunpack.c.l.b16 %v4642
      %v4675 = vunpack.c.l.b16 %v4643
      %v4676 = vunpack.c.l.b16 %v4644
      %v4677 = vunpack.c.l.b16 %v4645
      %v4678 = vunpack.c.l.b16 %v4646
      %v4679 = vunpack.c.l.b16 %v4647
      %v4680 = vpack.c.b16 %v4665, %v4664
      %v4681 = vpack.c.b16 %v4667, %v4666
      %v4682 = vpack.c.b16 %v4669, %v4668
      %v4683 = vpack.c.b16 %v4671, %v4670
      %v4684 = vpack.c.b16 %v4673, %v4672
      %v4685 = vpack.c.b16 %v4675, %v4674
      %v4686 = vpack.c.b16 %v4677, %v4676
      %v4687 = vpack.c.b16 %v4679, %v4678
      %4696 = vmatprep.subr.bf16.mxu0 0
      %4697 = vmatpush1.bf16.msra.mxu0 %v4680
      %4698 = vmatprep.subr.bf16.mxu0 0
      %4699 = vmatpush1.bf16.msra.mxu0 %v4681
      %4700 = vmatprep.subr.bf16.mxu0 0
      %4701 = vmatpush1.bf16.msra.mxu0 %v4682
      %4702 = vmatprep.subr.bf16.mxu0 0
      %4703 = vmatpush1.bf16.msra.mxu0 %v4683
      %4704 = vmatprep.subr.bf16.mxu0 0
      %4705 = vmatpush1.bf16.msra.mxu0 %v4684
      %4706 = vmatprep.subr.bf16.mxu0 0
      %4707 = vmatpush1.bf16.msra.mxu0 %v4685
      %4708 = vmatprep.subr.bf16.mxu0 0
      %4709 = vmatpush1.bf16.msra.mxu0 %v4686
      %4710 = vmatprep.subr.bf16.mxu0 0
      %4711 = vmatpush1.bf16.msra.mxu0 %v4687
      %4712 = vmatprep.subr.bf16.mxu0 0
      %4713 = vmatpush1.bf16.msra.mxu0 0
      %4714 = vmatprep.subr.bf16.mxu0 0
      %4715 = vmatpush1.bf16.msra.mxu0 0
      %4716 = vmatprep.subr.bf16.mxu0 0
      %4717 = vmatpush1.bf16.msra.mxu0 0
      %4718 = vmatprep.subr.bf16.mxu0 0
      %4719 = vmatpush1.bf16.msra.mxu0 0
      %4720 = vmatprep.subr.bf16.mxu0 0
      %4721 = vmatpush1.bf16.msra.mxu0 0
      %4722 = vmatprep.subr.bf16.mxu0 0
      %4723 = vmatpush1.bf16.msra.mxu0 0
      %4724 = vmatprep.subr.bf16.mxu0 0
      %4725 = vmatpush1.bf16.msra.mxu0 0
      %4726 = vmatprep.subr.bf16.mxu0 0
      %4727 = vmatpush1.bf16.msra.mxu0 0
      %4728 = vmatprep.mubr.bf16.mxu0 0
      %4729 = vmatmul.mubr.bf16.gmra.mrb[0].mxu0 %v4608
      %v4730 = vpop.f32.mrb[0].mxu0
      %v4731 = vadd.f32 0.0, %v4730
      %v4732 = vpop.f32.mrb[0].mxu0
      %v4733 = vpop.f32.mrb[0].mxu0
      %v4734 = vadd.f32 0.0, %v4733
      %v4735 = vpop.f32.mrb[0].mxu0
      %4736 = vmatprep.mubr.bf16.mxu0 0
      %4737 = vmatmul.mubr.bf16.gmra.mrb[0].mxu0 %v4609
      %v4738 = vpop.f32.mrb[0].mxu0
      %v4739 = vpop.f32.mrb[0].mxu0
      %v4740 = vpop.f32.mrb[0].mxu0
      %v4741 = vadd.f32 0.0, %v4740
      %v4742 = vpop.f32.mrb[0].mxu0
      %4743 = vmatprep.mubr.bf16.mxu0 0
      %4744 = vmatmul.mubr.bf16.gmra.mrb[0].mxu0 %v4610
      %v4745 = vpop.f32.mrb[0].mxu0
      %v4746 = vadd.f32 0.0, %v4745
      %v4747 = vpop.f32.mrb[0].mxu0
      %v4748 = vpop.f32.mrb[0].mxu0
      %v4749 = vpop.f32.mrb[0].mxu0
      %4750 = vmatprep.mubr.bf16.mxu0 0
      %4751 = vmatmul.mubr.bf16.gmra.mrb[0].mxu0 %v4611
      %v4752 = vpop.f32.mrb[0].mxu0
      %v4753 = vadd.f32 0.0, %v4752
      %v4754 = vpop.f32.mrb[0].mxu0
      %v4755 = vpop.f32.mrb[0].mxu0
      %v4756 = vadd.f32 0.0, %v4755
      %v4757 = vpop.f32.mrb[0].mxu0
      %4758 = vmatprep.mubr.bf16.mxu0 0
      %4759 = vmatmul.mubr.bf16.gmra.mrb[0].mxu0 %v4612
      %v4760 = vpop.f32.mrb[0].mxu0
      %v4761 = vpop.f32.mrb[0].mxu0
      %v4762 = vpop.f32.mrb[0].mxu0
      %v4763 = vadd.f32 0.0, %v4762
      %v4764 = vpop.f32.mrb[0].mxu0
      %4765 = vmatprep.mubr.bf16.mxu0 0
      %4766 = vmatmul.mubr.bf16.gmra.mrb[0].mxu0 %v4613
      %v4767 = vpop.f32.mrb[0].mxu0
      %v4768 = vadd.f32 0.0, %v4767
      %v4769 = vpop.f32.mrb[0].mxu0
      %v4770 = vpop.f32.mrb[0].mxu0
      %v4771 = vpop.f32.mrb[0].mxu0
      %4772 = vmatprep.mubr.bf16.mxu0 0
      %4773 = vmatmul.mubr.bf16.gmra.mrb[0].mxu0 %v4614
      %v4774 = vpop.f32.mrb[0].mxu0
      %v4775 = vadd.f32 0.0, %v4774
      %v4776 = vpop.f32.mrb[0].mxu0
      %v4777 = vpop.f32.mrb[0].mxu0
      %v4778 = vadd.f32 0.0, %v4777
      %v4779 = vpop.f32.mrb[0].mxu0
      %4780 = vmatprep.mubr.bf16.mxu0 0
      %4781 = vmatmul.mubr.bf16.gmra.mrb[0].mxu0 %v4615
      %v4782 = vpop.f32.mrb[0].mxu0
      %v4783 = vpop.f32.mrb[0].mxu0
      %v4784 = vpop.f32.mrb[0].mxu0
      %v4785 = vadd.f32 0.0, %v4784
      %v4786 = vpop.f32.mrb[0].mxu0
      %4787 = vmatprep.mubr.bf16.mxu0 0
      %4788 = vmatmul.mubr.bf16.gmra.mrb[0].mxu0 %v4616
      %v4789 = vpop.f32.mrb[0].mxu0
      %v4790 = vadd.f32 0.0, %v4789
      %v4791 = vpop.f32.mrb[0].mxu0
      %v4792 = vpop.f32.mrb[0].mxu0
      %v4793 = vpop.f32.mrb[0].mxu0
      %4794 = vmatprep.mubr.bf16.mxu0 0
      %4795 = vmatmul.mubr.bf16.gmra.mrb[0].mxu0 %v4617
      %v4796 = vpop.f32.mrb[0].mxu0
      %v4797 = vadd.f32 0.0, %v4796
      %v4798 = vpop.f32.mrb[0].mxu0
      %v4799 = vpop.f32.mrb[0].mxu0
      %v4800 = vadd.f32 0.0, %v4799
      %v4801 = vpop.f32.mrb[0].mxu0
      %4802 = vmatprep.mubr.bf16.mxu0 0
      %4803 = vmatmul.mubr.bf16.gmra.mrb[0].mxu0 %v4618
      %v4804 = vpop.f32.mrb[0].mxu0
      %v4805 = vpop.f32.mrb[0].mxu0
      %v4806 = vpop.f32.mrb[0].mxu0
      %v4807 = vadd.f32 0.0, %v4806
      %v4808 = vpop.f32.mrb[0].mxu0
      %4809 = vmatprep.mubr.bf16.mxu0 0
      %4810 = vmatmul.mubr.bf16.gmra.mrb[0].mxu0 %v4619
      %v4811 = vpop.f32.mrb[0].mxu0
      %v4812 = vadd.f32 0.0, %v4811
      %v4813 = vpop.f32.mrb[0].mxu0
      %v4814 = vpop.f32.mrb[0].mxu0
      %v4815 = vpop.f32.mrb[0].mxu0
      %4816 = vmatprep.mubr.bf16.mxu0 0
      %4817 = vmatmul.mubr.bf16.gmra.mrb[0].mxu0 %v4620
      %v4818 = vpop.f32.mrb[0].mxu0
      %v4819 = vadd.f32 0.0, %v4818
      %v4820 = vpop.f32.mrb[0].mxu0
      %v4821 = vpop.f32.mrb[0].mxu0
      %v4822 = vadd.f32 0.0, %v4821
      %v4823 = vpop.f32.mrb[0].mxu0
      %4824 = vmatprep.mubr.bf16.mxu0 0
      %4825 = vmatmul.mubr.bf16.gmra.mrb[0].mxu0 %v4621
      %v4826 = vpop.f32.mrb[0].mxu0
      %v4827 = vpop.f32.mrb[0].mxu0
      %v4828 = vpop.f32.mrb[0].mxu0
      %v4829 = vadd.f32 0.0, %v4828
      %v4830 = vpop.f32.mrb[0].mxu0
      %4831 = vmatprep.mubr.bf16.mxu0 0
      %4832 = vmatmul.mubr.bf16.gmra.mrb[0].mxu0 %v4622
      %v4833 = vpop.f32.mrb[0].mxu0
      %v4834 = vadd.f32 0.0, %v4833
      %v4835 = vpop.f32.mrb[0].mxu0
      %v4836 = vpop.f32.mrb[0].mxu0
      %v4837 = vpop.f32.mrb[0].mxu0
      %4838 = vmatprep.mubr.bf16.mxu0 0
      %4839 = vmatmul.mubr.bf16.gmra.mrb[0].mxu0 %v4623
      %v4840 = vpop.f32.mrb[0].mxu0
      %v4841 = vadd.f32 0.0, %v4840
      %v4842 = vpop.f32.mrb[0].mxu0
      %v4843 = vpop.f32.mrb[0].mxu0
      %v4844 = vadd.f32 0.0, %v4843
      %v4845 = vpop.f32.mrb[0].mxu0
      %4846 = vmatprep.mubr.bf16.mxu0 0
      %4847 = vmatmul.mubr.bf16.gmra.mrb[0].mxu0 %v4624
      %v4848 = vpop.f32.mrb[0].mxu0
      %v4849 = vpop.f32.mrb[0].mxu0
      %v4850 = vpop.f32.mrb[0].mxu0
      %v4851 = vadd.f32 0.0, %v4850
      %v4852 = vpop.f32.mrb[0].mxu0
      %4853 = vmatprep.mubr.bf16.mxu0 0
      %4854 = vmatmul.mubr.bf16.gmra.mrb[0].mxu0 %v4625
      %v4855 = vpop.f32.mrb[0].mxu0
      %v4856 = vadd.f32 0.0, %v4855
      %v4857 = vpop.f32.mrb[0].mxu0
      %v4858 = vpop.f32.mrb[0].mxu0
      %v4859 = vpop.f32.mrb[0].mxu0
      %4860 = vmatprep.mubr.bf16.mxu0 0
      %4861 = vmatmul.mubr.bf16.gmra.mrb[0].mxu0 %v4626
      %v4862 = vpop.f32.mrb[0].mxu0
      %v4863 = vadd.f32 0.0, %v4862
      %v4864 = vpop.f32.mrb[0].mxu0
      %v4865 = vpop.f32.mrb[0].mxu0
      %v4866 = vadd.f32 0.0, %v4865
      %v4867 = vpop.f32.mrb[0].mxu0
      %4868 = vmatprep.mubr.bf16.mxu0 0
      %4869 = vmatmul.mubr.bf16.gmra.mrb[0].mxu0 %v4627
      %v4870 = vpop.f32.mrb[0].mxu0
      %v4871 = vpop.f32.mrb[0].mxu0
      %v4872 = vpop.f32.mrb[0].mxu0
      %v4873 = vadd.f32 0.0, %v4872
      %v4874 = vpop.f32.mrb[0].mxu0
      %4875 = vmatprep.mubr.bf16.mxu0 0
      %4876 = vmatmul.mubr.bf16.gmra.mrb[0].mxu0 %v4628
      %v4877 = vpop.f32.mrb[0].mxu0
      %v4878 = vadd.f32 0.0, %v4877
      %v4879 = vpop.f32.mrb[0].mxu0
      %v4880 = vpop.f32.mrb[0].mxu0
      %v4881 = vpop.f32.mrb[0].mxu0
      %4882 = vmatprep.mubr.bf16.mxu0 0
      %4883 = vmatmul.mubr.bf16.gmra.mrb[0].mxu0 %v4629
      %v4884 = vpop.f32.mrb[0].mxu0
      %v4885 = vadd.f32 0.0, %v4884
      %v4886 = vpop.f32.mrb[0].mxu0
      %v4887 = vpop.f32.mrb[0].mxu0
      %v4888 = vadd.f32 0.0, %v4887
      %v4889 = vpop.f32.mrb[0].mxu0
      %4890 = vmatprep.mubr.bf16.mxu0 0
      %4891 = vmatmul.mubr.bf16.gmra.mrb[0].mxu0 %v4630
      %v4892 = vpop.f32.mrb[0].mxu0
      %v4893 = vpop.f32.mrb[0].mxu0
      %v4894 = vpop.f32.mrb[0].mxu0
      %v4895 = vadd.f32 0.0, %v4894
      %v4896 = vpop.f32.mrb[0].mxu0
      %4897 = vmatprep.mubr.bf16.mxu0 0
      %4898 = vmatmul.mubr.bf16.gmra.mrb[0].mxu0 %v4631
      %v4899 = vpop.f32.mrb[0].mxu0
      %v4900 = vadd.f32 0.0, %v4899
      %v4901 = vpop.f32.mrb[0].mxu0
      %v4902 = vpop.f32.mrb[0].mxu0
      %v4903 = vpop.f32.mrb[0].mxu0
      %4904 = vdwg.mxu0
      %s4905 = scalar_lea.vmem %s2, 64
      %v4906 = vld [vmem:[%s4905] sm:$0xf]
      %v4907 = vld [vmem:[%s4905 + $0x4] sm:$0xf]
      %v4908 = vld [vmem:[%s4905 + $0x8] sm:$0xf]
      %v4909 = vld [vmem:[%s4905 + $0xc] sm:$0xf]
      %v4910 = vld [vmem:[%s4905 + $0x10] sm:$0xf]
      %v4911 = vld [vmem:[%s4905 + $0x14] sm:$0xf]
      %v4912 = vld [vmem:[%s4905 + $0x18] sm:$0xf]
      %v4913 = vld [vmem:[%s4905 + $0x1c] sm:$0xf]
      %v4914 = vld [vmem:[%s4905 + $0x20] sm:$0xf]
      %v4915 = vld [vmem:[%s4905 + $0x24] sm:$0xf]
      %v4916 = vld [vmem:[%s4905 + $0x28] sm:$0xf]
      %v4917 = vld [vmem:[%s4905 + $0x2c] sm:$0xf]
      %v4918 = vld [vmem:[%s4905 + $0x30] sm:$0xf]
      %v4919 = vld [vmem:[%s4905 + $0x34] sm:$0xf]
      %v4920 = vld [vmem:[%s4905 + $0x38] sm:$0xf]
      %v4921 = vld [vmem:[%s4905 + $0x3c] sm:$0xf]
      %v4938 = vunpack.c.l.b16 %v4906
      %v4939 = vunpack.c.l.b16 %v4907
      %v4940 = vunpack.c.l.b16 %v4908
      %v4941 = vunpack.c.l.b16 %v4909
      %v4942 = vunpack.c.l.b16 %v4910
      %v4943 = vunpack.c.l.b16 %v4911
      %v4944 = vunpack.c.l.b16 %v4912
      %v4945 = vunpack.c.l.b16 %v4913
      %v4946 = vunpack.c.l.b16 %v4914
      %v4947 = vunpack.c.l.b16 %v4915
      %v4948 = vunpack.c.l.b16 %v4916
      %v4949 = vunpack.c.l.b16 %v4917
      %v4950 = vunpack.c.l.b16 %v4918
      %v4951 = vunpack.c.l.b16 %v4919
      %v4952 = vunpack.c.l.b16 %v4920
      %v4953 = vunpack.c.l.b16 %v4921
      %v4954 = vpack.c.b16 %v4939, %v4938
      %v4955 = vpack.c.b16 %v4941, %v4940
      %v4956 = vpack.c.b16 %v4943, %v4942
      %v4957 = vpack.c.b16 %v4945, %v4944
      %v4958 = vpack.c.b16 %v4947, %v4946
      %v4959 = vpack.c.b16 %v4949, %v4948
      %v4960 = vpack.c.b16 %v4951, %v4950
      %v4961 = vpack.c.b16 %v4953, %v4952
      %4970 = vmatprep.subr.bf16.mxu0 0
      %4971 = vmatpush1.bf16.msra.mxu0 %v4954
      %4972 = vmatprep.subr.bf16.mxu0 0
      %4973 = vmatpush1.bf16.msra.mxu0 %v4955
      %4974 = vmatprep.subr.bf16.mxu0 0
      %4975 = vmatpush1.bf16.msra.mxu0 %v4956
      %4976 = vmatprep.subr.bf16.mxu0 0
      %4977 = vmatpush1.bf16.msra.mxu0 %v4957
      %4978 = vmatprep.subr.bf16.mxu0 0
      %4979 = vmatpush1.bf16.msra.mxu0 %v4958
      %4980 = vmatprep.subr.bf16.mxu0 0
      %4981 = vmatpush1.bf16.msra.mxu0 %v4959
      %4982 = vmatprep.subr.bf16.mxu0 0
      %4983 = vmatpush1.bf16.msra.mxu0 %v4960
      %4984 = vmatprep.subr.bf16.mxu0 0
      %4985 = vmatpush1.bf16.msra.mxu0 %v4961
      %4986 = vmatprep.subr.bf16.mxu0 0
      %4987 = vmatpush1.bf16.msra.mxu0 0
      %4988 = vmatprep.subr.bf16.mxu0 0
      %4989 = vmatpush1.bf16.msra.mxu0 0
      %4990 = vmatprep.subr.bf16.mxu0 0
      %4991 = vmatpush1.bf16.msra.mxu0 0
      %4992 = vmatprep.subr.bf16.mxu0 0
      %4993 = vmatpush1.bf16.msra.mxu0 0
      %4994 = vmatprep.subr.bf16.mxu0 0
      %4995 = vmatpush1.bf16.msra.mxu0 0
      %4996 = vmatprep.subr.bf16.mxu0 0
      %4997 = vmatpush1.bf16.msra.mxu0 0
      %4998 = vmatprep.subr.bf16.mxu0 0
      %4999 = vmatpush1.bf16.msra.mxu0 0
      %5000 = vmatprep.subr.bf16.mxu0 0
      %5001 = vmatpush1.bf16.msra.mxu0 0
      %5002 = vmatprep.mubr.bf16.mxu0 0
      %5003 = vmatmul.mubr.bf16.gmra.mrb[0].mxu0 %v4608
      %v5004 = vpop.f32.mrb[0].mxu0
      %v5005 = vadd.f32 0.0, %v5004
      %v5006 = vpop.f32.mrb[0].mxu0
      %v5007 = vpop.f32.mrb[0].mxu0
      %v5008 = vadd.f32 0.0, %v5007
      %v5009 = vpop.f32.mrb[0].mxu0
      %5010 = vmatprep.mubr.bf16.mxu0 0
      %5011 = vmatmul.mubr.bf16.gmra.mrb[0].mxu0 %v4609
      %v5012 = vpop.f32.mrb[0].mxu0
      %v5013 = vadd.f32 0.0, %v5012
      %v5014 = vpop.f32.mrb[0].mxu0
      %v5015 = vpop.f32.mrb[0].mxu0
      %v5016 = vadd.f32 0.0, %v5015
      %v5017 = vpop.f32.mrb[0].mxu0
      %5018 = vmatprep.mubr.bf16.mxu0 0
      %5019 = vmatmul.mubr.bf16.gmra.mrb[0].mxu0 %v4610
      %v5020 = vpop.f32.mrb[0].mxu0
      %v5021 = vadd.f32 0.0, %v5020
      %v5022 = vpop.f32.mrb[0].mxu0
      %v5023 = vpop.f32.mrb[0].mxu0
      %v5024 = vadd.f32 0.0, %v5023
      %v5025 = vpop.f32.mrb[0].mxu0
      %5026 = vmatprep.mubr.bf16.mxu0 0
      %5027 = vmatmul.mubr.bf16.gmra.mrb[0].mxu0 %v4611
      %v5028 = vpop.f32.mrb[0].mxu0
      %v5029 = vadd.f32 0.0, %v5028
      %v5030 = vpop.f32.mrb[0].mxu0
      %v5031 = vpop.f32.mrb[0].mxu0
      %v5032 = vadd.f32 0.0, %v5031
      %v5033 = vpop.f32.mrb[0].mxu0
      %5034 = vmatprep.mubr.bf16.mxu0 0
      %5035 = vmatmul.mubr.bf16.gmra.mrb[0].mxu0 %v4612
      %v5036 = vpop.f32.mrb[0].mxu0
      %v5037 = vadd.f32 0.0, %v5036
      %v5038 = vpop.f32.mrb[0].mxu0
      %v5039 = vpop.f32.mrb[0].mxu0
      %v5040 = vadd.f32 0.0, %v5039
      %v5041 = vpop.f32.mrb[0].mxu0
      %5042 = vmatprep.mubr.bf16.mxu0 0
      %5043 = vmatmul.mubr.bf16.gmra.mrb[0].mxu0 %v4613
      %v5044 = vpop.f32.mrb[0].mxu0
      %v5045 = vadd.f32 0.0, %v5044
      %v5046 = vpop.f32.mrb[0].mxu0
      %v5047 = vpop.f32.mrb[0].mxu0
      %v5048 = vadd.f32 0.0, %v5047
      %v5049 = vpop.f32.mrb[0].mxu0
      %5050 = vmatprep.mubr.bf16.mxu0 0
      %5051 = vmatmul.mubr.bf16.gmra.mrb[0].mxu0 %v4614
      %v5052 = vpop.f32.mrb[0].mxu0
      %v5053 = vadd.f32 0.0, %v5052
      %v5054 = vpop.f32.mrb[0].mxu0
      %v5055 = vpop.f32.mrb[0].mxu0
      %v5056 = vadd.f32 0.0, %v5055
      %v5057 = vpop.f32.mrb[0].mxu0
      %5058 = vmatprep.mubr.bf16.mxu0 0
      %5059 = vmatmul.mubr.bf16.gmra.mrb[0].mxu0 %v4615
      %v5060 = vpop.f32.mrb[0].mxu0
      %v5061 = vadd.f32 0.0, %v5060
      %v5062 = vpop.f32.mrb[0].mxu0
      %v5063 = vpop.f32.mrb[0].mxu0
      %v5064 = vadd.f32 0.0, %v5063
      %v5065 = vpop.f32.mrb[0].mxu0
      %5066 = vmatprep.mubr.bf16.mxu0 0
      %5067 = vmatmul.mubr.bf16.gmra.mrb[0].mxu0 %v4616
      %v5068 = vpop.f32.mrb[0].mxu0
      %v5069 = vadd.f32 0.0, %v5068
      %v5070 = vpop.f32.mrb[0].mxu0
      %v5071 = vpop.f32.mrb[0].mxu0
      %v5072 = vadd.f32 0.0, %v5071
      %v5073 = vpop.f32.mrb[0].mxu0
      %5074 = vmatprep.mubr.bf16.mxu0 0
      %5075 = vmatmul.mubr.bf16.gmra.mrb[0].mxu0 %v4617
      %v5076 = vpop.f32.mrb[0].mxu0
      %v5077 = vadd.f32 0.0, %v5076
      %v5078 = vpop.f32.mrb[0].mxu0
      %v5079 = vpop.f32.mrb[0].mxu0
      %v5080 = vadd.f32 0.0, %v5079
      %v5081 = vpop.f32.mrb[0].mxu0
      %5082 = vmatprep.mubr.bf16.mxu0 0
      %5083 = vmatmul.mubr.bf16.gmra.mrb[0].mxu0 %v4618
      %v5084 = vpop.f32.mrb[0].mxu0
      %v5085 = vadd.f32 0.0, %v5084
      %v5086 = vpop.f32.mrb[0].mxu0
      %v5087 = vpop.f32.mrb[0].mxu0
      %v5088 = vadd.f32 0.0, %v5087
      %v5089 = vpop.f32.mrb[0].mxu0
      %5090 = vmatprep.mubr.bf16.mxu0 0
      %5091 = vmatmul.mubr.bf16.gmra.mrb[0].mxu0 %v4619
      %v5092 = vpop.f32.mrb[0].mxu0
      %v5093 = vadd.f32 0.0, %v5092
      %v5094 = vpop.f32.mrb[0].mxu0
      %v5095 = vpop.f32.mrb[0].mxu0
      %v5096 = vadd.f32 0.0, %v5095
      %v5097 = vpop.f32.mrb[0].mxu0
      %5098 = vmatprep.mubr.bf16.mxu0 0
      %5099 = vmatmul.mubr.bf16.gmra.mrb[0].mxu0 %v4620
      %v5100 = vpop.f32.mrb[0].mxu0
      %v5101 = vadd.f32 0.0, %v5100
      %v5102 = vpop.f32.mrb[0].mxu0
      %v5103 = vpop.f32.mrb[0].mxu0
      %v5104 = vadd.f32 0.0, %v5103
      %v5105 = vpop.f32.mrb[0].mxu0
      %5106 = vmatprep.mubr.bf16.mxu0 0
      %5107 = vmatmul.mubr.bf16.gmra.mrb[0].mxu0 %v4621
      %v5108 = vpop.f32.mrb[0].mxu0
      %v5109 = vadd.f32 0.0, %v5108
      %v5110 = vpop.f32.mrb[0].mxu0
      %v5111 = vpop.f32.mrb[0].mxu0
      %v5112 = vadd.f32 0.0, %v5111
      %v5113 = vpop.f32.mrb[0].mxu0
      %5114 = vmatprep.mubr.bf16.mxu0 0
      %5115 = vmatmul.mubr.bf16.gmra.mrb[0].mxu0 %v4622
      %v5116 = vpop.f32.mrb[0].mxu0
      %v5117 = vadd.f32 0.0, %v5116
      %v5118 = vpop.f32.mrb[0].mxu0
      %v5119 = vpop.f32.mrb[0].mxu0
      %v5120 = vadd.f32 0.0, %v5119
      %v5121 = vpop.f32.mrb[0].mxu0
      %5122 = vmatprep.mubr.bf16.mxu0 0
      %5123 = vmatmul.mubr.bf16.gmra.mrb[0].mxu0 %v4623
      %v5124 = vpop.f32.mrb[0].mxu0
      %v5125 = vadd.f32 0.0, %v5124
      %v5126 = vpop.f32.mrb[0].mxu0
      %v5127 = vpop.f32.mrb[0].mxu0
      %v5128 = vadd.f32 0.0, %v5127
      %v5129 = vpop.f32.mrb[0].mxu0
      %5130 = vmatprep.mubr.bf16.mxu0 0
      %5131 = vmatmul.mubr.bf16.gmra.mrb[0].mxu0 %v4624
      %v5132 = vpop.f32.mrb[0].mxu0
      %v5133 = vadd.f32 0.0, %v5132
      %v5134 = vpop.f32.mrb[0].mxu0
      %v5135 = vpop.f32.mrb[0].mxu0
      %v5136 = vadd.f32 0.0, %v5135
      %v5137 = vpop.f32.mrb[0].mxu0
      %5138 = vmatprep.mubr.bf16.mxu0 0
      %5139 = vmatmul.mubr.bf16.gmra.mrb[0].mxu0 %v4625
      %v5140 = vpop.f32.mrb[0].mxu0
      %v5141 = vadd.f32 0.0, %v5140
      %v5142 = vpop.f32.mrb[0].mxu0
      %v5143 = vpop.f32.mrb[0].mxu0
      %v5144 = vadd.f32 0.0, %v5143
      %v5145 = vpop.f32.mrb[0].mxu0
      %5146 = vmatprep.mubr.bf16.mxu0 0
      %5147 = vmatmul.mubr.bf16.gmra.mrb[0].mxu0 %v4626
      %v5148 = vpop.f32.mrb[0].mxu0
      %v5149 = vadd.f32 0.0, %v5148
      %v5150 = vpop.f32.mrb[0].mxu0
      %v5151 = vpop.f32.mrb[0].mxu0
      %v5152 = vadd.f32 0.0, %v5151
      %v5153 = vpop.f32.mrb[0].mxu0
      %5154 = vmatprep.mubr.bf16.mxu0 0
      %5155 = vmatmul.mubr.bf16.gmra.mrb[0].mxu0 %v4627
      %v5156 = vpop.f32.mrb[0].mxu0
      %v5157 = vadd.f32 0.0, %v5156
      %v5158 = vpop.f32.mrb[0].mxu0
      %v5159 = vpop.f32.mrb[0].mxu0
      %v5160 = vadd.f32 0.0, %v5159
      %v5161 = vpop.f32.mrb[0].mxu0
      %5162 = vmatprep.mubr.bf16.mxu0 0
      %5163 = vmatmul.mubr.bf16.gmra.mrb[0].mxu0 %v4628
      %v5164 = vpop.f32.mrb[0].mxu0
      %v5165 = vadd.f32 0.0, %v5164
      %v5166 = vpop.f32.mrb[0].mxu0
      %v5167 = vpop.f32.mrb[0].mxu0
      %v5168 = vadd.f32 0.0, %v5167
      %v5169 = vpop.f32.mrb[0].mxu0
      %5170 = vmatprep.mubr.bf16.mxu0 0
      %5171 = vmatmul.mubr.bf16.gmra.mrb[0].mxu0 %v4629
      %v5172 = vpop.f32.mrb[0].mxu0
      %v5173 = vadd.f32 0.0, %v5172
      %v5174 = vpop.f32.mrb[0].mxu0
      %v5175 = vpop.f32.mrb[0].mxu0
      %v5176 = vadd.f32 0.0, %v5175
      %v5177 = vpop.f32.mrb[0].mxu0
      %5178 = vmatprep.mubr.bf16.mxu0 0
      %5179 = vmatmul.mubr.bf16.gmra.mrb[0].mxu0 %v4630
      %v5180 = vpop.f32.mrb[0].mxu0
      %v5181 = vadd.f32 0.0, %v5180
      %v5182 = vpop.f32.mrb[0].mxu0
      %v5183 = vpop.f32.mrb[0].mxu0
      %v5184 = vadd.f32 0.0, %v5183
      %v5185 = vpop.f32.mrb[0].mxu0
      %5186 = vmatprep.mubr.bf16.mxu0 0
      %5187 = vmatmul.mubr.bf16.gmra.mrb[0].mxu0 %v4631
      %v5188 = vpop.f32.mrb[0].mxu0
      %v5189 = vadd.f32 0.0, %v5188
      %v5190 = vpop.f32.mrb[0].mxu0
      %v5191 = vpop.f32.mrb[0].mxu0
      %v5192 = vadd.f32 0.0, %v5191
      %v5193 = vpop.f32.mrb[0].mxu0
      %5194 = vdwg.mxu0
      %v5243 = vrot.slane %v5005, 1
      %v5244 = vrot.slane %v5008, 1
      %v5245 = vsel %vm1105, %v5243, %v5244
      %v5246 = vrot.slane %v5013, 1
      %v5247 = vsel %vm1105, %v5244, %v5246
      %v5248 = vrot.slane %v5016, 1
      %v5249 = vrot.slane %v5021, 1
      %v5250 = vsel %vm1105, %v5248, %v5249
      %v5251 = vrot.slane %v5024, 1
      %v5252 = vsel %vm1105, %v5249, %v5251
      %v5253 = vrot.slane %v5029, 1
      %v5254 = vrot.slane %v5032, 1
      %v5255 = vsel %vm1105, %v5253, %v5254
      %v5256 = vrot.slane %v5037, 1
      %v5257 = vsel %vm1105, %v5254, %v5256
      %v5258 = vrot.slane %v5040, 1
      %v5259 = vrot.slane %v5045, 1
      %v5260 = vsel %vm1105, %v5258, %v5259
      %v5261 = vrot.slane %v5048, 1
      %v5262 = vsel %vm1105, %v5259, %v5261
      %v5263 = vrot.slane %v5053, 1
      %v5264 = vrot.slane %v5056, 1
      %v5265 = vsel %vm1105, %v5263, %v5264
      %v5266 = vrot.slane %v5061, 1
      %v5267 = vsel %vm1105, %v5264, %v5266
      %v5268 = vrot.slane %v5064, 1
      %v5269 = vrot.slane %v5069, 1
      %v5270 = vsel %vm1105, %v5268, %v5269
      %v5271 = vrot.slane %v5072, 1
      %v5272 = vsel %vm1105, %v5269, %v5271
      %v5273 = vrot.slane %v5077, 1
      %v5274 = vrot.slane %v5080, 1
      %v5275 = vsel %vm1105, %v5273, %v5274
      %v5276 = vrot.slane %v5085, 1
      %v5277 = vsel %vm1105, %v5274, %v5276
      %v5278 = vrot.slane %v5088, 1
      %v5279 = vrot.slane %v5093, 1
      %v5280 = vsel %vm1105, %v5278, %v5279
      %v5281 = vrot.slane %v5096, 1
      %v5282 = vsel %vm1105, %v5279, %v5281
      %v5283 = vrot.slane %v5101, 1
      %v5284 = vrot.slane %v5104, 1
      %v5285 = vsel %vm1105, %v5283, %v5284
      %v5286 = vrot.slane %v5109, 1
      %v5287 = vsel %vm1105, %v5284, %v5286
      %v5288 = vrot.slane %v5112, 1
      %v5289 = vrot.slane %v5117, 1
      %v5290 = vsel %vm1105, %v5288, %v5289
      %v5291 = vrot.slane %v5120, 1
      %v5292 = vsel %vm1105, %v5289, %v5291
      %v5293 = vrot.slane %v5125, 1
      %v5294 = vrot.slane %v5128, 1
      %v5295 = vsel %vm1105, %v5293, %v5294
      %v5296 = vrot.slane %v5133, 1
      %v5297 = vsel %vm1105, %v5294, %v5296
      %v5298 = vrot.slane %v5136, 1
      %v5299 = vrot.slane %v5141, 1
      %v5300 = vsel %vm1105, %v5298, %v5299
      %v5301 = vrot.slane %v5144, 1
      %v5302 = vsel %vm1105, %v5299, %v5301
      %v5303 = vrot.slane %v5149, 1
      %v5304 = vrot.slane %v5152, 1
      %v5305 = vsel %vm1105, %v5303, %v5304
      %v5306 = vrot.slane %v5157, 1
      %v5307 = vsel %vm1105, %v5304, %v5306
      %v5308 = vrot.slane %v5160, 1
      %v5309 = vrot.slane %v5165, 1
      %v5310 = vsel %vm1105, %v5308, %v5309
      %v5311 = vrot.slane %v5168, 1
      %v5312 = vsel %vm1105, %v5309, %v5311
      %v5313 = vrot.slane %v5173, 1
      %v5314 = vrot.slane %v5176, 1
      %v5315 = vsel %vm1105, %v5313, %v5314
      %v5316 = vrot.slane %v5181, 1
      %v5317 = vsel %vm1105, %v5314, %v5316
      %v5318 = vrot.slane %v5184, 1
      %v5319 = vrot.slane %v5189, 1
      %v5320 = vsel %vm1105, %v5318, %v5319
      %v5321 = vrot.slane %v5192, 1
      %v5322 = vsel %vm1105, %v5319, %v5321
      %v5355 = vadd.f32 %v4731, %v5245
      %v5356 = vadd.f32 %v4734, %v5247
      %v5357 = vadd.f32 %v4741, %v5250
      %v5358 = vadd.f32 %v4746, %v5252
      %v5359 = vadd.f32 %v4753, %v5255
      %v5360 = vadd.f32 %v4756, %v5257
      %v5361 = vadd.f32 %v4763, %v5260
      %v5362 = vadd.f32 %v4768, %v5262
      %v5363 = vadd.f32 %v4775, %v5265
      %v5364 = vadd.f32 %v4778, %v5267
      %v5365 = vadd.f32 %v4785, %v5270
      %v5366 = vadd.f32 %v4790, %v5272
      %v5367 = vadd.f32 %v4797, %v5275
      %v5368 = vadd.f32 %v4800, %v5277
      %v5369 = vadd.f32 %v4807, %v5280
      %v5370 = vadd.f32 %v4812, %v5282
      %v5371 = vadd.f32 %v4819, %v5285
      %v5372 = vadd.f32 %v4822, %v5287
      %v5373 = vadd.f32 %v4829, %v5290
      %v5374 = vadd.f32 %v4834, %v5292
      %v5375 = vadd.f32 %v4841, %v5295
      %v5376 = vadd.f32 %v4844, %v5297
      %v5377 = vadd.f32 %v4851, %v5300
      %v5378 = vadd.f32 %v4856, %v5302
      %v5379 = vadd.f32 %v4863, %v5305
      %v5380 = vadd.f32 %v4866, %v5307
      %v5381 = vadd.f32 %v4873, %v5310
      %v5382 = vadd.f32 %v4878, %v5312
      %v5383 = vadd.f32 %v4885, %v5315
      %v5384 = vadd.f32 %v4888, %v5317
      %v5385 = vadd.f32 %v4895, %v5320
      %v5386 = vadd.f32 %v4900, %v5322
      %s5387 = scalar_lea.vmem %s2, 128
      %v5388 = vld [vmem:[%s5387] sm:$0xf]
      %v5389 = vld [vmem:[%s5387 + $0x4] sm:$0xf]
      %v5390 = vld [vmem:[%s5387 + $0x8] sm:$0xf]
      %v5391 = vld [vmem:[%s5387 + $0xc] sm:$0xf]
      %v5392 = vld [vmem:[%s5387 + $0x10] sm:$0xf]
      %v5393 = vld [vmem:[%s5387 + $0x14] sm:$0xf]
      %v5394 = vld [vmem:[%s5387 + $0x18] sm:$0xf]
      %v5395 = vld [vmem:[%s5387 + $0x1c] sm:$0xf]
      %v5396 = vld [vmem:[%s5387 + $0x20] sm:$0xf]
      %v5397 = vld [vmem:[%s5387 + $0x24] sm:$0xf]
      %v5398 = vld [vmem:[%s5387 + $0x28] sm:$0xf]
      %v5399 = vld [vmem:[%s5387 + $0x2c] sm:$0xf]
      %v5400 = vld [vmem:[%s5387 + $0x30] sm:$0xf]
      %v5401 = vld [vmem:[%s5387 + $0x34] sm:$0xf]
      %v5402 = vld [vmem:[%s5387 + $0x38] sm:$0xf]
      %v5403 = vld [vmem:[%s5387 + $0x3c] sm:$0xf]
      %v5420 = vunpack.c.l.b16 %v5388
      %v5421 = vunpack.c.l.b16 %v5389
      %v5422 = vunpack.c.l.b16 %v5390
      %v5423 = vunpack.c.l.b16 %v5391
      %v5424 = vunpack.c.l.b16 %v5392
      %v5425 = vunpack.c.l.b16 %v5393
      %v5426 = vunpack.c.l.b16 %v5394
      %v5427 = vunpack.c.l.b16 %v5395
      %v5428 = vunpack.c.l.b16 %v5396
      %v5429 = vunpack.c.l.b16 %v5397
      %v5430 = vunpack.c.l.b16 %v5398
      %v5431 = vunpack.c.l.b16 %v5399
      %v5432 = vunpack.c.l.b16 %v5400
      %v5433 = vunpack.c.l.b16 %v5401
      %v5434 = vunpack.c.l.b16 %v5402
      %v5435 = vunpack.c.l.b16 %v5403
      %v5436 = vpack.c.b16 %v5421, %v5420
      %v5437 = vpack.c.b16 %v5423, %v5422
      %v5438 = vpack.c.b16 %v5425, %v5424
      %v5439 = vpack.c.b16 %v5427, %v5426
      %v5440 = vpack.c.b16 %v5429, %v5428
      %v5441 = vpack.c.b16 %v5431, %v5430
      %v5442 = vpack.c.b16 %v5433, %v5432
      %v5443 = vpack.c.b16 %v5435, %v5434
      %5452 = vmatprep.subr.bf16.mxu0 0
      %5453 = vmatpush1.bf16.msra.mxu0 %v5436
      %5454 = vmatprep.subr.bf16.mxu0 0
      %5455 = vmatpush1.bf16.msra.mxu0 %v5437
      %5456 = vmatprep.subr.bf16.mxu0 0
      %5457 = vmatpush1.bf16.msra.mxu0 %v5438
      %5458 = vmatprep.subr.bf16.mxu0 0
      %5459 = vmatpush1.bf16.msra.mxu0 %v5439
      %5460 = vmatprep.subr.bf16.mxu0 0
      %5461 = vmatpush1.bf16.msra.mxu0 %v5440
      %5462 = vmatprep.subr.bf16.mxu0 0
      %5463 = vmatpush1.bf16.msra.mxu0 %v5441
      %5464 = vmatprep.subr.bf16.mxu0 0
      %5465 = vmatpush1.bf16.msra.mxu0 %v5442
      %5466 = vmatprep.subr.bf16.mxu0 0
      %5467 = vmatpush1.bf16.msra.mxu0 %v5443
      %5468 = vmatprep.subr.bf16.mxu0 0
      %5469 = vmatpush1.bf16.msra.mxu0 0
      %5470 = vmatprep.subr.bf16.mxu0 0
      %5471 = vmatpush1.bf16.msra.mxu0 0
      %5472 = vmatprep.subr.bf16.mxu0 0
      %5473 = vmatpush1.bf16.msra.mxu0 0
      %5474 = vmatprep.subr.bf16.mxu0 0
      %5475 = vmatpush1.bf16.msra.mxu0 0
      %5476 = vmatprep.subr.bf16.mxu0 0
      %5477 = vmatpush1.bf16.msra.mxu0 0
      %5478 = vmatprep.subr.bf16.mxu0 0
      %5479 = vmatpush1.bf16.msra.mxu0 0
      %5480 = vmatprep.subr.bf16.mxu0 0
      %5481 = vmatpush1.bf16.msra.mxu0 0
      %5482 = vmatprep.subr.bf16.mxu0 0
      %5483 = vmatpush1.bf16.msra.mxu0 0
      %5484 = vmatprep.mubr.bf16.mxu0 0
      %5485 = vmatmul.mubr.bf16.gmra.mrb[0].mxu0 %v4608
      %v5486 = vpop.f32.mrb[0].mxu0
      %v5487 = vadd.f32 0.0, %v5486
      %v5488 = vpop.f32.mrb[0].mxu0
      %v5489 = vpop.f32.mrb[0].mxu0
      %v5490 = vadd.f32 0.0, %v5489
      %v5491 = vpop.f32.mrb[0].mxu0
      %5492 = vmatprep.mubr.bf16.mxu0 0
      %5493 = vmatmul.mubr.bf16.gmra.mrb[0].mxu0 %v4609
      %v5494 = vpop.f32.mrb[0].mxu0
      %v5495 = vadd.f32 0.0, %v5494
      %v5496 = vpop.f32.mrb[0].mxu0
      %v5497 = vpop.f32.mrb[0].mxu0
      %v5498 = vadd.f32 0.0, %v5497
      %v5499 = vpop.f32.mrb[0].mxu0
      %5500 = vmatprep.mubr.bf16.mxu0 0
      %5501 = vmatmul.mubr.bf16.gmra.mrb[0].mxu0 %v4610
      %v5502 = vpop.f32.mrb[0].mxu0
      %v5503 = vadd.f32 0.0, %v5502
      %v5504 = vpop.f32.mrb[0].mxu0
      %v5505 = vpop.f32.mrb[0].mxu0
      %v5506 = vadd.f32 0.0, %v5505
      %v5507 = vpop.f32.mrb[0].mxu0
      %5508 = vmatprep.mubr.bf16.mxu0 0
      %5509 = vmatmul.mubr.bf16.gmra.mrb[0].mxu0 %v4611
      %v5510 = vpop.f32.mrb[0].mxu0
      %v5511 = vadd.f32 0.0, %v5510
      %v5512 = vpop.f32.mrb[0].mxu0
      %v5513 = vpop.f32.mrb[0].mxu0
      %v5514 = vadd.f32 0.0, %v5513
      %v5515 = vpop.f32.mrb[0].mxu0
      %5516 = vmatprep.mubr.bf16.mxu0 0
      %5517 = vmatmul.mubr.bf16.gmra.mrb[0].mxu0 %v4612
      %v5518 = vpop.f32.mrb[0].mxu0
      %v5519 = vadd.f32 0.0, %v5518
      %v5520 = vpop.f32.mrb[0].mxu0
      %v5521 = vpop.f32.mrb[0].mxu0
      %v5522 = vadd.f32 0.0, %v5521
      %v5523 = vpop.f32.mrb[0].mxu0
      %5524 = vmatprep.mubr.bf16.mxu0 0
      %5525 = vmatmul.mubr.bf16.gmra.mrb[0].mxu0 %v4613
      %v5526 = vpop.f32.mrb[0].mxu0
      %v5527 = vadd.f32 0.0, %v5526
      %v5528 = vpop.f32.mrb[0].mxu0
      %v5529 = vpop.f32.mrb[0].mxu0
      %v5530 = vadd.f32 0.0, %v5529
      %v5531 = vpop.f32.mrb[0].mxu0
      %5532 = vmatprep.mubr.bf16.mxu0 0
      %5533 = vmatmul.mubr.bf16.gmra.mrb[0].mxu0 %v4614
      %v5534 = vpop.f32.mrb[0].mxu0
      %v5535 = vadd.f32 0.0, %v5534
      %v5536 = vpop.f32.mrb[0].mxu0
      %v5537 = vpop.f32.mrb[0].mxu0
      %v5538 = vadd.f32 0.0, %v5537
      %v5539 = vpop.f32.mrb[0].mxu0
      %5540 = vmatprep.mubr.bf16.mxu0 0
      %5541 = vmatmul.mubr.bf16.gmra.mrb[0].mxu0 %v4615
      %v5542 = vpop.f32.mrb[0].mxu0
      %v5543 = vadd.f32 0.0, %v5542
      %v5544 = vpop.f32.mrb[0].mxu0
      %v5545 = vpop.f32.mrb[0].mxu0
      %v5546 = vadd.f32 0.0, %v5545
      %v5547 = vpop.f32.mrb[0].mxu0
      %5548 = vmatprep.mubr.bf16.mxu0 0
      %5549 = vmatmul.mubr.bf16.gmra.mrb[0].mxu0 %v4616
      %v5550 = vpop.f32.mrb[0].mxu0
      %v5551 = vadd.f32 0.0, %v5550
      %v5552 = vpop.f32.mrb[0].mxu0
      %v5553 = vpop.f32.mrb[0].mxu0
      %v5554 = vadd.f32 0.0, %v5553
      %v5555 = vpop.f32.mrb[0].mxu0
      %5556 = vmatprep.mubr.bf16.mxu0 0
      %5557 = vmatmul.mubr.bf16.gmra.mrb[0].mxu0 %v4617
      %v5558 = vpop.f32.mrb[0].mxu0
      %v5559 = vadd.f32 0.0, %v5558
      %v5560 = vpop.f32.mrb[0].mxu0
      %v5561 = vpop.f32.mrb[0].mxu0
      %v5562 = vadd.f32 0.0, %v5561
      %v5563 = vpop.f32.mrb[0].mxu0
      %5564 = vmatprep.mubr.bf16.mxu0 0
      %5565 = vmatmul.mubr.bf16.gmra.mrb[0].mxu0 %v4618
      %v5566 = vpop.f32.mrb[0].mxu0
      %v5567 = vadd.f32 0.0, %v5566
      %v5568 = vpop.f32.mrb[0].mxu0
      %v5569 = vpop.f32.mrb[0].mxu0
      %v5570 = vadd.f32 0.0, %v5569
      %v5571 = vpop.f32.mrb[0].mxu0
      %5572 = vmatprep.mubr.bf16.mxu0 0
      %5573 = vmatmul.mubr.bf16.gmra.mrb[0].mxu0 %v4619
      %v5574 = vpop.f32.mrb[0].mxu0
      %v5575 = vadd.f32 0.0, %v5574
      %v5576 = vpop.f32.mrb[0].mxu0
      %v5577 = vpop.f32.mrb[0].mxu0
      %v5578 = vadd.f32 0.0, %v5577
      %v5579 = vpop.f32.mrb[0].mxu0
      %5580 = vmatprep.mubr.bf16.mxu0 0
      %5581 = vmatmul.mubr.bf16.gmra.mrb[0].mxu0 %v4620
      %v5582 = vpop.f32.mrb[0].mxu0
      %v5583 = vadd.f32 0.0, %v5582
      %v5584 = vpop.f32.mrb[0].mxu0
      %v5585 = vpop.f32.mrb[0].mxu0
      %v5586 = vadd.f32 0.0, %v5585
      %v5587 = vpop.f32.mrb[0].mxu0
      %5588 = vmatprep.mubr.bf16.mxu0 0
      %5589 = vmatmul.mubr.bf16.gmra.mrb[0].mxu0 %v4621
      %v5590 = vpop.f32.mrb[0].mxu0
      %v5591 = vadd.f32 0.0, %v5590
      %v5592 = vpop.f32.mrb[0].mxu0
      %v5593 = vpop.f32.mrb[0].mxu0
      %v5594 = vadd.f32 0.0, %v5593
      %v5595 = vpop.f32.mrb[0].mxu0
      %5596 = vmatprep.mubr.bf16.mxu0 0
      %5597 = vmatmul.mubr.bf16.gmra.mrb[0].mxu0 %v4622
      %v5598 = vpop.f32.mrb[0].mxu0
      %v5599 = vadd.f32 0.0, %v5598
      %v5600 = vpop.f32.mrb[0].mxu0
      %v5601 = vpop.f32.mrb[0].mxu0
      %v5602 = vadd.f32 0.0, %v5601
      %v5603 = vpop.f32.mrb[0].mxu0
      %5604 = vmatprep.mubr.bf16.mxu0 0
      %5605 = vmatmul.mubr.bf16.gmra.mrb[0].mxu0 %v4623
      %v5606 = vpop.f32.mrb[0].mxu0
      %v5607 = vadd.f32 0.0, %v5606
      %v5608 = vpop.f32.mrb[0].mxu0
      %v5609 = vpop.f32.mrb[0].mxu0
      %v5610 = vadd.f32 0.0, %v5609
      %v5611 = vpop.f32.mrb[0].mxu0
      %5612 = vmatprep.mubr.bf16.mxu0 0
      %5613 = vmatmul.mubr.bf16.gmra.mrb[0].mxu0 %v4624
      %v5614 = vpop.f32.mrb[0].mxu0
      %v5615 = vadd.f32 0.0, %v5614
      %v5616 = vpop.f32.mrb[0].mxu0
      %v5617 = vpop.f32.mrb[0].mxu0
      %v5618 = vadd.f32 0.0, %v5617
      %v5619 = vpop.f32.mrb[0].mxu0
      %5620 = vmatprep.mubr.bf16.mxu0 0
      %5621 = vmatmul.mubr.bf16.gmra.mrb[0].mxu0 %v4625
      %v5622 = vpop.f32.mrb[0].mxu0
      %v5623 = vadd.f32 0.0, %v5622
      %v5624 = vpop.f32.mrb[0].mxu0
      %v5625 = vpop.f32.mrb[0].mxu0
      %v5626 = vadd.f32 0.0, %v5625
      %v5627 = vpop.f32.mrb[0].mxu0
      %5628 = vmatprep.mubr.bf16.mxu0 0
      %5629 = vmatmul.mubr.bf16.gmra.mrb[0].mxu0 %v4626
      %v5630 = vpop.f32.mrb[0].mxu0
      %v5631 = vadd.f32 0.0, %v5630
      %v5632 = vpop.f32.mrb[0].mxu0
      %v5633 = vpop.f32.mrb[0].mxu0
      %v5634 = vadd.f32 0.0, %v5633
      %v5635 = vpop.f32.mrb[0].mxu0
      %5636 = vmatprep.mubr.bf16.mxu0 0
      %5637 = vmatmul.mubr.bf16.gmra.mrb[0].mxu0 %v4627
      %v5638 = vpop.f32.mrb[0].mxu0
      %v5639 = vadd.f32 0.0, %v5638
      %v5640 = vpop.f32.mrb[0].mxu0
      %v5641 = vpop.f32.mrb[0].mxu0
      %v5642 = vadd.f32 0.0, %v5641
      %v5643 = vpop.f32.mrb[0].mxu0
      %5644 = vmatprep.mubr.bf16.mxu0 0
      %5645 = vmatmul.mubr.bf16.gmra.mrb[0].mxu0 %v4628
      %v5646 = vpop.f32.mrb[0].mxu0
      %v5647 = vadd.f32 0.0, %v5646
      %v5648 = vpop.f32.mrb[0].mxu0
      %v5649 = vpop.f32.mrb[0].mxu0
      %v5650 = vadd.f32 0.0, %v5649
      %v5651 = vpop.f32.mrb[0].mxu0
      %5652 = vmatprep.mubr.bf16.mxu0 0
      %5653 = vmatmul.mubr.bf16.gmra.mrb[0].mxu0 %v4629
      %v5654 = vpop.f32.mrb[0].mxu0
      %v5655 = vadd.f32 0.0, %v5654
      %v5656 = vpop.f32.mrb[0].mxu0
      %v5657 = vpop.f32.mrb[0].mxu0
      %v5658 = vadd.f32 0.0, %v5657
      %v5659 = vpop.f32.mrb[0].mxu0
      %5660 = vmatprep.mubr.bf16.mxu0 0
      %5661 = vmatmul.mubr.bf16.gmra.mrb[0].mxu0 %v4630
      %v5662 = vpop.f32.mrb[0].mxu0
      %v5663 = vadd.f32 0.0, %v5662
      %v5664 = vpop.f32.mrb[0].mxu0
      %v5665 = vpop.f32.mrb[0].mxu0
      %v5666 = vadd.f32 0.0, %v5665
      %v5667 = vpop.f32.mrb[0].mxu0
      %5668 = vmatprep.mubr.bf16.mxu0 0
      %5669 = vmatmul.mubr.bf16.gmra.mrb[0].mxu0 %v4631
      %v5670 = vpop.f32.mrb[0].mxu0
      %v5671 = vadd.f32 0.0, %v5670
      %v5672 = vpop.f32.mrb[0].mxu0
      %v5673 = vpop.f32.mrb[0].mxu0
      %v5674 = vadd.f32 0.0, %v5673
      %v5675 = vpop.f32.mrb[0].mxu0
      %5676 = vdwg.mxu0
      %v5725 = vrot.slane %v5487, 2
      %v5726 = vrot.slane %v5490, 2
      %v5727 = vsel %vm1588, %v5725, %v5726
      %v5728 = vrot.slane %v5495, 2
      %v5729 = vsel %vm1588, %v5726, %v5728
      %v5730 = vrot.slane %v5498, 2
      %v5731 = vrot.slane %v5503, 2
      %v5732 = vsel %vm1588, %v5730, %v5731
      %v5733 = vrot.slane %v5506, 2
      %v5734 = vsel %vm1588, %v5731, %v5733
      %v5735 = vrot.slane %v5511, 2
      %v5736 = vrot.slane %v5514, 2
      %v5737 = vsel %vm1588, %v5735, %v5736
      %v5738 = vrot.slane %v5519, 2
      %v5739 = vsel %vm1588, %v5736, %v5738
      %v5740 = vrot.slane %v5522, 2
      %v5741 = vrot.slane %v5527, 2
      %v5742 = vsel %vm1588, %v5740, %v5741
      %v5743 = vrot.slane %v5530, 2
      %v5744 = vsel %vm1588, %v5741, %v5743
      %v5745 = vrot.slane %v5535, 2
      %v5746 = vrot.slane %v5538, 2
      %v5747 = vsel %vm1588, %v5745, %v5746
      %v5748 = vrot.slane %v5543, 2
      %v5749 = vsel %vm1588, %v5746, %v5748
      %v5750 = vrot.slane %v5546, 2
      %v5751 = vrot.slane %v5551, 2
      %v5752 = vsel %vm1588, %v5750, %v5751
      %v5753 = vrot.slane %v5554, 2
      %v5754 = vsel %vm1588, %v5751, %v5753
      %v5755 = vrot.slane %v5559, 2
      %v5756 = vrot.slane %v5562, 2
      %v5757 = vsel %vm1588, %v5755, %v5756
      %v5758 = vrot.slane %v5567, 2
      %v5759 = vsel %vm1588, %v5756, %v5758
      %v5760 = vrot.slane %v5570, 2
      %v5761 = vrot.slane %v5575, 2
      %v5762 = vsel %vm1588, %v5760, %v5761
      %v5763 = vrot.slane %v5578, 2
      %v5764 = vsel %vm1588, %v5761, %v5763
      %v5765 = vrot.slane %v5583, 2
      %v5766 = vrot.slane %v5586, 2
      %v5767 = vsel %vm1588, %v5765, %v5766
      %v5768 = vrot.slane %v5591, 2
      %v5769 = vsel %vm1588, %v5766, %v5768
      %v5770 = vrot.slane %v5594, 2
      %v5771 = vrot.slane %v5599, 2
      %v5772 = vsel %vm1588, %v5770, %v5771
      %v5773 = vrot.slane %v5602, 2
      %v5774 = vsel %vm1588, %v5771, %v5773
      %v5775 = vrot.slane %v5607, 2
      %v5776 = vrot.slane %v5610, 2
      %v5777 = vsel %vm1588, %v5775, %v5776
      %v5778 = vrot.slane %v5615, 2
      %v5779 = vsel %vm1588, %v5776, %v5778
      %v5780 = vrot.slane %v5618, 2
      %v5781 = vrot.slane %v5623, 2
      %v5782 = vsel %vm1588, %v5780, %v5781
      %v5783 = vrot.slane %v5626, 2
      %v5784 = vsel %vm1588, %v5781, %v5783
      %v5785 = vrot.slane %v5631, 2
      %v5786 = vrot.slane %v5634, 2
      %v5787 = vsel %vm1588, %v5785, %v5786
      %v5788 = vrot.slane %v5639, 2
      %v5789 = vsel %vm1588, %v5786, %v5788
      %v5790 = vrot.slane %v5642, 2
      %v5791 = vrot.slane %v5647, 2
      %v5792 = vsel %vm1588, %v5790, %v5791
      %v5793 = vrot.slane %v5650, 2
      %v5794 = vsel %vm1588, %v5791, %v5793
      %v5795 = vrot.slane %v5655, 2
      %v5796 = vrot.slane %v5658, 2
      %v5797 = vsel %vm1588, %v5795, %v5796
      %v5798 = vrot.slane %v5663, 2
      %v5799 = vsel %vm1588, %v5796, %v5798
      %v5800 = vrot.slane %v5666, 2
      %v5801 = vrot.slane %v5671, 2
      %v5802 = vsel %vm1588, %v5800, %v5801
      %v5803 = vrot.slane %v5674, 2
      %v5804 = vsel %vm1588, %v5801, %v5803
      %v5837 = vadd.f32 %v5355, %v5727
      %v5838 = vadd.f32 %v5356, %v5729
      %v5839 = vadd.f32 %v5357, %v5732
      %v5840 = vadd.f32 %v5358, %v5734
      %v5841 = vadd.f32 %v5359, %v5737
      %v5842 = vadd.f32 %v5360, %v5739
      %v5843 = vadd.f32 %v5361, %v5742
      %v5844 = vadd.f32 %v5362, %v5744
      %v5845 = vadd.f32 %v5363, %v5747
      %v5846 = vadd.f32 %v5364, %v5749
      %v5847 = vadd.f32 %v5365, %v5752
      %v5848 = vadd.f32 %v5366, %v5754
      %v5849 = vadd.f32 %v5367, %v5757
      %v5850 = vadd.f32 %v5368, %v5759
      %v5851 = vadd.f32 %v5369, %v5762
      %v5852 = vadd.f32 %v5370, %v5764
      %v5853 = vadd.f32 %v5371, %v5767
      %v5854 = vadd.f32 %v5372, %v5769
      %v5855 = vadd.f32 %v5373, %v5772
      %v5856 = vadd.f32 %v5374, %v5774
      %v5857 = vadd.f32 %v5375, %v5777
      %v5858 = vadd.f32 %v5376, %v5779
      %v5859 = vadd.f32 %v5377, %v5782
      %v5860 = vadd.f32 %v5378, %v5784
      %v5861 = vadd.f32 %v5379, %v5787
      %v5862 = vadd.f32 %v5380, %v5789
      %v5863 = vadd.f32 %v5381, %v5792
      %v5864 = vadd.f32 %v5382, %v5794
      %v5865 = vadd.f32 %v5383, %v5797
      %v5866 = vadd.f32 %v5384, %v5799
      %v5867 = vadd.f32 %v5385, %v5802
      %v5868 = vadd.f32 %v5386, %v5804
      %v5869 = vld [vmem:[%s387] sm:$0xff]
      %v5870 = vld [vmem:[%s387 + $0x8] sm:$0xff]
      %v5871 = vld [vmem:[%s387 + $0x10] sm:$0xff]
      %v5872 = vld [vmem:[%s387 + $0x18] sm:$0xff]
      %v5873 = vld [vmem:[%s387 + $0x20] sm:$0xff]
      %v5874 = vld [vmem:[%s387 + $0x28] sm:$0xff]
      %v5875 = vld [vmem:[%s387 + $0x30] sm:$0xff]
      %v5876 = vld [vmem:[%s387 + $0x38] sm:$0xff]
      %v5877 = vld [vmem:[%s387 + $0x40] sm:$0xff]
      %v5878 = vld [vmem:[%s387 + $0x48] sm:$0xff]
      %v5879 = vld [vmem:[%s387 + $0x50] sm:$0xff]
      %v5880 = vld [vmem:[%s387 + $0x58] sm:$0xff]
      %v5881 = vld [vmem:[%s387 + $0x60] sm:$0xff]
      %v5882 = vld [vmem:[%s387 + $0x68] sm:$0xff]
      %v5883 = vld [vmem:[%s387 + $0x70] sm:$0xff]
      %v5884 = vld [vmem:[%s387 + $0x78] sm:$0xff]
      %v5885 = vld [vmem:[%s387 + $0x80] sm:$0xff]
      %v5886 = vld [vmem:[%s387 + $0x88] sm:$0xff]
      %v5887 = vld [vmem:[%s387 + $0x90] sm:$0xff]
      %v5888 = vld [vmem:[%s387 + $0x98] sm:$0xff]
      %v5889 = vld [vmem:[%s387 + $0xa0] sm:$0xff]
      %v5890 = vld [vmem:[%s387 + $0xa8] sm:$0xff]
      %v5891 = vld [vmem:[%s387 + $0xb0] sm:$0xff]
      %v5892 = vld [vmem:[%s387 + $0xb8] sm:$0xff]
      %v5893 = vld [vmem:[%s387 + $0xc0] sm:$0xff]
      %v5894 = vld [vmem:[%s387 + $0xc8] sm:$0xff]
      %v5895 = vld [vmem:[%s387 + $0xd0] sm:$0xff]
      %v5896 = vld [vmem:[%s387 + $0xd8] sm:$0xff]
      %v5897 = vld [vmem:[%s387 + $0xe0] sm:$0xff]
      %v5898 = vld [vmem:[%s387 + $0xe8] sm:$0xff]
      %v5899 = vld [vmem:[%s387 + $0xf0] sm:$0xff]
      %v5900 = vld [vmem:[%s387 + $0xf8] sm:$0xff]
      %v5901 = vld [vmem:[%s387 + $0x100] sm:$0xff]
      %v5902 = vld [vmem:[%s387 + $0x108] sm:$0xff]
      %v5903 = vld [vmem:[%s387 + $0x110] sm:$0xff]
      %v5904 = vld [vmem:[%s387 + $0x118] sm:$0xff]
      %v5905 = vld [vmem:[%s387 + $0x120] sm:$0xff]
      %v5906 = vld [vmem:[%s387 + $0x128] sm:$0xff]
      %v5907 = vld [vmem:[%s387 + $0x130] sm:$0xff]
      %v5908 = vld [vmem:[%s387 + $0x138] sm:$0xff]
      %v5909 = vld [vmem:[%s387 + $0x140] sm:$0xff]
      %v5910 = vld [vmem:[%s387 + $0x148] sm:$0xff]
      %v5911 = vld [vmem:[%s387 + $0x150] sm:$0xff]
      %v5912 = vld [vmem:[%s387 + $0x158] sm:$0xff]
      %v5913 = vld [vmem:[%s387 + $0x160] sm:$0xff]
      %v5914 = vld [vmem:[%s387 + $0x168] sm:$0xff]
      %v5915 = vld [vmem:[%s387 + $0x170] sm:$0xff]
      %v5916 = vld [vmem:[%s387 + $0x178] sm:$0xff]
      %v5917 = vpack.c.bf16 %v5870, %v5869
      %v5918 = vpack.c.bf16 %v5872, %v5871
      %v5919 = vpack.c.bf16 %v5874, %v5873
      %v5920 = vpack.c.bf16 %v5876, %v5875
      %v5921 = vpack.c.bf16 %v5878, %v5877
      %v5922 = vpack.c.bf16 %v5880, %v5879
      %v5923 = vpack.c.bf16 %v5882, %v5881
      %v5924 = vpack.c.bf16 %v5884, %v5883
      %v5925 = vpack.c.bf16 %v5886, %v5885
      %v5926 = vpack.c.bf16 %v5888, %v5887
      %v5927 = vpack.c.bf16 %v5890, %v5889
      %v5928 = vpack.c.bf16 %v5892, %v5891
      %v5929 = vpack.c.bf16 %v5894, %v5893
      %v5930 = vpack.c.bf16 %v5896, %v5895
      %v5931 = vpack.c.bf16 %v5898, %v5897
      %v5932 = vpack.c.bf16 %v5900, %v5899
      %v5933 = vpack.c.bf16 %v5902, %v5901
      %v5934 = vpack.c.bf16 %v5904, %v5903
      %v5935 = vpack.c.bf16 %v5906, %v5905
      %v5936 = vpack.c.bf16 %v5908, %v5907
      %v5937 = vpack.c.bf16 %v5910, %v5909
      %v5938 = vpack.c.bf16 %v5912, %v5911
      %v5939 = vpack.c.bf16 %v5914, %v5913
      %v5940 = vpack.c.bf16 %v5916, %v5915
      %s5941 = scalar_lea.vmem %s2, 192
      %v5942 = vld [vmem:[%s5941] sm:$0xf]
      %v5943 = vld [vmem:[%s5941 + $0x4] sm:$0xf]
      %v5944 = vld [vmem:[%s5941 + $0x8] sm:$0xf]
      %v5945 = vld [vmem:[%s5941 + $0xc] sm:$0xf]
      %v5946 = vld [vmem:[%s5941 + $0x10] sm:$0xf]
      %v5947 = vld [vmem:[%s5941 + $0x14] sm:$0xf]
      %v5948 = vld [vmem:[%s5941 + $0x18] sm:$0xf]
      %v5949 = vld [vmem:[%s5941 + $0x1c] sm:$0xf]
      %v5950 = vld [vmem:[%s5941 + $0x20] sm:$0xf]
      %v5951 = vld [vmem:[%s5941 + $0x24] sm:$0xf]
      %v5952 = vld [vmem:[%s5941 + $0x28] sm:$0xf]
      %v5953 = vld [vmem:[%s5941 + $0x2c] sm:$0xf]
      %v5954 = vld [vmem:[%s5941 + $0x30] sm:$0xf]
      %v5955 = vld [vmem:[%s5941 + $0x34] sm:$0xf]
      %v5956 = vld [vmem:[%s5941 + $0x38] sm:$0xf]
      %v5957 = vld [vmem:[%s5941 + $0x3c] sm:$0xf]
      %v5974 = vunpack.c.l.b16 %v5942
      %v5975 = vunpack.c.l.b16 %v5943
      %v5976 = vunpack.c.l.b16 %v5944
      %v5977 = vunpack.c.l.b16 %v5945
      %v5978 = vunpack.c.l.b16 %v5946
      %v5979 = vunpack.c.l.b16 %v5947
      %v5980 = vunpack.c.l.b16 %v5948
      %v5981 = vunpack.c.l.b16 %v5949
      %v5982 = vunpack.c.l.b16 %v5950
      %v5983 = vunpack.c.l.b16 %v5951
      %v5984 = vunpack.c.l.b16 %v5952
      %v5985 = vunpack.c.l.b16 %v5953
      %v5986 = vunpack.c.l.b16 %v5954
      %v5987 = vunpack.c.l.b16 %v5955
      %v5988 = vunpack.c.l.b16 %v5956
      %v5989 = vunpack.c.l.b16 %v5957
      %v5990 = vpack.c.b16 %v5975, %v5974
      %v5991 = vpack.c.b16 %v5977, %v5976
      %v5992 = vpack.c.b16 %v5979, %v5978
      %v5993 = vpack.c.b16 %v5981, %v5980
      %v5994 = vpack.c.b16 %v5983, %v5982
      %v5995 = vpack.c.b16 %v5985, %v5984
      %v5996 = vpack.c.b16 %v5987, %v5986
      %v5997 = vpack.c.b16 %v5989, %v5988
      %6006 = vmatprep.subr.bf16.mxu0 0
      %6007 = vmatpush1.bf16.msra.mxu0 %v5990
      %6008 = vmatprep.subr.bf16.mxu0 0
      %6009 = vmatpush1.bf16.msra.mxu0 %v5991
      %6010 = vmatprep.subr.bf16.mxu0 0
      %6011 = vmatpush1.bf16.msra.mxu0 %v5992
      %6012 = vmatprep.subr.bf16.mxu0 0
      %6013 = vmatpush1.bf16.msra.mxu0 %v5993
      %6014 = vmatprep.subr.bf16.mxu0 0
      %6015 = vmatpush1.bf16.msra.mxu0 %v5994
      %6016 = vmatprep.subr.bf16.mxu0 0
      %6017 = vmatpush1.bf16.msra.mxu0 %v5995
      %6018 = vmatprep.subr.bf16.mxu0 0
      %6019 = vmatpush1.bf16.msra.mxu0 %v5996
      %6020 = vmatprep.subr.bf16.mxu0 0
      %6021 = vmatpush1.bf16.msra.mxu0 %v5997
      %6022 = vmatprep.subr.bf16.mxu0 0
      %6023 = vmatpush1.bf16.msra.mxu0 0
      %6024 = vmatprep.subr.bf16.mxu0 0
      %6025 = vmatpush1.bf16.msra.mxu0 0
      %6026 = vmatprep.subr.bf16.mxu0 0
      %6027 = vmatpush1.bf16.msra.mxu0 0
      %6028 = vmatprep.subr.bf16.mxu0 0
      %6029 = vmatpush1.bf16.msra.mxu0 0
      %6030 = vmatprep.subr.bf16.mxu0 0
      %6031 = vmatpush1.bf16.msra.mxu0 0
      %6032 = vmatprep.subr.bf16.mxu0 0
      %6033 = vmatpush1.bf16.msra.mxu0 0
      %6034 = vmatprep.subr.bf16.mxu0 0
      %6035 = vmatpush1.bf16.msra.mxu0 0
      %6036 = vmatprep.subr.bf16.mxu0 0
      %6037 = vmatpush1.bf16.msra.mxu0 0
      %6038 = vmatprep.mubr.bf16.mxu0 0
      %6039 = vmatmul.mubr.bf16.gmra.mrb[0].mxu0 %v5917
      %v6040 = vpop.f32.mrb[0].mxu0
      %v6041 = vadd.f32 0.0, %v6040
      %v6042 = vpop.f32.mrb[0].mxu0
      %v6043 = vpop.f32.mrb[0].mxu0
      %v6044 = vadd.f32 0.0, %v6043
      %v6045 = vpop.f32.mrb[0].mxu0
      %6046 = vmatprep.mubr.bf16.mxu0 0
      %6047 = vmatmul.mubr.bf16.gmra.mrb[0].mxu0 %v5918
      %v6048 = vpop.f32.mrb[0].mxu0
      %v6049 = vpop.f32.mrb[0].mxu0
      %v6050 = vpop.f32.mrb[0].mxu0
      %v6051 = vadd.f32 0.0, %v6050
      %v6052 = vpop.f32.mrb[0].mxu0
      %6053 = vmatprep.mubr.bf16.mxu0 0
      %6054 = vmatmul.mubr.bf16.gmra.mrb[0].mxu0 %v5919
      %v6055 = vpop.f32.mrb[0].mxu0
      %v6056 = vadd.f32 0.0, %v6055
      %v6057 = vpop.f32.mrb[0].mxu0
      %v6058 = vpop.f32.mrb[0].mxu0
      %v6059 = vpop.f32.mrb[0].mxu0
      %6060 = vmatprep.mubr.bf16.mxu0 0
      %6061 = vmatmul.mubr.bf16.gmra.mrb[0].mxu0 %v5920
      %v6062 = vpop.f32.mrb[0].mxu0
      %v6063 = vadd.f32 0.0, %v6062
      %v6064 = vpop.f32.mrb[0].mxu0
      %v6065 = vpop.f32.mrb[0].mxu0
      %v6066 = vadd.f32 0.0, %v6065
      %v6067 = vpop.f32.mrb[0].mxu0
      %6068 = vmatprep.mubr.bf16.mxu0 0
      %6069 = vmatmul.mubr.bf16.gmra.mrb[0].mxu0 %v5921
      %v6070 = vpop.f32.mrb[0].mxu0
      %v6071 = vpop.f32.mrb[0].mxu0
      %v6072 = vpop.f32.mrb[0].mxu0
      %v6073 = vadd.f32 0.0, %v6072
      %v6074 = vpop.f32.mrb[0].mxu0
      %6075 = vmatprep.mubr.bf16.mxu0 0
      %6076 = vmatmul.mubr.bf16.gmra.mrb[0].mxu0 %v5922
      %v6077 = vpop.f32.mrb[0].mxu0
      %v6078 = vadd.f32 0.0, %v6077
      %v6079 = vpop.f32.mrb[0].mxu0
      %v6080 = vpop.f32.mrb[0].mxu0
      %v6081 = vpop.f32.mrb[0].mxu0
      %6082 = vmatprep.mubr.bf16.mxu0 0
      %6083 = vmatmul.mubr.bf16.gmra.mrb[0].mxu0 %v5923
      %v6084 = vpop.f32.mrb[0].mxu0
      %v6085 = vadd.f32 0.0, %v6084
      %v6086 = vpop.f32.mrb[0].mxu0
      %v6087 = vpop.f32.mrb[0].mxu0
      %v6088 = vadd.f32 0.0, %v6087
      %v6089 = vpop.f32.mrb[0].mxu0
      %6090 = vmatprep.mubr.bf16.mxu0 0
      %6091 = vmatmul.mubr.bf16.gmra.mrb[0].mxu0 %v5924
      %v6092 = vpop.f32.mrb[0].mxu0
      %v6093 = vpop.f32.mrb[0].mxu0
      %v6094 = vpop.f32.mrb[0].mxu0
      %v6095 = vadd.f32 0.0, %v6094
      %v6096 = vpop.f32.mrb[0].mxu0
      %6097 = vmatprep.mubr.bf16.mxu0 0
      %6098 = vmatmul.mubr.bf16.gmra.mrb[0].mxu0 %v5925
      %v6099 = vpop.f32.mrb[0].mxu0
      %v6100 = vadd.f32 0.0, %v6099
      %v6101 = vpop.f32.mrb[0].mxu0
      %v6102 = vpop.f32.mrb[0].mxu0
      %v6103 = vpop.f32.mrb[0].mxu0
      %6104 = vmatprep.mubr.bf16.mxu0 0
      %6105 = vmatmul.mubr.bf16.gmra.mrb[0].mxu0 %v5926
      %v6106 = vpop.f32.mrb[0].mxu0
      %v6107 = vadd.f32 0.0, %v6106
      %v6108 = vpop.f32.mrb[0].mxu0
      %v6109 = vpop.f32.mrb[0].mxu0
      %v6110 = vadd.f32 0.0, %v6109
      %v6111 = vpop.f32.mrb[0].mxu0
      %6112 = vmatprep.mubr.bf16.mxu0 0
      %6113 = vmatmul.mubr.bf16.gmra.mrb[0].mxu0 %v5927
      %v6114 = vpop.f32.mrb[0].mxu0
      %v6115 = vpop.f32.mrb[0].mxu0
      %v6116 = vpop.f32.mrb[0].mxu0
      %v6117 = vadd.f32 0.0, %v6116
      %v6118 = vpop.f32.mrb[0].mxu0
      %6119 = vmatprep.mubr.bf16.mxu0 0
      %6120 = vmatmul.mubr.bf16.gmra.mrb[0].mxu0 %v5928
      %v6121 = vpop.f32.mrb[0].mxu0
      %v6122 = vadd.f32 0.0, %v6121
      %v6123 = vpop.f32.mrb[0].mxu0
      %v6124 = vpop.f32.mrb[0].mxu0
      %v6125 = vpop.f32.mrb[0].mxu0
      %6126 = vmatprep.mubr.bf16.mxu0 0
      %6127 = vmatmul.mubr.bf16.gmra.mrb[0].mxu0 %v5929
      %v6128 = vpop.f32.mrb[0].mxu0
      %v6129 = vadd.f32 0.0, %v6128
      %v6130 = vpop.f32.mrb[0].mxu0
      %v6131 = vpop.f32.mrb[0].mxu0
      %v6132 = vadd.f32 0.0, %v6131
      %v6133 = vpop.f32.mrb[0].mxu0
      %6134 = vmatprep.mubr.bf16.mxu0 0
      %6135 = vmatmul.mubr.bf16.gmra.mrb[0].mxu0 %v5930
      %v6136 = vpop.f32.mrb[0].mxu0
      %v6137 = vpop.f32.mrb[0].mxu0
      %v6138 = vpop.f32.mrb[0].mxu0
      %v6139 = vadd.f32 0.0, %v6138
      %v6140 = vpop.f32.mrb[0].mxu0
      %6141 = vmatprep.mubr.bf16.mxu0 0
      %6142 = vmatmul.mubr.bf16.gmra.mrb[0].mxu0 %v5931
      %v6143 = vpop.f32.mrb[0].mxu0
      %v6144 = vadd.f32 0.0, %v6143
      %v6145 = vpop.f32.mrb[0].mxu0
      %v6146 = vpop.f32.mrb[0].mxu0
      %v6147 = vpop.f32.mrb[0].mxu0
      %6148 = vmatprep.mubr.bf16.mxu0 0
      %6149 = vmatmul.mubr.bf16.gmra.mrb[0].mxu0 %v5932
      %v6150 = vpop.f32.mrb[0].mxu0
      %v6151 = vadd.f32 0.0, %v6150
      %v6152 = vpop.f32.mrb[0].mxu0
      %v6153 = vpop.f32.mrb[0].mxu0
      %v6154 = vadd.f32 0.0, %v6153
      %v6155 = vpop.f32.mrb[0].mxu0
      %6156 = vmatprep.mubr.bf16.mxu0 0
      %6157 = vmatmul.mubr.bf16.gmra.mrb[0].mxu0 %v5933
      %v6158 = vpop.f32.mrb[0].mxu0
      %v6159 = vpop.f32.mrb[0].mxu0
      %v6160 = vpop.f32.mrb[0].mxu0
      %v6161 = vadd.f32 0.0, %v6160
      %v6162 = vpop.f32.mrb[0].mxu0
      %6163 = vmatprep.mubr.bf16.mxu0 0
      %6164 = vmatmul.mubr.bf16.gmra.mrb[0].mxu0 %v5934
      %v6165 = vpop.f32.mrb[0].mxu0
      %v6166 = vadd.f32 0.0, %v6165
      %v6167 = vpop.f32.mrb[0].mxu0
      %v6168 = vpop.f32.mrb[0].mxu0
      %v6169 = vpop.f32.mrb[0].mxu0
      %6170 = vmatprep.mubr.bf16.mxu0 0
      %6171 = vmatmul.mubr.bf16.gmra.mrb[0].mxu0 %v5935
      %v6172 = vpop.f32.mrb[0].mxu0
      %v6173 = vadd.f32 0.0, %v6172
      %v6174 = vpop.f32.mrb[0].mxu0
      %v6175 = vpop.f32.mrb[0].mxu0
      %v6176 = vadd.f32 0.0, %v6175
      %v6177 = vpop.f32.mrb[0].mxu0
      %6178 = vmatprep.mubr.bf16.mxu0 0
      %6179 = vmatmul.mubr.bf16.gmra.mrb[0].mxu0 %v5936
      %v6180 = vpop.f32.mrb[0].mxu0
      %v6181 = vpop.f32.mrb[0].mxu0
      %v6182 = vpop.f32.mrb[0].mxu0
      %v6183 = vadd.f32 0.0, %v6182
      %v6184 = vpop.f32.mrb[0].mxu0
      %6185 = vmatprep.mubr.bf16.mxu0 0
      %6186 = vmatmul.mubr.bf16.gmra.mrb[0].mxu0 %v5937
      %v6187 = vpop.f32.mrb[0].mxu0
      %v6188 = vadd.f32 0.0, %v6187
      %v6189 = vpop.f32.mrb[0].mxu0
      %v6190 = vpop.f32.mrb[0].mxu0
      %v6191 = vpop.f32.mrb[0].mxu0
      %6192 = vmatprep.mubr.bf16.mxu0 0
      %6193 = vmatmul.mubr.bf16.gmra.mrb[0].mxu0 %v5938
      %v6194 = vpop.f32.mrb[0].mxu0
      %v6195 = vadd.f32 0.0, %v6194
      %v6196 = vpop.f32.mrb[0].mxu0
      %v6197 = vpop.f32.mrb[0].mxu0
      %v6198 = vadd.f32 0.0, %v6197
      %v6199 = vpop.f32.mrb[0].mxu0
      %6200 = vmatprep.mubr.bf16.mxu0 0
      %6201 = vmatmul.mubr.bf16.gmra.mrb[0].mxu0 %v5939
      %v6202 = vpop.f32.mrb[0].mxu0
      %v6203 = vpop.f32.mrb[0].mxu0
      %v6204 = vpop.f32.mrb[0].mxu0
      %v6205 = vadd.f32 0.0, %v6204
      %v6206 = vpop.f32.mrb[0].mxu0
      %6207 = vmatprep.mubr.bf16.mxu0 0
      %6208 = vmatmul.mubr.bf16.gmra.mrb[0].mxu0 %v5940
      %v6209 = vpop.f32.mrb[0].mxu0
      %v6210 = vadd.f32 0.0, %v6209
      %v6211 = vpop.f32.mrb[0].mxu0
      %v6212 = vpop.f32.mrb[0].mxu0
      %v6213 = vpop.f32.mrb[0].mxu0
      %6214 = vdwg.mxu0
      %v6215 = vadd.f32 %v5837, %v6041
      %v6216 = vadd.f32 %v5838, %v6044
      %v6217 = vadd.f32 %v5839, %v6051
      %v6218 = vadd.f32 %v5840, %v6056
      %v6219 = vadd.f32 %v5841, %v6063
      %v6220 = vadd.f32 %v5842, %v6066
      %v6221 = vadd.f32 %v5843, %v6073
      %v6222 = vadd.f32 %v5844, %v6078
      %v6223 = vadd.f32 %v5845, %v6085
      %v6224 = vadd.f32 %v5846, %v6088
      %v6225 = vadd.f32 %v5847, %v6095
      %v6226 = vadd.f32 %v5848, %v6100
      %v6227 = vadd.f32 %v5849, %v6107
      %v6228 = vadd.f32 %v5850, %v6110
      %v6229 = vadd.f32 %v5851, %v6117
      %v6230 = vadd.f32 %v5852, %v6122
      %v6231 = vadd.f32 %v5853, %v6129
      %v6232 = vadd.f32 %v5854, %v6132
      %v6233 = vadd.f32 %v5855, %v6139
      %v6234 = vadd.f32 %v5856, %v6144
      %v6235 = vadd.f32 %v5857, %v6151
      %v6236 = vadd.f32 %v5858, %v6154
      %v6237 = vadd.f32 %v5859, %v6161
      %v6238 = vadd.f32 %v5860, %v6166
      %v6239 = vadd.f32 %v5861, %v6173
      %v6240 = vadd.f32 %v5862, %v6176
      %v6241 = vadd.f32 %v5863, %v6183
      %v6242 = vadd.f32 %v5864, %v6188
      %v6243 = vadd.f32 %v5865, %v6195
      %v6244 = vadd.f32 %v5866, %v6198
      %v6245 = vadd.f32 %v5867, %v6205
      %v6246 = vadd.f32 %v5868, %v6210
      %s6247 = scalar_lea.vmem %s2, 256
      %v6248 = vld [vmem:[%s6247] sm:$0xf]
      %v6249 = vld [vmem:[%s6247 + $0x4] sm:$0xf]
      %v6250 = vld [vmem:[%s6247 + $0x8] sm:$0xf]
      %v6251 = vld [vmem:[%s6247 + $0xc] sm:$0xf]
      %v6252 = vld [vmem:[%s6247 + $0x10] sm:$0xf]
      %v6253 = vld [vmem:[%s6247 + $0x14] sm:$0xf]
      %v6254 = vld [vmem:[%s6247 + $0x18] sm:$0xf]
      %v6255 = vld [vmem:[%s6247 + $0x1c] sm:$0xf]
      %v6256 = vld [vmem:[%s6247 + $0x20] sm:$0xf]
      %v6257 = vld [vmem:[%s6247 + $0x24] sm:$0xf]
      %v6258 = vld [vmem:[%s6247 + $0x28] sm:$0xf]
      %v6259 = vld [vmem:[%s6247 + $0x2c] sm:$0xf]
      %v6260 = vld [vmem:[%s6247 + $0x30] sm:$0xf]
      %v6261 = vld [vmem:[%s6247 + $0x34] sm:$0xf]
      %v6262 = vld [vmem:[%s6247 + $0x38] sm:$0xf]
      %v6263 = vld [vmem:[%s6247 + $0x3c] sm:$0xf]
      %v6280 = vunpack.c.l.b16 %v6248
      %v6281 = vunpack.c.l.b16 %v6249
      %v6282 = vunpack.c.l.b16 %v6250
      %v6283 = vunpack.c.l.b16 %v6251
      %v6284 = vunpack.c.l.b16 %v6252
      %v6285 = vunpack.c.l.b16 %v6253
      %v6286 = vunpack.c.l.b16 %v6254
      %v6287 = vunpack.c.l.b16 %v6255
      %v6288 = vunpack.c.l.b16 %v6256
      %v6289 = vunpack.c.l.b16 %v6257
      %v6290 = vunpack.c.l.b16 %v6258
      %v6291 = vunpack.c.l.b16 %v6259
      %v6292 = vunpack.c.l.b16 %v6260
      %v6293 = vunpack.c.l.b16 %v6261
      %v6294 = vunpack.c.l.b16 %v6262
      %v6295 = vunpack.c.l.b16 %v6263
      %v6296 = vpack.c.b16 %v6281, %v6280
      %v6297 = vpack.c.b16 %v6283, %v6282
      %v6298 = vpack.c.b16 %v6285, %v6284
      %v6299 = vpack.c.b16 %v6287, %v6286
      %v6300 = vpack.c.b16 %v6289, %v6288
      %v6301 = vpack.c.b16 %v6291, %v6290
      %v6302 = vpack.c.b16 %v6293, %v6292
      %v6303 = vpack.c.b16 %v6295, %v6294
      %6312 = vmatprep.subr.bf16.mxu0 0
      %6313 = vmatpush1.bf16.msra.mxu0 %v6296
      %6314 = vmatprep.subr.bf16.mxu0 0
      %6315 = vmatpush1.bf16.msra.mxu0 %v6297
      %6316 = vmatprep.subr.bf16.mxu0 0
      %6317 = vmatpush1.bf16.msra.mxu0 %v6298
      %6318 = vmatprep.subr.bf16.mxu0 0
      %6319 = vmatpush1.bf16.msra.mxu0 %v6299
      %6320 = vmatprep.subr.bf16.mxu0 0
      %6321 = vmatpush1.bf16.msra.mxu0 %v6300
      %6322 = vmatprep.subr.bf16.mxu0 0
      %6323 = vmatpush1.bf16.msra.mxu0 %v6301
      %6324 = vmatprep.subr.bf16.mxu0 0
      %6325 = vmatpush1.bf16.msra.mxu0 %v6302
      %6326 = vmatprep.subr.bf16.mxu0 0
      %6327 = vmatpush1.bf16.msra.mxu0 %v6303
      %6328 = vmatprep.subr.bf16.mxu0 0
      %6329 = vmatpush1.bf16.msra.mxu0 0
      %6330 = vmatprep.subr.bf16.mxu0 0
      %6331 = vmatpush1.bf16.msra.mxu0 0
      %6332 = vmatprep.subr.bf16.mxu0 0
      %6333 = vmatpush1.bf16.msra.mxu0 0
      %6334 = vmatprep.subr.bf16.mxu0 0
      %6335 = vmatpush1.bf16.msra.mxu0 0
      %6336 = vmatprep.subr.bf16.mxu0 0
      %6337 = vmatpush1.bf16.msra.mxu0 0
      %6338 = vmatprep.subr.bf16.mxu0 0
      %6339 = vmatpush1.bf16.msra.mxu0 0
      %6340 = vmatprep.subr.bf16.mxu0 0
      %6341 = vmatpush1.bf16.msra.mxu0 0
      %6342 = vmatprep.subr.bf16.mxu0 0
      %6343 = vmatpush1.bf16.msra.mxu0 0
      %6344 = vmatprep.mubr.bf16.mxu0 0
      %6345 = vmatmul.mubr.bf16.gmra.mrb[0].mxu0 %v5917
      %v6346 = vpop.f32.mrb[0].mxu0
      %v6347 = vadd.f32 0.0, %v6346
      %v6348 = vpop.f32.mrb[0].mxu0
      %v6349 = vpop.f32.mrb[0].mxu0
      %v6350 = vadd.f32 0.0, %v6349
      %v6351 = vpop.f32.mrb[0].mxu0
      %6352 = vmatprep.mubr.bf16.mxu0 0
      %6353 = vmatmul.mubr.bf16.gmra.mrb[0].mxu0 %v5918
      %v6354 = vpop.f32.mrb[0].mxu0
      %v6355 = vadd.f32 0.0, %v6354
      %v6356 = vpop.f32.mrb[0].mxu0
      %v6357 = vpop.f32.mrb[0].mxu0
      %v6358 = vadd.f32 0.0, %v6357
      %v6359 = vpop.f32.mrb[0].mxu0
      %6360 = vmatprep.mubr.bf16.mxu0 0
      %6361 = vmatmul.mubr.bf16.gmra.mrb[0].mxu0 %v5919
      %v6362 = vpop.f32.mrb[0].mxu0
      %v6363 = vadd.f32 0.0, %v6362
      %v6364 = vpop.f32.mrb[0].mxu0
      %v6365 = vpop.f32.mrb[0].mxu0
      %v6366 = vadd.f32 0.0, %v6365
      %v6367 = vpop.f32.mrb[0].mxu0
      %6368 = vmatprep.mubr.bf16.mxu0 0
      %6369 = vmatmul.mubr.bf16.gmra.mrb[0].mxu0 %v5920
      %v6370 = vpop.f32.mrb[0].mxu0
      %v6371 = vadd.f32 0.0, %v6370
      %v6372 = vpop.f32.mrb[0].mxu0
      %v6373 = vpop.f32.mrb[0].mxu0
      %v6374 = vadd.f32 0.0, %v6373
      %v6375 = vpop.f32.mrb[0].mxu0
      %6376 = vmatprep.mubr.bf16.mxu0 0
      %6377 = vmatmul.mubr.bf16.gmra.mrb[0].mxu0 %v5921
      %v6378 = vpop.f32.mrb[0].mxu0
      %v6379 = vadd.f32 0.0, %v6378
      %v6380 = vpop.f32.mrb[0].mxu0
      %v6381 = vpop.f32.mrb[0].mxu0
      %v6382 = vadd.f32 0.0, %v6381
      %v6383 = vpop.f32.mrb[0].mxu0
      %6384 = vmatprep.mubr.bf16.mxu0 0
      %6385 = vmatmul.mubr.bf16.gmra.mrb[0].mxu0 %v5922
      %v6386 = vpop.f32.mrb[0].mxu0
      %v6387 = vadd.f32 0.0, %v6386
      %v6388 = vpop.f32.mrb[0].mxu0
      %v6389 = vpop.f32.mrb[0].mxu0
      %v6390 = vadd.f32 0.0, %v6389
      %v6391 = vpop.f32.mrb[0].mxu0
      %6392 = vmatprep.mubr.bf16.mxu0 0
      %6393 = vmatmul.mubr.bf16.gmra.mrb[0].mxu0 %v5923
      %v6394 = vpop.f32.mrb[0].mxu0
      %v6395 = vadd.f32 0.0, %v6394
      %v6396 = vpop.f32.mrb[0].mxu0
      %v6397 = vpop.f32.mrb[0].mxu0
      %v6398 = vadd.f32 0.0, %v6397
      %v6399 = vpop.f32.mrb[0].mxu0
      %6400 = vmatprep.mubr.bf16.mxu0 0
      %6401 = vmatmul.mubr.bf16.gmra.mrb[0].mxu0 %v5924
      %v6402 = vpop.f32.mrb[0].mxu0
      %v6403 = vadd.f32 0.0, %v6402
      %v6404 = vpop.f32.mrb[0].mxu0
      %v6405 = vpop.f32.mrb[0].mxu0
      %v6406 = vadd.f32 0.0, %v6405
      %v6407 = vpop.f32.mrb[0].mxu0
      %6408 = vmatprep.mubr.bf16.mxu0 0
      %6409 = vmatmul.mubr.bf16.gmra.mrb[0].mxu0 %v5925
      %v6410 = vpop.f32.mrb[0].mxu0
      %v6411 = vadd.f32 0.0, %v6410
      %v6412 = vpop.f32.mrb[0].mxu0
      %v6413 = vpop.f32.mrb[0].mxu0
      %v6414 = vadd.f32 0.0, %v6413
      %v6415 = vpop.f32.mrb[0].mxu0
      %6416 = vmatprep.mubr.bf16.mxu0 0
      %6417 = vmatmul.mubr.bf16.gmra.mrb[0].mxu0 %v5926
      %v6418 = vpop.f32.mrb[0].mxu0
      %v6419 = vadd.f32 0.0, %v6418
      %v6420 = vpop.f32.mrb[0].mxu0
      %v6421 = vpop.f32.mrb[0].mxu0
      %v6422 = vadd.f32 0.0, %v6421
      %v6423 = vpop.f32.mrb[0].mxu0
      %6424 = vmatprep.mubr.bf16.mxu0 0
      %6425 = vmatmul.mubr.bf16.gmra.mrb[0].mxu0 %v5927
      %v6426 = vpop.f32.mrb[0].mxu0
      %v6427 = vadd.f32 0.0, %v6426
      %v6428 = vpop.f32.mrb[0].mxu0
      %v6429 = vpop.f32.mrb[0].mxu0
      %v6430 = vadd.f32 0.0, %v6429
      %v6431 = vpop.f32.mrb[0].mxu0
      %6432 = vmatprep.mubr.bf16.mxu0 0
      %6433 = vmatmul.mubr.bf16.gmra.mrb[0].mxu0 %v5928
      %v6434 = vpop.f32.mrb[0].mxu0
      %v6435 = vadd.f32 0.0, %v6434
      %v6436 = vpop.f32.mrb[0].mxu0
      %v6437 = vpop.f32.mrb[0].mxu0
      %v6438 = vadd.f32 0.0, %v6437
      %v6439 = vpop.f32.mrb[0].mxu0
      %6440 = vmatprep.mubr.bf16.mxu0 0
      %6441 = vmatmul.mubr.bf16.gmra.mrb[0].mxu0 %v5929
      %v6442 = vpop.f32.mrb[0].mxu0
      %v6443 = vadd.f32 0.0, %v6442
      %v6444 = vpop.f32.mrb[0].mxu0
      %v6445 = vpop.f32.mrb[0].mxu0
      %v6446 = vadd.f32 0.0, %v6445
      %v6447 = vpop.f32.mrb[0].mxu0
      %6448 = vmatprep.mubr.bf16.mxu0 0
      %6449 = vmatmul.mubr.bf16.gmra.mrb[0].mxu0 %v5930
      %v6450 = vpop.f32.mrb[0].mxu0
      %v6451 = vadd.f32 0.0, %v6450
      %v6452 = vpop.f32.mrb[0].mxu0
      %v6453 = vpop.f32.mrb[0].mxu0
      %v6454 = vadd.f32 0.0, %v6453
      %v6455 = vpop.f32.mrb[0].mxu0
      %6456 = vmatprep.mubr.bf16.mxu0 0
      %6457 = vmatmul.mubr.bf16.gmra.mrb[0].mxu0 %v5931
      %v6458 = vpop.f32.mrb[0].mxu0
      %v6459 = vadd.f32 0.0, %v6458
      %v6460 = vpop.f32.mrb[0].mxu0
      %v6461 = vpop.f32.mrb[0].mxu0
      %v6462 = vadd.f32 0.0, %v6461
      %v6463 = vpop.f32.mrb[0].mxu0
      %6464 = vmatprep.mubr.bf16.mxu0 0
      %6465 = vmatmul.mubr.bf16.gmra.mrb[0].mxu0 %v5932
      %v6466 = vpop.f32.mrb[0].mxu0
      %v6467 = vadd.f32 0.0, %v6466
      %v6468 = vpop.f32.mrb[0].mxu0
      %v6469 = vpop.f32.mrb[0].mxu0
      %v6470 = vadd.f32 0.0, %v6469
      %v6471 = vpop.f32.mrb[0].mxu0
      %6472 = vmatprep.mubr.bf16.mxu0 0
      %6473 = vmatmul.mubr.bf16.gmra.mrb[0].mxu0 %v5933
      %v6474 = vpop.f32.mrb[0].mxu0
      %v6475 = vadd.f32 0.0, %v6474
      %v6476 = vpop.f32.mrb[0].mxu0
      %v6477 = vpop.f32.mrb[0].mxu0
      %v6478 = vadd.f32 0.0, %v6477
      %v6479 = vpop.f32.mrb[0].mxu0
      %6480 = vmatprep.mubr.bf16.mxu0 0
      %6481 = vmatmul.mubr.bf16.gmra.mrb[0].mxu0 %v5934
      %v6482 = vpop.f32.mrb[0].mxu0
      %v6483 = vadd.f32 0.0, %v6482
      %v6484 = vpop.f32.mrb[0].mxu0
      %v6485 = vpop.f32.mrb[0].mxu0
      %v6486 = vadd.f32 0.0, %v6485
      %v6487 = vpop.f32.mrb[0].mxu0
      %6488 = vmatprep.mubr.bf16.mxu0 0
      %6489 = vmatmul.mubr.bf16.gmra.mrb[0].mxu0 %v5935
      %v6490 = vpop.f32.mrb[0].mxu0
      %v6491 = vadd.f32 0.0, %v6490
      %v6492 = vpop.f32.mrb[0].mxu0
      %v6493 = vpop.f32.mrb[0].mxu0
      %v6494 = vadd.f32 0.0, %v6493
      %v6495 = vpop.f32.mrb[0].mxu0
      %6496 = vmatprep.mubr.bf16.mxu0 0
      %6497 = vmatmul.mubr.bf16.gmra.mrb[0].mxu0 %v5936
      %v6498 = vpop.f32.mrb[0].mxu0
      %v6499 = vadd.f32 0.0, %v6498
      %v6500 = vpop.f32.mrb[0].mxu0
      %v6501 = vpop.f32.mrb[0].mxu0
      %v6502 = vadd.f32 0.0, %v6501
      %v6503 = vpop.f32.mrb[0].mxu0
      %6504 = vmatprep.mubr.bf16.mxu0 0
      %6505 = vmatmul.mubr.bf16.gmra.mrb[0].mxu0 %v5937
      %v6506 = vpop.f32.mrb[0].mxu0
      %v6507 = vadd.f32 0.0, %v6506
      %v6508 = vpop.f32.mrb[0].mxu0
      %v6509 = vpop.f32.mrb[0].mxu0
      %v6510 = vadd.f32 0.0, %v6509
      %v6511 = vpop.f32.mrb[0].mxu0
      %6512 = vmatprep.mubr.bf16.mxu0 0
      %6513 = vmatmul.mubr.bf16.gmra.mrb[0].mxu0 %v5938
      %v6514 = vpop.f32.mrb[0].mxu0
      %v6515 = vadd.f32 0.0, %v6514
      %v6516 = vpop.f32.mrb[0].mxu0
      %v6517 = vpop.f32.mrb[0].mxu0
      %v6518 = vadd.f32 0.0, %v6517
      %v6519 = vpop.f32.mrb[0].mxu0
      %6520 = vmatprep.mubr.bf16.mxu0 0
      %6521 = vmatmul.mubr.bf16.gmra.mrb[0].mxu0 %v5939
      %v6522 = vpop.f32.mrb[0].mxu0
      %v6523 = vadd.f32 0.0, %v6522
      %v6524 = vpop.f32.mrb[0].mxu0
      %v6525 = vpop.f32.mrb[0].mxu0
      %v6526 = vadd.f32 0.0, %v6525
      %v6527 = vpop.f32.mrb[0].mxu0
      %6528 = vmatprep.mubr.bf16.mxu0 0
      %6529 = vmatmul.mubr.bf16.gmra.mrb[0].mxu0 %v5940
      %v6530 = vpop.f32.mrb[0].mxu0
      %v6531 = vadd.f32 0.0, %v6530
      %v6532 = vpop.f32.mrb[0].mxu0
      %v6533 = vpop.f32.mrb[0].mxu0
      %v6534 = vadd.f32 0.0, %v6533
      %v6535 = vpop.f32.mrb[0].mxu0
      %6536 = vdwg.mxu0
      %v6585 = vrot.slane %v6347, 1
      %v6586 = vrot.slane %v6350, 1
      %v6587 = vsel %vm1105, %v6585, %v6586
      %v6588 = vrot.slane %v6355, 1
      %v6589 = vsel %vm1105, %v6586, %v6588
      %v6590 = vrot.slane %v6358, 1
      %v6591 = vrot.slane %v6363, 1
      %v6592 = vsel %vm1105, %v6590, %v6591
      %v6593 = vrot.slane %v6366, 1
      %v6594 = vsel %vm1105, %v6591, %v6593
      %v6595 = vrot.slane %v6371, 1
      %v6596 = vrot.slane %v6374, 1
      %v6597 = vsel %vm1105, %v6595, %v6596
      %v6598 = vrot.slane %v6379, 1
      %v6599 = vsel %vm1105, %v6596, %v6598
      %v6600 = vrot.slane %v6382, 1
      %v6601 = vrot.slane %v6387, 1
      %v6602 = vsel %vm1105, %v6600, %v6601
      %v6603 = vrot.slane %v6390, 1
      %v6604 = vsel %vm1105, %v6601, %v6603
      %v6605 = vrot.slane %v6395, 1
      %v6606 = vrot.slane %v6398, 1
      %v6607 = vsel %vm1105, %v6605, %v6606
      %v6608 = vrot.slane %v6403, 1
      %v6609 = vsel %vm1105, %v6606, %v6608
      %v6610 = vrot.slane %v6406, 1
      %v6611 = vrot.slane %v6411, 1
      %v6612 = vsel %vm1105, %v6610, %v6611
      %v6613 = vrot.slane %v6414, 1
      %v6614 = vsel %vm1105, %v6611, %v6613
      %v6615 = vrot.slane %v6419, 1
      %v6616 = vrot.slane %v6422, 1
      %v6617 = vsel %vm1105, %v6615, %v6616
      %v6618 = vrot.slane %v6427, 1
      %v6619 = vsel %vm1105, %v6616, %v6618
      %v6620 = vrot.slane %v6430, 1
      %v6621 = vrot.slane %v6435, 1
      %v6622 = vsel %vm1105, %v6620, %v6621
      %v6623 = vrot.slane %v6438, 1
      %v6624 = vsel %vm1105, %v6621, %v6623
      %v6625 = vrot.slane %v6443, 1
      %v6626 = vrot.slane %v6446, 1
      %v6627 = vsel %vm1105, %v6625, %v6626
      %v6628 = vrot.slane %v6451, 1
      %v6629 = vsel %vm1105, %v6626, %v6628
      %v6630 = vrot.slane %v6454, 1
      %v6631 = vrot.slane %v6459, 1
      %v6632 = vsel %vm1105, %v6630, %v6631
      %v6633 = vrot.slane %v6462, 1
      %v6634 = vsel %vm1105, %v6631, %v6633
      %v6635 = vrot.slane %v6467, 1
      %v6636 = vrot.slane %v6470, 1
      %v6637 = vsel %vm1105, %v6635, %v6636
      %v6638 = vrot.slane %v6475, 1
      %v6639 = vsel %vm1105, %v6636, %v6638
      %v6640 = vrot.slane %v6478, 1
      %v6641 = vrot.slane %v6483, 1
      %v6642 = vsel %vm1105, %v6640, %v6641
      %v6643 = vrot.slane %v6486, 1
      %v6644 = vsel %vm1105, %v6641, %v6643
      %v6645 = vrot.slane %v6491, 1
      %v6646 = vrot.slane %v6494, 1
      %v6647 = vsel %vm1105, %v6645, %v6646
      %v6648 = vrot.slane %v6499, 1
      %v6649 = vsel %vm1105, %v6646, %v6648
      %v6650 = vrot.slane %v6502, 1
      %v6651 = vrot.slane %v6507, 1
      %v6652 = vsel %vm1105, %v6650, %v6651
      %v6653 = vrot.slane %v6510, 1
      %v6654 = vsel %vm1105, %v6651, %v6653
      %v6655 = vrot.slane %v6515, 1
      %v6656 = vrot.slane %v6518, 1
      %v6657 = vsel %vm1105, %v6655, %v6656
      %v6658 = vrot.slane %v6523, 1
      %v6659 = vsel %vm1105, %v6656, %v6658
      %v6660 = vrot.slane %v6526, 1
      %v6661 = vrot.slane %v6531, 1
      %v6662 = vsel %vm1105, %v6660, %v6661
      %v6663 = vrot.slane %v6534, 1
      %v6664 = vsel %vm1105, %v6661, %v6663
      %v6697 = vadd.f32 %v6215, %v6587
      %v6698 = vadd.f32 %v6216, %v6589
      %v6699 = vadd.f32 %v6217, %v6592
      %v6700 = vadd.f32 %v6218, %v6594
      %v6701 = vadd.f32 %v6219, %v6597
      %v6702 = vadd.f32 %v6220, %v6599
      %v6703 = vadd.f32 %v6221, %v6602
      %v6704 = vadd.f32 %v6222, %v6604
      %v6705 = vadd.f32 %v6223, %v6607
      %v6706 = vadd.f32 %v6224, %v6609
      %v6707 = vadd.f32 %v6225, %v6612
      %v6708 = vadd.f32 %v6226, %v6614
      %v6709 = vadd.f32 %v6227, %v6617
      %v6710 = vadd.f32 %v6228, %v6619
      %v6711 = vadd.f32 %v6229, %v6622
      %v6712 = vadd.f32 %v6230, %v6624
      %v6713 = vadd.f32 %v6231, %v6627
      %v6714 = vadd.f32 %v6232, %v6629
      %v6715 = vadd.f32 %v6233, %v6632
      %v6716 = vadd.f32 %v6234, %v6634
      %v6717 = vadd.f32 %v6235, %v6637
      %v6718 = vadd.f32 %v6236, %v6639
      %v6719 = vadd.f32 %v6237, %v6642
      %v6720 = vadd.f32 %v6238, %v6644
      %v6721 = vadd.f32 %v6239, %v6647
      %v6722 = vadd.f32 %v6240, %v6649
      %v6723 = vadd.f32 %v6241, %v6652
      %v6724 = vadd.f32 %v6242, %v6654
      %v6725 = vadd.f32 %v6243, %v6657
      %v6726 = vadd.f32 %v6244, %v6659
      %v6727 = vadd.f32 %v6245, %v6662
      %v6728 = vadd.f32 %v6246, %v6664
      %s6729 = scalar_lea.vmem %s2, 320
      %v6730 = vld [vmem:[%s6729] sm:$0xf]
      %v6731 = vld [vmem:[%s6729 + $0x4] sm:$0xf]
      %v6732 = vld [vmem:[%s6729 + $0x8] sm:$0xf]
      %v6733 = vld [vmem:[%s6729 + $0xc] sm:$0xf]
      %v6734 = vld [vmem:[%s6729 + $0x10] sm:$0xf]
      %v6735 = vld [vmem:[%s6729 + $0x14] sm:$0xf]
      %v6736 = vld [vmem:[%s6729 + $0x18] sm:$0xf]
      %v6737 = vld [vmem:[%s6729 + $0x1c] sm:$0xf]
      %v6738 = vld [vmem:[%s6729 + $0x20] sm:$0xf]
      %v6739 = vld [vmem:[%s6729 + $0x24] sm:$0xf]
      %v6740 = vld [vmem:[%s6729 + $0x28] sm:$0xf]
      %v6741 = vld [vmem:[%s6729 + $0x2c] sm:$0xf]
      %v6742 = vld [vmem:[%s6729 + $0x30] sm:$0xf]
      %v6743 = vld [vmem:[%s6729 + $0x34] sm:$0xf]
      %v6744 = vld [vmem:[%s6729 + $0x38] sm:$0xf]
      %v6745 = vld [vmem:[%s6729 + $0x3c] sm:$0xf]
      %v6762 = vunpack.c.l.b16 %v6730
      %v6763 = vunpack.c.l.b16 %v6731
      %v6764 = vunpack.c.l.b16 %v6732
      %v6765 = vunpack.c.l.b16 %v6733
      %v6766 = vunpack.c.l.b16 %v6734
      %v6767 = vunpack.c.l.b16 %v6735
      %v6768 = vunpack.c.l.b16 %v6736
      %v6769 = vunpack.c.l.b16 %v6737
      %v6770 = vunpack.c.l.b16 %v6738
      %v6771 = vunpack.c.l.b16 %v6739
      %v6772 = vunpack.c.l.b16 %v6740
      %v6773 = vunpack.c.l.b16 %v6741
      %v6774 = vunpack.c.l.b16 %v6742
      %v6775 = vunpack.c.l.b16 %v6743
      %v6776 = vunpack.c.l.b16 %v6744
      %v6777 = vunpack.c.l.b16 %v6745
      %v6778 = vpack.c.b16 %v6763, %v6762
      %v6779 = vpack.c.b16 %v6765, %v6764
      %v6780 = vpack.c.b16 %v6767, %v6766
      %v6781 = vpack.c.b16 %v6769, %v6768
      %v6782 = vpack.c.b16 %v6771, %v6770
      %v6783 = vpack.c.b16 %v6773, %v6772
      %v6784 = vpack.c.b16 %v6775, %v6774
      %v6785 = vpack.c.b16 %v6777, %v6776
      %6794 = vmatprep.subr.bf16.mxu0 0
      %6795 = vmatpush1.bf16.msra.mxu0 %v6778
      %6796 = vmatprep.subr.bf16.mxu0 0
      %6797 = vmatpush1.bf16.msra.mxu0 %v6779
      %6798 = vmatprep.subr.bf16.mxu0 0
      %6799 = vmatpush1.bf16.msra.mxu0 %v6780
      %6800 = vmatprep.subr.bf16.mxu0 0
      %6801 = vmatpush1.bf16.msra.mxu0 %v6781
      %6802 = vmatprep.subr.bf16.mxu0 0
      %6803 = vmatpush1.bf16.msra.mxu0 %v6782
      %6804 = vmatprep.subr.bf16.mxu0 0
      %6805 = vmatpush1.bf16.msra.mxu0 %v6783
      %6806 = vmatprep.subr.bf16.mxu0 0
      %6807 = vmatpush1.bf16.msra.mxu0 %v6784
      %6808 = vmatprep.subr.bf16.mxu0 0
      %6809 = vmatpush1.bf16.msra.mxu0 %v6785
      %6810 = vmatprep.subr.bf16.mxu0 0
      %6811 = vmatpush1.bf16.msra.mxu0 0
      %6812 = vmatprep.subr.bf16.mxu0 0
      %6813 = vmatpush1.bf16.msra.mxu0 0
      %6814 = vmatprep.subr.bf16.mxu0 0
      %6815 = vmatpush1.bf16.msra.mxu0 0
      %6816 = vmatprep.subr.bf16.mxu0 0
      %6817 = vmatpush1.bf16.msra.mxu0 0
      %6818 = vmatprep.subr.bf16.mxu0 0
      %6819 = vmatpush1.bf16.msra.mxu0 0
      %6820 = vmatprep.subr.bf16.mxu0 0
      %6821 = vmatpush1.bf16.msra.mxu0 0
      %6822 = vmatprep.subr.bf16.mxu0 0
      %6823 = vmatpush1.bf16.msra.mxu0 0
      %6824 = vmatprep.subr.bf16.mxu0 0
      %6825 = vmatpush1.bf16.msra.mxu0 0
      %6826 = vmatprep.mubr.bf16.mxu0 0
      %6827 = vmatmul.mubr.bf16.gmra.mrb[0].mxu0 %v5917
      %v6828 = vpop.f32.mrb[0].mxu0
      %v6829 = vadd.f32 0.0, %v6828
      %v6830 = vpop.f32.mrb[0].mxu0
      %v6831 = vpop.f32.mrb[0].mxu0
      %v6832 = vadd.f32 0.0, %v6831
      %v6833 = vpop.f32.mrb[0].mxu0
      %6834 = vmatprep.mubr.bf16.mxu0 0
      %6835 = vmatmul.mubr.bf16.gmra.mrb[0].mxu0 %v5918
      %v6836 = vpop.f32.mrb[0].mxu0
      %v6837 = vadd.f32 0.0, %v6836
      %v6838 = vpop.f32.mrb[0].mxu0
      %v6839 = vpop.f32.mrb[0].mxu0
      %v6840 = vadd.f32 0.0, %v6839
      %v6841 = vpop.f32.mrb[0].mxu0
      %6842 = vmatprep.mubr.bf16.mxu0 0
      %6843 = vmatmul.mubr.bf16.gmra.mrb[0].mxu0 %v5919
      %v6844 = vpop.f32.mrb[0].mxu0
      %v6845 = vadd.f32 0.0, %v6844
      %v6846 = vpop.f32.mrb[0].mxu0
      %v6847 = vpop.f32.mrb[0].mxu0
      %v6848 = vadd.f32 0.0, %v6847
      %v6849 = vpop.f32.mrb[0].mxu0
      %6850 = vmatprep.mubr.bf16.mxu0 0
      %6851 = vmatmul.mubr.bf16.gmra.mrb[0].mxu0 %v5920
      %v6852 = vpop.f32.mrb[0].mxu0
      %v6853 = vadd.f32 0.0, %v6852
      %v6854 = vpop.f32.mrb[0].mxu0
      %v6855 = vpop.f32.mrb[0].mxu0
      %v6856 = vadd.f32 0.0, %v6855
      %v6857 = vpop.f32.mrb[0].mxu0
      %6858 = vmatprep.mubr.bf16.mxu0 0
      %6859 = vmatmul.mubr.bf16.gmra.mrb[0].mxu0 %v5921
      %v6860 = vpop.f32.mrb[0].mxu0
      %v6861 = vadd.f32 0.0, %v6860
      %v6862 = vpop.f32.mrb[0].mxu0
      %v6863 = vpop.f32.mrb[0].mxu0
      %v6864 = vadd.f32 0.0, %v6863
      %v6865 = vpop.f32.mrb[0].mxu0
      %6866 = vmatprep.mubr.bf16.mxu0 0
      %6867 = vmatmul.mubr.bf16.gmra.mrb[0].mxu0 %v5922
      %v6868 = vpop.f32.mrb[0].mxu0
      %v6869 = vadd.f32 0.0, %v6868
      %v6870 = vpop.f32.mrb[0].mxu0
      %v6871 = vpop.f32.mrb[0].mxu0
      %v6872 = vadd.f32 0.0, %v6871
      %v6873 = vpop.f32.mrb[0].mxu0
      %6874 = vmatprep.mubr.bf16.mxu0 0
      %6875 = vmatmul.mubr.bf16.gmra.mrb[0].mxu0 %v5923
      %v6876 = vpop.f32.mrb[0].mxu0
      %v6877 = vadd.f32 0.0, %v6876
      %v6878 = vpop.f32.mrb[0].mxu0
      %v6879 = vpop.f32.mrb[0].mxu0
      %v6880 = vadd.f32 0.0, %v6879
      %v6881 = vpop.f32.mrb[0].mxu0
      %6882 = vmatprep.mubr.bf16.mxu0 0
      %6883 = vmatmul.mubr.bf16.gmra.mrb[0].mxu0 %v5924
      %v6884 = vpop.f32.mrb[0].mxu0
      %v6885 = vadd.f32 0.0, %v6884
      %v6886 = vpop.f32.mrb[0].mxu0
      %v6887 = vpop.f32.mrb[0].mxu0
      %v6888 = vadd.f32 0.0, %v6887
      %v6889 = vpop.f32.mrb[0].mxu0
      %6890 = vmatprep.mubr.bf16.mxu0 0
      %6891 = vmatmul.mubr.bf16.gmra.mrb[0].mxu0 %v5925
      %v6892 = vpop.f32.mrb[0].mxu0
      %v6893 = vadd.f32 0.0, %v6892
      %v6894 = vpop.f32.mrb[0].mxu0
      %v6895 = vpop.f32.mrb[0].mxu0
      %v6896 = vadd.f32 0.0, %v6895
      %v6897 = vpop.f32.mrb[0].mxu0
      %6898 = vmatprep.mubr.bf16.mxu0 0
      %6899 = vmatmul.mubr.bf16.gmra.mrb[0].mxu0 %v5926
      %v6900 = vpop.f32.mrb[0].mxu0
      %v6901 = vadd.f32 0.0, %v6900
      %v6902 = vpop.f32.mrb[0].mxu0
      %v6903 = vpop.f32.mrb[0].mxu0
      %v6904 = vadd.f32 0.0, %v6903
      %v6905 = vpop.f32.mrb[0].mxu0
      %6906 = vmatprep.mubr.bf16.mxu0 0
      %6907 = vmatmul.mubr.bf16.gmra.mrb[0].mxu0 %v5927
      %v6908 = vpop.f32.mrb[0].mxu0
      %v6909 = vadd.f32 0.0, %v6908
      %v6910 = vpop.f32.mrb[0].mxu0
      %v6911 = vpop.f32.mrb[0].mxu0
      %v6912 = vadd.f32 0.0, %v6911
      %v6913 = vpop.f32.mrb[0].mxu0
      %6914 = vmatprep.mubr.bf16.mxu0 0
      %6915 = vmatmul.mubr.bf16.gmra.mrb[0].mxu0 %v5928
      %v6916 = vpop.f32.mrb[0].mxu0
      %v6917 = vadd.f32 0.0, %v6916
      %v6918 = vpop.f32.mrb[0].mxu0
      %v6919 = vpop.f32.mrb[0].mxu0
      %v6920 = vadd.f32 0.0, %v6919
      %v6921 = vpop.f32.mrb[0].mxu0
      %6922 = vmatprep.mubr.bf16.mxu0 0
      %6923 = vmatmul.mubr.bf16.gmra.mrb[0].mxu0 %v5929
      %v6924 = vpop.f32.mrb[0].mxu0
      %v6925 = vadd.f32 0.0, %v6924
      %v6926 = vpop.f32.mrb[0].mxu0
      %v6927 = vpop.f32.mrb[0].mxu0
      %v6928 = vadd.f32 0.0, %v6927
      %v6929 = vpop.f32.mrb[0].mxu0
      %6930 = vmatprep.mubr.bf16.mxu0 0
      %6931 = vmatmul.mubr.bf16.gmra.mrb[0].mxu0 %v5930
      %v6932 = vpop.f32.mrb[0].mxu0
      %v6933 = vadd.f32 0.0, %v6932
      %v6934 = vpop.f32.mrb[0].mxu0
      %v6935 = vpop.f32.mrb[0].mxu0
      %v6936 = vadd.f32 0.0, %v6935
      %v6937 = vpop.f32.mrb[0].mxu0
      %6938 = vmatprep.mubr.bf16.mxu0 0
      %6939 = vmatmul.mubr.bf16.gmra.mrb[0].mxu0 %v5931
      %v6940 = vpop.f32.mrb[0].mxu0
      %v6941 = vadd.f32 0.0, %v6940
      %v6942 = vpop.f32.mrb[0].mxu0
      %v6943 = vpop.f32.mrb[0].mxu0
      %v6944 = vadd.f32 0.0, %v6943
      %v6945 = vpop.f32.mrb[0].mxu0
      %6946 = vmatprep.mubr.bf16.mxu0 0
      %6947 = vmatmul.mubr.bf16.gmra.mrb[0].mxu0 %v5932
      %v6948 = vpop.f32.mrb[0].mxu0
      %v6949 = vadd.f32 0.0, %v6948
      %v6950 = vpop.f32.mrb[0].mxu0
      %v6951 = vpop.f32.mrb[0].mxu0
      %v6952 = vadd.f32 0.0, %v6951
      %v6953 = vpop.f32.mrb[0].mxu0
      %6954 = vmatprep.mubr.bf16.mxu0 0
      %6955 = vmatmul.mubr.bf16.gmra.mrb[0].mxu0 %v5933
      %v6956 = vpop.f32.mrb[0].mxu0
      %v6957 = vadd.f32 0.0, %v6956
      %v6958 = vpop.f32.mrb[0].mxu0
      %v6959 = vpop.f32.mrb[0].mxu0
      %v6960 = vadd.f32 0.0, %v6959
      %v6961 = vpop.f32.mrb[0].mxu0
      %6962 = vmatprep.mubr.bf16.mxu0 0
      %6963 = vmatmul.mubr.bf16.gmra.mrb[0].mxu0 %v5934
      %v6964 = vpop.f32.mrb[0].mxu0
      %v6965 = vadd.f32 0.0, %v6964
      %v6966 = vpop.f32.mrb[0].mxu0
      %v6967 = vpop.f32.mrb[0].mxu0
      %v6968 = vadd.f32 0.0, %v6967
      %v6969 = vpop.f32.mrb[0].mxu0
      %6970 = vmatprep.mubr.bf16.mxu0 0
      %6971 = vmatmul.mubr.bf16.gmra.mrb[0].mxu0 %v5935
      %v6972 = vpop.f32.mrb[0].mxu0
      %v6973 = vadd.f32 0.0, %v6972
      %v6974 = vpop.f32.mrb[0].mxu0
      %v6975 = vpop.f32.mrb[0].mxu0
      %v6976 = vadd.f32 0.0, %v6975
      %v6977 = vpop.f32.mrb[0].mxu0
      %6978 = vmatprep.mubr.bf16.mxu0 0
      %6979 = vmatmul.mubr.bf16.gmra.mrb[0].mxu0 %v5936
      %v6980 = vpop.f32.mrb[0].mxu0
      %v6981 = vadd.f32 0.0, %v6980
      %v6982 = vpop.f32.mrb[0].mxu0
      %v6983 = vpop.f32.mrb[0].mxu0
      %v6984 = vadd.f32 0.0, %v6983
      %v6985 = vpop.f32.mrb[0].mxu0
      %6986 = vmatprep.mubr.bf16.mxu0 0
      %6987 = vmatmul.mubr.bf16.gmra.mrb[0].mxu0 %v5937
      %v6988 = vpop.f32.mrb[0].mxu0
      %v6989 = vadd.f32 0.0, %v6988
      %v6990 = vpop.f32.mrb[0].mxu0
      %v6991 = vpop.f32.mrb[0].mxu0
      %v6992 = vadd.f32 0.0, %v6991
      %v6993 = vpop.f32.mrb[0].mxu0
      %6994 = vmatprep.mubr.bf16.mxu0 0
      %6995 = vmatmul.mubr.bf16.gmra.mrb[0].mxu0 %v5938
      %v6996 = vpop.f32.mrb[0].mxu0
      %v6997 = vadd.f32 0.0, %v6996
      %v6998 = vpop.f32.mrb[0].mxu0
      %v6999 = vpop.f32.mrb[0].mxu0
      %v7000 = vadd.f32 0.0, %v6999
      %v7001 = vpop.f32.mrb[0].mxu0
      %7002 = vmatprep.mubr.bf16.mxu0 0
      %7003 = vmatmul.mubr.bf16.gmra.mrb[0].mxu0 %v5939
      %v7004 = vpop.f32.mrb[0].mxu0
      %v7005 = vadd.f32 0.0, %v7004
      %v7006 = vpop.f32.mrb[0].mxu0
      %v7007 = vpop.f32.mrb[0].mxu0
      %v7008 = vadd.f32 0.0, %v7007
      %v7009 = vpop.f32.mrb[0].mxu0
      %7010 = vmatprep.mubr.bf16.mxu0 0
      %7011 = vmatmul.mubr.bf16.gmra.mrb[0].mxu0 %v5940
      %v7012 = vpop.f32.mrb[0].mxu0
      %v7013 = vadd.f32 0.0, %v7012
      %v7014 = vpop.f32.mrb[0].mxu0
      %v7015 = vpop.f32.mrb[0].mxu0
      %v7016 = vadd.f32 0.0, %v7015
      %v7017 = vpop.f32.mrb[0].mxu0
      %7018 = vdwg.mxu0
      %v7067 = vrot.slane %v6829, 2
      %v7068 = vrot.slane %v6832, 2
      %v7069 = vsel %vm1588, %v7067, %v7068
      %v7070 = vrot.slane %v6837, 2
      %v7071 = vsel %vm1588, %v7068, %v7070
      %v7072 = vrot.slane %v6840, 2
      %v7073 = vrot.slane %v6845, 2
      %v7074 = vsel %vm1588, %v7072, %v7073
      %v7075 = vrot.slane %v6848, 2
      %v7076 = vsel %vm1588, %v7073, %v7075
      %v7077 = vrot.slane %v6853, 2
      %v7078 = vrot.slane %v6856, 2
      %v7079 = vsel %vm1588, %v7077, %v7078
      %v7080 = vrot.slane %v6861, 2
      %v7081 = vsel %vm1588, %v7078, %v7080
      %v7082 = vrot.slane %v6864, 2
      %v7083 = vrot.slane %v6869, 2
      %v7084 = vsel %vm1588, %v7082, %v7083
      %v7085 = vrot.slane %v6872, 2
      %v7086 = vsel %vm1588, %v7083, %v7085
      %v7087 = vrot.slane %v6877, 2
      %v7088 = vrot.slane %v6880, 2
      %v7089 = vsel %vm1588, %v7087, %v7088
      %v7090 = vrot.slane %v6885, 2
      %v7091 = vsel %vm1588, %v7088, %v7090
      %v7092 = vrot.slane %v6888, 2
      %v7093 = vrot.slane %v6893, 2
      %v7094 = vsel %vm1588, %v7092, %v7093
      %v7095 = vrot.slane %v6896, 2
      %v7096 = vsel %vm1588, %v7093, %v7095
      %v7097 = vrot.slane %v6901, 2
      %v7098 = vrot.slane %v6904, 2
      %v7099 = vsel %vm1588, %v7097, %v7098
      %v7100 = vrot.slane %v6909, 2
      %v7101 = vsel %vm1588, %v7098, %v7100
      %v7102 = vrot.slane %v6912, 2
      %v7103 = vrot.slane %v6917, 2
      %v7104 = vsel %vm1588, %v7102, %v7103
      %v7105 = vrot.slane %v6920, 2
      %v7106 = vsel %vm1588, %v7103, %v7105
      %v7107 = vrot.slane %v6925, 2
      %v7108 = vrot.slane %v6928, 2
      %v7109 = vsel %vm1588, %v7107, %v7108
      %v7110 = vrot.slane %v6933, 2
      %v7111 = vsel %vm1588, %v7108, %v7110
      %v7112 = vrot.slane %v6936, 2
      %v7113 = vrot.slane %v6941, 2
      %v7114 = vsel %vm1588, %v7112, %v7113
      %v7115 = vrot.slane %v6944, 2
      %v7116 = vsel %vm1588, %v7113, %v7115
      %v7117 = vrot.slane %v6949, 2
      %v7118 = vrot.slane %v6952, 2
      %v7119 = vsel %vm1588, %v7117, %v7118
      %v7120 = vrot.slane %v6957, 2
      %v7121 = vsel %vm1588, %v7118, %v7120
      %v7122 = vrot.slane %v6960, 2
      %v7123 = vrot.slane %v6965, 2
      %v7124 = vsel %vm1588, %v7122, %v7123
      %v7125 = vrot.slane %v6968, 2
      %v7126 = vsel %vm1588, %v7123, %v7125
      %v7127 = vrot.slane %v6973, 2
      %v7128 = vrot.slane %v6976, 2
      %v7129 = vsel %vm1588, %v7127, %v7128
      %v7130 = vrot.slane %v6981, 2
      %v7131 = vsel %vm1588, %v7128, %v7130
      %v7132 = vrot.slane %v6984, 2
      %v7133 = vrot.slane %v6989, 2
      %v7134 = vsel %vm1588, %v7132, %v7133
      %v7135 = vrot.slane %v6992, 2
      %v7136 = vsel %vm1588, %v7133, %v7135
      %v7137 = vrot.slane %v6997, 2
      %v7138 = vrot.slane %v7000, 2
      %v7139 = vsel %vm1588, %v7137, %v7138
      %v7140 = vrot.slane %v7005, 2
      %v7141 = vsel %vm1588, %v7138, %v7140
      %v7142 = vrot.slane %v7008, 2
      %v7143 = vrot.slane %v7013, 2
      %v7144 = vsel %vm1588, %v7142, %v7143
      %v7145 = vrot.slane %v7016, 2
      %v7146 = vsel %vm1588, %v7143, %v7145
      %v7179 = vadd.f32 %v6697, %v7069
      %v7180 = vadd.f32 %v6698, %v7071
      %v7181 = vadd.f32 %v6699, %v7074
      %v7182 = vadd.f32 %v6700, %v7076
      %v7183 = vadd.f32 %v6701, %v7079
      %v7184 = vadd.f32 %v6702, %v7081
      %v7185 = vadd.f32 %v6703, %v7084
      %v7186 = vadd.f32 %v6704, %v7086
      %v7187 = vadd.f32 %v6705, %v7089
      %v7188 = vadd.f32 %v6706, %v7091
      %v7189 = vadd.f32 %v6707, %v7094
      %v7190 = vadd.f32 %v6708, %v7096
      %v7191 = vadd.f32 %v6709, %v7099
      %v7192 = vadd.f32 %v6710, %v7101
      %v7193 = vadd.f32 %v6711, %v7104
      %v7194 = vadd.f32 %v6712, %v7106
      %v7195 = vadd.f32 %v6713, %v7109
      %v7196 = vadd.f32 %v6714, %v7111
      %v7197 = vadd.f32 %v6715, %v7114
      %v7198 = vadd.f32 %v6716, %v7116
      %v7199 = vadd.f32 %v6717, %v7119
      %v7200 = vadd.f32 %v6718, %v7121
      %v7201 = vadd.f32 %v6719, %v7124
      %v7202 = vadd.f32 %v6720, %v7126
      %v7203 = vadd.f32 %v6721, %v7129
      %v7204 = vadd.f32 %v6722, %v7131
      %v7205 = vadd.f32 %v6723, %v7134
      %v7206 = vadd.f32 %v6724, %v7136
      %v7207 = vadd.f32 %v6725, %v7139
      %v7208 = vadd.f32 %v6726, %v7141
      %v7209 = vadd.f32 %v6727, %v7144
      %v7210 = vadd.f32 %v6728, %v7146
      %v7211 = vld [vmem:[%s3075] sm:$0xff]
      %v7212 = vld [vmem:[%s3075 + $0x8] sm:$0xff]
      %v7213 = vld [vmem:[%s3075 + $0x10] sm:$0xff]
      %v7214 = vld [vmem:[%s3075 + $0x18] sm:$0xff]
      %v7215 = vld [vmem:[%s3075 + $0x20] sm:$0xff]
      %v7216 = vld [vmem:[%s3075 + $0x28] sm:$0xff]
      %v7217 = vld [vmem:[%s3075 + $0x30] sm:$0xff]
      %v7218 = vld [vmem:[%s3075 + $0x38] sm:$0xff]
      %v7219 = vld [vmem:[%s3075 + $0x40] sm:$0xff]
      %v7220 = vld [vmem:[%s3075 + $0x48] sm:$0xff]
      %v7221 = vld [vmem:[%s3075 + $0x50] sm:$0xff]
      %v7222 = vld [vmem:[%s3075 + $0x58] sm:$0xff]
      %v7223 = vld [vmem:[%s3075 + $0x60] sm:$0xff]
      %v7224 = vld [vmem:[%s3075 + $0x68] sm:$0xff]
      %v7225 = vld [vmem:[%s3075 + $0x70] sm:$0xff]
      %v7226 = vld [vmem:[%s3075 + $0x78] sm:$0xff]
      %v7227 = vld [vmem:[%s3075 + $0x80] sm:$0xff]
      %v7228 = vld [vmem:[%s3075 + $0x88] sm:$0xff]
      %v7229 = vld [vmem:[%s3075 + $0x90] sm:$0xff]
      %v7230 = vld [vmem:[%s3075 + $0x98] sm:$0xff]
      %v7231 = vld [vmem:[%s3075 + $0xa0] sm:$0xff]
      %v7232 = vld [vmem:[%s3075 + $0xa8] sm:$0xff]
      %v7233 = vld [vmem:[%s3075 + $0xb0] sm:$0xff]
      %v7234 = vld [vmem:[%s3075 + $0xb8] sm:$0xff]
      %v7235 = vld [vmem:[%s3075 + $0xc0] sm:$0xff]
      %v7236 = vld [vmem:[%s3075 + $0xc8] sm:$0xff]
      %v7237 = vld [vmem:[%s3075 + $0xd0] sm:$0xff]
      %v7238 = vld [vmem:[%s3075 + $0xd8] sm:$0xff]
      %v7239 = vld [vmem:[%s3075 + $0xe0] sm:$0xff]
      %v7240 = vld [vmem:[%s3075 + $0xe8] sm:$0xff]
      %v7241 = vld [vmem:[%s3075 + $0xf0] sm:$0xff]
      %v7242 = vld [vmem:[%s3075 + $0xf8] sm:$0xff]
      %v7243 = vld [vmem:[%s3075 + $0x100] sm:$0xff]
      %v7244 = vld [vmem:[%s3075 + $0x108] sm:$0xff]
      %v7245 = vld [vmem:[%s3075 + $0x110] sm:$0xff]
      %v7246 = vld [vmem:[%s3075 + $0x118] sm:$0xff]
      %v7247 = vld [vmem:[%s3075 + $0x120] sm:$0xff]
      %v7248 = vld [vmem:[%s3075 + $0x128] sm:$0xff]
      %v7249 = vld [vmem:[%s3075 + $0x130] sm:$0xff]
      %v7250 = vld [vmem:[%s3075 + $0x138] sm:$0xff]
      %v7251 = vld [vmem:[%s3075 + $0x140] sm:$0xff]
      %v7252 = vld [vmem:[%s3075 + $0x148] sm:$0xff]
      %v7253 = vld [vmem:[%s3075 + $0x150] sm:$0xff]
      %v7254 = vld [vmem:[%s3075 + $0x158] sm:$0xff]
      %v7255 = vld [vmem:[%s3075 + $0x160] sm:$0xff]
      %v7256 = vld [vmem:[%s3075 + $0x168] sm:$0xff]
      %v7257 = vld [vmem:[%s3075 + $0x170] sm:$0xff]
      %v7258 = vld [vmem:[%s3075 + $0x178] sm:$0xff]
      %v7259 = vpack.c.bf16 %v7212, %v7211
      %v7260 = vpack.c.bf16 %v7214, %v7213
      %v7261 = vpack.c.bf16 %v7216, %v7215
      %v7262 = vpack.c.bf16 %v7218, %v7217
      %v7263 = vpack.c.bf16 %v7220, %v7219
      %v7264 = vpack.c.bf16 %v7222, %v7221
      %v7265 = vpack.c.bf16 %v7224, %v7223
      %v7266 = vpack.c.bf16 %v7226, %v7225
      %v7267 = vpack.c.bf16 %v7228, %v7227
      %v7268 = vpack.c.bf16 %v7230, %v7229
      %v7269 = vpack.c.bf16 %v7232, %v7231
      %v7270 = vpack.c.bf16 %v7234, %v7233
      %v7271 = vpack.c.bf16 %v7236, %v7235
      %v7272 = vpack.c.bf16 %v7238, %v7237
      %v7273 = vpack.c.bf16 %v7240, %v7239
      %v7274 = vpack.c.bf16 %v7242, %v7241
      %v7275 = vpack.c.bf16 %v7244, %v7243
      %v7276 = vpack.c.bf16 %v7246, %v7245
      %v7277 = vpack.c.bf16 %v7248, %v7247
      %v7278 = vpack.c.bf16 %v7250, %v7249
      %v7279 = vpack.c.bf16 %v7252, %v7251
      %v7280 = vpack.c.bf16 %v7254, %v7253
      %v7281 = vpack.c.bf16 %v7256, %v7255
      %v7282 = vpack.c.bf16 %v7258, %v7257
      %s7283 = scalar_lea.vmem %s2, 384
      %v7284 = vld [vmem:[%s7283] sm:$0xf]
      %v7285 = vld [vmem:[%s7283 + $0x4] sm:$0xf]
      %v7286 = vld [vmem:[%s7283 + $0x8] sm:$0xf]
      %v7287 = vld [vmem:[%s7283 + $0xc] sm:$0xf]
      %v7288 = vld [vmem:[%s7283 + $0x10] sm:$0xf]
      %v7289 = vld [vmem:[%s7283 + $0x14] sm:$0xf]
      %v7290 = vld [vmem:[%s7283 + $0x18] sm:$0xf]
      %v7291 = vld [vmem:[%s7283 + $0x1c] sm:$0xf]
      %v7292 = vld [vmem:[%s7283 + $0x20] sm:$0xf]
      %v7293 = vld [vmem:[%s7283 + $0x24] sm:$0xf]
      %v7294 = vld [vmem:[%s7283 + $0x28] sm:$0xf]
      %v7295 = vld [vmem:[%s7283 + $0x2c] sm:$0xf]
      %v7296 = vld [vmem:[%s7283 + $0x30] sm:$0xf]
      %v7297 = vld [vmem:[%s7283 + $0x34] sm:$0xf]
      %v7298 = vld [vmem:[%s7283 + $0x38] sm:$0xf]
      %v7299 = vld [vmem:[%s7283 + $0x3c] sm:$0xf]
      %v7316 = vunpack.c.l.b16 %v7284
      %v7317 = vunpack.c.l.b16 %v7285
      %v7318 = vunpack.c.l.b16 %v7286
      %v7319 = vunpack.c.l.b16 %v7287
      %v7320 = vunpack.c.l.b16 %v7288
      %v7321 = vunpack.c.l.b16 %v7289
      %v7322 = vunpack.c.l.b16 %v7290
      %v7323 = vunpack.c.l.b16 %v7291
      %v7324 = vunpack.c.l.b16 %v7292
      %v7325 = vunpack.c.l.b16 %v7293
      %v7326 = vunpack.c.l.b16 %v7294
      %v7327 = vunpack.c.l.b16 %v7295
      %v7328 = vunpack.c.l.b16 %v7296
      %v7329 = vunpack.c.l.b16 %v7297
      %v7330 = vunpack.c.l.b16 %v7298
      %v7331 = vunpack.c.l.b16 %v7299
      %v7332 = vpack.c.b16 %v7317, %v7316
      %v7333 = vpack.c.b16 %v7319, %v7318
      %v7334 = vpack.c.b16 %v7321, %v7320
      %v7335 = vpack.c.b16 %v7323, %v7322
      %v7336 = vpack.c.b16 %v7325, %v7324
      %v7337 = vpack.c.b16 %v7327, %v7326
      %v7338 = vpack.c.b16 %v7329, %v7328
      %v7339 = vpack.c.b16 %v7331, %v7330
      %7348 = vmatprep.subr.bf16.mxu0 0
      %7349 = vmatpush1.bf16.msra.mxu0 %v7332
      %7350 = vmatprep.subr.bf16.mxu0 0
      %7351 = vmatpush1.bf16.msra.mxu0 %v7333
      %7352 = vmatprep.subr.bf16.mxu0 0
      %7353 = vmatpush1.bf16.msra.mxu0 %v7334
      %7354 = vmatprep.subr.bf16.mxu0 0
      %7355 = vmatpush1.bf16.msra.mxu0 %v7335
      %7356 = vmatprep.subr.bf16.mxu0 0
      %7357 = vmatpush1.bf16.msra.mxu0 %v7336
      %7358 = vmatprep.subr.bf16.mxu0 0
      %7359 = vmatpush1.bf16.msra.mxu0 %v7337
      %7360 = vmatprep.subr.bf16.mxu0 0
      %7361 = vmatpush1.bf16.msra.mxu0 %v7338
      %7362 = vmatprep.subr.bf16.mxu0 0
      %7363 = vmatpush1.bf16.msra.mxu0 %v7339
      %7364 = vmatprep.subr.bf16.mxu0 0
      %7365 = vmatpush1.bf16.msra.mxu0 0
      %7366 = vmatprep.subr.bf16.mxu0 0
      %7367 = vmatpush1.bf16.msra.mxu0 0
      %7368 = vmatprep.subr.bf16.mxu0 0
      %7369 = vmatpush1.bf16.msra.mxu0 0
      %7370 = vmatprep.subr.bf16.mxu0 0
      %7371 = vmatpush1.bf16.msra.mxu0 0
      %7372 = vmatprep.subr.bf16.mxu0 0
      %7373 = vmatpush1.bf16.msra.mxu0 0
      %7374 = vmatprep.subr.bf16.mxu0 0
      %7375 = vmatpush1.bf16.msra.mxu0 0
      %7376 = vmatprep.subr.bf16.mxu0 0
      %7377 = vmatpush1.bf16.msra.mxu0 0
      %7378 = vmatprep.subr.bf16.mxu0 0
      %7379 = vmatpush1.bf16.msra.mxu0 0
      %7380 = vmatprep.mubr.bf16.mxu0 0
      %7381 = vmatmul.mubr.bf16.gmra.mrb[0].mxu0 %v7259
      %v7382 = vpop.f32.mrb[0].mxu0
      %v7383 = vadd.f32 0.0, %v7382
      %v7384 = vpop.f32.mrb[0].mxu0
      %v7385 = vpop.f32.mrb[0].mxu0
      %v7386 = vadd.f32 0.0, %v7385
      %v7387 = vpop.f32.mrb[0].mxu0
      %7388 = vmatprep.mubr.bf16.mxu0 0
      %7389 = vmatmul.mubr.bf16.gmra.mrb[0].mxu0 %v7260
      %v7390 = vpop.f32.mrb[0].mxu0
      %v7391 = vpop.f32.mrb[0].mxu0
      %v7392 = vpop.f32.mrb[0].mxu0
      %v7393 = vadd.f32 0.0, %v7392
      %v7394 = vpop.f32.mrb[0].mxu0
      %7395 = vmatprep.mubr.bf16.mxu0 0
      %7396 = vmatmul.mubr.bf16.gmra.mrb[0].mxu0 %v7261
      %v7397 = vpop.f32.mrb[0].mxu0
      %v7398 = vadd.f32 0.0, %v7397
      %v7399 = vpop.f32.mrb[0].mxu0
      %v7400 = vpop.f32.mrb[0].mxu0
      %v7401 = vpop.f32.mrb[0].mxu0
      %7402 = vmatprep.mubr.bf16.mxu0 0
      %7403 = vmatmul.mubr.bf16.gmra.mrb[0].mxu0 %v7262
      %v7404 = vpop.f32.mrb[0].mxu0
      %v7405 = vadd.f32 0.0, %v7404
      %v7406 = vpop.f32.mrb[0].mxu0
      %v7407 = vpop.f32.mrb[0].mxu0
      %v7408 = vadd.f32 0.0, %v7407
      %v7409 = vpop.f32.mrb[0].mxu0
      %7410 = vmatprep.mubr.bf16.mxu0 0
      %7411 = vmatmul.mubr.bf16.gmra.mrb[0].mxu0 %v7263
      %v7412 = vpop.f32.mrb[0].mxu0
      %v7413 = vpop.f32.mrb[0].mxu0
      %v7414 = vpop.f32.mrb[0].mxu0
      %v7415 = vadd.f32 0.0, %v7414
      %v7416 = vpop.f32.mrb[0].mxu0
      %7417 = vmatprep.mubr.bf16.mxu0 0
      %7418 = vmatmul.mubr.bf16.gmra.mrb[0].mxu0 %v7264
      %v7419 = vpop.f32.mrb[0].mxu0
      %v7420 = vadd.f32 0.0, %v7419
      %v7421 = vpop.f32.mrb[0].mxu0
      %v7422 = vpop.f32.mrb[0].mxu0
      %v7423 = vpop.f32.mrb[0].mxu0
      %7424 = vmatprep.mubr.bf16.mxu0 0
      %7425 = vmatmul.mubr.bf16.gmra.mrb[0].mxu0 %v7265
      %v7426 = vpop.f32.mrb[0].mxu0
      %v7427 = vadd.f32 0.0, %v7426
      %v7428 = vpop.f32.mrb[0].mxu0
      %v7429 = vpop.f32.mrb[0].mxu0
      %v7430 = vadd.f32 0.0, %v7429
      %v7431 = vpop.f32.mrb[0].mxu0
      %7432 = vmatprep.mubr.bf16.mxu0 0
      %7433 = vmatmul.mubr.bf16.gmra.mrb[0].mxu0 %v7266
      %v7434 = vpop.f32.mrb[0].mxu0
      %v7435 = vpop.f32.mrb[0].mxu0
      %v7436 = vpop.f32.mrb[0].mxu0
      %v7437 = vadd.f32 0.0, %v7436
      %v7438 = vpop.f32.mrb[0].mxu0
      %7439 = vmatprep.mubr.bf16.mxu0 0
      %7440 = vmatmul.mubr.bf16.gmra.mrb[0].mxu0 %v7267
      %v7441 = vpop.f32.mrb[0].mxu0
      %v7442 = vadd.f32 0.0, %v7441
      %v7443 = vpop.f32.mrb[0].mxu0
      %v7444 = vpop.f32.mrb[0].mxu0
      %v7445 = vpop.f32.mrb[0].mxu0
      %7446 = vmatprep.mubr.bf16.mxu0 0
      %7447 = vmatmul.mubr.bf16.gmra.mrb[0].mxu0 %v7268
      %v7448 = vpop.f32.mrb[0].mxu0
      %v7449 = vadd.f32 0.0, %v7448
      %v7450 = vpop.f32.mrb[0].mxu0
      %v7451 = vpop.f32.mrb[0].mxu0
      %v7452 = vadd.f32 0.0, %v7451
      %v7453 = vpop.f32.mrb[0].mxu0
      %7454 = vmatprep.mubr.bf16.mxu0 0
      %7455 = vmatmul.mubr.bf16.gmra.mrb[0].mxu0 %v7269
      %v7456 = vpop.f32.mrb[0].mxu0
      %v7457 = vpop.f32.mrb[0].mxu0
      %v7458 = vpop.f32.mrb[0].mxu0
      %v7459 = vadd.f32 0.0, %v7458
      %v7460 = vpop.f32.mrb[0].mxu0
      %7461 = vmatprep.mubr.bf16.mxu0 0
      %7462 = vmatmul.mubr.bf16.gmra.mrb[0].mxu0 %v7270
      %v7463 = vpop.f32.mrb[0].mxu0
      %v7464 = vadd.f32 0.0, %v7463
      %v7465 = vpop.f32.mrb[0].mxu0
      %v7466 = vpop.f32.mrb[0].mxu0
      %v7467 = vpop.f32.mrb[0].mxu0
      %7468 = vmatprep.mubr.bf16.mxu0 0
      %7469 = vmatmul.mubr.bf16.gmra.mrb[0].mxu0 %v7271
      %v7470 = vpop.f32.mrb[0].mxu0
      %v7471 = vadd.f32 0.0, %v7470
      %v7472 = vpop.f32.mrb[0].mxu0
      %v7473 = vpop.f32.mrb[0].mxu0
      %v7474 = vadd.f32 0.0, %v7473
      %v7475 = vpop.f32.mrb[0].mxu0
      %7476 = vmatprep.mubr.bf16.mxu0 0
      %7477 = vmatmul.mubr.bf16.gmra.mrb[0].mxu0 %v7272
      %v7478 = vpop.f32.mrb[0].mxu0
      %v7479 = vpop.f32.mrb[0].mxu0
      %v7480 = vpop.f32.mrb[0].mxu0
      %v7481 = vadd.f32 0.0, %v7480
      %v7482 = vpop.f32.mrb[0].mxu0
      %7483 = vmatprep.mubr.bf16.mxu0 0
      %7484 = vmatmul.mubr.bf16.gmra.mrb[0].mxu0 %v7273
      %v7485 = vpop.f32.mrb[0].mxu0
      %v7486 = vadd.f32 0.0, %v7485
      %v7487 = vpop.f32.mrb[0].mxu0
      %v7488 = vpop.f32.mrb[0].mxu0
      %v7489 = vpop.f32.mrb[0].mxu0
      %7490 = vmatprep.mubr.bf16.mxu0 0
      %7491 = vmatmul.mubr.bf16.gmra.mrb[0].mxu0 %v7274
      %v7492 = vpop.f32.mrb[0].mxu0
      %v7493 = vadd.f32 0.0, %v7492
      %v7494 = vpop.f32.mrb[0].mxu0
      %v7495 = vpop.f32.mrb[0].mxu0
      %v7496 = vadd.f32 0.0, %v7495
      %v7497 = vpop.f32.mrb[0].mxu0
      %7498 = vmatprep.mubr.bf16.mxu0 0
      %7499 = vmatmul.mubr.bf16.gmra.mrb[0].mxu0 %v7275
      %v7500 = vpop.f32.mrb[0].mxu0
      %v7501 = vpop.f32.mrb[0].mxu0
      %v7502 = vpop.f32.mrb[0].mxu0
      %v7503 = vadd.f32 0.0, %v7502
      %v7504 = vpop.f32.mrb[0].mxu0
      %7505 = vmatprep.mubr.bf16.mxu0 0
      %7506 = vmatmul.mubr.bf16.gmra.mrb[0].mxu0 %v7276
      %v7507 = vpop.f32.mrb[0].mxu0
      %v7508 = vadd.f32 0.0, %v7507
      %v7509 = vpop.f32.mrb[0].mxu0
      %v7510 = vpop.f32.mrb[0].mxu0
      %v7511 = vpop.f32.mrb[0].mxu0
      %7512 = vmatprep.mubr.bf16.mxu0 0
      %7513 = vmatmul.mubr.bf16.gmra.mrb[0].mxu0 %v7277
      %v7514 = vpop.f32.mrb[0].mxu0
      %v7515 = vadd.f32 0.0, %v7514
      %v7516 = vpop.f32.mrb[0].mxu0
      %v7517 = vpop.f32.mrb[0].mxu0
      %v7518 = vadd.f32 0.0, %v7517
      %v7519 = vpop.f32.mrb[0].mxu0
      %7520 = vmatprep.mubr.bf16.mxu0 0
      %7521 = vmatmul.mubr.bf16.gmra.mrb[0].mxu0 %v7278
      %v7522 = vpop.f32.mrb[0].mxu0
      %v7523 = vpop.f32.mrb[0].mxu0
      %v7524 = vpop.f32.mrb[0].mxu0
      %v7525 = vadd.f32 0.0, %v7524
      %v7526 = vpop.f32.mrb[0].mxu0
      %7527 = vmatprep.mubr.bf16.mxu0 0
      %7528 = vmatmul.mubr.bf16.gmra.mrb[0].mxu0 %v7279
      %v7529 = vpop.f32.mrb[0].mxu0
      %v7530 = vadd.f32 0.0, %v7529
      %v7531 = vpop.f32.mrb[0].mxu0
      %v7532 = vpop.f32.mrb[0].mxu0
      %v7533 = vpop.f32.mrb[0].mxu0
      %7534 = vmatprep.mubr.bf16.mxu0 0
      %7535 = vmatmul.mubr.bf16.gmra.mrb[0].mxu0 %v7280
      %v7536 = vpop.f32.mrb[0].mxu0
      %v7537 = vadd.f32 0.0, %v7536
      %v7538 = vpop.f32.mrb[0].mxu0
      %v7539 = vpop.f32.mrb[0].mxu0
      %v7540 = vadd.f32 0.0, %v7539
      %v7541 = vpop.f32.mrb[0].mxu0
      %7542 = vmatprep.mubr.bf16.mxu0 0
      %7543 = vmatmul.mubr.bf16.gmra.mrb[0].mxu0 %v7281
      %v7544 = vpop.f32.mrb[0].mxu0
      %v7545 = vpop.f32.mrb[0].mxu0
      %v7546 = vpop.f32.mrb[0].mxu0
      %v7547 = vadd.f32 0.0, %v7546
      %v7548 = vpop.f32.mrb[0].mxu0
      %7549 = vmatprep.mubr.bf16.mxu0 0
      %7550 = vmatmul.mubr.bf16.gmra.mrb[0].mxu0 %v7282
      %v7551 = vpop.f32.mrb[0].mxu0
      %v7552 = vadd.f32 0.0, %v7551
      %v7553 = vpop.f32.mrb[0].mxu0
      %v7554 = vpop.f32.mrb[0].mxu0
      %v7555 = vpop.f32.mrb[0].mxu0
      %7556 = vdwg.mxu0
      %v7557 = vadd.f32 %v7179, %v7383
      %v7558 = vadd.f32 %v7180, %v7386
      %v7559 = vadd.f32 %v7181, %v7393
      %v7560 = vadd.f32 %v7182, %v7398
      %v7561 = vadd.f32 %v7183, %v7405
      %v7562 = vadd.f32 %v7184, %v7408
      %v7563 = vadd.f32 %v7185, %v7415
      %v7564 = vadd.f32 %v7186, %v7420
      %v7565 = vadd.f32 %v7187, %v7427
      %v7566 = vadd.f32 %v7188, %v7430
      %v7567 = vadd.f32 %v7189, %v7437
      %v7568 = vadd.f32 %v7190, %v7442
      %v7569 = vadd.f32 %v7191, %v7449
      %v7570 = vadd.f32 %v7192, %v7452
      %v7571 = vadd.f32 %v7193, %v7459
      %v7572 = vadd.f32 %v7194, %v7464
      %v7573 = vadd.f32 %v7195, %v7471
      %v7574 = vadd.f32 %v7196, %v7474
      %v7575 = vadd.f32 %v7197, %v7481
      %v7576 = vadd.f32 %v7198, %v7486
      %v7577 = vadd.f32 %v7199, %v7493
      %v7578 = vadd.f32 %v7200, %v7496
      %v7579 = vadd.f32 %v7201, %v7503
      %v7580 = vadd.f32 %v7202, %v7508
      %v7581 = vadd.f32 %v7203, %v7515
      %v7582 = vadd.f32 %v7204, %v7518
      %v7583 = vadd.f32 %v7205, %v7525
      %v7584 = vadd.f32 %v7206, %v7530
      %v7585 = vadd.f32 %v7207, %v7537
      %v7586 = vadd.f32 %v7208, %v7540
      %v7587 = vadd.f32 %v7209, %v7547
      %v7588 = vadd.f32 %v7210, %v7552
      %s7589 = scalar_lea.vmem %s2, 448
      %v7590 = vld [vmem:[%s7589] sm:$0xf]
      %v7591 = vld [vmem:[%s7589 + $0x4] sm:$0xf]
      %v7592 = vld [vmem:[%s7589 + $0x8] sm:$0xf]
      %v7593 = vld [vmem:[%s7589 + $0xc] sm:$0xf]
      %v7594 = vld [vmem:[%s7589 + $0x10] sm:$0xf]
      %v7595 = vld [vmem:[%s7589 + $0x14] sm:$0xf]
      %v7596 = vld [vmem:[%s7589 + $0x18] sm:$0xf]
      %v7597 = vld [vmem:[%s7589 + $0x1c] sm:$0xf]
      %v7598 = vld [vmem:[%s7589 + $0x20] sm:$0xf]
      %v7599 = vld [vmem:[%s7589 + $0x24] sm:$0xf]
      %v7600 = vld [vmem:[%s7589 + $0x28] sm:$0xf]
      %v7601 = vld [vmem:[%s7589 + $0x2c] sm:$0xf]
      %v7602 = vld [vmem:[%s7589 + $0x30] sm:$0xf]
      %v7603 = vld [vmem:[%s7589 + $0x34] sm:$0xf]
      %v7604 = vld [vmem:[%s7589 + $0x38] sm:$0xf]
      %v7605 = vld [vmem:[%s7589 + $0x3c] sm:$0xf]
      %v7622 = vunpack.c.l.b16 %v7590
      %v7623 = vunpack.c.l.b16 %v7591
      %v7624 = vunpack.c.l.b16 %v7592
      %v7625 = vunpack.c.l.b16 %v7593
      %v7626 = vunpack.c.l.b16 %v7594
      %v7627 = vunpack.c.l.b16 %v7595
      %v7628 = vunpack.c.l.b16 %v7596
      %v7629 = vunpack.c.l.b16 %v7597
      %v7630 = vunpack.c.l.b16 %v7598
      %v7631 = vunpack.c.l.b16 %v7599
      %v7632 = vunpack.c.l.b16 %v7600
      %v7633 = vunpack.c.l.b16 %v7601
      %v7634 = vunpack.c.l.b16 %v7602
      %v7635 = vunpack.c.l.b16 %v7603
      %v7636 = vunpack.c.l.b16 %v7604
      %v7637 = vunpack.c.l.b16 %v7605
      %v7638 = vpack.c.b16 %v7623, %v7622
      %v7639 = vpack.c.b16 %v7625, %v7624
      %v7640 = vpack.c.b16 %v7627, %v7626
      %v7641 = vpack.c.b16 %v7629, %v7628
      %v7642 = vpack.c.b16 %v7631, %v7630
      %v7643 = vpack.c.b16 %v7633, %v7632
      %v7644 = vpack.c.b16 %v7635, %v7634
      %v7645 = vpack.c.b16 %v7637, %v7636
      %7654 = vmatprep.subr.bf16.mxu0 0
      %7655 = vmatpush1.bf16.msra.mxu0 %v7638
      %7656 = vmatprep.subr.bf16.mxu0 0
      %7657 = vmatpush1.bf16.msra.mxu0 %v7639
      %7658 = vmatprep.subr.bf16.mxu0 0
      %7659 = vmatpush1.bf16.msra.mxu0 %v7640
      %7660 = vmatprep.subr.bf16.mxu0 0
      %7661 = vmatpush1.bf16.msra.mxu0 %v7641
      %7662 = vmatprep.subr.bf16.mxu0 0
      %7663 = vmatpush1.bf16.msra.mxu0 %v7642
      %7664 = vmatprep.subr.bf16.mxu0 0
      %7665 = vmatpush1.bf16.msra.mxu0 %v7643
      %7666 = vmatprep.subr.bf16.mxu0 0
      %7667 = vmatpush1.bf16.msra.mxu0 %v7644
      %7668 = vmatprep.subr.bf16.mxu0 0
      %7669 = vmatpush1.bf16.msra.mxu0 %v7645
      %7670 = vmatprep.subr.bf16.mxu0 0
      %7671 = vmatpush1.bf16.msra.mxu0 0
      %7672 = vmatprep.subr.bf16.mxu0 0
      %7673 = vmatpush1.bf16.msra.mxu0 0
      %7674 = vmatprep.subr.bf16.mxu0 0
      %7675 = vmatpush1.bf16.msra.mxu0 0
      %7676 = vmatprep.subr.bf16.mxu0 0
      %7677 = vmatpush1.bf16.msra.mxu0 0
      %7678 = vmatprep.subr.bf16.mxu0 0
      %7679 = vmatpush1.bf16.msra.mxu0 0
      %7680 = vmatprep.subr.bf16.mxu0 0
      %7681 = vmatpush1.bf16.msra.mxu0 0
      %7682 = vmatprep.subr.bf16.mxu0 0
      %7683 = vmatpush1.bf16.msra.mxu0 0
      %7684 = vmatprep.subr.bf16.mxu0 0
      %7685 = vmatpush1.bf16.msra.mxu0 0
      %7686 = vmatprep.mubr.bf16.mxu0 0
      %7687 = vmatmul.mubr.bf16.gmra.mrb[0].mxu0 %v7259
      %v7688 = vpop.f32.mrb[0].mxu0
      %v7689 = vadd.f32 0.0, %v7688
      %v7690 = vpop.f32.mrb[0].mxu0
      %v7691 = vpop.f32.mrb[0].mxu0
      %v7692 = vadd.f32 0.0, %v7691
      %v7693 = vpop.f32.mrb[0].mxu0
      %7694 = vmatprep.mubr.bf16.mxu0 0
      %7695 = vmatmul.mubr.bf16.gmra.mrb[0].mxu0 %v7260
      %v7696 = vpop.f32.mrb[0].mxu0
      %v7697 = vadd.f32 0.0, %v7696
      %v7698 = vpop.f32.mrb[0].mxu0
      %v7699 = vpop.f32.mrb[0].mxu0
      %v7700 = vadd.f32 0.0, %v7699
      %v7701 = vpop.f32.mrb[0].mxu0
      %7702 = vmatprep.mubr.bf16.mxu0 0
      %7703 = vmatmul.mubr.bf16.gmra.mrb[0].mxu0 %v7261
      %v7704 = vpop.f32.mrb[0].mxu0
      %v7705 = vadd.f32 0.0, %v7704
      %v7706 = vpop.f32.mrb[0].mxu0
      %v7707 = vpop.f32.mrb[0].mxu0
      %v7708 = vadd.f32 0.0, %v7707
      %v7709 = vpop.f32.mrb[0].mxu0
      %7710 = vmatprep.mubr.bf16.mxu0 0
      %7711 = vmatmul.mubr.bf16.gmra.mrb[0].mxu0 %v7262
      %v7712 = vpop.f32.mrb[0].mxu0
      %v7713 = vadd.f32 0.0, %v7712
      %v7714 = vpop.f32.mrb[0].mxu0
      %v7715 = vpop.f32.mrb[0].mxu0
      %v7716 = vadd.f32 0.0, %v7715
      %v7717 = vpop.f32.mrb[0].mxu0
      %7718 = vmatprep.mubr.bf16.mxu0 0
      %7719 = vmatmul.mubr.bf16.gmra.mrb[0].mxu0 %v7263
      %v7720 = vpop.f32.mrb[0].mxu0
      %v7721 = vadd.f32 0.0, %v7720
      %v7722 = vpop.f32.mrb[0].mxu0
      %v7723 = vpop.f32.mrb[0].mxu0
      %v7724 = vadd.f32 0.0, %v7723
      %v7725 = vpop.f32.mrb[0].mxu0
      %7726 = vmatprep.mubr.bf16.mxu0 0
      %7727 = vmatmul.mubr.bf16.gmra.mrb[0].mxu0 %v7264
      %v7728 = vpop.f32.mrb[0].mxu0
      %v7729 = vadd.f32 0.0, %v7728
      %v7730 = vpop.f32.mrb[0].mxu0
      %v7731 = vpop.f32.mrb[0].mxu0
      %v7732 = vadd.f32 0.0, %v7731
      %v7733 = vpop.f32.mrb[0].mxu0
      %7734 = vmatprep.mubr.bf16.mxu0 0
      %7735 = vmatmul.mubr.bf16.gmra.mrb[0].mxu0 %v7265
      %v7736 = vpop.f32.mrb[0].mxu0
      %v7737 = vadd.f32 0.0, %v7736
      %v7738 = vpop.f32.mrb[0].mxu0
      %v7739 = vpop.f32.mrb[0].mxu0
      %v7740 = vadd.f32 0.0, %v7739
      %v7741 = vpop.f32.mrb[0].mxu0
      %7742 = vmatprep.mubr.bf16.mxu0 0
      %7743 = vmatmul.mubr.bf16.gmra.mrb[0].mxu0 %v7266
      %v7744 = vpop.f32.mrb[0].mxu0
      %v7745 = vadd.f32 0.0, %v7744
      %v7746 = vpop.f32.mrb[0].mxu0
      %v7747 = vpop.f32.mrb[0].mxu0
      %v7748 = vadd.f32 0.0, %v7747
      %v7749 = vpop.f32.mrb[0].mxu0
      %7750 = vmatprep.mubr.bf16.mxu0 0
      %7751 = vmatmul.mubr.bf16.gmra.mrb[0].mxu0 %v7267
      %v7752 = vpop.f32.mrb[0].mxu0
      %v7753 = vadd.f32 0.0, %v7752
      %v7754 = vpop.f32.mrb[0].mxu0
      %v7755 = vpop.f32.mrb[0].mxu0
      %v7756 = vadd.f32 0.0, %v7755
      %v7757 = vpop.f32.mrb[0].mxu0
      %7758 = vmatprep.mubr.bf16.mxu0 0
      %7759 = vmatmul.mubr.bf16.gmra.mrb[0].mxu0 %v7268
      %v7760 = vpop.f32.mrb[0].mxu0
      %v7761 = vadd.f32 0.0, %v7760
      %v7762 = vpop.f32.mrb[0].mxu0
      %v7763 = vpop.f32.mrb[0].mxu0
      %v7764 = vadd.f32 0.0, %v7763
      %v7765 = vpop.f32.mrb[0].mxu0
      %7766 = vmatprep.mubr.bf16.mxu0 0
      %7767 = vmatmul.mubr.bf16.gmra.mrb[0].mxu0 %v7269
      %v7768 = vpop.f32.mrb[0].mxu0
      %v7769 = vadd.f32 0.0, %v7768
      %v7770 = vpop.f32.mrb[0].mxu0
      %v7771 = vpop.f32.mrb[0].mxu0
      %v7772 = vadd.f32 0.0, %v7771
      %v7773 = vpop.f32.mrb[0].mxu0
      %7774 = vmatprep.mubr.bf16.mxu0 0
      %7775 = vmatmul.mubr.bf16.gmra.mrb[0].mxu0 %v7270
      %v7776 = vpop.f32.mrb[0].mxu0
      %v7777 = vadd.f32 0.0, %v7776
      %v7778 = vpop.f32.mrb[0].mxu0
      %v7779 = vpop.f32.mrb[0].mxu0
      %v7780 = vadd.f32 0.0, %v7779
      %v7781 = vpop.f32.mrb[0].mxu0
      %7782 = vmatprep.mubr.bf16.mxu0 0
      %7783 = vmatmul.mubr.bf16.gmra.mrb[0].mxu0 %v7271
      %v7784 = vpop.f32.mrb[0].mxu0
      %v7785 = vadd.f32 0.0, %v7784
      %v7786 = vpop.f32.mrb[0].mxu0
      %v7787 = vpop.f32.mrb[0].mxu0
      %v7788 = vadd.f32 0.0, %v7787
      %v7789 = vpop.f32.mrb[0].mxu0
      %7790 = vmatprep.mubr.bf16.mxu0 0
      %7791 = vmatmul.mubr.bf16.gmra.mrb[0].mxu0 %v7272
      %v7792 = vpop.f32.mrb[0].mxu0
      %v7793 = vadd.f32 0.0, %v7792
      %v7794 = vpop.f32.mrb[0].mxu0
      %v7795 = vpop.f32.mrb[0].mxu0
      %v7796 = vadd.f32 0.0, %v7795
      %v7797 = vpop.f32.mrb[0].mxu0
      %7798 = vmatprep.mubr.bf16.mxu0 0
      %7799 = vmatmul.mubr.bf16.gmra.mrb[0].mxu0 %v7273
      %v7800 = vpop.f32.mrb[0].mxu0
      %v7801 = vadd.f32 0.0, %v7800
      %v7802 = vpop.f32.mrb[0].mxu0
      %v7803 = vpop.f32.mrb[0].mxu0
      %v7804 = vadd.f32 0.0, %v7803
      %v7805 = vpop.f32.mrb[0].mxu0
      %7806 = vmatprep.mubr.bf16.mxu0 0
      %7807 = vmatmul.mubr.bf16.gmra.mrb[0].mxu0 %v7274
      %v7808 = vpop.f32.mrb[0].mxu0
      %v7809 = vadd.f32 0.0, %v7808
      %v7810 = vpop.f32.mrb[0].mxu0
      %v7811 = vpop.f32.mrb[0].mxu0
      %v7812 = vadd.f32 0.0, %v7811
      %v7813 = vpop.f32.mrb[0].mxu0
      %7814 = vmatprep.mubr.bf16.mxu0 0
      %7815 = vmatmul.mubr.bf16.gmra.mrb[0].mxu0 %v7275
      %v7816 = vpop.f32.mrb[0].mxu0
      %v7817 = vadd.f32 0.0, %v7816
      %v7818 = vpop.f32.mrb[0].mxu0
      %v7819 = vpop.f32.mrb[0].mxu0
      %v7820 = vadd.f32 0.0, %v7819
      %v7821 = vpop.f32.mrb[0].mxu0
      %7822 = vmatprep.mubr.bf16.mxu0 0
      %7823 = vmatmul.mubr.bf16.gmra.mrb[0].mxu0 %v7276
      %v7824 = vpop.f32.mrb[0].mxu0
      %v7825 = vadd.f32 0.0, %v7824
      %v7826 = vpop.f32.mrb[0].mxu0
      %v7827 = vpop.f32.mrb[0].mxu0
      %v7828 = vadd.f32 0.0, %v7827
      %v7829 = vpop.f32.mrb[0].mxu0
      %7830 = vmatprep.mubr.bf16.mxu0 0
      %7831 = vmatmul.mubr.bf16.gmra.mrb[0].mxu0 %v7277
      %v7832 = vpop.f32.mrb[0].mxu0
      %v7833 = vadd.f32 0.0, %v7832
      %v7834 = vpop.f32.mrb[0].mxu0
      %v7835 = vpop.f32.mrb[0].mxu0
      %v7836 = vadd.f32 0.0, %v7835
      %v7837 = vpop.f32.mrb[0].mxu0
      %7838 = vmatprep.mubr.bf16.mxu0 0
      %7839 = vmatmul.mubr.bf16.gmra.mrb[0].mxu0 %v7278
      %v7840 = vpop.f32.mrb[0].mxu0
      %v7841 = vadd.f32 0.0, %v7840
      %v7842 = vpop.f32.mrb[0].mxu0
      %v7843 = vpop.f32.mrb[0].mxu0
      %v7844 = vadd.f32 0.0, %v7843
      %v7845 = vpop.f32.mrb[0].mxu0
      %7846 = vmatprep.mubr.bf16.mxu0 0
      %7847 = vmatmul.mubr.bf16.gmra.mrb[0].mxu0 %v7279
      %v7848 = vpop.f32.mrb[0].mxu0
      %v7849 = vadd.f32 0.0, %v7848
      %v7850 = vpop.f32.mrb[0].mxu0
      %v7851 = vpop.f32.mrb[0].mxu0
      %v7852 = vadd.f32 0.0, %v7851
      %v7853 = vpop.f32.mrb[0].mxu0
      %7854 = vmatprep.mubr.bf16.mxu0 0
      %7855 = vmatmul.mubr.bf16.gmra.mrb[0].mxu0 %v7280
      %v7856 = vpop.f32.mrb[0].mxu0
      %v7857 = vadd.f32 0.0, %v7856
      %v7858 = vpop.f32.mrb[0].mxu0
      %v7859 = vpop.f32.mrb[0].mxu0
      %v7860 = vadd.f32 0.0, %v7859
      %v7861 = vpop.f32.mrb[0].mxu0
      %7862 = vmatprep.mubr.bf16.mxu0 0
      %7863 = vmatmul.mubr.bf16.gmra.mrb[0].mxu0 %v7281
      %v7864 = vpop.f32.mrb[0].mxu0
      %v7865 = vadd.f32 0.0, %v7864
      %v7866 = vpop.f32.mrb[0].mxu0
      %v7867 = vpop.f32.mrb[0].mxu0
      %v7868 = vadd.f32 0.0, %v7867
      %v7869 = vpop.f32.mrb[0].mxu0
      %7870 = vmatprep.mubr.bf16.mxu0 0
      %7871 = vmatmul.mubr.bf16.gmra.mrb[0].mxu0 %v7282
      %v7872 = vpop.f32.mrb[0].mxu0
      %v7873 = vadd.f32 0.0, %v7872
      %v7874 = vpop.f32.mrb[0].mxu0
      %v7875 = vpop.f32.mrb[0].mxu0
      %v7876 = vadd.f32 0.0, %v7875
      %v7877 = vpop.f32.mrb[0].mxu0
      %7878 = vdwg.mxu0
      %v7927 = vrot.slane %v7689, 1
      %v7928 = vrot.slane %v7692, 1
      %v7929 = vsel %vm1105, %v7927, %v7928
      %v7930 = vrot.slane %v7697, 1
      %v7931 = vsel %vm1105, %v7928, %v7930
      %v7932 = vrot.slane %v7700, 1
      %v7933 = vrot.slane %v7705, 1
      %v7934 = vsel %vm1105, %v7932, %v7933
      %v7935 = vrot.slane %v7708, 1
      %v7936 = vsel %vm1105, %v7933, %v7935
      %v7937 = vrot.slane %v7713, 1
      %v7938 = vrot.slane %v7716, 1
      %v7939 = vsel %vm1105, %v7937, %v7938
      %v7940 = vrot.slane %v7721, 1
      %v7941 = vsel %vm1105, %v7938, %v7940
      %v7942 = vrot.slane %v7724, 1
      %v7943 = vrot.slane %v7729, 1
      %v7944 = vsel %vm1105, %v7942, %v7943
      %v7945 = vrot.slane %v7732, 1
      %v7946 = vsel %vm1105, %v7943, %v7945
      %v7947 = vrot.slane %v7737, 1
      %v7948 = vrot.slane %v7740, 1
      %v7949 = vsel %vm1105, %v7947, %v7948
      %v7950 = vrot.slane %v7745, 1
      %v7951 = vsel %vm1105, %v7948, %v7950
      %v7952 = vrot.slane %v7748, 1
      %v7953 = vrot.slane %v7753, 1
      %v7954 = vsel %vm1105, %v7952, %v7953
      %v7955 = vrot.slane %v7756, 1
      %v7956 = vsel %vm1105, %v7953, %v7955
      %v7957 = vrot.slane %v7761, 1
      %v7958 = vrot.slane %v7764, 1
      %v7959 = vsel %vm1105, %v7957, %v7958
      %v7960 = vrot.slane %v7769, 1
      %v7961 = vsel %vm1105, %v7958, %v7960
      %v7962 = vrot.slane %v7772, 1
      %v7963 = vrot.slane %v7777, 1
      %v7964 = vsel %vm1105, %v7962, %v7963
      %v7965 = vrot.slane %v7780, 1
      %v7966 = vsel %vm1105, %v7963, %v7965
      %v7967 = vrot.slane %v7785, 1
      %v7968 = vrot.slane %v7788, 1
      %v7969 = vsel %vm1105, %v7967, %v7968
      %v7970 = vrot.slane %v7793, 1
      %v7971 = vsel %vm1105, %v7968, %v7970
      %v7972 = vrot.slane %v7796, 1
      %v7973 = vrot.slane %v7801, 1
      %v7974 = vsel %vm1105, %v7972, %v7973
      %v7975 = vrot.slane %v7804, 1
      %v7976 = vsel %vm1105, %v7973, %v7975
      %v7977 = vrot.slane %v7809, 1
      %v7978 = vrot.slane %v7812, 1
      %v7979 = vsel %vm1105, %v7977, %v7978
      %v7980 = vrot.slane %v7817, 1
      %v7981 = vsel %vm1105, %v7978, %v7980
      %v7982 = vrot.slane %v7820, 1
      %v7983 = vrot.slane %v7825, 1
      %v7984 = vsel %vm1105, %v7982, %v7983
      %v7985 = vrot.slane %v7828, 1
      %v7986 = vsel %vm1105, %v7983, %v7985
      %v7987 = vrot.slane %v7833, 1
      %v7988 = vrot.slane %v7836, 1
      %v7989 = vsel %vm1105, %v7987, %v7988
      %v7990 = vrot.slane %v7841, 1
      %v7991 = vsel %vm1105, %v7988, %v7990
      %v7992 = vrot.slane %v7844, 1
      %v7993 = vrot.slane %v7849, 1
      %v7994 = vsel %vm1105, %v7992, %v7993
      %v7995 = vrot.slane %v7852, 1
      %v7996 = vsel %vm1105, %v7993, %v7995
      %v7997 = vrot.slane %v7857, 1
      %v7998 = vrot.slane %v7860, 1
      %v7999 = vsel %vm1105, %v7997, %v7998
      %v8000 = vrot.slane %v7865, 1
      %v8001 = vsel %vm1105, %v7998, %v8000
      %v8002 = vrot.slane %v7868, 1
      %v8003 = vrot.slane %v7873, 1
      %v8004 = vsel %vm1105, %v8002, %v8003
      %v8005 = vrot.slane %v7876, 1
      %v8006 = vsel %vm1105, %v8003, %v8005
      %v8039 = vadd.f32 %v7557, %v7929
      %v8040 = vadd.f32 %v7558, %v7931
      %v8041 = vadd.f32 %v7559, %v7934
      %v8042 = vadd.f32 %v7560, %v7936
      %v8043 = vadd.f32 %v7561, %v7939
      %v8044 = vadd.f32 %v7562, %v7941
      %v8045 = vadd.f32 %v7563, %v7944
      %v8046 = vadd.f32 %v7564, %v7946
      %v8047 = vadd.f32 %v7565, %v7949
      %v8048 = vadd.f32 %v7566, %v7951
      %v8049 = vadd.f32 %v7567, %v7954
      %v8050 = vadd.f32 %v7568, %v7956
      %v8051 = vadd.f32 %v7569, %v7959
      %v8052 = vadd.f32 %v7570, %v7961
      %v8053 = vadd.f32 %v7571, %v7964
      %v8054 = vadd.f32 %v7572, %v7966
      %v8055 = vadd.f32 %v7573, %v7969
      %v8056 = vadd.f32 %v7574, %v7971
      %v8057 = vadd.f32 %v7575, %v7974
      %v8058 = vadd.f32 %v7576, %v7976
      %v8059 = vadd.f32 %v7577, %v7979
      %v8060 = vadd.f32 %v7578, %v7981
      %v8061 = vadd.f32 %v7579, %v7984
      %v8062 = vadd.f32 %v7580, %v7986
      %v8063 = vadd.f32 %v7581, %v7989
      %v8064 = vadd.f32 %v7582, %v7991
      %v8065 = vadd.f32 %v7583, %v7994
      %v8066 = vadd.f32 %v7584, %v7996
      %v8067 = vadd.f32 %v7585, %v7999
      %v8068 = vadd.f32 %v7586, %v8001
      %v8069 = vadd.f32 %v7587, %v8004
      %v8070 = vadd.f32 %v7588, %v8006
      %s8071 = scalar_lea.vmem %s2, 512
      %v8072 = vld [vmem:[%s8071] sm:$0xf]
      %v8073 = vld [vmem:[%s8071 + $0x4] sm:$0xf]
      %v8074 = vld [vmem:[%s8071 + $0x8] sm:$0xf]
      %v8075 = vld [vmem:[%s8071 + $0xc] sm:$0xf]
      %v8076 = vld [vmem:[%s8071 + $0x10] sm:$0xf]
      %v8077 = vld [vmem:[%s8071 + $0x14] sm:$0xf]
      %v8078 = vld [vmem:[%s8071 + $0x18] sm:$0xf]
      %v8079 = vld [vmem:[%s8071 + $0x1c] sm:$0xf]
      %v8080 = vld [vmem:[%s8071 + $0x20] sm:$0xf]
      %v8081 = vld [vmem:[%s8071 + $0x24] sm:$0xf]
      %v8082 = vld [vmem:[%s8071 + $0x28] sm:$0xf]
      %v8083 = vld [vmem:[%s8071 + $0x2c] sm:$0xf]
      %v8084 = vld [vmem:[%s8071 + $0x30] sm:$0xf]
      %v8085 = vld [vmem:[%s8071 + $0x34] sm:$0xf]
      %v8086 = vld [vmem:[%s8071 + $0x38] sm:$0xf]
      %v8087 = vld [vmem:[%s8071 + $0x3c] sm:$0xf]
      %v8104 = vunpack.c.l.b16 %v8072
      %v8105 = vunpack.c.l.b16 %v8073
      %v8106 = vunpack.c.l.b16 %v8074
      %v8107 = vunpack.c.l.b16 %v8075
      %v8108 = vunpack.c.l.b16 %v8076
      %v8109 = vunpack.c.l.b16 %v8077
      %v8110 = vunpack.c.l.b16 %v8078
      %v8111 = vunpack.c.l.b16 %v8079
      %v8112 = vunpack.c.l.b16 %v8080
      %v8113 = vunpack.c.l.b16 %v8081
      %v8114 = vunpack.c.l.b16 %v8082
      %v8115 = vunpack.c.l.b16 %v8083
      %v8116 = vunpack.c.l.b16 %v8084
      %v8117 = vunpack.c.l.b16 %v8085
      %v8118 = vunpack.c.l.b16 %v8086
      %v8119 = vunpack.c.l.b16 %v8087
      %v8120 = vpack.c.b16 %v8105, %v8104
      %v8121 = vpack.c.b16 %v8107, %v8106
      %v8122 = vpack.c.b16 %v8109, %v8108
      %v8123 = vpack.c.b16 %v8111, %v8110
      %v8124 = vpack.c.b16 %v8113, %v8112
      %v8125 = vpack.c.b16 %v8115, %v8114
      %v8126 = vpack.c.b16 %v8117, %v8116
      %v8127 = vpack.c.b16 %v8119, %v8118
      %8136 = vmatprep.subr.bf16.mxu0 0
      %8137 = vmatpush1.bf16.msra.mxu0 %v8120
      %8138 = vmatprep.subr.bf16.mxu0 0
      %8139 = vmatpush1.bf16.msra.mxu0 %v8121
      %8140 = vmatprep.subr.bf16.mxu0 0
      %8141 = vmatpush1.bf16.msra.mxu0 %v8122
      %8142 = vmatprep.subr.bf16.mxu0 0
      %8143 = vmatpush1.bf16.msra.mxu0 %v8123
      %8144 = vmatprep.subr.bf16.mxu0 0
      %8145 = vmatpush1.bf16.msra.mxu0 %v8124
      %8146 = vmatprep.subr.bf16.mxu0 0
      %8147 = vmatpush1.bf16.msra.mxu0 %v8125
      %8148 = vmatprep.subr.bf16.mxu0 0
      %8149 = vmatpush1.bf16.msra.mxu0 %v8126
      %8150 = vmatprep.subr.bf16.mxu0 0
      %8151 = vmatpush1.bf16.msra.mxu0 %v8127
      %8152 = vmatprep.subr.bf16.mxu0 0
      %8153 = vmatpush1.bf16.msra.mxu0 0
      %8154 = vmatprep.subr.bf16.mxu0 0
      %8155 = vmatpush1.bf16.msra.mxu0 0
      %8156 = vmatprep.subr.bf16.mxu0 0
      %8157 = vmatpush1.bf16.msra.mxu0 0
      %8158 = vmatprep.subr.bf16.mxu0 0
      %8159 = vmatpush1.bf16.msra.mxu0 0
      %8160 = vmatprep.subr.bf16.mxu0 0
      %8161 = vmatpush1.bf16.msra.mxu0 0
      %8162 = vmatprep.subr.bf16.mxu0 0
      %8163 = vmatpush1.bf16.msra.mxu0 0
      %8164 = vmatprep.subr.bf16.mxu0 0
      %8165 = vmatpush1.bf16.msra.mxu0 0
      %8166 = vmatprep.subr.bf16.mxu0 0
      %8167 = vmatpush1.bf16.msra.mxu0 0
      %8168 = vmatprep.mubr.bf16.mxu0 0
      %8169 = vmatmul.mubr.bf16.gmra.mrb[0].mxu0 %v7259
      %v8170 = vpop.f32.mrb[0].mxu0
      %v8171 = vadd.f32 0.0, %v8170
      %v8172 = vpop.f32.mrb[0].mxu0
      %v8173 = vpop.f32.mrb[0].mxu0
      %v8174 = vadd.f32 0.0, %v8173
      %v8175 = vpop.f32.mrb[0].mxu0
      %8176 = vmatprep.mubr.bf16.mxu0 0
      %8177 = vmatmul.mubr.bf16.gmra.mrb[0].mxu0 %v7260
      %v8178 = vpop.f32.mrb[0].mxu0
      %v8179 = vadd.f32 0.0, %v8178
      %v8180 = vpop.f32.mrb[0].mxu0
      %v8181 = vpop.f32.mrb[0].mxu0
      %v8182 = vadd.f32 0.0, %v8181
      %v8183 = vpop.f32.mrb[0].mxu0
      %8184 = vmatprep.mubr.bf16.mxu0 0
      %8185 = vmatmul.mubr.bf16.gmra.mrb[0].mxu0 %v7261
      %v8186 = vpop.f32.mrb[0].mxu0
      %v8187 = vadd.f32 0.0, %v8186
      %v8188 = vpop.f32.mrb[0].mxu0
      %v8189 = vpop.f32.mrb[0].mxu0
      %v8190 = vadd.f32 0.0, %v8189
      %v8191 = vpop.f32.mrb[0].mxu0
      %8192 = vmatprep.mubr.bf16.mxu0 0
      %8193 = vmatmul.mubr.bf16.gmra.mrb[0].mxu0 %v7262
      %v8194 = vpop.f32.mrb[0].mxu0
      %v8195 = vadd.f32 0.0, %v8194
      %v8196 = vpop.f32.mrb[0].mxu0
      %v8197 = vpop.f32.mrb[0].mxu0
      %v8198 = vadd.f32 0.0, %v8197
      %v8199 = vpop.f32.mrb[0].mxu0
      %8200 = vmatprep.mubr.bf16.mxu0 0
      %8201 = vmatmul.mubr.bf16.gmra.mrb[0].mxu0 %v7263
      %v8202 = vpop.f32.mrb[0].mxu0
      %v8203 = vadd.f32 0.0, %v8202
      %v8204 = vpop.f32.mrb[0].mxu0
      %v8205 = vpop.f32.mrb[0].mxu0
      %v8206 = vadd.f32 0.0, %v8205
      %v8207 = vpop.f32.mrb[0].mxu0
      %8208 = vmatprep.mubr.bf16.mxu0 0
      %8209 = vmatmul.mubr.bf16.gmra.mrb[0].mxu0 %v7264
      %v8210 = vpop.f32.mrb[0].mxu0
      %v8211 = vadd.f32 0.0, %v8210
      %v8212 = vpop.f32.mrb[0].mxu0
      %v8213 = vpop.f32.mrb[0].mxu0
      %v8214 = vadd.f32 0.0, %v8213
      %v8215 = vpop.f32.mrb[0].mxu0
      %8216 = vmatprep.mubr.bf16.mxu0 0
      %8217 = vmatmul.mubr.bf16.gmra.mrb[0].mxu0 %v7265
      %v8218 = vpop.f32.mrb[0].mxu0
      %v8219 = vadd.f32 0.0, %v8218
      %v8220 = vpop.f32.mrb[0].mxu0
      %v8221 = vpop.f32.mrb[0].mxu0
      %v8222 = vadd.f32 0.0, %v8221
      %v8223 = vpop.f32.mrb[0].mxu0
      %8224 = vmatprep.mubr.bf16.mxu0 0
      %8225 = vmatmul.mubr.bf16.gmra.mrb[0].mxu0 %v7266
      %v8226 = vpop.f32.mrb[0].mxu0
      %v8227 = vadd.f32 0.0, %v8226
      %v8228 = vpop.f32.mrb[0].mxu0
      %v8229 = vpop.f32.mrb[0].mxu0
      %v8230 = vadd.f32 0.0, %v8229
      %v8231 = vpop.f32.mrb[0].mxu0
      %8232 = vmatprep.mubr.bf16.mxu0 0
      %8233 = vmatmul.mubr.bf16.gmra.mrb[0].mxu0 %v7267
      %v8234 = vpop.f32.mrb[0].mxu0
      %v8235 = vadd.f32 0.0, %v8234
      %v8236 = vpop.f32.mrb[0].mxu0
      %v8237 = vpop.f32.mrb[0].mxu0
      %v8238 = vadd.f32 0.0, %v8237
      %v8239 = vpop.f32.mrb[0].mxu0
      %8240 = vmatprep.mubr.bf16.mxu0 0
      %8241 = vmatmul.mubr.bf16.gmra.mrb[0].mxu0 %v7268
      %v8242 = vpop.f32.mrb[0].mxu0
      %v8243 = vadd.f32 0.0, %v8242
      %v8244 = vpop.f32.mrb[0].mxu0
      %v8245 = vpop.f32.mrb[0].mxu0
      %v8246 = vadd.f32 0.0, %v8245
      %v8247 = vpop.f32.mrb[0].mxu0
      %8248 = vmatprep.mubr.bf16.mxu0 0
      %8249 = vmatmul.mubr.bf16.gmra.mrb[0].mxu0 %v7269
      %v8250 = vpop.f32.mrb[0].mxu0
      %v8251 = vadd.f32 0.0, %v8250
      %v8252 = vpop.f32.mrb[0].mxu0
      %v8253 = vpop.f32.mrb[0].mxu0
      %v8254 = vadd.f32 0.0, %v8253
      %v8255 = vpop.f32.mrb[0].mxu0
      %8256 = vmatprep.mubr.bf16.mxu0 0
      %8257 = vmatmul.mubr.bf16.gmra.mrb[0].mxu0 %v7270
      %v8258 = vpop.f32.mrb[0].mxu0
      %v8259 = vadd.f32 0.0, %v8258
      %v8260 = vpop.f32.mrb[0].mxu0
      %v8261 = vpop.f32.mrb[0].mxu0
      %v8262 = vadd.f32 0.0, %v8261
      %v8263 = vpop.f32.mrb[0].mxu0
      %8264 = vmatprep.mubr.bf16.mxu0 0
      %8265 = vmatmul.mubr.bf16.gmra.mrb[0].mxu0 %v7271
      %v8266 = vpop.f32.mrb[0].mxu0
      %v8267 = vadd.f32 0.0, %v8266
      %v8268 = vpop.f32.mrb[0].mxu0
      %v8269 = vpop.f32.mrb[0].mxu0
      %v8270 = vadd.f32 0.0, %v8269
      %v8271 = vpop.f32.mrb[0].mxu0
      %8272 = vmatprep.mubr.bf16.mxu0 0
      %8273 = vmatmul.mubr.bf16.gmra.mrb[0].mxu0 %v7272
      %v8274 = vpop.f32.mrb[0].mxu0
      %v8275 = vadd.f32 0.0, %v8274
      %v8276 = vpop.f32.mrb[0].mxu0
      %v8277 = vpop.f32.mrb[0].mxu0
      %v8278 = vadd.f32 0.0, %v8277
      %v8279 = vpop.f32.mrb[0].mxu0
      %8280 = vmatprep.mubr.bf16.mxu0 0
      %8281 = vmatmul.mubr.bf16.gmra.mrb[0].mxu0 %v7273
      %v8282 = vpop.f32.mrb[0].mxu0
      %v8283 = vadd.f32 0.0, %v8282
      %v8284 = vpop.f32.mrb[0].mxu0
      %v8285 = vpop.f32.mrb[0].mxu0
      %v8286 = vadd.f32 0.0, %v8285
      %v8287 = vpop.f32.mrb[0].mxu0
      %8288 = vmatprep.mubr.bf16.mxu0 0
      %8289 = vmatmul.mubr.bf16.gmra.mrb[0].mxu0 %v7274
      %v8290 = vpop.f32.mrb[0].mxu0
      %v8291 = vadd.f32 0.0, %v8290
      %v8292 = vpop.f32.mrb[0].mxu0
      %v8293 = vpop.f32.mrb[0].mxu0
      %v8294 = vadd.f32 0.0, %v8293
      %v8295 = vpop.f32.mrb[0].mxu0
      %8296 = vmatprep.mubr.bf16.mxu0 0
      %8297 = vmatmul.mubr.bf16.gmra.mrb[0].mxu0 %v7275
      %v8298 = vpop.f32.mrb[0].mxu0
      %v8299 = vadd.f32 0.0, %v8298
      %v8300 = vpop.f32.mrb[0].mxu0
      %v8301 = vpop.f32.mrb[0].mxu0
      %v8302 = vadd.f32 0.0, %v8301
      %v8303 = vpop.f32.mrb[0].mxu0
      %8304 = vmatprep.mubr.bf16.mxu0 0
      %8305 = vmatmul.mubr.bf16.gmra.mrb[0].mxu0 %v7276
      %v8306 = vpop.f32.mrb[0].mxu0
      %v8307 = vadd.f32 0.0, %v8306
      %v8308 = vpop.f32.mrb[0].mxu0
      %v8309 = vpop.f32.mrb[0].mxu0
      %v8310 = vadd.f32 0.0, %v8309
      %v8311 = vpop.f32.mrb[0].mxu0
      %8312 = vmatprep.mubr.bf16.mxu0 0
      %8313 = vmatmul.mubr.bf16.gmra.mrb[0].mxu0 %v7277
      %v8314 = vpop.f32.mrb[0].mxu0
      %v8315 = vadd.f32 0.0, %v8314
      %v8316 = vpop.f32.mrb[0].mxu0
      %v8317 = vpop.f32.mrb[0].mxu0
      %v8318 = vadd.f32 0.0, %v8317
      %v8319 = vpop.f32.mrb[0].mxu0
      %8320 = vmatprep.mubr.bf16.mxu0 0
      %8321 = vmatmul.mubr.bf16.gmra.mrb[0].mxu0 %v7278
      %v8322 = vpop.f32.mrb[0].mxu0
      %v8323 = vadd.f32 0.0, %v8322
      %v8324 = vpop.f32.mrb[0].mxu0
      %v8325 = vpop.f32.mrb[0].mxu0
      %v8326 = vadd.f32 0.0, %v8325
      %v8327 = vpop.f32.mrb[0].mxu0
      %8328 = vmatprep.mubr.bf16.mxu0 0
      %8329 = vmatmul.mubr.bf16.gmra.mrb[0].mxu0 %v7279
      %v8330 = vpop.f32.mrb[0].mxu0
      %v8331 = vadd.f32 0.0, %v8330
      %v8332 = vpop.f32.mrb[0].mxu0
      %v8333 = vpop.f32.mrb[0].mxu0
      %v8334 = vadd.f32 0.0, %v8333
      %v8335 = vpop.f32.mrb[0].mxu0
      %8336 = vmatprep.mubr.bf16.mxu0 0
      %8337 = vmatmul.mubr.bf16.gmra.mrb[0].mxu0 %v7280
      %v8338 = vpop.f32.mrb[0].mxu0
      %v8339 = vadd.f32 0.0, %v8338
      %v8340 = vpop.f32.mrb[0].mxu0
      %v8341 = vpop.f32.mrb[0].mxu0
      %v8342 = vadd.f32 0.0, %v8341
      %v8343 = vpop.f32.mrb[0].mxu0
      %8344 = vmatprep.mubr.bf16.mxu0 0
      %8345 = vmatmul.mubr.bf16.gmra.mrb[0].mxu0 %v7281
      %v8346 = vpop.f32.mrb[0].mxu0
      %v8347 = vadd.f32 0.0, %v8346
      %v8348 = vpop.f32.mrb[0].mxu0
      %v8349 = vpop.f32.mrb[0].mxu0
      %v8350 = vadd.f32 0.0, %v8349
      %v8351 = vpop.f32.mrb[0].mxu0
      %8352 = vmatprep.mubr.bf16.mxu0 0
      %8353 = vmatmul.mubr.bf16.gmra.mrb[0].mxu0 %v7282
      %v8354 = vpop.f32.mrb[0].mxu0
      %v8355 = vadd.f32 0.0, %v8354
      %v8356 = vpop.f32.mrb[0].mxu0
      %v8357 = vpop.f32.mrb[0].mxu0
      %v8358 = vadd.f32 0.0, %v8357
      %v8359 = vpop.f32.mrb[0].mxu0
      %8360 = vdwg.mxu0
      %v8409 = vrot.slane %v8171, 2
      %v8410 = vrot.slane %v8174, 2
      %v8411 = vsel %vm1588, %v8409, %v8410
      %v8412 = vrot.slane %v8179, 2
      %v8413 = vsel %vm1588, %v8410, %v8412
      %v8414 = vrot.slane %v8182, 2
      %v8415 = vrot.slane %v8187, 2
      %v8416 = vsel %vm1588, %v8414, %v8415
      %v8417 = vrot.slane %v8190, 2
      %v8418 = vsel %vm1588, %v8415, %v8417
      %v8419 = vrot.slane %v8195, 2
      %v8420 = vrot.slane %v8198, 2
      %v8421 = vsel %vm1588, %v8419, %v8420
      %v8422 = vrot.slane %v8203, 2
      %v8423 = vsel %vm1588, %v8420, %v8422
      %v8424 = vrot.slane %v8206, 2
      %v8425 = vrot.slane %v8211, 2
      %v8426 = vsel %vm1588, %v8424, %v8425
      %v8427 = vrot.slane %v8214, 2
      %v8428 = vsel %vm1588, %v8425, %v8427
      %v8429 = vrot.slane %v8219, 2
      %v8430 = vrot.slane %v8222, 2
      %v8431 = vsel %vm1588, %v8429, %v8430
      %v8432 = vrot.slane %v8227, 2
      %v8433 = vsel %vm1588, %v8430, %v8432
      %v8434 = vrot.slane %v8230, 2
      %v8435 = vrot.slane %v8235, 2
      %v8436 = vsel %vm1588, %v8434, %v8435
      %v8437 = vrot.slane %v8238, 2
      %v8438 = vsel %vm1588, %v8435, %v8437
      %v8439 = vrot.slane %v8243, 2
      %v8440 = vrot.slane %v8246, 2
      %v8441 = vsel %vm1588, %v8439, %v8440
      %v8442 = vrot.slane %v8251, 2
      %v8443 = vsel %vm1588, %v8440, %v8442
      %v8444 = vrot.slane %v8254, 2
      %v8445 = vrot.slane %v8259, 2
      %v8446 = vsel %vm1588, %v8444, %v8445
      %v8447 = vrot.slane %v8262, 2
      %v8448 = vsel %vm1588, %v8445, %v8447
      %v8449 = vrot.slane %v8267, 2
      %v8450 = vrot.slane %v8270, 2
      %v8451 = vsel %vm1588, %v8449, %v8450
      %v8452 = vrot.slane %v8275, 2
      %v8453 = vsel %vm1588, %v8450, %v8452
      %v8454 = vrot.slane %v8278, 2
      %v8455 = vrot.slane %v8283, 2
      %v8456 = vsel %vm1588, %v8454, %v8455
      %v8457 = vrot.slane %v8286, 2
      %v8458 = vsel %vm1588, %v8455, %v8457
      %v8459 = vrot.slane %v8291, 2
      %v8460 = vrot.slane %v8294, 2
      %v8461 = vsel %vm1588, %v8459, %v8460
      %v8462 = vrot.slane %v8299, 2
      %v8463 = vsel %vm1588, %v8460, %v8462
      %v8464 = vrot.slane %v8302, 2
      %v8465 = vrot.slane %v8307, 2
      %v8466 = vsel %vm1588, %v8464, %v8465
      %v8467 = vrot.slane %v8310, 2
      %v8468 = vsel %vm1588, %v8465, %v8467
      %v8469 = vrot.slane %v8315, 2
      %v8470 = vrot.slane %v8318, 2
      %v8471 = vsel %vm1588, %v8469, %v8470
      %v8472 = vrot.slane %v8323, 2
      %v8473 = vsel %vm1588, %v8470, %v8472
      %v8474 = vrot.slane %v8326, 2
      %v8475 = vrot.slane %v8331, 2
      %v8476 = vsel %vm1588, %v8474, %v8475
      %v8477 = vrot.slane %v8334, 2
      %v8478 = vsel %vm1588, %v8475, %v8477
      %v8479 = vrot.slane %v8339, 2
      %v8480 = vrot.slane %v8342, 2
      %v8481 = vsel %vm1588, %v8479, %v8480
      %v8482 = vrot.slane %v8347, 2
      %v8483 = vsel %vm1588, %v8480, %v8482
      %v8484 = vrot.slane %v8350, 2
      %v8485 = vrot.slane %v8355, 2
      %v8486 = vsel %vm1588, %v8484, %v8485
      %v8487 = vrot.slane %v8358, 2
      %v8488 = vsel %vm1588, %v8485, %v8487
      %v8521 = vadd.f32 %v8039, %v8411
      %v8522 = vadd.f32 %v8040, %v8413
      %v8523 = vadd.f32 %v8041, %v8416
      %v8524 = vadd.f32 %v8042, %v8418
      %v8525 = vadd.f32 %v8043, %v8421
      %v8526 = vadd.f32 %v8044, %v8423
      %v8527 = vadd.f32 %v8045, %v8426
      %v8528 = vadd.f32 %v8046, %v8428
      %v8529 = vadd.f32 %v8047, %v8431
      %v8530 = vadd.f32 %v8048, %v8433
      %v8531 = vadd.f32 %v8049, %v8436
      %v8532 = vadd.f32 %v8050, %v8438
      %v8533 = vadd.f32 %v8051, %v8441
      %v8534 = vadd.f32 %v8052, %v8443
      %v8535 = vadd.f32 %v8053, %v8446
      %v8536 = vadd.f32 %v8054, %v8448
      %v8537 = vadd.f32 %v8055, %v8451
      %v8538 = vadd.f32 %v8056, %v8453
      %v8539 = vadd.f32 %v8057, %v8456
      %v8540 = vadd.f32 %v8058, %v8458
      %v8541 = vadd.f32 %v8059, %v8461
      %v8542 = vadd.f32 %v8060, %v8463
      %v8543 = vadd.f32 %v8061, %v8466
      %v8544 = vadd.f32 %v8062, %v8468
      %v8545 = vadd.f32 %v8063, %v8471
      %v8546 = vadd.f32 %v8064, %v8473
      %v8547 = vadd.f32 %v8065, %v8476
      %v8548 = vadd.f32 %v8066, %v8478
      %v8549 = vadd.f32 %v8067, %v8481
      %v8550 = vadd.f32 %v8068, %v8483
      %v8551 = vadd.f32 %v8069, %v8486
      %v8552 = vadd.f32 %v8070, %v8488
      %v8554 = vlaneseq
      %v8555 = vshrl.u32 %v8554, 7
      %v8556 = vsub.s32 0, %v8555
      %v8557 = vrot.slane %v4558, %v8556
      %v8559 = vmul.f32 %v8521, %v8557
      %v8560 = vmul.f32 %v8522, %v8557
      %v8561 = vmul.f32 %v8523, %v8557
      %v8562 = vmul.f32 %v8524, %v8557
      %v8563 = vmul.f32 %v8525, %v8557
      %v8564 = vmul.f32 %v8526, %v8557
      %v8565 = vmul.f32 %v8527, %v8557
      %v8566 = vmul.f32 %v8528, %v8557
      %v8567 = vmul.f32 %v8529, %v8557
      %v8568 = vmul.f32 %v8530, %v8557
      %v8569 = vmul.f32 %v8531, %v8557
      %v8570 = vmul.f32 %v8532, %v8557
      %v8571 = vmul.f32 %v8533, %v8557
      %v8572 = vmul.f32 %v8534, %v8557
      %v8573 = vmul.f32 %v8535, %v8557
      %v8574 = vmul.f32 %v8536, %v8557
      %v8575 = vmul.f32 %v8537, %v8557
      %v8576 = vmul.f32 %v8538, %v8557
      %v8577 = vmul.f32 %v8539, %v8557
      %v8578 = vmul.f32 %v8540, %v8557
      %v8579 = vmul.f32 %v8541, %v8557
      %v8580 = vmul.f32 %v8542, %v8557
      %v8581 = vmul.f32 %v8543, %v8557
      %v8582 = vmul.f32 %v8544, %v8557
      %v8583 = vmul.f32 %v8545, %v8557
      %v8584 = vmul.f32 %v8546, %v8557
      %v8585 = vmul.f32 %v8547, %v8557
      %v8586 = vmul.f32 %v8548, %v8557
      %v8587 = vmul.f32 %v8549, %v8557
      %v8588 = vmul.f32 %v8550, %v8557
      %v8589 = vmul.f32 %v8551, %v8557
      %v8590 = vmul.f32 %v8552, %v8557
      %v8592 = vlaneseq
      %v8593 = vshrl.u32 %v8592, 7
      %v8594 = vsub.s32 0, %v8593
      %v8595 = vrot.slane %v4559, %v8594
      %v8597 = vadd.f32 %v8559, %v8595
      %v8598 = vadd.f32 %v8560, %v8595
      %v8599 = vadd.f32 %v8561, %v8595
      %v8600 = vadd.f32 %v8562, %v8595
      %v8601 = vadd.f32 %v8563, %v8595
      %v8602 = vadd.f32 %v8564, %v8595
      %v8603 = vadd.f32 %v8565, %v8595
      %v8604 = vadd.f32 %v8566, %v8595
      %v8605 = vadd.f32 %v8567, %v8595
      %v8606 = vadd.f32 %v8568, %v8595
      %v8607 = vadd.f32 %v8569, %v8595
      %v8608 = vadd.f32 %v8570, %v8595
      %v8609 = vadd.f32 %v8571, %v8595
      %v8610 = vadd.f32 %v8572, %v8595
      %v8611 = vadd.f32 %v8573, %v8595
      %v8612 = vadd.f32 %v8574, %v8595
      %v8613 = vadd.f32 %v8575, %v8595
      %v8614 = vadd.f32 %v8576, %v8595
      %v8615 = vadd.f32 %v8577, %v8595
      %v8616 = vadd.f32 %v8578, %v8595
      %v8617 = vadd.f32 %v8579, %v8595
      %v8618 = vadd.f32 %v8580, %v8595
      %v8619 = vadd.f32 %v8581, %v8595
      %v8620 = vadd.f32 %v8582, %v8595
      %v8621 = vadd.f32 %v8583, %v8595
      %v8622 = vadd.f32 %v8584, %v8595
      %v8623 = vadd.f32 %v8585, %v8595
      %v8624 = vadd.f32 %v8586, %v8595
      %v8625 = vadd.f32 %v8587, %v8595
      %v8626 = vadd.f32 %v8588, %v8595
      %v8627 = vadd.f32 %v8589, %v8595
      %v8628 = vadd.f32 %v8590, %v8595
      %v8629 = vadd.f32 %v8597, %v355
      %v8630 = vadd.f32 %v8598, %v356
      %v8631 = vadd.f32 %v8599, %v357
      %v8632 = vadd.f32 %v8600, %v358
      %v8633 = vadd.f32 %v8601, %v359
      %v8634 = vadd.f32 %v8602, %v360
      %v8635 = vadd.f32 %v8603, %v361
      %v8636 = vadd.f32 %v8604, %v362
      %v8637 = vadd.f32 %v8605, %v363
      %v8638 = vadd.f32 %v8606, %v364
      %v8639 = vadd.f32 %v8607, %v365
      %v8640 = vadd.f32 %v8608, %v366
      %v8641 = vadd.f32 %v8609, %v367
      %v8642 = vadd.f32 %v8610, %v368
      %v8643 = vadd.f32 %v8611, %v369
      %v8644 = vadd.f32 %v8612, %v370
      %v8645 = vadd.f32 %v8613, %v371
      %v8646 = vadd.f32 %v8614, %v372
      %v8647 = vadd.f32 %v8615, %v373
      %v8648 = vadd.f32 %v8616, %v374
      %v8649 = vadd.f32 %v8617, %v375
      %v8650 = vadd.f32 %v8618, %v376
      %v8651 = vadd.f32 %v8619, %v377
      %v8652 = vadd.f32 %v8620, %v378
      %v8653 = vadd.f32 %v8621, %v379
      %v8654 = vadd.f32 %v8622, %v380
      %v8655 = vadd.f32 %v8623, %v381
      %v8656 = vadd.f32 %v8624, %v382
      %v8657 = vadd.f32 %v8625, %v383
      %v8658 = vadd.f32 %v8626, %v384
      %v8659 = vadd.f32 %v8627, %v385
      %v8660 = vadd.f32 %v8628, %v386
      %v8661 = vmax.f32 %v8629, 0.0
      %v8662 = vmax.f32 %v8630, 0.0
      %v8663 = vmax.f32 %v8631, 0.0
      %v8664 = vmax.f32 %v8632, 0.0
      %v8665 = vmax.f32 %v8633, 0.0
      %v8666 = vmax.f32 %v8634, 0.0
      %v8667 = vmax.f32 %v8635, 0.0
      %v8668 = vmax.f32 %v8636, 0.0
      %v8669 = vmax.f32 %v8637, 0.0
      %v8670 = vmax.f32 %v8638, 0.0
      %v8671 = vmax.f32 %v8639, 0.0
      %v8672 = vmax.f32 %v8640, 0.0
      %v8673 = vmax.f32 %v8641, 0.0
      %v8674 = vmax.f32 %v8642, 0.0
      %v8675 = vmax.f32 %v8643, 0.0
      %v8676 = vmax.f32 %v8644, 0.0
      %v8677 = vmax.f32 %v8645, 0.0
      %v8678 = vmax.f32 %v8646, 0.0
      %v8679 = vmax.f32 %v8647, 0.0
      %v8680 = vmax.f32 %v8648, 0.0
      %v8681 = vmax.f32 %v8649, 0.0
      %v8682 = vmax.f32 %v8650, 0.0
      %v8683 = vmax.f32 %v8651, 0.0
      %v8684 = vmax.f32 %v8652, 0.0
      %v8685 = vmax.f32 %v8653, 0.0
      %v8686 = vmax.f32 %v8654, 0.0
      %v8687 = vmax.f32 %v8655, 0.0
      %v8688 = vmax.f32 %v8656, 0.0
      %v8689 = vmax.f32 %v8657, 0.0
      %v8690 = vmax.f32 %v8658, 0.0
      %v8691 = vmax.f32 %v8659, 0.0
      %v8692 = vmax.f32 %v8660, 0.0
      %v8693 = vpack.c.bf16 %v8662, %v8661
      %v8694 = vpack.c.bf16 %v8664, %v8663
      %v8695 = vpack.c.bf16 %v8666, %v8665
      %v8696 = vpack.c.bf16 %v8668, %v8667
      %v8697 = vpack.c.bf16 %v8670, %v8669
      %v8698 = vpack.c.bf16 %v8672, %v8671
      %v8699 = vpack.c.bf16 %v8674, %v8673
      %v8700 = vpack.c.bf16 %v8676, %v8675
      %v8701 = vpack.c.bf16 %v8678, %v8677
      %v8702 = vpack.c.bf16 %v8680, %v8679
      %v8703 = vpack.c.bf16 %v8682, %v8681
      %v8704 = vpack.c.bf16 %v8684, %v8683
      %v8705 = vpack.c.bf16 %v8686, %v8685
      %v8706 = vpack.c.bf16 %v8688, %v8687
      %v8707 = vpack.c.bf16 %v8690, %v8689
      %v8708 = vpack.c.bf16 %v8692, %v8691
      %v8725 = vunpack.c.l.b16 %v8693
      %v8726 = vunpack.c.h.b16 %v8693
      %v8727 = vunpack.c.l.b16 %v8694
      %v8728 = vunpack.c.h.b16 %v8694
      %v8729 = vunpack.c.l.b16 %v8695
      %v8730 = vunpack.c.h.b16 %v8695
      %v8731 = vunpack.c.l.b16 %v8696
      %v8732 = vunpack.c.h.b16 %v8696
      %v8733 = vunpack.c.l.b16 %v8697
      %v8734 = vunpack.c.h.b16 %v8697
      %v8735 = vunpack.c.l.b16 %v8698
      %v8736 = vunpack.c.h.b16 %v8698
      %v8737 = vunpack.c.l.b16 %v8699
      %v8738 = vunpack.c.h.b16 %v8699
      %v8739 = vunpack.c.l.b16 %v8700
      %v8740 = vunpack.c.h.b16 %v8700
      %v8741 = vunpack.c.l.b16 %v8701
      %v8742 = vunpack.c.h.b16 %v8701
      %v8743 = vunpack.c.l.b16 %v8702
      %v8744 = vunpack.c.h.b16 %v8702
      %v8745 = vunpack.c.l.b16 %v8703
      %v8746 = vunpack.c.h.b16 %v8703
      %v8747 = vunpack.c.l.b16 %v8704
      %v8748 = vunpack.c.h.b16 %v8704
      %v8749 = vunpack.c.l.b16 %v8705
      %v8750 = vunpack.c.h.b16 %v8705
      %v8751 = vunpack.c.l.b16 %v8706
      %v8752 = vunpack.c.h.b16 %v8706
      %v8753 = vunpack.c.l.b16 %v8707
      %v8754 = vunpack.c.h.b16 %v8707
      %v8755 = vunpack.c.l.b16 %v8708
      %v8756 = vunpack.c.h.b16 %v8708
      %v8757 = vpack.c.b16 %v8725, %v8725
      %v8758 = vpack.c.b16 %v8726, %v8726
      %v8759 = vpack.c.b16 %v8727, %v8727
      %v8760 = vpack.c.b16 %v8728, %v8728
      %v8761 = vpack.c.b16 %v8729, %v8729
      %v8762 = vpack.c.b16 %v8730, %v8730
      %v8763 = vpack.c.b16 %v8731, %v8731
      %v8764 = vpack.c.b16 %v8732, %v8732
      %v8765 = vpack.c.b16 %v8733, %v8733
      %v8766 = vpack.c.b16 %v8734, %v8734
      %v8767 = vpack.c.b16 %v8735, %v8735
      %v8768 = vpack.c.b16 %v8736, %v8736
      %v8769 = vpack.c.b16 %v8737, %v8737
      %v8770 = vpack.c.b16 %v8738, %v8738
      %v8771 = vpack.c.b16 %v8739, %v8739
      %v8772 = vpack.c.b16 %v8740, %v8740
      %v8773 = vpack.c.b16 %v8741, %v8741
      %v8774 = vpack.c.b16 %v8742, %v8742
      %v8775 = vpack.c.b16 %v8743, %v8743
      %v8776 = vpack.c.b16 %v8744, %v8744
      %v8777 = vpack.c.b16 %v8745, %v8745
      %v8778 = vpack.c.b16 %v8746, %v8746
      %v8779 = vpack.c.b16 %v8747, %v8747
      %v8780 = vpack.c.b16 %v8748, %v8748
      %v8781 = vpack.c.b16 %v8749, %v8749
      %v8782 = vpack.c.b16 %v8750, %v8750
      %v8783 = vpack.c.b16 %v8751, %v8751
      %v8784 = vpack.c.b16 %v8752, %v8752
      %v8785 = vpack.c.b16 %v8753, %v8753
      %v8786 = vpack.c.b16 %v8754, %v8754
      %v8787 = vpack.c.b16 %v8755, %v8755
      %v8788 = vpack.c.b16 %v8756, %v8756
      %8821 = vst [vmem:[%s278] sm:$0xf] %v8757
      %8822 = vst [vmem:[%s278 + $0x4] sm:$0xf] %v8758
      %8823 = vst [vmem:[%s278 + $0x8] sm:$0xf] %v8759
      %8824 = vst [vmem:[%s278 + $0xc] sm:$0xf] %v8760
      %8825 = vst [vmem:[%s278 + $0x10] sm:$0xf] %v8761
      %8826 = vst [vmem:[%s278 + $0x14] sm:$0xf] %v8762
      %8827 = vst [vmem:[%s278 + $0x18] sm:$0xf] %v8763
      %8828 = vst [vmem:[%s278 + $0x1c] sm:$0xf] %v8764
      %8829 = vst [vmem:[%s278 + $0x20] sm:$0xf] %v8765
      %8830 = vst [vmem:[%s278 + $0x24] sm:$0xf] %v8766
      %8831 = vst [vmem:[%s278 + $0x28] sm:$0xf] %v8767
      %8832 = vst [vmem:[%s278 + $0x2c] sm:$0xf] %v8768
      %8833 = vst [vmem:[%s278 + $0x30] sm:$0xf] %v8769
      %8834 = vst [vmem:[%s278 + $0x34] sm:$0xf] %v8770
      %8835 = vst [vmem:[%s278 + $0x38] sm:$0xf] %v8771
      %8836 = vst [vmem:[%s278 + $0x3c] sm:$0xf] %v8772
      %8837 = vst [vmem:[%s278 + $0x40] sm:$0xf] %v8773
      %8838 = vst [vmem:[%s278 + $0x44] sm:$0xf] %v8774
      %8839 = vst [vmem:[%s278 + $0x48] sm:$0xf] %v8775
      %8840 = vst [vmem:[%s278 + $0x4c] sm:$0xf] %v8776
      %8841 = vst [vmem:[%s278 + $0x50] sm:$0xf] %v8777
      %8842 = vst [vmem:[%s278 + $0x54] sm:$0xf] %v8778
      %8843 = vst [vmem:[%s278 + $0x58] sm:$0xf] %v8779
      %8844 = vst [vmem:[%s278 + $0x5c] sm:$0xf] %v8780
      %8845 = vst [vmem:[%s278 + $0x60] sm:$0xf] %v8781
      %8846 = vst [vmem:[%s278 + $0x64] sm:$0xf] %v8782
      %8847 = vst [vmem:[%s278 + $0x68] sm:$0xf] %v8783
      %8848 = vst [vmem:[%s278 + $0x6c] sm:$0xf] %v8784
      %8849 = vst [vmem:[%s278 + $0x70] sm:$0xf] %v8785
      %8850 = vst [vmem:[%s278 + $0x74] sm:$0xf] %v8786
      %8851 = vst [vmem:[%s278 + $0x78] sm:$0xf] %v8787
      %8852 = vst [vmem:[%s278 + $0x7c] sm:$0xf] %v8788
      %p8853 = scmp.lt.s32.totalorder %s18, 1
      %s8854 = scalar_select %p8853, %s18, 1
      %s8855 = smul.addr %s8854, 32
      %s8856 = smul.addr %s8855, 4
      %s8857 = scalar_lea.vmem %s7, %s8856
      // Predicated region
      $region49: #{resnet_block_forward.1} parent=47 // pred_check
        %p8858 = pneg %p188
      $region50: #{resnet_block_forward.1} parent=47 // pred_check_branch
        %8860 = sbr.rel (%p8858) target = $region52
      $region51: #{resnet_block_forward.1} parent=47 // pred_region
        _
      $region52: #{resnet_block_forward.1} parent=47 // pred_fallthru
        _
    $region48: #{resnet_block_forward.1} parent=5 // pred_fallthru
      _
    %p8861 = scmp.le.s32.totalorder 2, %s13
    // Predicated region
    $region53: #{resnet_block_forward.1} parent=5 // pred_check
      %p8862 = pneg %p8861
    $region54: #{resnet_block_forward.1} parent=5 // pred_check_branch
      %8864 = sbr.rel (%p8862) target = $region56
    $region55: #{resnet_block_forward.1} parent=5 // pred_region
      %s8865 = ssub.s32 %s13, 2
      // Predicated region
      $region57: #{resnet_block_forward.1} parent=55 // pred_check
        %p8866 = pneg %p194
      $region58: #{resnet_block_forward.1} parent=55 // pred_check_branch
        %8868 = sbr.rel (%p8866) target = $region60
      $region59: #{resnet_block_forward.1} parent=55 // pred_region
        %p8869 = scmp.lt.s32.totalorder %s19, 1
        %s8870 = scalar_select %p8869, %s19, 1
        %s8871 = smul.addr %s8870, 32
        %s8872 = smul.addr %s8871, 4
        %s8873 = scalar_lea.vmem %s7, %s8872
      $region60: #{resnet_block_forward.1} parent=55 // pred_fallthru
        _
    $region56: #{resnet_block_forward.1} parent=5 // pred_fallthru
      _
  $region6: #{resnet_block_forward.1} parent=0 // loop_footer
    %s17 = sadd.s32 1, %s13
  $region7: #{resnet_block_forward.1} parent=0 // loop_footer_branch
    %12 = sbr.rel target = $region3
  $region8: #{resnet_block_forward.1} parent=0 // loop_exit
    _

</llo_original>
